<compile_context>
chip_gen: v6e
topology: v6e:2x2x1
jax: 0.10.0
libtpu: 0.0.40
codegen_flags: <defaults>
</compile_context>

<pallas_src>
import jax
import jax.numpy as jnp
from jax.experimental import pallas as pl
from jax.experimental.pallas import tpu as pltpu

EPS = 1e-5
VMEM_SPEC = pl.BlockSpec(memory_space=pltpu.MemorySpace.VMEM)
ANY_SPEC = pl.BlockSpec(memory_space=pl.ANY)


# ---------------------------------------------------------------------------
# Fused Pallas kernel: the whole EncoderZ forward
# ---------------------------------------------------------------------------
def encoder_z_kernel(xcls_ref, mask_ref, w1_ref, g1_ref, be1_ref,
                     w2_ref, g2_ref, be2_ref,
                     w3_hbm, g3_ref, be3_ref,
                     w4_ref, b4_ref,
                     o_ref,
                     y2_scr, r2_scr, w3_vmem, w3_sem):
    f32 = jnp.float32
    B = o_ref.shape[0]
    nrow = 64 * B                 # 8x8 padded output grid x batch
    n1 = 4 * B * 49               # valid conv1 output elements per channel
    n2 = B * 49                   # valid conv2 output elements per channel

    # Kick off the fc1-weight DMA (~3.2 MB) so it overlaps the conv stages.
    w3_copy = pltpu.make_async_copy(w3_hbm, w3_vmem, w3_sem)
    w3_copy.start()

    # ---------------- conv1 + BatchNorm2d(32) + ReLU  (MXU) -----------------
    # xcls rows = class*(64B) + (p*8+q)*B + b, 16 taps per row; rows at padded
    # grid positions (p==7 or q==7) are all-zero.
    acc1 = jnp.dot(xcls_ref[...], w1_ref[...], preferred_element_type=f32)
    # single-pass train-mode stats; pad rows are exactly zero (no conv bias,
    # which BN's mean subtraction cancels anyway), so plain sums / n1 are exact.
    s1 = jnp.sum(acc1, axis=0, keepdims=True)
    q1 = jnp.sum(acc1 * acc1, axis=0, keepdims=True)
    m1 = s1 / n1
    v1 = q1 / n1 - m1 * m1
    y1 = jnp.maximum((acc1 - m1) * jax.lax.rsqrt(v1 + EPS) * g1_ref[...]
                     + be1_ref[...], 0.0)

    # Scatter the 4 stride-2 parity classes into the zero-padded
    # space-to-depth buffer:  row = (P*8+Q)*B + b,  lane = (2r+s)*32 + c,
    # value = bn_relu(conv1)_padded[b, 2P+r, 2Q+s, c].
    mask = mask_ref[...]                                 # (64B,1), 0 at pad pos
    y2_scr[...] = jnp.zeros_like(y2_scr)
    for k, (off, lo) in enumerate(((0, 96), (B, 64), (8 * B, 32), (9 * B, 0))):
        y1k = (y1[k * nrow:(k + 1) * nrow, :] * mask).astype(jnp.bfloat16)
        y2_scr[off:off + nrow, lo:lo + 32] = y1k

    # ---------------- conv2 + BatchNorm2d(64) + ReLU  (MXU) -----------------
    # 4x4 / stride-2 window == 4 shifted K=128 bf16 matmuls with M = 64*B,
    # accumulated in registers (f32).
    acc2 = jnp.zeros((nrow, 64), f32)
    for a in range(2):
        for bb in range(2):
            off = (a * 8 + bb) * B
            acc2 = acc2 + jnp.dot(y2_scr[off:off + nrow, :], w2_ref[2 * a + bb],
                                  preferred_element_type=f32)

    # masked single-pass stats: rows with ho==7 or wo==7 are off-image garbage.
    a2m = acc2 * mask
    m2 = jnp.sum(a2m, axis=0, keepdims=True) / n2
    v2 = jnp.sum(a2m * acc2, axis=0, keepdims=True) / n2 - m2 * m2
    y2v = jnp.maximum((acc2 - m2) * jax.lax.rsqrt(v2 + EPS) * g2_ref[...]
                      + be2_ref[...], 0.0)
    r2_scr[...] = y2v.astype(jnp.bfloat16)

    # ------------- flatten to (B, 3136) lanes for the fc head ---------------
    # Rows are position-major / batch-minor, so the NCHW-folded fc1 layout
    # z[b, (ho*7+wo)*64 + c] is 49 contiguous row slices lane-concatenated
    # (the fc1 weight rows were permuted to match at parameter-prep time).
    z = jnp.concatenate(
        [r2_scr[(ho * 8 + wo) * B:(ho * 8 + wo) * B + B, :]
         for ho in range(7) for wo in range(7)], axis=1)        # (B,3136) bf16

    # ---------- fc1(3136->512) + BatchNorm1d(512) + ReLU + fc2 --------------
    w3_copy.wait()
    h = jnp.dot(z, w3_vmem[...], preferred_element_type=f32)    # (B,512) f32
    m3 = jnp.sum(h, axis=0, keepdims=True) / B
    v3 = jnp.sum(h * h, axis=0, keepdims=True) / B - m3 * m3
    h = jnp.maximum((h - m3) * jax.lax.rsqrt(v3 + EPS) * g3_ref[...]
                    + be3_ref[...], 0.0)
    o_ref[...] = jnp.dot(h.astype(jnp.bfloat16), w4_ref[...],
                         preferred_element_type=f32) + b4_ref[...]


# ---------------------------------------------------------------------------
# Host-side input layout prep (pure layout glue on the tiny 28x28 input)
# ---------------------------------------------------------------------------
def _prep_input(x_nchw):
    """(B,1,28,28) f32 -> (4*64*B, 16) f32.

    The four output-parity classes of the 4x4 / stride-2 / pad-1 conv, each as
    non-overlapping 4x4 input patches on an 8x8 zero-padded output grid,
    ordered row = class*(64B) + (p*8+q)*B + b (position-major, batch-minor).
    Kept in float32 so conv1 matches the fp32 PyTorch reference.
    """
    B = x_nchw.shape[0]
    xp = jnp.pad(x_nchw[:, 0], ((0, 0), (1, 1), (1, 1)))            # (B,30,30)
    cls = []
    for ro, co in ((0, 0), (0, 2), (2, 0), (2, 2)):
        s = xp[:, ro:ro + 28, co:co + 28]
        s = s.reshape(B, 7, 4, 7, 4).transpose(0, 1, 3, 2, 4).reshape(B, 7, 7, 16)
        s = jnp.pad(s, ((0, 0), (0, 1), (0, 1), (0, 0)))            # (B,8,8,16)
        cls.append(jnp.transpose(s, (1, 2, 0, 3)).reshape(64 * B, 16))
    return jnp.concatenate(cls, axis=0)


# ---------------------------------------------------------------------------
# Parameter construction: synthesize in PyTorch layout, pre-pack for kernel
# ---------------------------------------------------------------------------
def make_params(key, input_channel=1, dim_output=10):
    assert input_channel == 1 and dim_output <= 128
    ks = jax.random.split(key, 4)
    # PyTorch-layout tensors.  conv1/conv2/fc1 biases are omitted: they feed
    # straight into training-mode BatchNorm, whose mean subtraction cancels
    # them exactly, so they are dead work in the kernel.
    w1t = 0.1 * jax.random.normal(ks[0], (32, input_channel, 4, 4), jnp.float32)
    w2t = 0.05 * jax.random.normal(ks[1], (64, 32, 4, 4), jnp.float32)
    w3t = 0.02 * jax.random.normal(ks[2], (512, 7 * 7 * 64), jnp.float32)
    w4t = 0.02 * jax.random.normal(ks[3], (dim_output, 512), jnp.float32)
    b4t = jnp.zeros((dim_output,), jnp.float32)

    p = {}
    # conv1: (Cout,Cin,4,4) -> (16,32); rows = kh*4+kw taps, cols = Cout lanes.
    p["w1"] = jnp.transpose(w1t.reshape(32, 16), (1, 0))
    p["g1"] = jnp.ones((1, 32), jnp.float32)
    p["beta1"] = jnp.zeros((1, 32), jnp.float32)
    # conv2: (Cout,Cin,4,4) -> (4,128,64): [2a+b, (2r+s)*32+ci, co], kh=2a+r, kw=2b+s.
    w2r = w2t.reshape(64, 32, 2, 2, 2, 2)                # (co, ci, a, r, b, s)
    p["w2"] = jnp.transpose(w2r, (2, 4, 3, 5, 1, 0)).reshape(4, 128, 64).astype(jnp.bfloat16)
    p["g2"] = jnp.ones((1, 64), jnp.float32)
    p["beta2"] = jnp.zeros((1, 64), jnp.float32)
    # fc1: fold PyTorch's NCHW flatten order into the rows: row = (ho*7+wo)*64 + c.
    w3r = jnp.transpose(w3t.reshape(512, 64, 7, 7), (2, 3, 1, 0))   # (ho,wo,c,d)
    p["w3"] = w3r.reshape(3136, 512).astype(jnp.bfloat16)
    p["g3"] = jnp.ones((1, 512), jnp.float32)
    p["beta3"] = jnp.zeros((1, 512), jnp.float32)
    # fc2: transpose and pad 10 -> 128 output lanes (lane-dense final store).
    p["w4"] = jnp.pad(jnp.transpose(w4t, (1, 0)),
                      ((0, 0), (0, 128 - dim_output))).astype(jnp.bfloat16)
    p["b4"] = jnp.pad(b4t, (0, 128 - dim_output)).reshape(1, 128)
    return p


# ---------------------------------------------------------------------------
# Forward pass (single fused pallas_call)
# ---------------------------------------------------------------------------
def encoder_z_forward(x_nchw, p):
    B = x_nchw.shape[0]
    xcls = _prep_input(x_nchw)                                    # (4*64*B,16) f32
    pos = jnp.arange(64, dtype=jnp.int32)
    valid = ((pos % 8) < 7) & ((pos // 8) < 7)                    # 8x8 grid -> 7x7 valid
    mask = jnp.repeat(valid, B).astype(jnp.float32).reshape(64 * B, 1)

    flops = (2 * 4 * 64 * B * 16 * 32          # conv1
             + 2 * 4 * 64 * B * 128 * 64       # conv2
             + 2 * B * 3136 * 512              # fc1
             + 2 * B * 512 * 128)              # fc2 (padded)
    bytes_accessed = (xcls.size * 4 + p["w2"].size * 2 + p["w3"].size * 2
                      + p["w4"].size * 2 + B * 128 * 4)

    out = pl.pallas_call(
        encoder_z_kernel,
        out_shape=jax.ShapeDtypeStruct((B, 128), jnp.float32),
        in_specs=[VMEM_SPEC] * 8 + [ANY_SPEC] + [VMEM_SPEC] * 4,
        out_specs=VMEM_SPEC,
        scratch_shapes=[
            pltpu.VMEM((80 * B, 128), jnp.bfloat16),   # s2d conv1 activations (bf16)
            pltpu.VMEM((64 * B, 64), jnp.bfloat16),    # conv2 BN+ReLU output (bf16)
            pltpu.VMEM((3136, 512), jnp.bfloat16),     # fc1 weight landing buffer
            pltpu.SemaphoreType.DMA,                   # fc1 weight DMA completion
        ],
        compiler_params=pltpu.CompilerParams(vmem_limit_bytes=32 * 1024 * 1024),
        cost_estimate=pl.CostEstimate(flops=flops, transcendentals=640,
                                      bytes_accessed=bytes_accessed),
    )(xcls, mask, p["w1"], p["g1"], p["beta1"],
      p["w2"], p["g2"], p["beta2"],
      p["w3"], p["g3"], p["beta3"],
      p["w4"], p["b4"])
    # TODO(synk): for large batches, add a batch-tiled grid with
    # dimension_semantics=("parallel",) and a two-pass (partial-stat) BatchNorm
    # so v7x can spread rows across its two TensorCores.
    return out[:, :10]


if __name__ == "__main__":
    key = jax.random.PRNGKey(0)
    k_x, k_p = jax.random.split(key)
    # Module geometry requires 28x28 inputs (fc expects 7*7*64); batch kept small.
    x = jax.random.normal(k_x, (2, 1, 28, 28), jnp.float32)
    params = make_params(k_p, input_channel=1, dim_output=10)

    out = jax.jit(encoder_z_forward)(x, params)
    out = jax.block_until_ready(out)
    assert out.shape == (2, 10) and out.dtype == jnp.float32
    assert bool(jnp.all(jnp.isfinite(out)))
    print("KERNEL_OK")
</pallas_src>

<mosaic_0001>
module attributes {stable_mosaic.version = 11 : i64} {
  func.func @encoder_z_kernel(%arg0: memref<512x16xf32, #tpu.memory_space<vmem>>, %arg1: memref<128x1xf32, #tpu.memory_space<vmem>>, %arg2: memref<16x32xf32, #tpu.memory_space<vmem>>, %arg3: memref<1x32xf32, #tpu.memory_space<vmem>>, %arg4: memref<1x32xf32, #tpu.memory_space<vmem>>, %arg5: memref<4x128x64xbf16, #tpu.memory_space<vmem>>, %arg6: memref<1x64xf32, #tpu.memory_space<vmem>>, %arg7: memref<1x64xf32, #tpu.memory_space<vmem>>, %arg8: memref<3136x512xbf16, #tpu.memory_space<any>>, %arg9: memref<1x512xf32, #tpu.memory_space<vmem>>, %arg10: memref<1x512xf32, #tpu.memory_space<vmem>>, %arg11: memref<512x128xbf16, #tpu.memory_space<vmem>>, %arg12: memref<1x128xf32, #tpu.memory_space<vmem>>, %arg13: memref<2x128xf32, #tpu.memory_space<vmem>>, %arg14: memref<160x128xbf16, #tpu.memory_space<vmem>>, %arg15: memref<128x64xbf16, #tpu.memory_space<vmem>>, %arg16: memref<3136x512xbf16, #tpu.memory_space<vmem>>, %arg17: memref<!tpu.dma_semaphore, #tpu.memory_space<semaphore_mem>>) attributes {dimension_semantics = [], scalar_prefetch = 0 : i64, scratch_operands = 4 : i64, tpu.core_type = #tpu.core_type<tc>} {
    tpu.enqueue_dma source(%arg8 : memref<3136x512xbf16, #tpu.memory_space<any>>) target(%arg16 : memref<3136x512xbf16, #tpu.memory_space<vmem>>) target_semaphore(%arg17 : memref<!tpu.dma_semaphore, #tpu.memory_space<semaphore_mem>>)
    %c0 = arith.constant 0 : index
    %c0_0 = arith.constant 0 : index
    %0 = vector.load %arg0[%c0, %c0_0] : memref<512x16xf32, #tpu.memory_space<vmem>>, vector<512x16xf32>
    %c0_1 = arith.constant 0 : index
    %c0_2 = arith.constant 0 : index
    %1 = vector.load %arg2[%c0_1, %c0_2] : memref<16x32xf32, #tpu.memory_space<vmem>>, vector<16x32xf32>
    %cst = arith.constant dense<0.000000e+00> : vector<512x32xf32>
    %2 = tpu.matmul %0, %1, %cst {dimension_numbers = #tpu.dot_dimension_numbers<[1], [0], [0], [1], [0, 0, 1, 1], [], []>} : vector<512x16xf32>, vector<16x32xf32>, vector<512x32xf32> -> vector<512x32xf32>
    %cst_3 = arith.constant dense<0.000000e+00> : vector<32xf32>
    %3 = vector.multi_reduction <add>, %2, %cst_3 [0] : vector<512x32xf32> to vector<32xf32>
    %4 = vector.shape_cast %3 : vector<32xf32> to vector<1x32xf32>
    %5 = arith.mulf %2, %2 : vector<512x32xf32>
    %cst_4 = arith.constant dense<0.000000e+00> : vector<32xf32>
    %6 = vector.multi_reduction <add>, %5, %cst_4 [0] : vector<512x32xf32> to vector<32xf32>
    %7 = vector.shape_cast %6 : vector<32xf32> to vector<1x32xf32>
    %cst_5 = arith.constant 3.920000e+02 : f32
    %8 = vector.broadcast %cst_5 : f32 to vector<1x32xf32>
    %9 = arith.divf %4, %8 : vector<1x32xf32>
    %cst_6 = arith.constant 3.920000e+02 : f32
    %10 = vector.broadcast %cst_6 : f32 to vector<1x32xf32>
    %11 = arith.divf %7, %10 : vector<1x32xf32>
    %12 = arith.mulf %9, %9 : vector<1x32xf32>
    %13 = arith.subf %11, %12 : vector<1x32xf32>
    %14 = vector.broadcast %9 : vector<1x32xf32> to vector<512x32xf32>
    %15 = arith.subf %2, %14 : vector<512x32xf32>
    %cst_7 = arith.constant 9.99999974E-6 : f32
    %16 = vector.broadcast %cst_7 : f32 to vector<1x32xf32>
    %17 = arith.addf %13, %16 : vector<1x32xf32>
    %18 = math.rsqrt %17 : vector<1x32xf32>
    %19 = vector.broadcast %18 : vector<1x32xf32> to vector<512x32xf32>
    %20 = arith.mulf %15, %19 : vector<512x32xf32>
    %c0_8 = arith.constant 0 : index
    %c0_9 = arith.constant 0 : index
    %21 = vector.load %arg3[%c0_8, %c0_9] : memref<1x32xf32, #tpu.memory_space<vmem>>, vector<1x32xf32>
    %22 = vector.broadcast %21 : vector<1x32xf32> to vector<512x32xf32>
    %23 = arith.mulf %20, %22 : vector<512x32xf32>
    %c0_10 = arith.constant 0 : index
    %c0_11 = arith.constant 0 : index
    %24 = vector.load %arg4[%c0_10, %c0_11] : memref<1x32xf32, #tpu.memory_space<vmem>>, vector<1x32xf32>
    %25 = vector.broadcast %24 : vector<1x32xf32> to vector<512x32xf32>
    %26 = arith.addf %23, %25 : vector<512x32xf32>
    %cst_12 = arith.constant 0.000000e+00 : f32
    %27 = vector.broadcast %cst_12 : f32 to vector<512x32xf32>
    %28 = arith.maximumf %26, %27 : vector<512x32xf32>
    %c0_13 = arith.constant 0 : index
    %c0_14 = arith.constant 0 : index
    %29 = vector.load %arg1[%c0_13, %c0_14] : memref<128x1xf32, #tpu.memory_space<vmem>>, vector<128x1xf32>
    %cst_15 = arith.constant 0.000000e+00 : bf16
    %30 = vector.broadcast %cst_15 : bf16 to vector<160x128xbf16>
    %c0_16 = arith.constant 0 : index
    %c0_17 = arith.constant 0 : index
    %31 = vector.load %arg14[%c0_16, %c0_17] : memref<160x128xbf16, #tpu.memory_space<vmem>>, vector<160x128xbf16>
    tpu.vector_store %arg14[%c0_16, %c0_17], %30 {strides = array<i32>} : memref<160x128xbf16, #tpu.memory_space<vmem>>, vector<160x128xbf16>,
    %32 = vector.extract_strided_slice %28 {offsets = [0, 0], sizes = [128, 32], strides = [1, 1]} : vector<512x32xf32> to vector<128x32xf32>
    %33 = vector.broadcast %29 : vector<128x1xf32> to vector<128x32xf32>
    %34 = arith.mulf %32, %33 : vector<128x32xf32>
    %35 = arith.truncf %34 : vector<128x32xf32> to vector<128x32xbf16>
    %c0_18 = arith.constant 0 : index
    %c96 = arith.constant 96 : index
    %36 = vector.load %arg14[%c0_18, %c96] : memref<160x128xbf16, #tpu.memory_space<vmem>>, vector<128x32xbf16>
    tpu.vector_store %arg14[%c0_18, %c96], %35 {strides = array<i32>} : memref<160x128xbf16, #tpu.memory_space<vmem>>, vector<128x32xbf16>,
    %37 = vector.extract_strided_slice %28 {offsets = [128, 0], sizes = [128, 32], strides = [1, 1]} : vector<512x32xf32> to vector<128x32xf32>
    %38 = vector.broadcast %29 : vector<128x1xf32> to vector<128x32xf32>
    %39 = arith.mulf %37, %38 : vector<128x32xf32>
    %40 = arith.truncf %39 : vector<128x32xf32> to vector<128x32xbf16>
    %c2 = arith.constant 2 : index
    %c64 = arith.constant 64 : index
    %41 = vector.load %arg14[%c2, %c64] : memref<160x128xbf16, #tpu.memory_space<vmem>>, vector<128x32xbf16>
    tpu.vector_store %arg14[%c2, %c64], %40 {strides = array<i32>} : memref<160x128xbf16, #tpu.memory_space<vmem>>, vector<128x32xbf16>,
    %42 = vector.extract_strided_slice %28 {offsets = [256, 0], sizes = [128, 32], strides = [1, 1]} : vector<512x32xf32> to vector<128x32xf32>
    %43 = vector.broadcast %29 : vector<128x1xf32> to vector<128x32xf32>
    %44 = arith.mulf %42, %43 : vector<128x32xf32>
    %45 = arith.truncf %44 : vector<128x32xf32> to vector<128x32xbf16>
    %c16 = arith.constant 16 : index
    %c32 = arith.constant 32 : index
    %46 = vector.load %arg14[%c16, %c32] : memref<160x128xbf16, #tpu.memory_space<vmem>>, vector<128x32xbf16>
    tpu.vector_store %arg14[%c16, %c32], %45 {strides = array<i32>} : memref<160x128xbf16, #tpu.memory_space<vmem>>, vector<128x32xbf16>,
    %47 = vector.extract_strided_slice %28 {offsets = [384, 0], sizes = [128, 32], strides = [1, 1]} : vector<512x32xf32> to vector<128x32xf32>
    %48 = vector.broadcast %29 : vector<128x1xf32> to vector<128x32xf32>
    %49 = arith.mulf %47, %48 : vector<128x32xf32>
    %50 = arith.truncf %49 : vector<128x32xf32> to vector<128x32xbf16>
    %c18 = arith.constant 18 : index
    %c0_19 = arith.constant 0 : index
    %51 = vector.load %arg14[%c18, %c0_19] : memref<160x128xbf16, #tpu.memory_space<vmem>>, vector<128x32xbf16>
    tpu.vector_store %arg14[%c18, %c0_19], %50 {strides = array<i32>} : memref<160x128xbf16, #tpu.memory_space<vmem>>, vector<128x32xbf16>,
    %cst_20 = arith.constant 0.000000e+00 : f32
    %52 = vector.broadcast %cst_20 : f32 to vector<128x64xf32>
    %c0_21 = arith.constant 0 : index
    %c0_22 = arith.constant 0 : index
    %53 = vector.load %arg14[%c0_21, %c0_22] : memref<160x128xbf16, #tpu.memory_space<vmem>>, vector<128x128xbf16>
    %c0_23 = arith.constant 0 : index
    %c0_24 = arith.constant 0 : index
    %c0_25 = arith.constant 0 : index
    %54 = vector.load %arg5[%c0_23, %c0_24, %c0_25] : memref<4x128x64xbf16, #tpu.memory_space<vmem>>, vector<1x128x64xbf16>
    %55 = vector.shape_cast %54 : vector<1x128x64xbf16> to vector<128x64xbf16>
    %cst_26 = arith.constant dense<0.000000e+00> : vector<128x64xf32>
    %56 = tpu.matmul %53, %55, %cst_26 {dimension_numbers = #tpu.dot_dimension_numbers<[1], [0], [0], [1], [0, 0, 1, 1], [], []>} : vector<128x128xbf16>, vector<128x64xbf16>, vector<128x64xf32> -> vector<128x64xf32>
    %57 = arith.addf %52, %56 : vector<128x64xf32>
    %c2_27 = arith.constant 2 : index
    %c0_28 = arith.constant 0 : index
    %58 = vector.load %arg14[%c2_27, %c0_28] : memref<160x128xbf16, #tpu.memory_space<vmem>>, vector<128x128xbf16>
    %c1 = arith.constant 1 : index
    %c0_29 = arith.constant 0 : index
    %c0_30 = arith.constant 0 : index
    %59 = vector.load %arg5[%c1, %c0_29, %c0_30] : memref<4x128x64xbf16, #tpu.memory_space<vmem>>, vector<1x128x64xbf16>
    %60 = vector.shape_cast %59 : vector<1x128x64xbf16> to vector<128x64xbf16>
    %cst_31 = arith.constant dense<0.000000e+00> : vector<128x64xf32>
    %61 = tpu.matmul %58, %60, %cst_31 {dimension_numbers = #tpu.dot_dimension_numbers<[1], [0], [0], [1], [0, 0, 1, 1], [], []>} : vector<128x128xbf16>, vector<128x64xbf16>, vector<128x64xf32> -> vector<128x64xf32>
    %62 = arith.addf %57, %61 : vector<128x64xf32>
    %c16_32 = arith.constant 16 : index
    %c0_33 = arith.constant 0 : index
    %63 = vector.load %arg14[%c16_32, %c0_33] : memref<160x128xbf16, #tpu.memory_space<vmem>>, vector<128x128xbf16>
    %c2_34 = arith.constant 2 : index
    %c0_35 = arith.constant 0 : index
    %c0_36 = arith.constant 0 : index
    %64 = vector.load %arg5[%c2_34, %c0_35, %c0_36] : memref<4x128x64xbf16, #tpu.memory_space<vmem>>, vector<1x128x64xbf16>
    %65 = vector.shape_cast %64 : vector<1x128x64xbf16> to vector<128x64xbf16>
    %cst_37 = arith.constant dense<0.000000e+00> : vector<128x64xf32>
    %66 = tpu.matmul %63, %65, %cst_37 {dimension_numbers = #tpu.dot_dimension_numbers<[1], [0], [0], [1], [0, 0, 1, 1], [], []>} : vector<128x128xbf16>, vector<128x64xbf16>, vector<128x64xf32> -> vector<128x64xf32>
    %67 = arith.addf %62, %66 : vector<128x64xf32>
    %c18_38 = arith.constant 18 : index
    %c0_39 = arith.constant 0 : index
    %68 = vector.load %arg14[%c18_38, %c0_39] : memref<160x128xbf16, #tpu.memory_space<vmem>>, vector<128x128xbf16>
    %c3 = arith.constant 3 : index
    %c0_40 = arith.constant 0 : index
    %c0_41 = arith.constant 0 : index
    %69 = vector.load %arg5[%c3, %c0_40, %c0_41] : memref<4x128x64xbf16, #tpu.memory_space<vmem>>, vector<1x128x64xbf16>
    %70 = vector.shape_cast %69 : vector<1x128x64xbf16> to vector<128x64xbf16>
    %cst_42 = arith.constant dense<0.000000e+00> : vector<128x64xf32>
    %71 = tpu.matmul %68, %70, %cst_42 {dimension_numbers = #tpu.dot_dimension_numbers<[1], [0], [0], [1], [0, 0, 1, 1], [], []>} : vector<128x128xbf16>, vector<128x64xbf16>, vector<128x64xf32> -> vector<128x64xf32>
    %72 = arith.addf %67, %71 : vector<128x64xf32>
    %73 = vector.broadcast %29 : vector<128x1xf32> to vector<128x64xf32>
    %74 = arith.mulf %72, %73 : vector<128x64xf32>
    %cst_43 = arith.constant dense<0.000000e+00> : vector<64xf32>
    %75 = vector.multi_reduction <add>, %74, %cst_43 [0] : vector<128x64xf32> to vector<64xf32>
    %76 = vector.shape_cast %75 : vector<64xf32> to vector<1x64xf32>
    %cst_44 = arith.constant 9.800000e+01 : f32
    %77 = vector.broadcast %cst_44 : f32 to vector<1x64xf32>
    %78 = arith.divf %76, %77 : vector<1x64xf32>
    %79 = arith.mulf %74, %72 : vector<128x64xf32>
    %cst_45 = arith.constant dense<0.000000e+00> : vector<64xf32>
    %80 = vector.multi_reduction <add>, %79, %cst_45 [0] : vector<128x64xf32> to vector<64xf32>
    %81 = vector.shape_cast %80 : vector<64xf32> to vector<1x64xf32>
    %cst_46 = arith.constant 9.800000e+01 : f32
    %82 = vector.broadcast %cst_46 : f32 to vector<1x64xf32>
    %83 = arith.divf %81, %82 : vector<1x64xf32>
    %84 = arith.mulf %78, %78 : vector<1x64xf32>
    %85 = arith.subf %83, %84 : vector<1x64xf32>
    %86 = vector.broadcast %78 : vector<1x64xf32> to vector<128x64xf32>
    %87 = arith.subf %72, %86 : vector<128x64xf32>
    %cst_47 = arith.constant 9.99999974E-6 : f32
    %88 = vector.broadcast %cst_47 : f32 to vector<1x64xf32>
    %89 = arith.addf %85, %88 : vector<1x64xf32>
    %90 = math.rsqrt %89 : vector<1x64xf32>
    %91 = vector.broadcast %90 : vector<1x64xf32> to vector<128x64xf32>
    %92 = arith.mulf %87, %91 : vector<128x64xf32>
    %c0_48 = arith.constant 0 : index
    %c0_49 = arith.constant 0 : index
    %93 = vector.load %arg6[%c0_48, %c0_49] : memref<1x64xf32, #tpu.memory_space<vmem>>, vector<1x64xf32>
    %94 = vector.broadcast %93 : vector<1x64xf32> to vector<128x64xf32>
    %95 = arith.mulf %92, %94 : vector<128x64xf32>
    %c0_50 = arith.constant 0 : index
    %c0_51 = arith.constant 0 : index
    %96 = vector.load %arg7[%c0_50, %c0_51] : memref<1x64xf32, #tpu.memory_space<vmem>>, vector<1x64xf32>
    %97 = vector.broadcast %96 : vector<1x64xf32> to vector<128x64xf32>
    %98 = arith.addf %95, %97 : vector<128x64xf32>
    %cst_52 = arith.constant 0.000000e+00 : f32
    %99 = vector.broadcast %cst_52 : f32 to vector<128x64xf32>
    %100 = arith.maximumf %98, %99 : vector<128x64xf32>
    %101 = arith.truncf %100 : vector<128x64xf32> to vector<128x64xbf16>
    %c0_53 = arith.constant 0 : index
    %c0_54 = arith.constant 0 : index
    %102 = vector.load %arg15[%c0_53, %c0_54] : memref<128x64xbf16, #tpu.memory_space<vmem>>, vector<128x64xbf16>
    tpu.vector_store %arg15[%c0_53, %c0_54], %101 {strides = array<i32>} : memref<128x64xbf16, #tpu.memory_space<vmem>>, vector<128x64xbf16>,
    %c0_55 = arith.constant 0 : index
    %c0_56 = arith.constant 0 : index
    %103 = vector.load %arg15[%c0_55, %c0_56] : memref<128x64xbf16, #tpu.memory_space<vmem>>, vector<2x64xbf16>
    %c2_57 = arith.constant 2 : index
    %c0_58 = arith.constant 0 : index
    %104 = vector.load %arg15[%c2_57, %c0_58] : memref<128x64xbf16, #tpu.memory_space<vmem>>, vector<2x64xbf16>
    %c4 = arith.constant 4 : index
    %c0_59 = arith.constant 0 : index
    %105 = vector.load %arg15[%c4, %c0_59] : memref<128x64xbf16, #tpu.memory_space<vmem>>, vector<2x64xbf16>
    %c6 = arith.constant 6 : index
    %c0_60 = arith.constant 0 : index
    %106 = vector.load %arg15[%c6, %c0_60] : memref<128x64xbf16, #tpu.memory_space<vmem>>, vector<2x64xbf16>
    %c8 = arith.constant 8 : index
    %c0_61 = arith.constant 0 : index
    %107 = vector.load %arg15[%c8, %c0_61] : memref<128x64xbf16, #tpu.memory_space<vmem>>, vector<2x64xbf16>
    %c10 = arith.constant 10 : index
    %c0_62 = arith.constant 0 : index
    %108 = vector.load %arg15[%c10, %c0_62] : memref<128x64xbf16, #tpu.memory_space<vmem>>, vector<2x64xbf16>
    %c12 = arith.constant 12 : index
    %c0_63 = arith.constant 0 : index
    %109 = vector.load %arg15[%c12, %c0_63] : memref<128x64xbf16, #tpu.memory_space<vmem>>, vector<2x64xbf16>
    %c16_64 = arith.constant 16 : index
    %c0_65 = arith.constant 0 : index
    %110 = vector.load %arg15[%c16_64, %c0_65] : memref<128x64xbf16, #tpu.memory_space<vmem>>, vector<2x64xbf16>
    %c18_66 = arith.constant 18 : index
    %c0_67 = arith.constant 0 : index
    %111 = vector.load %arg15[%c18_66, %c0_67] : memref<128x64xbf16, #tpu.memory_space<vmem>>, vector<2x64xbf16>
    %c20 = arith.constant 20 : index
    %c0_68 = arith.constant 0 : index
    %112 = vector.load %arg15[%c20, %c0_68] : memref<128x64xbf16, #tpu.memory_space<vmem>>, vector<2x64xbf16>
    %c22 = arith.constant 22 : index
    %c0_69 = arith.constant 0 : index
    %113 = vector.load %arg15[%c22, %c0_69] : memref<128x64xbf16, #tpu.memory_space<vmem>>, vector<2x64xbf16>
    %c24 = arith.constant 24 : index
    %c0_70 = arith.constant 0 : index
    %114 = vector.load %arg15[%c24, %c0_70] : memref<128x64xbf16, #tpu.memory_space<vmem>>, vector<2x64xbf16>
    %c26 = arith.constant 26 : index
    %c0_71 = arith.constant 0 : index
    %115 = vector.load %arg15[%c26, %c0_71] : memref<128x64xbf16, #tpu.memory_space<vmem>>, vector<2x64xbf16>
    %c28 = arith.constant 28 : index
    %c0_72 = arith.constant 0 : index
    %116 = vector.load %arg15[%c28, %c0_72] : memref<128x64xbf16, #tpu.memory_space<vmem>>, vector<2x64xbf16>
    %c32_73 = arith.constant 32 : index
    %c0_74 = arith.constant 0 : index
    %117 = vector.load %arg15[%c32_73, %c0_74] : memref<128x64xbf16, #tpu.memory_space<vmem>>, vector<2x64xbf16>
    %c34 = arith.constant 34 : index
    %c0_75 = arith.constant 0 : index
    %118 = vector.load %arg15[%c34, %c0_75] : memref<128x64xbf16, #tpu.memory_space<vmem>>, vector<2x64xbf16>
    %c36 = arith.constant 36 : index
    %c0_76 = arith.constant 0 : index
    %119 = vector.load %arg15[%c36, %c0_76] : memref<128x64xbf16, #tpu.memory_space<vmem>>, vector<2x64xbf16>
    %c38 = arith.constant 38 : index
    %c0_77 = arith.constant 0 : index
    %120 = vector.load %arg15[%c38, %c0_77] : memref<128x64xbf16, #tpu.memory_space<vmem>>, vector<2x64xbf16>
    %c40 = arith.constant 40 : index
    %c0_78 = arith.constant 0 : index
    %121 = vector.load %arg15[%c40, %c0_78] : memref<128x64xbf16, #tpu.memory_space<vmem>>, vector<2x64xbf16>
    %c42 = arith.constant 42 : index
    %c0_79 = arith.constant 0 : index
    %122 = vector.load %arg15[%c42, %c0_79] : memref<128x64xbf16, #tpu.memory_space<vmem>>, vector<2x64xbf16>
    %c44 = arith.constant 44 : index
    %c0_80 = arith.constant 0 : index
    %123 = vector.load %arg15[%c44, %c0_80] : memref<128x64xbf16, #tpu.memory_space<vmem>>, vector<2x64xbf16>
    %c48 = arith.constant 48 : index
    %c0_81 = arith.constant 0 : index
    %124 = vector.load %arg15[%c48, %c0_81] : memref<128x64xbf16, #tpu.memory_space<vmem>>, vector<2x64xbf16>
    %c50 = arith.constant 50 : index
    %c0_82 = arith.constant 0 : index
    %125 = vector.load %arg15[%c50, %c0_82] : memref<128x64xbf16, #tpu.memory_space<vmem>>, vector<2x64xbf16>
    %c52 = arith.constant 52 : index
    %c0_83 = arith.constant 0 : index
    %126 = vector.load %arg15[%c52, %c0_83] : memref<128x64xbf16, #tpu.memory_space<vmem>>, vector<2x64xbf16>
    %c54 = arith.constant 54 : index
    %c0_84 = arith.constant 0 : index
    %127 = vector.load %arg15[%c54, %c0_84] : memref<128x64xbf16, #tpu.memory_space<vmem>>, vector<2x64xbf16>
    %c56 = arith.constant 56 : index
    %c0_85 = arith.constant 0 : index
    %128 = vector.load %arg15[%c56, %c0_85] : memref<128x64xbf16, #tpu.memory_space<vmem>>, vector<2x64xbf16>
    %c58 = arith.constant 58 : index
    %c0_86 = arith.constant 0 : index
    %129 = vector.load %arg15[%c58, %c0_86] : memref<128x64xbf16, #tpu.memory_space<vmem>>, vector<2x64xbf16>
    %c60 = arith.constant 60 : index
    %c0_87 = arith.constant 0 : index
    %130 = vector.load %arg15[%c60, %c0_87] : memref<128x64xbf16, #tpu.memory_space<vmem>>, vector<2x64xbf16>
    %c64_88 = arith.constant 64 : index
    %c0_89 = arith.constant 0 : index
    %131 = vector.load %arg15[%c64_88, %c0_89] : memref<128x64xbf16, #tpu.memory_space<vmem>>, vector<2x64xbf16>
    %c66 = arith.constant 66 : index
    %c0_90 = arith.constant 0 : index
    %132 = vector.load %arg15[%c66, %c0_90] : memref<128x64xbf16, #tpu.memory_space<vmem>>, vector<2x64xbf16>
    %c68 = arith.constant 68 : index
    %c0_91 = arith.constant 0 : index
    %133 = vector.load %arg15[%c68, %c0_91] : memref<128x64xbf16, #tpu.memory_space<vmem>>, vector<2x64xbf16>
    %c70 = arith.constant 70 : index
    %c0_92 = arith.constant 0 : index
    %134 = vector.load %arg15[%c70, %c0_92] : memref<128x64xbf16, #tpu.memory_space<vmem>>, vector<2x64xbf16>
    %c72 = arith.constant 72 : index
    %c0_93 = arith.constant 0 : index
    %135 = vector.load %arg15[%c72, %c0_93] : memref<128x64xbf16, #tpu.memory_space<vmem>>, vector<2x64xbf16>
    %c74 = arith.constant 74 : index
    %c0_94 = arith.constant 0 : index
    %136 = vector.load %arg15[%c74, %c0_94] : memref<128x64xbf16, #tpu.memory_space<vmem>>, vector<2x64xbf16>
    %c76 = arith.constant 76 : index
    %c0_95 = arith.constant 0 : index
    %137 = vector.load %arg15[%c76, %c0_95] : memref<128x64xbf16, #tpu.memory_space<vmem>>, vector<2x64xbf16>
    %c80 = arith.constant 80 : index
    %c0_96 = arith.constant 0 : index
    %138 = vector.load %arg15[%c80, %c0_96] : memref<128x64xbf16, #tpu.memory_space<vmem>>, vector<2x64xbf16>
    %c82 = arith.constant 82 : index
    %c0_97 = arith.constant 0 : index
    %139 = vector.load %arg15[%c82, %c0_97] : memref<128x64xbf16, #tpu.memory_space<vmem>>, vector<2x64xbf16>
    %c84 = arith.constant 84 : index
    %c0_98 = arith.constant 0 : index
    %140 = vector.load %arg15[%c84, %c0_98] : memref<128x64xbf16, #tpu.memory_space<vmem>>, vector<2x64xbf16>
    %c86 = arith.constant 86 : index
    %c0_99 = arith.constant 0 : index
    %141 = vector.load %arg15[%c86, %c0_99] : memref<128x64xbf16, #tpu.memory_space<vmem>>, vector<2x64xbf16>
    %c88 = arith.constant 88 : index
    %c0_100 = arith.constant 0 : index
    %142 = vector.load %arg15[%c88, %c0_100] : memref<128x64xbf16, #tpu.memory_space<vmem>>, vector<2x64xbf16>
    %c90 = arith.constant 90 : index
    %c0_101 = arith.constant 0 : index
    %143 = vector.load %arg15[%c90, %c0_101] : memref<128x64xbf16, #tpu.memory_space<vmem>>, vector<2x64xbf16>
    %c92 = arith.constant 92 : index
    %c0_102 = arith.constant 0 : index
    %144 = vector.load %arg15[%c92, %c0_102] : memref<128x64xbf16, #tpu.memory_space<vmem>>, vector<2x64xbf16>
    %c96_103 = arith.constant 96 : index
    %c0_104 = arith.constant 0 : index
    %145 = vector.load %arg15[%c96_103, %c0_104] : memref<128x64xbf16, #tpu.memory_space<vmem>>, vector<2x64xbf16>
    %c98 = arith.constant 98 : index
    %c0_105 = arith.constant 0 : index
    %146 = vector.load %arg15[%c98, %c0_105] : memref<128x64xbf16, #tpu.memory_space<vmem>>, vector<2x64xbf16>
    %c100 = arith.constant 100 : index
    %c0_106 = arith.constant 0 : index
    %147 = vector.load %arg15[%c100, %c0_106] : memref<128x64xbf16, #tpu.memory_space<vmem>>, vector<2x64xbf16>
    %c102 = arith.constant 102 : index
    %c0_107 = arith.constant 0 : index
    %148 = vector.load %arg15[%c102, %c0_107] : memref<128x64xbf16, #tpu.memory_space<vmem>>, vector<2x64xbf16>
    %c104 = arith.constant 104 : index
    %c0_108 = arith.constant 0 : index
    %149 = vector.load %arg15[%c104, %c0_108] : memref<128x64xbf16, #tpu.memory_space<vmem>>, vector<2x64xbf16>
    %c106 = arith.constant 106 : index
    %c0_109 = arith.constant 0 : index
    %150 = vector.load %arg15[%c106, %c0_109] : memref<128x64xbf16, #tpu.memory_space<vmem>>, vector<2x64xbf16>
    %c108 = arith.constant 108 : index
    %c0_110 = arith.constant 0 : index
    %151 = vector.load %arg15[%c108, %c0_110] : memref<128x64xbf16, #tpu.memory_space<vmem>>, vector<2x64xbf16>
    %152 = tpu.concatenate %103, %104, %105, %106, %107, %108, %109, %110, %111, %112, %113, %114, %115, %116, %117, %118 in 1 : vector<2x64xbf16>, vector<2x64xbf16>, vector<2x64xbf16>, vector<2x64xbf16>, vector<2x64xbf16>, vector<2x64xbf16>, vector<2x64xbf16>, vector<2x64xbf16>, vector<2x64xbf16>, vector<2x64xbf16>, vector<2x64xbf16>, vector<2x64xbf16>, vector<2x64xbf16>, vector<2x64xbf16>, vector<2x64xbf16>, vector<2x64xbf16> -> vector<2x1024xbf16>
    %153 = tpu.concatenate %119, %120, %121, %122, %123, %124, %125, %126, %127, %128, %129, %130, %131, %132, %133, %134 in 1 : vector<2x64xbf16>, vector<2x64xbf16>, vector<2x64xbf16>, vector<2x64xbf16>, vector<2x64xbf16>, vector<2x64xbf16>, vector<2x64xbf16>, vector<2x64xbf16>, vector<2x64xbf16>, vector<2x64xbf16>, vector<2x64xbf16>, vector<2x64xbf16>, vector<2x64xbf16>, vector<2x64xbf16>, vector<2x64xbf16>, vector<2x64xbf16> -> vector<2x1024xbf16>
    %154 = tpu.concatenate %135, %136, %137, %138, %139, %140, %141, %142, %143, %144, %145, %146, %147, %148, %149, %150 in 1 : vector<2x64xbf16>, vector<2x64xbf16>, vector<2x64xbf16>, vector<2x64xbf16>, vector<2x64xbf16>, vector<2x64xbf16>, vector<2x64xbf16>, vector<2x64xbf16>, vector<2x64xbf16>, vector<2x64xbf16>, vector<2x64xbf16>, vector<2x64xbf16>, vector<2x64xbf16>, vector<2x64xbf16>, vector<2x64xbf16>, vector<2x64xbf16> -> vector<2x1024xbf16>
    %155 = tpu.concatenate %152, %153, %154, %151 in 1 : vector<2x1024xbf16>, vector<2x1024xbf16>, vector<2x1024xbf16>, vector<2x64xbf16> -> vector<2x3136xbf16>
    tpu.wait_dma2 semaphore(%arg17 : memref<!tpu.dma_semaphore, #tpu.memory_space<semaphore_mem>>) src(%arg8 : memref<3136x512xbf16, #tpu.memory_space<any>>) dst(%arg16 : memref<3136x512xbf16, #tpu.memory_space<vmem>>)
    %c0_111 = arith.constant 0 : index
    %c0_112 = arith.constant 0 : index
    %156 = vector.load %arg16[%c0_111, %c0_112] : memref<3136x512xbf16, #tpu.memory_space<vmem>>, vector<3136x512xbf16>
    %cst_113 = arith.constant dense<0.000000e+00> : vector<2x512xf32>
    %157 = tpu.matmul %155, %156, %cst_113 {dimension_numbers = #tpu.dot_dimension_numbers<[1], [0], [0], [1], [0, 0, 1, 1], [], []>} : vector<2x3136xbf16>, vector<3136x512xbf16>, vector<2x512xf32> -> vector<2x512xf32>
    %cst_114 = arith.constant dense<0.000000e+00> : vector<512xf32>
    %158 = vector.multi_reduction <add>, %157, %cst_114 [0] : vector<2x512xf32> to vector<512xf32>
    %159 = vector.shape_cast %158 : vector<512xf32> to vector<1x512xf32>
    %cst_115 = arith.constant 2.000000e+00 : f32
    %160 = vector.broadcast %cst_115 : f32 to vector<1x512xf32>
    %161 = arith.divf %159, %160 : vector<1x512xf32>
    %162 = arith.mulf %157, %157 : vector<2x512xf32>
    %cst_116 = arith.constant dense<0.000000e+00> : vector<512xf32>
    %163 = vector.multi_reduction <add>, %162, %cst_116 [0] : vector<2x512xf32> to vector<512xf32>
    %164 = vector.shape_cast %163 : vector<512xf32> to vector<1x512xf32>
    %cst_117 = arith.constant 2.000000e+00 : f32
    %165 = vector.broadcast %cst_117 : f32 to vector<1x512xf32>
    %166 = arith.divf %164, %165 : vector<1x512xf32>
    %167 = arith.mulf %161, %161 : vector<1x512xf32>
    %168 = arith.subf %166, %167 : vector<1x512xf32>
    %169 = vector.broadcast %161 : vector<1x512xf32> to vector<2x512xf32>
    %170 = arith.subf %157, %169 : vector<2x512xf32>
    %cst_118 = arith.constant 9.99999974E-6 : f32
    %171 = vector.broadcast %cst_118 : f32 to vector<1x512xf32>
    %172 = arith.addf %168, %171 : vector<1x512xf32>
    %173 = math.rsqrt %172 : vector<1x512xf32>
    %174 = vector.broadcast %173 : vector<1x512xf32> to vector<2x512xf32>
    %175 = arith.mulf %170, %174 : vector<2x512xf32>
    %c0_119 = arith.constant 0 : index
    %c0_120 = arith.constant 0 : index
    %176 = vector.load %arg9[%c0_119, %c0_120] : memref<1x512xf32, #tpu.memory_space<vmem>>, vector<1x512xf32>
    %177 = vector.broadcast %176 : vector<1x512xf32> to vector<2x512xf32>
    %178 = arith.mulf %175, %177 : vector<2x512xf32>
    %c0_121 = arith.constant 0 : index
    %c0_122 = arith.constant 0 : index
    %179 = vector.load %arg10[%c0_121, %c0_122] : memref<1x512xf32, #tpu.memory_space<vmem>>, vector<1x512xf32>
    %180 = vector.broadcast %179 : vector<1x512xf32> to vector<2x512xf32>
    %181 = arith.addf %178, %180 : vector<2x512xf32>
    %cst_123 = arith.constant 0.000000e+00 : f32
    %182 = vector.broadcast %cst_123 : f32 to vector<2x512xf32>
    %183 = arith.maximumf %181, %182 : vector<2x512xf32>
    %184 = arith.truncf %183 : vector<2x512xf32> to vector<2x512xbf16>
    %c0_124 = arith.constant 0 : index
    %c0_125 = arith.constant 0 : index
    %185 = vector.load %arg11[%c0_124, %c0_125] : memref<512x128xbf16, #tpu.memory_space<vmem>>, vector<512x128xbf16>
    %cst_126 = arith.constant dense<0.000000e+00> : vector<2x128xf32>
    %186 = tpu.matmul %184, %185, %cst_126 {dimension_numbers = #tpu.dot_dimension_numbers<[1], [0], [0], [1], [0, 0, 1, 1], [], []>} : vector<2x512xbf16>, vector<512x128xbf16>, vector<2x128xf32> -> vector<2x128xf32>
    %c0_127 = arith.constant 0 : index
    %c0_128 = arith.constant 0 : index
    %187 = vector.load %arg12[%c0_127, %c0_128] : memref<1x128xf32, #tpu.memory_space<vmem>>, vector<1x128xf32>
    %188 = vector.broadcast %187 : vector<1x128xf32> to vector<2x128xf32>
    %189 = arith.addf %186, %188 : vector<2x128xf32>
    %c0_129 = arith.constant 0 : index
    %c0_130 = arith.constant 0 : index
    %190 = vector.load %arg13[%c0_129, %c0_130] : memref<2x128xf32, #tpu.memory_space<vmem>>, vector<2x128xf32>
    tpu.vector_store %arg13[%c0_129, %c0_130], %189 {strides = array<i32>} : memref<2x128xf32, #tpu.memory_space<vmem>>, vector<2x128xf32>,
    return
  }
}

</mosaic_0001>

<llo_original>
// kernel: encoder_z_forward.1
$region0: #{encoder_z_forward.1}
  #allocation0 [shape = 'u32[]', space=smem, size = 0x4, offset = 0x4, fixed_abs, tag = 'smem constant byte address 0x4 - core index']
  #allocation1 [shape = 'u32[144,128]{1,0:T(1,128)}', space=vmem, size = 0x12000, scoped, tag = 'internal scratch']
  #allocation2 [shape = 'bf16[160,128]{1,0:T(8,128)(2,1)}', space=vmem, size = 0xa000, scoped, tag = 'scratch operand']
  #allocation3 [shape = 'bf16[128,64]{1,0:T(8,128)(2,1)}', space=vmem, size = 0x8000, scoped, tag = 'scratch operand']
  #allocation4 [shape = 'bf16[3136,512]{1,0:T(8,128)(2,1)}', space=vmem, size = 0x310000, scoped, tag = 'scratch operand']
  #allocation5 [shape = 's32[1]{0}', space=sflag, size = 0x4, scoped, tag = 'scratch operand']
  #allocation8 [shape = 's32[]', space=sflag, size = 0x4, offset = 0, fixed_abs, tag = 'sflag constant byte address 0x0 - dummy sync flag']
  %s0 = inlined_call_operand.vmem [shape: f32[512,16], index: 0, kind: input, shape index: {}]
  %s1 = inlined_call_operand.vmem [shape: f32[128,1], index: 1, kind: input, shape index: {}]
  %s2 = inlined_call_operand.vmem [shape: f32[16,32], index: 2, kind: input, shape index: {}]
  %s3 = inlined_call_operand.vmem [shape: f32[1,32], index: 3, kind: input, shape index: {}]
  %s4 = inlined_call_operand.vmem [shape: f32[1,32], index: 4, kind: input, shape index: {}]
  %s5 = inlined_call_operand.vmem [shape: bf16[4,128,64], index: 5, kind: input, shape index: {}]
  %s6 = inlined_call_operand.vmem [shape: f32[1,64], index: 6, kind: input, shape index: {}]
  %s7 = inlined_call_operand.vmem [shape: f32[1,64], index: 7, kind: input, shape index: {}]
  %s8 = inlined_call_operand.vmem [shape: bf16[3136,512], index: 8, kind: input, shape index: {}]
  %s9 = inlined_call_operand.vmem [shape: f32[1,512], index: 9, kind: input, shape index: {}]
  %s10 = inlined_call_operand.vmem [shape: f32[1,512], index: 10, kind: input, shape index: {}]
  %s11 = inlined_call_operand.vmem [shape: bf16[512,128], index: 11, kind: input, shape index: {}]
  %s12 = inlined_call_operand.vmem [shape: f32[1,128], index: 12, kind: input, shape index: {}]
  %s13 = inlined_call_operand.hbm [shape: f32[2,128], index: 13, kind: output, shape index: {}]
  %s14 = sld [smem:[#allocation0]]
  $region92: #{encoder_z_forward.1} parent=0
    _
  %s16 = ssub.s32 1, %s14
  %s17 = scalar_select 0, %s16, %s14
  $region1: #{encoder_z_forward.1} parent=0
    #allocation6 [shape = 'u8[1024]{0}', space=vmem, size = 0x400, scoped, tag = 'output window, operand 0, single buffered']
    #allocation7 [shape = 's32[1]{0}', space=sflag, size = 0x4, scoped, tag = 'scoped memory for encoder_z_forward.1']
    %18 = vsyncpa [#allocation7], 0
    // Predicated region
    $region2: #{encoder_z_forward.1} parent=1 // pred_check
      _
    $region3: #{encoder_z_forward.1} parent=1 // pred_check_branch
      %20 = sbr.rel (0) target = $region5
    $region4: #{encoder_z_forward.1} parent=1 // pred_region
      _
    $region5: #{encoder_z_forward.1} parent=1 // pred_fallthru
      _
    // Predicated region
    $region6: #{encoder_z_forward.1} parent=1 // pred_check
      _
    $region7: #{encoder_z_forward.1} parent=1 // pred_check_branch
      %22 = sbr.rel (0) target = $region9
    $region8: #{encoder_z_forward.1} parent=1 // pred_region
      _
    $region9: #{encoder_z_forward.1} parent=1 // pred_fallthru
      _
    // Predicated region
    $region10: #{encoder_z_forward.1} parent=1 // pred_check
      _
    $region11: #{encoder_z_forward.1} parent=1 // pred_check_branch
      %24 = sbr.rel (0) target = $region13
    $region12: #{encoder_z_forward.1} parent=1 // pred_region
      _
    $region13: #{encoder_z_forward.1} parent=1 // pred_fallthru
      _
    // Predicated region
    $region14: #{encoder_z_forward.1} parent=1 // pred_check
      _
    $region15: #{encoder_z_forward.1} parent=1 // pred_check_branch
      %26 = sbr.rel (0) target = $region17
    $region16: #{encoder_z_forward.1} parent=1 // pred_region
      _
    $region17: #{encoder_z_forward.1} parent=1 // pred_fallthru
      _
    // Predicated region
    $region18: #{encoder_z_forward.1} parent=1 // pred_check
      _
    $region19: #{encoder_z_forward.1} parent=1 // pred_check_branch
      %28 = sbr.rel (0) target = $region21
    $region20: #{encoder_z_forward.1} parent=1 // pred_region
      _
    $region21: #{encoder_z_forward.1} parent=1 // pred_fallthru
      _
    // Predicated region
    $region22: #{encoder_z_forward.1} parent=1 // pred_check
      _
    $region23: #{encoder_z_forward.1} parent=1 // pred_check_branch
      %30 = sbr.rel (0) target = $region25
    $region24: #{encoder_z_forward.1} parent=1 // pred_region
      _
    $region25: #{encoder_z_forward.1} parent=1 // pred_fallthru
      _
    // Predicated region
    $region26: #{encoder_z_forward.1} parent=1 // pred_check
      _
    $region27: #{encoder_z_forward.1} parent=1 // pred_check_branch
      %32 = sbr.rel (0) target = $region29
    $region28: #{encoder_z_forward.1} parent=1 // pred_region
      _
    $region29: #{encoder_z_forward.1} parent=1 // pred_fallthru
      _
    // Predicated region
    $region30: #{encoder_z_forward.1} parent=1 // pred_check
      _
    $region31: #{encoder_z_forward.1} parent=1 // pred_check_branch
      %34 = sbr.rel (0) target = $region33
    $region32: #{encoder_z_forward.1} parent=1 // pred_region
      _
    $region33: #{encoder_z_forward.1} parent=1 // pred_fallthru
      _
    // Predicated region
    $region34: #{encoder_z_forward.1} parent=1 // pred_check
      _
    $region35: #{encoder_z_forward.1} parent=1 // pred_check_branch
      %36 = sbr.rel (0) target = $region37
    $region36: #{encoder_z_forward.1} parent=1 // pred_region
      _
    $region37: #{encoder_z_forward.1} parent=1 // pred_fallthru
      _
    // Predicated region
    $region38: #{encoder_z_forward.1} parent=1 // pred_check
      _
    $region39: #{encoder_z_forward.1} parent=1 // pred_check_branch
      %38 = sbr.rel (0) target = $region41
    $region40: #{encoder_z_forward.1} parent=1 // pred_region
      _
    $region41: #{encoder_z_forward.1} parent=1 // pred_fallthru
      _
    // Predicated region
    $region42: #{encoder_z_forward.1} parent=1 // pred_check
      _
    $region43: #{encoder_z_forward.1} parent=1 // pred_check_branch
      %40 = sbr.rel (0) target = $region45
    $region44: #{encoder_z_forward.1} parent=1 // pred_region
      _
    $region45: #{encoder_z_forward.1} parent=1 // pred_fallthru
      _
    // Predicated region
    $region46: #{encoder_z_forward.1} parent=1 // pred_check
      _
    $region47: #{encoder_z_forward.1} parent=1 // pred_check_branch
      %42 = sbr.rel (0) target = $region49
    $region48: #{encoder_z_forward.1} parent=1 // pred_region
      _
    $region49: #{encoder_z_forward.1} parent=1 // pred_fallthru
      _
    %p45 = scmp.lt.u32.totalorder 6272, 8
    %p46 = pneg %p45
    // Predicated region
    $region50: #{encoder_z_forward.1} parent=1 // pred_check
      _
    $region51: #{encoder_z_forward.1} parent=1 // pred_check_branch
      %48 = sbr.rel (%p45) target = $region53
    $region52: #{encoder_z_forward.1} parent=1 // pred_region
      %s64 = sand.u32 6272, 7
      %p65 = scmp.eq.s32.totalorder %s64, 0
      // Predicated region
      $region65: #{encoder_z_forward.1} parent=52 // pred_check
        %p66 = pneg %p65
      $region66: #{encoder_z_forward.1} parent=52 // pred_check_branch
        %68 = sbr.rel (%p66) target = $region68
      $region67: #{encoder_z_forward.1} parent=52 // pred_region
        loop: start=0, step=1, limit=1
        $region69: #{encoder_z_forward.1} parent=67 // loop_pre_header
          _
        $region70: #{encoder_z_forward.1} parent=67 // loop_header
          %s70 = sphi 0, %s74
          %p71 = scmp.ge.s32.totalorder %s70, 1
          %s75 = sphi %s8, %s8
          %s76 = sphi [#allocation4], [#allocation4]
        $region71: #{encoder_z_forward.1} parent=67 // loop_header_branch
          %73 = sbr.rel (%p71) target = $region75
        $region72: #{encoder_z_forward.1} parent=67 // loop_body
          %v77 = vld [vmem:[%s75] sm:$0xff]
          %78 = vst [vmem:[%s76] sm:$0xff] %v77
          %v79 = vld [vmem:[%s75 + $0x8] sm:$0xff]
          %80 = vst [vmem:[%s76 + $0x8] sm:$0xff] %v79
          %v81 = vld [vmem:[%s75 + $0x10] sm:$0xff]
          %82 = vst [vmem:[%s76 + $0x10] sm:$0xff] %v81
          %v83 = vld [vmem:[%s75 + $0x18] sm:$0xff]
          %84 = vst [vmem:[%s76 + $0x18] sm:$0xff] %v83
          %v85 = vld [vmem:[%s75 + $0x20] sm:$0xff]
          %86 = vst [vmem:[%s76 + $0x20] sm:$0xff] %v85
          %v87 = vld [vmem:[%s75 + $0x28] sm:$0xff]
          %88 = vst [vmem:[%s76 + $0x28] sm:$0xff] %v87
          %v89 = vld [vmem:[%s75 + $0x30] sm:$0xff]
          %90 = vst [vmem:[%s76 + $0x30] sm:$0xff] %v89
          %v91 = vld [vmem:[%s75 + $0x38] sm:$0xff]
          %92 = vst [vmem:[%s76 + $0x38] sm:$0xff] %v91
          %v93 = vld [vmem:[%s75 + $0x40] sm:$0xff]
          %94 = vst [vmem:[%s76 + $0x40] sm:$0xff] %v93
          %v95 = vld [vmem:[%s75 + $0x48] sm:$0xff]
          %96 = vst [vmem:[%s76 + $0x48] sm:$0xff] %v95
          %v97 = vld [vmem:[%s75 + $0x50] sm:$0xff]
          %98 = vst [vmem:[%s76 + $0x50] sm:$0xff] %v97
          %v99 = vld [vmem:[%s75 + $0x58] sm:$0xff]
          %100 = vst [vmem:[%s76 + $0x58] sm:$0xff] %v99
          %v101 = vld [vmem:[%s75 + $0x60] sm:$0xff]
          %102 = vst [vmem:[%s76 + $0x60] sm:$0xff] %v101
          %v103 = vld [vmem:[%s75 + $0x68] sm:$0xff]
          %104 = vst [vmem:[%s76 + $0x68] sm:$0xff] %v103
          %v105 = vld [vmem:[%s75 + $0x70] sm:$0xff]
          %106 = vst [vmem:[%s76 + $0x70] sm:$0xff] %v105
          %v107 = vld [vmem:[%s75 + $0x78] sm:$0xff]
          %108 = vst [vmem:[%s76 + $0x78] sm:$0xff] %v107
          %v109 = vld [vmem:[%s75 + $0x80] sm:$0xff]
          %110 = vst [vmem:[%s76 + $0x80] sm:$0xff] %v109
          %v111 = vld [vmem:[%s75 + $0x88] sm:$0xff]
          %112 = vst [vmem:[%s76 + $0x88] sm:$0xff] %v111
          %v113 = vld [vmem:[%s75 + $0x90] sm:$0xff]
          %114 = vst [vmem:[%s76 + $0x90] sm:$0xff] %v113
          %v115 = vld [vmem:[%s75 + $0x98] sm:$0xff]
          %116 = vst [vmem:[%s76 + $0x98] sm:$0xff] %v115
          %v117 = vld [vmem:[%s75 + $0xa0] sm:$0xff]
          %118 = vst [vmem:[%s76 + $0xa0] sm:$0xff] %v117
          %v119 = vld [vmem:[%s75 + $0xa8] sm:$0xff]
          %120 = vst [vmem:[%s76 + $0xa8] sm:$0xff] %v119
          %v121 = vld [vmem:[%s75 + $0xb0] sm:$0xff]
          %122 = vst [vmem:[%s76 + $0xb0] sm:$0xff] %v121
          %v123 = vld [vmem:[%s75 + $0xb8] sm:$0xff]
          %124 = vst [vmem:[%s76 + $0xb8] sm:$0xff] %v123
          %v125 = vld [vmem:[%s75 + $0xc0] sm:$0xff]
          %126 = vst [vmem:[%s76 + $0xc0] sm:$0xff] %v125
          %v127 = vld [vmem:[%s75 + $0xc8] sm:$0xff]
          %128 = vst [vmem:[%s76 + $0xc8] sm:$0xff] %v127
          %v129 = vld [vmem:[%s75 + $0xd0] sm:$0xff]
          %130 = vst [vmem:[%s76 + $0xd0] sm:$0xff] %v129
          %v131 = vld [vmem:[%s75 + $0xd8] sm:$0xff]
          %132 = vst [vmem:[%s76 + $0xd8] sm:$0xff] %v131
          %v133 = vld [vmem:[%s75 + $0xe0] sm:$0xff]
          %134 = vst [vmem:[%s76 + $0xe0] sm:$0xff] %v133
          %v135 = vld [vmem:[%s75 + $0xe8] sm:$0xff]
          %136 = vst [vmem:[%s76 + $0xe8] sm:$0xff] %v135
          %v137 = vld [vmem:[%s75 + $0xf0] sm:$0xff]
          %138 = vst [vmem:[%s76 + $0xf0] sm:$0xff] %v137
          %v139 = vld [vmem:[%s75 + $0xf8] sm:$0xff]
          %140 = vst [vmem:[%s76 + $0xf8] sm:$0xff] %v139
          %v141 = vld [vmem:[%s75 + $0x100] sm:$0xff]
          %142 = vst [vmem:[%s76 + $0x100] sm:$0xff] %v141
          %v143 = vld [vmem:[%s75 + $0x108] sm:$0xff]
          %144 = vst [vmem:[%s76 + $0x108] sm:$0xff] %v143
          %v145 = vld [vmem:[%s75 + $0x110] sm:$0xff]
          %146 = vst [vmem:[%s76 + $0x110] sm:$0xff] %v145
          %v147 = vld [vmem:[%s75 + $0x118] sm:$0xff]
          %148 = vst [vmem:[%s76 + $0x118] sm:$0xff] %v147
          %v149 = vld [vmem:[%s75 + $0x120] sm:$0xff]
          %150 = vst [vmem:[%s76 + $0x120] sm:$0xff] %v149
          %v151 = vld [vmem:[%s75 + $0x128] sm:$0xff]
          %152 = vst [vmem:[%s76 + $0x128] sm:$0xff] %v151
          %v153 = vld [vmem:[%s75 + $0x130] sm:$0xff]
          %154 = vst [vmem:[%s76 + $0x130] sm:$0xff] %v153
          %v155 = vld [vmem:[%s75 + $0x138] sm:$0xff]
          %156 = vst [vmem:[%s76 + $0x138] sm:$0xff] %v155
          %v157 = vld [vmem:[%s75 + $0x140] sm:$0xff]
          %158 = vst [vmem:[%s76 + $0x140] sm:$0xff] %v157
          %v159 = vld [vmem:[%s75 + $0x148] sm:$0xff]
          %160 = vst [vmem:[%s76 + $0x148] sm:$0xff] %v159
          %v161 = vld [vmem:[%s75 + $0x150] sm:$0xff]
          %162 = vst [vmem:[%s76 + $0x150] sm:$0xff] %v161
          %v163 = vld [vmem:[%s75 + $0x158] sm:$0xff]
          %164 = vst [vmem:[%s76 + $0x158] sm:$0xff] %v163
          %v165 = vld [vmem:[%s75 + $0x160] sm:$0xff]
          %166 = vst [vmem:[%s76 + $0x160] sm:$0xff] %v165
          %v167 = vld [vmem:[%s75 + $0x168] sm:$0xff]
          %168 = vst [vmem:[%s76 + $0x168] sm:$0xff] %v167
          %v169 = vld [vmem:[%s75 + $0x170] sm:$0xff]
          %170 = vst [vmem:[%s76 + $0x170] sm:$0xff] %v169
          %v171 = vld [vmem:[%s75 + $0x178] sm:$0xff]
          %172 = vst [vmem:[%s76 + $0x178] sm:$0xff] %v171
          %v173 = vld [vmem:[%s75 + $0x180] sm:$0xff]
          %174 = vst [vmem:[%s76 + $0x180] sm:$0xff] %v173
          %v175 = vld [vmem:[%s75 + $0x188] sm:$0xff]
          %176 = vst [vmem:[%s76 + $0x188] sm:$0xff] %v175
          %v177 = vld [vmem:[%s75 + $0x190] sm:$0xff]
          %178 = vst [vmem:[%s76 + $0x190] sm:$0xff] %v177
          %v179 = vld [vmem:[%s75 + $0x198] sm:$0xff]
          %180 = vst [vmem:[%s76 + $0x198] sm:$0xff] %v179
          %v181 = vld [vmem:[%s75 + $0x1a0] sm:$0xff]
          %182 = vst [vmem:[%s76 + $0x1a0] sm:$0xff] %v181
          %v183 = vld [vmem:[%s75 + $0x1a8] sm:$0xff]
          %184 = vst [vmem:[%s76 + $0x1a8] sm:$0xff] %v183
          %v185 = vld [vmem:[%s75 + $0x1b0] sm:$0xff]
          %186 = vst [vmem:[%s76 + $0x1b0] sm:$0xff] %v185
          %v187 = vld [vmem:[%s75 + $0x1b8] sm:$0xff]
          %188 = vst [vmem:[%s76 + $0x1b8] sm:$0xff] %v187
          %v189 = vld [vmem:[%s75 + $0x1c0] sm:$0xff]
          %190 = vst [vmem:[%s76 + $0x1c0] sm:$0xff] %v189
          %v191 = vld [vmem:[%s75 + $0x1c8] sm:$0xff]
          %192 = vst [vmem:[%s76 + $0x1c8] sm:$0xff] %v191
          %v193 = vld [vmem:[%s75 + $0x1d0] sm:$0xff]
          %194 = vst [vmem:[%s76 + $0x1d0] sm:$0xff] %v193
          %v195 = vld [vmem:[%s75 + $0x1d8] sm:$0xff]
          %196 = vst [vmem:[%s76 + $0x1d8] sm:$0xff] %v195
          %v197 = vld [vmem:[%s75 + $0x1e0] sm:$0xff]
          %198 = vst [vmem:[%s76 + $0x1e0] sm:$0xff] %v197
          %v199 = vld [vmem:[%s75 + $0x1e8] sm:$0xff]
          %200 = vst [vmem:[%s76 + $0x1e8] sm:$0xff] %v199
          %v201 = vld [vmem:[%s75 + $0x1f0] sm:$0xff]
          %202 = vst [vmem:[%s76 + $0x1f0] sm:$0xff] %v201
          %v203 = vld [vmem:[%s75 + $0x1f8] sm:$0xff]
          %204 = vst [vmem:[%s76 + $0x1f8] sm:$0xff] %v203
          %v205 = vld [vmem:[%s75 + $0x200] sm:$0xff]
          %206 = vst [vmem:[%s76 + $0x200] sm:$0xff] %v205
          %v207 = vld [vmem:[%s75 + $0x208] sm:$0xff]
          %208 = vst [vmem:[%s76 + $0x208] sm:$0xff] %v207
          %v209 = vld [vmem:[%s75 + $0x210] sm:$0xff]
          %210 = vst [vmem:[%s76 + $0x210] sm:$0xff] %v209
          %v211 = vld [vmem:[%s75 + $0x218] sm:$0xff]
          %212 = vst [vmem:[%s76 + $0x218] sm:$0xff] %v211
          %v213 = vld [vmem:[%s75 + $0x220] sm:$0xff]
          %214 = vst [vmem:[%s76 + $0x220] sm:$0xff] %v213
          %v215 = vld [vmem:[%s75 + $0x228] sm:$0xff]
          %216 = vst [vmem:[%s76 + $0x228] sm:$0xff] %v215
          %v217 = vld [vmem:[%s75 + $0x230] sm:$0xff]
          %218 = vst [vmem:[%s76 + $0x230] sm:$0xff] %v217
          %v219 = vld [vmem:[%s75 + $0x238] sm:$0xff]
          %220 = vst [vmem:[%s76 + $0x238] sm:$0xff] %v219
          %v221 = vld [vmem:[%s75 + $0x240] sm:$0xff]
          %222 = vst [vmem:[%s76 + $0x240] sm:$0xff] %v221
          %v223 = vld [vmem:[%s75 + $0x248] sm:$0xff]
          %224 = vst [vmem:[%s76 + $0x248] sm:$0xff] %v223
          %v225 = vld [vmem:[%s75 + $0x250] sm:$0xff]
          %226 = vst [vmem:[%s76 + $0x250] sm:$0xff] %v225
          %v227 = vld [vmem:[%s75 + $0x258] sm:$0xff]
          %228 = vst [vmem:[%s76 + $0x258] sm:$0xff] %v227
          %v229 = vld [vmem:[%s75 + $0x260] sm:$0xff]
          %230 = vst [vmem:[%s76 + $0x260] sm:$0xff] %v229
          %v231 = vld [vmem:[%s75 + $0x268] sm:$0xff]
          %232 = vst [vmem:[%s76 + $0x268] sm:$0xff] %v231
          %v233 = vld [vmem:[%s75 + $0x270] sm:$0xff]
          %234 = vst [vmem:[%s76 + $0x270] sm:$0xff] %v233
          %v235 = vld [vmem:[%s75 + $0x278] sm:$0xff]
          %236 = vst [vmem:[%s76 + $0x278] sm:$0xff] %v235
          %v237 = vld [vmem:[%s75 + $0x280] sm:$0xff]
          %238 = vst [vmem:[%s76 + $0x280] sm:$0xff] %v237
          %v239 = vld [vmem:[%s75 + $0x288] sm:$0xff]
          %240 = vst [vmem:[%s76 + $0x288] sm:$0xff] %v239
          %v241 = vld [vmem:[%s75 + $0x290] sm:$0xff]
          %242 = vst [vmem:[%s76 + $0x290] sm:$0xff] %v241
          %v243 = vld [vmem:[%s75 + $0x298] sm:$0xff]
          %244 = vst [vmem:[%s76 + $0x298] sm:$0xff] %v243
          %v245 = vld [vmem:[%s75 + $0x2a0] sm:$0xff]
          %246 = vst [vmem:[%s76 + $0x2a0] sm:$0xff] %v245
          %v247 = vld [vmem:[%s75 + $0x2a8] sm:$0xff]
          %248 = vst [vmem:[%s76 + $0x2a8] sm:$0xff] %v247
          %v249 = vld [vmem:[%s75 + $0x2b0] sm:$0xff]
          %250 = vst [vmem:[%s76 + $0x2b0] sm:$0xff] %v249
          %v251 = vld [vmem:[%s75 + $0x2b8] sm:$0xff]
          %252 = vst [vmem:[%s76 + $0x2b8] sm:$0xff] %v251
          %v253 = vld [vmem:[%s75 + $0x2c0] sm:$0xff]
          %254 = vst [vmem:[%s76 + $0x2c0] sm:$0xff] %v253
          %v255 = vld [vmem:[%s75 + $0x2c8] sm:$0xff]
          %256 = vst [vmem:[%s76 + $0x2c8] sm:$0xff] %v255
          %v257 = vld [vmem:[%s75 + $0x2d0] sm:$0xff]
          %258 = vst [vmem:[%s76 + $0x2d0] sm:$0xff] %v257
          %v259 = vld [vmem:[%s75 + $0x2d8] sm:$0xff]
          %260 = vst [vmem:[%s76 + $0x2d8] sm:$0xff] %v259
          %v261 = vld [vmem:[%s75 + $0x2e0] sm:$0xff]
          %262 = vst [vmem:[%s76 + $0x2e0] sm:$0xff] %v261
          %v263 = vld [vmem:[%s75 + $0x2e8] sm:$0xff]
          %264 = vst [vmem:[%s76 + $0x2e8] sm:$0xff] %v263
          %v265 = vld [vmem:[%s75 + $0x2f0] sm:$0xff]
          %266 = vst [vmem:[%s76 + $0x2f0] sm:$0xff] %v265
          %v267 = vld [vmem:[%s75 + $0x2f8] sm:$0xff]
          %268 = vst [vmem:[%s76 + $0x2f8] sm:$0xff] %v267
          %v269 = vld [vmem:[%s75 + $0x300] sm:$0xff]
          %270 = vst [vmem:[%s76 + $0x300] sm:$0xff] %v269
          %v271 = vld [vmem:[%s75 + $0x308] sm:$0xff]
          %272 = vst [vmem:[%s76 + $0x308] sm:$0xff] %v271
          %v273 = vld [vmem:[%s75 + $0x310] sm:$0xff]
          %274 = vst [vmem:[%s76 + $0x310] sm:$0xff] %v273
          %v275 = vld [vmem:[%s75 + $0x318] sm:$0xff]
          %276 = vst [vmem:[%s76 + $0x318] sm:$0xff] %v275
          %v277 = vld [vmem:[%s75 + $0x320] sm:$0xff]
          %278 = vst [vmem:[%s76 + $0x320] sm:$0xff] %v277
          %v279 = vld [vmem:[%s75 + $0x328] sm:$0xff]
          %280 = vst [vmem:[%s76 + $0x328] sm:$0xff] %v279
          %v281 = vld [vmem:[%s75 + $0x330] sm:$0xff]
          %282 = vst [vmem:[%s76 + $0x330] sm:$0xff] %v281
          %v283 = vld [vmem:[%s75 + $0x338] sm:$0xff]
          %284 = vst [vmem:[%s76 + $0x338] sm:$0xff] %v283
          %v285 = vld [vmem:[%s75 + $0x340] sm:$0xff]
          %286 = vst [vmem:[%s76 + $0x340] sm:$0xff] %v285
          %v287 = vld [vmem:[%s75 + $0x348] sm:$0xff]
          %288 = vst [vmem:[%s76 + $0x348] sm:$0xff] %v287
          %v289 = vld [vmem:[%s75 + $0x350] sm:$0xff]
          %290 = vst [vmem:[%s76 + $0x350] sm:$0xff] %v289
          %v291 = vld [vmem:[%s75 + $0x358] sm:$0xff]
          %292 = vst [vmem:[%s76 + $0x358] sm:$0xff] %v291
          %v293 = vld [vmem:[%s75 + $0x360] sm:$0xff]
          %294 = vst [vmem:[%s76 + $0x360] sm:$0xff] %v293
          %v295 = vld [vmem:[%s75 + $0x368] sm:$0xff]
          %296 = vst [vmem:[%s76 + $0x368] sm:$0xff] %v295
          %v297 = vld [vmem:[%s75 + $0x370] sm:$0xff]
          %298 = vst [vmem:[%s76 + $0x370] sm:$0xff] %v297
          %v299 = vld [vmem:[%s75 + $0x378] sm:$0xff]
          %300 = vst [vmem:[%s76 + $0x378] sm:$0xff] %v299
          %v301 = vld [vmem:[%s75 + $0x380] sm:$0xff]
          %302 = vst [vmem:[%s76 + $0x380] sm:$0xff] %v301
          %v303 = vld [vmem:[%s75 + $0x388] sm:$0xff]
          %304 = vst [vmem:[%s76 + $0x388] sm:$0xff] %v303
          %v305 = vld [vmem:[%s75 + $0x390] sm:$0xff]
          %306 = vst [vmem:[%s76 + $0x390] sm:$0xff] %v305
          %v307 = vld [vmem:[%s75 + $0x398] sm:$0xff]
          %308 = vst [vmem:[%s76 + $0x398] sm:$0xff] %v307
          %v309 = vld [vmem:[%s75 + $0x3a0] sm:$0xff]
          %310 = vst [vmem:[%s76 + $0x3a0] sm:$0xff] %v309
          %v311 = vld [vmem:[%s75 + $0x3a8] sm:$0xff]
          %312 = vst [vmem:[%s76 + $0x3a8] sm:$0xff] %v311
          %v313 = vld [vmem:[%s75 + $0x3b0] sm:$0xff]
          %314 = vst [vmem:[%s76 + $0x3b0] sm:$0xff] %v313
          %v315 = vld [vmem:[%s75 + $0x3b8] sm:$0xff]
          %316 = vst [vmem:[%s76 + $0x3b8] sm:$0xff] %v315
          %v317 = vld [vmem:[%s75 + $0x3c0] sm:$0xff]
          %318 = vst [vmem:[%s76 + $0x3c0] sm:$0xff] %v317
          %v319 = vld [vmem:[%s75 + $0x3c8] sm:$0xff]
          %320 = vst [vmem:[%s76 + $0x3c8] sm:$0xff] %v319
          %v321 = vld [vmem:[%s75 + $0x3d0] sm:$0xff]
          %322 = vst [vmem:[%s76 + $0x3d0] sm:$0xff] %v321
          %v323 = vld [vmem:[%s75 + $0x3d8] sm:$0xff]
          %324 = vst [vmem:[%s76 + $0x3d8] sm:$0xff] %v323
          %v325 = vld [vmem:[%s75 + $0x3e0] sm:$0xff]
          %326 = vst [vmem:[%s76 + $0x3e0] sm:$0xff] %v325
          %v327 = vld [vmem:[%s75 + $0x3e8] sm:$0xff]
          %328 = vst [vmem:[%s76 + $0x3e8] sm:$0xff] %v327
          %v329 = vld [vmem:[%s75 + $0x3f0] sm:$0xff]
          %330 = vst [vmem:[%s76 + $0x3f0] sm:$0xff] %v329
          %v331 = vld [vmem:[%s75 + $0x3f8] sm:$0xff]
          %332 = vst [vmem:[%s76 + $0x3f8] sm:$0xff] %v331
          %v333 = vld [vmem:[%s75 + $0x400] sm:$0xff]
          %334 = vst [vmem:[%s76 + $0x400] sm:$0xff] %v333
          %v335 = vld [vmem:[%s75 + $0x408] sm:$0xff]
          %336 = vst [vmem:[%s76 + $0x408] sm:$0xff] %v335
          %v337 = vld [vmem:[%s75 + $0x410] sm:$0xff]
          %338 = vst [vmem:[%s76 + $0x410] sm:$0xff] %v337
          %v339 = vld [vmem:[%s75 + $0x418] sm:$0xff]
          %340 = vst [vmem:[%s76 + $0x418] sm:$0xff] %v339
          %v341 = vld [vmem:[%s75 + $0x420] sm:$0xff]
          %342 = vst [vmem:[%s76 + $0x420] sm:$0xff] %v341
          %v343 = vld [vmem:[%s75 + $0x428] sm:$0xff]
          %344 = vst [vmem:[%s76 + $0x428] sm:$0xff] %v343
          %v345 = vld [vmem:[%s75 + $0x430] sm:$0xff]
          %346 = vst [vmem:[%s76 + $0x430] sm:$0xff] %v345
          %v347 = vld [vmem:[%s75 + $0x438] sm:$0xff]
          %348 = vst [vmem:[%s76 + $0x438] sm:$0xff] %v347
          %v349 = vld [vmem:[%s75 + $0x440] sm:$0xff]
          %350 = vst [vmem:[%s76 + $0x440] sm:$0xff] %v349
          %v351 = vld [vmem:[%s75 + $0x448] sm:$0xff]
          %352 = vst [vmem:[%s76 + $0x448] sm:$0xff] %v351
          %v353 = vld [vmem:[%s75 + $0x450] sm:$0xff]
          %354 = vst [vmem:[%s76 + $0x450] sm:$0xff] %v353
          %v355 = vld [vmem:[%s75 + $0x458] sm:$0xff]
          %356 = vst [vmem:[%s76 + $0x458] sm:$0xff] %v355
          %v357 = vld [vmem:[%s75 + $0x460] sm:$0xff]
          %358 = vst [vmem:[%s76 + $0x460] sm:$0xff] %v357
          %v359 = vld [vmem:[%s75 + $0x468] sm:$0xff]
          %360 = vst [vmem:[%s76 + $0x468] sm:$0xff] %v359
          %v361 = vld [vmem:[%s75 + $0x470] sm:$0xff]
          %362 = vst [vmem:[%s76 + $0x470] sm:$0xff] %v361
          %v363 = vld [vmem:[%s75 + $0x478] sm:$0xff]
          %364 = vst [vmem:[%s76 + $0x478] sm:$0xff] %v363
          %v365 = vld [vmem:[%s75 + $0x480] sm:$0xff]
          %366 = vst [vmem:[%s76 + $0x480] sm:$0xff] %v365
          %v367 = vld [vmem:[%s75 + $0x488] sm:$0xff]
          %368 = vst [vmem:[%s76 + $0x488] sm:$0xff] %v367
          %v369 = vld [vmem:[%s75 + $0x490] sm:$0xff]
          %370 = vst [vmem:[%s76 + $0x490] sm:$0xff] %v369
          %v371 = vld [vmem:[%s75 + $0x498] sm:$0xff]
          %372 = vst [vmem:[%s76 + $0x498] sm:$0xff] %v371
          %v373 = vld [vmem:[%s75 + $0x4a0] sm:$0xff]
          %374 = vst [vmem:[%s76 + $0x4a0] sm:$0xff] %v373
          %v375 = vld [vmem:[%s75 + $0x4a8] sm:$0xff]
          %376 = vst [vmem:[%s76 + $0x4a8] sm:$0xff] %v375
          %v377 = vld [vmem:[%s75 + $0x4b0] sm:$0xff]
          %378 = vst [vmem:[%s76 + $0x4b0] sm:$0xff] %v377
          %v379 = vld [vmem:[%s75 + $0x4b8] sm:$0xff]
          %380 = vst [vmem:[%s76 + $0x4b8] sm:$0xff] %v379
          %v381 = vld [vmem:[%s75 + $0x4c0] sm:$0xff]
          %382 = vst [vmem:[%s76 + $0x4c0] sm:$0xff] %v381
          %v383 = vld [vmem:[%s75 + $0x4c8] sm:$0xff]
          %384 = vst [vmem:[%s76 + $0x4c8] sm:$0xff] %v383
          %v385 = vld [vmem:[%s75 + $0x4d0] sm:$0xff]
          %386 = vst [vmem:[%s76 + $0x4d0] sm:$0xff] %v385
          %v387 = vld [vmem:[%s75 + $0x4d8] sm:$0xff]
          %388 = vst [vmem:[%s76 + $0x4d8] sm:$0xff] %v387
          %v389 = vld [vmem:[%s75 + $0x4e0] sm:$0xff]
          %390 = vst [vmem:[%s76 + $0x4e0] sm:$0xff] %v389
          %v391 = vld [vmem:[%s75 + $0x4e8] sm:$0xff]
          %392 = vst [vmem:[%s76 + $0x4e8] sm:$0xff] %v391
          %v393 = vld [vmem:[%s75 + $0x4f0] sm:$0xff]
          %394 = vst [vmem:[%s76 + $0x4f0] sm:$0xff] %v393
          %v395 = vld [vmem:[%s75 + $0x4f8] sm:$0xff]
          %396 = vst [vmem:[%s76 + $0x4f8] sm:$0xff] %v395
          %v397 = vld [vmem:[%s75 + $0x500] sm:$0xff]
          %398 = vst [vmem:[%s76 + $0x500] sm:$0xff] %v397
          %v399 = vld [vmem:[%s75 + $0x508] sm:$0xff]
          %400 = vst [vmem:[%s76 + $0x508] sm:$0xff] %v399
          %v401 = vld [vmem:[%s75 + $0x510] sm:$0xff]
          %402 = vst [vmem:[%s76 + $0x510] sm:$0xff] %v401
          %v403 = vld [vmem:[%s75 + $0x518] sm:$0xff]
          %404 = vst [vmem:[%s76 + $0x518] sm:$0xff] %v403
          %v405 = vld [vmem:[%s75 + $0x520] sm:$0xff]
          %406 = vst [vmem:[%s76 + $0x520] sm:$0xff] %v405
          %v407 = vld [vmem:[%s75 + $0x528] sm:$0xff]
          %408 = vst [vmem:[%s76 + $0x528] sm:$0xff] %v407
          %v409 = vld [vmem:[%s75 + $0x530] sm:$0xff]
          %410 = vst [vmem:[%s76 + $0x530] sm:$0xff] %v409
          %v411 = vld [vmem:[%s75 + $0x538] sm:$0xff]
          %412 = vst [vmem:[%s76 + $0x538] sm:$0xff] %v411
          %v413 = vld [vmem:[%s75 + $0x540] sm:$0xff]
          %414 = vst [vmem:[%s76 + $0x540] sm:$0xff] %v413
          %v415 = vld [vmem:[%s75 + $0x548] sm:$0xff]
          %416 = vst [vmem:[%s76 + $0x548] sm:$0xff] %v415
          %v417 = vld [vmem:[%s75 + $0x550] sm:$0xff]
          %418 = vst [vmem:[%s76 + $0x550] sm:$0xff] %v417
          %v419 = vld [vmem:[%s75 + $0x558] sm:$0xff]
          %420 = vst [vmem:[%s76 + $0x558] sm:$0xff] %v419
          %v421 = vld [vmem:[%s75 + $0x560] sm:$0xff]
          %422 = vst [vmem:[%s76 + $0x560] sm:$0xff] %v421
          %v423 = vld [vmem:[%s75 + $0x568] sm:$0xff]
          %424 = vst [vmem:[%s76 + $0x568] sm:$0xff] %v423
          %v425 = vld [vmem:[%s75 + $0x570] sm:$0xff]
          %426 = vst [vmem:[%s76 + $0x570] sm:$0xff] %v425
          %v427 = vld [vmem:[%s75 + $0x578] sm:$0xff]
          %428 = vst [vmem:[%s76 + $0x578] sm:$0xff] %v427
          %v429 = vld [vmem:[%s75 + $0x580] sm:$0xff]
          %430 = vst [vmem:[%s76 + $0x580] sm:$0xff] %v429
          %v431 = vld [vmem:[%s75 + $0x588] sm:$0xff]
          %432 = vst [vmem:[%s76 + $0x588] sm:$0xff] %v431
          %v433 = vld [vmem:[%s75 + $0x590] sm:$0xff]
          %434 = vst [vmem:[%s76 + $0x590] sm:$0xff] %v433
          %v435 = vld [vmem:[%s75 + $0x598] sm:$0xff]
          %436 = vst [vmem:[%s76 + $0x598] sm:$0xff] %v435
          %v437 = vld [vmem:[%s75 + $0x5a0] sm:$0xff]
          %438 = vst [vmem:[%s76 + $0x5a0] sm:$0xff] %v437
          %v439 = vld [vmem:[%s75 + $0x5a8] sm:$0xff]
          %440 = vst [vmem:[%s76 + $0x5a8] sm:$0xff] %v439
          %v441 = vld [vmem:[%s75 + $0x5b0] sm:$0xff]
          %442 = vst [vmem:[%s76 + $0x5b0] sm:$0xff] %v441
          %v443 = vld [vmem:[%s75 + $0x5b8] sm:$0xff]
          %444 = vst [vmem:[%s76 + $0x5b8] sm:$0xff] %v443
          %v445 = vld [vmem:[%s75 + $0x5c0] sm:$0xff]
          %446 = vst [vmem:[%s76 + $0x5c0] sm:$0xff] %v445
          %v447 = vld [vmem:[%s75 + $0x5c8] sm:$0xff]
          %448 = vst [vmem:[%s76 + $0x5c8] sm:$0xff] %v447
          %v449 = vld [vmem:[%s75 + $0x5d0] sm:$0xff]
          %450 = vst [vmem:[%s76 + $0x5d0] sm:$0xff] %v449
          %v451 = vld [vmem:[%s75 + $0x5d8] sm:$0xff]
          %452 = vst [vmem:[%s76 + $0x5d8] sm:$0xff] %v451
          %v453 = vld [vmem:[%s75 + $0x5e0] sm:$0xff]
          %454 = vst [vmem:[%s76 + $0x5e0] sm:$0xff] %v453
          %v455 = vld [vmem:[%s75 + $0x5e8] sm:$0xff]
          %456 = vst [vmem:[%s76 + $0x5e8] sm:$0xff] %v455
          %v457 = vld [vmem:[%s75 + $0x5f0] sm:$0xff]
          %458 = vst [vmem:[%s76 + $0x5f0] sm:$0xff] %v457
          %v459 = vld [vmem:[%s75 + $0x5f8] sm:$0xff]
          %460 = vst [vmem:[%s76 + $0x5f8] sm:$0xff] %v459
          %v461 = vld [vmem:[%s75 + $0x600] sm:$0xff]
          %462 = vst [vmem:[%s76 + $0x600] sm:$0xff] %v461
          %v463 = vld [vmem:[%s75 + $0x608] sm:$0xff]
          %464 = vst [vmem:[%s76 + $0x608] sm:$0xff] %v463
          %v465 = vld [vmem:[%s75 + $0x610] sm:$0xff]
          %466 = vst [vmem:[%s76 + $0x610] sm:$0xff] %v465
          %v467 = vld [vmem:[%s75 + $0x618] sm:$0xff]
          %468 = vst [vmem:[%s76 + $0x618] sm:$0xff] %v467
          %v469 = vld [vmem:[%s75 + $0x620] sm:$0xff]
          %470 = vst [vmem:[%s76 + $0x620] sm:$0xff] %v469
          %v471 = vld [vmem:[%s75 + $0x628] sm:$0xff]
          %472 = vst [vmem:[%s76 + $0x628] sm:$0xff] %v471
          %v473 = vld [vmem:[%s75 + $0x630] sm:$0xff]
          %474 = vst [vmem:[%s76 + $0x630] sm:$0xff] %v473
          %v475 = vld [vmem:[%s75 + $0x638] sm:$0xff]
          %476 = vst [vmem:[%s76 + $0x638] sm:$0xff] %v475
          %v477 = vld [vmem:[%s75 + $0x640] sm:$0xff]
          %478 = vst [vmem:[%s76 + $0x640] sm:$0xff] %v477
          %v479 = vld [vmem:[%s75 + $0x648] sm:$0xff]
          %480 = vst [vmem:[%s76 + $0x648] sm:$0xff] %v479
          %v481 = vld [vmem:[%s75 + $0x650] sm:$0xff]
          %482 = vst [vmem:[%s76 + $0x650] sm:$0xff] %v481
          %v483 = vld [vmem:[%s75 + $0x658] sm:$0xff]
          %484 = vst [vmem:[%s76 + $0x658] sm:$0xff] %v483
          %v485 = vld [vmem:[%s75 + $0x660] sm:$0xff]
          %486 = vst [vmem:[%s76 + $0x660] sm:$0xff] %v485
          %v487 = vld [vmem:[%s75 + $0x668] sm:$0xff]
          %488 = vst [vmem:[%s76 + $0x668] sm:$0xff] %v487
          %v489 = vld [vmem:[%s75 + $0x670] sm:$0xff]
          %490 = vst [vmem:[%s76 + $0x670] sm:$0xff] %v489
          %v491 = vld [vmem:[%s75 + $0x678] sm:$0xff]
          %492 = vst [vmem:[%s76 + $0x678] sm:$0xff] %v491
          %v493 = vld [vmem:[%s75 + $0x680] sm:$0xff]
          %494 = vst [vmem:[%s76 + $0x680] sm:$0xff] %v493
          %v495 = vld [vmem:[%s75 + $0x688] sm:$0xff]
          %496 = vst [vmem:[%s76 + $0x688] sm:$0xff] %v495
          %v497 = vld [vmem:[%s75 + $0x690] sm:$0xff]
          %498 = vst [vmem:[%s76 + $0x690] sm:$0xff] %v497
          %v499 = vld [vmem:[%s75 + $0x698] sm:$0xff]
          %500 = vst [vmem:[%s76 + $0x698] sm:$0xff] %v499
          %v501 = vld [vmem:[%s75 + $0x6a0] sm:$0xff]
          %502 = vst [vmem:[%s76 + $0x6a0] sm:$0xff] %v501
          %v503 = vld [vmem:[%s75 + $0x6a8] sm:$0xff]
          %504 = vst [vmem:[%s76 + $0x6a8] sm:$0xff] %v503
          %v505 = vld [vmem:[%s75 + $0x6b0] sm:$0xff]
          %506 = vst [vmem:[%s76 + $0x6b0] sm:$0xff] %v505
          %v507 = vld [vmem:[%s75 + $0x6b8] sm:$0xff]
          %508 = vst [vmem:[%s76 + $0x6b8] sm:$0xff] %v507
          %v509 = vld [vmem:[%s75 + $0x6c0] sm:$0xff]
          %510 = vst [vmem:[%s76 + $0x6c0] sm:$0xff] %v509
          %v511 = vld [vmem:[%s75 + $0x6c8] sm:$0xff]
          %512 = vst [vmem:[%s76 + $0x6c8] sm:$0xff] %v511
          %v513 = vld [vmem:[%s75 + $0x6d0] sm:$0xff]
          %514 = vst [vmem:[%s76 + $0x6d0] sm:$0xff] %v513
          %v515 = vld [vmem:[%s75 + $0x6d8] sm:$0xff]
          %516 = vst [vmem:[%s76 + $0x6d8] sm:$0xff] %v515
          %v517 = vld [vmem:[%s75 + $0x6e0] sm:$0xff]
          %518 = vst [vmem:[%s76 + $0x6e0] sm:$0xff] %v517
          %v519 = vld [vmem:[%s75 + $0x6e8] sm:$0xff]
          %520 = vst [vmem:[%s76 + $0x6e8] sm:$0xff] %v519
          %v521 = vld [vmem:[%s75 + $0x6f0] sm:$0xff]
          %522 = vst [vmem:[%s76 + $0x6f0] sm:$0xff] %v521
          %v523 = vld [vmem:[%s75 + $0x6f8] sm:$0xff]
          %524 = vst [vmem:[%s76 + $0x6f8] sm:$0xff] %v523
          %v525 = vld [vmem:[%s75 + $0x700] sm:$0xff]
          %526 = vst [vmem:[%s76 + $0x700] sm:$0xff] %v525
          %v527 = vld [vmem:[%s75 + $0x708] sm:$0xff]
          %528 = vst [vmem:[%s76 + $0x708] sm:$0xff] %v527
          %v529 = vld [vmem:[%s75 + $0x710] sm:$0xff]
          %530 = vst [vmem:[%s76 + $0x710] sm:$0xff] %v529
          %v531 = vld [vmem:[%s75 + $0x718] sm:$0xff]
          %532 = vst [vmem:[%s76 + $0x718] sm:$0xff] %v531
          %v533 = vld [vmem:[%s75 + $0x720] sm:$0xff]
          %534 = vst [vmem:[%s76 + $0x720] sm:$0xff] %v533
          %v535 = vld [vmem:[%s75 + $0x728] sm:$0xff]
          %536 = vst [vmem:[%s76 + $0x728] sm:$0xff] %v535
          %v537 = vld [vmem:[%s75 + $0x730] sm:$0xff]
          %538 = vst [vmem:[%s76 + $0x730] sm:$0xff] %v537
          %v539 = vld [vmem:[%s75 + $0x738] sm:$0xff]
          %540 = vst [vmem:[%s76 + $0x738] sm:$0xff] %v539
          %v541 = vld [vmem:[%s75 + $0x740] sm:$0xff]
          %542 = vst [vmem:[%s76 + $0x740] sm:$0xff] %v541
          %v543 = vld [vmem:[%s75 + $0x748] sm:$0xff]
          %544 = vst [vmem:[%s76 + $0x748] sm:$0xff] %v543
          %v545 = vld [vmem:[%s75 + $0x750] sm:$0xff]
          %546 = vst [vmem:[%s76 + $0x750] sm:$0xff] %v545
          %v547 = vld [vmem:[%s75 + $0x758] sm:$0xff]
          %548 = vst [vmem:[%s76 + $0x758] sm:$0xff] %v547
          %v549 = vld [vmem:[%s75 + $0x760] sm:$0xff]
          %550 = vst [vmem:[%s76 + $0x760] sm:$0xff] %v549
          %v551 = vld [vmem:[%s75 + $0x768] sm:$0xff]
          %552 = vst [vmem:[%s76 + $0x768] sm:$0xff] %v551
          %v553 = vld [vmem:[%s75 + $0x770] sm:$0xff]
          %554 = vst [vmem:[%s76 + $0x770] sm:$0xff] %v553
          %v555 = vld [vmem:[%s75 + $0x778] sm:$0xff]
          %556 = vst [vmem:[%s76 + $0x778] sm:$0xff] %v555
          %v557 = vld [vmem:[%s75 + $0x780] sm:$0xff]
          %558 = vst [vmem:[%s76 + $0x780] sm:$0xff] %v557
          %v559 = vld [vmem:[%s75 + $0x788] sm:$0xff]
          %560 = vst [vmem:[%s76 + $0x788] sm:$0xff] %v559
          %v561 = vld [vmem:[%s75 + $0x790] sm:$0xff]
          %562 = vst [vmem:[%s76 + $0x790] sm:$0xff] %v561
          %v563 = vld [vmem:[%s75 + $0x798] sm:$0xff]
          %564 = vst [vmem:[%s76 + $0x798] sm:$0xff] %v563
          %v565 = vld [vmem:[%s75 + $0x7a0] sm:$0xff]
          %566 = vst [vmem:[%s76 + $0x7a0] sm:$0xff] %v565
          %v567 = vld [vmem:[%s75 + $0x7a8] sm:$0xff]
          %568 = vst [vmem:[%s76 + $0x7a8] sm:$0xff] %v567
          %v569 = vld [vmem:[%s75 + $0x7b0] sm:$0xff]
          %570 = vst [vmem:[%s76 + $0x7b0] sm:$0xff] %v569
          %v571 = vld [vmem:[%s75 + $0x7b8] sm:$0xff]
          %572 = vst [vmem:[%s76 + $0x7b8] sm:$0xff] %v571
          %v573 = vld [vmem:[%s75 + $0x7c0] sm:$0xff]
          %574 = vst [vmem:[%s76 + $0x7c0] sm:$0xff] %v573
          %v575 = vld [vmem:[%s75 + $0x7c8] sm:$0xff]
          %576 = vst [vmem:[%s76 + $0x7c8] sm:$0xff] %v575
          %v577 = vld [vmem:[%s75 + $0x7d0] sm:$0xff]
          %578 = vst [vmem:[%s76 + $0x7d0] sm:$0xff] %v577
          %v579 = vld [vmem:[%s75 + $0x7d8] sm:$0xff]
          %580 = vst [vmem:[%s76 + $0x7d8] sm:$0xff] %v579
          %v581 = vld [vmem:[%s75 + $0x7e0] sm:$0xff]
          %582 = vst [vmem:[%s76 + $0x7e0] sm:$0xff] %v581
          %v583 = vld [vmem:[%s75 + $0x7e8] sm:$0xff]
          %584 = vst [vmem:[%s76 + $0x7e8] sm:$0xff] %v583
          %v585 = vld [vmem:[%s75 + $0x7f0] sm:$0xff]
          %586 = vst [vmem:[%s76 + $0x7f0] sm:$0xff] %v585
          %v587 = vld [vmem:[%s75 + $0x7f8] sm:$0xff]
          %588 = vst [vmem:[%s76 + $0x7f8] sm:$0xff] %v587
          %v589 = vld [vmem:[%s75 + $0x800] sm:$0xff]
          %590 = vst [vmem:[%s76 + $0x800] sm:$0xff] %v589
          %v591 = vld [vmem:[%s75 + $0x808] sm:$0xff]
          %592 = vst [vmem:[%s76 + $0x808] sm:$0xff] %v591
          %v593 = vld [vmem:[%s75 + $0x810] sm:$0xff]
          %594 = vst [vmem:[%s76 + $0x810] sm:$0xff] %v593
          %v595 = vld [vmem:[%s75 + $0x818] sm:$0xff]
          %596 = vst [vmem:[%s76 + $0x818] sm:$0xff] %v595
          %v597 = vld [vmem:[%s75 + $0x820] sm:$0xff]
          %598 = vst [vmem:[%s76 + $0x820] sm:$0xff] %v597
          %v599 = vld [vmem:[%s75 + $0x828] sm:$0xff]
          %600 = vst [vmem:[%s76 + $0x828] sm:$0xff] %v599
          %v601 = vld [vmem:[%s75 + $0x830] sm:$0xff]
          %602 = vst [vmem:[%s76 + $0x830] sm:$0xff] %v601
          %v603 = vld [vmem:[%s75 + $0x838] sm:$0xff]
          %604 = vst [vmem:[%s76 + $0x838] sm:$0xff] %v603
          %v605 = vld [vmem:[%s75 + $0x840] sm:$0xff]
          %606 = vst [vmem:[%s76 + $0x840] sm:$0xff] %v605
          %v607 = vld [vmem:[%s75 + $0x848] sm:$0xff]
          %608 = vst [vmem:[%s76 + $0x848] sm:$0xff] %v607
          %v609 = vld [vmem:[%s75 + $0x850] sm:$0xff]
          %610 = vst [vmem:[%s76 + $0x850] sm:$0xff] %v609
          %v611 = vld [vmem:[%s75 + $0x858] sm:$0xff]
          %612 = vst [vmem:[%s76 + $0x858] sm:$0xff] %v611
          %v613 = vld [vmem:[%s75 + $0x860] sm:$0xff]
          %614 = vst [vmem:[%s76 + $0x860] sm:$0xff] %v613
          %v615 = vld [vmem:[%s75 + $0x868] sm:$0xff]
          %616 = vst [vmem:[%s76 + $0x868] sm:$0xff] %v615
          %v617 = vld [vmem:[%s75 + $0x870] sm:$0xff]
          %618 = vst [vmem:[%s76 + $0x870] sm:$0xff] %v617
          %v619 = vld [vmem:[%s75 + $0x878] sm:$0xff]
          %620 = vst [vmem:[%s76 + $0x878] sm:$0xff] %v619
          %v621 = vld [vmem:[%s75 + $0x880] sm:$0xff]
          %622 = vst [vmem:[%s76 + $0x880] sm:$0xff] %v621
          %v623 = vld [vmem:[%s75 + $0x888] sm:$0xff]
          %624 = vst [vmem:[%s76 + $0x888] sm:$0xff] %v623
          %v625 = vld [vmem:[%s75 + $0x890] sm:$0xff]
          %626 = vst [vmem:[%s76 + $0x890] sm:$0xff] %v625
          %v627 = vld [vmem:[%s75 + $0x898] sm:$0xff]
          %628 = vst [vmem:[%s76 + $0x898] sm:$0xff] %v627
          %v629 = vld [vmem:[%s75 + $0x8a0] sm:$0xff]
          %630 = vst [vmem:[%s76 + $0x8a0] sm:$0xff] %v629
          %v631 = vld [vmem:[%s75 + $0x8a8] sm:$0xff]
          %632 = vst [vmem:[%s76 + $0x8a8] sm:$0xff] %v631
          %v633 = vld [vmem:[%s75 + $0x8b0] sm:$0xff]
          %634 = vst [vmem:[%s76 + $0x8b0] sm:$0xff] %v633
          %v635 = vld [vmem:[%s75 + $0x8b8] sm:$0xff]
          %636 = vst [vmem:[%s76 + $0x8b8] sm:$0xff] %v635
          %v637 = vld [vmem:[%s75 + $0x8c0] sm:$0xff]
          %638 = vst [vmem:[%s76 + $0x8c0] sm:$0xff] %v637
          %v639 = vld [vmem:[%s75 + $0x8c8] sm:$0xff]
          %640 = vst [vmem:[%s76 + $0x8c8] sm:$0xff] %v639
          %v641 = vld [vmem:[%s75 + $0x8d0] sm:$0xff]
          %642 = vst [vmem:[%s76 + $0x8d0] sm:$0xff] %v641
          %v643 = vld [vmem:[%s75 + $0x8d8] sm:$0xff]
          %644 = vst [vmem:[%s76 + $0x8d8] sm:$0xff] %v643
          %v645 = vld [vmem:[%s75 + $0x8e0] sm:$0xff]
          %646 = vst [vmem:[%s76 + $0x8e0] sm:$0xff] %v645
          %v647 = vld [vmem:[%s75 + $0x8e8] sm:$0xff]
          %648 = vst [vmem:[%s76 + $0x8e8] sm:$0xff] %v647
          %v649 = vld [vmem:[%s75 + $0x8f0] sm:$0xff]
          %650 = vst [vmem:[%s76 + $0x8f0] sm:$0xff] %v649
          %v651 = vld [vmem:[%s75 + $0x8f8] sm:$0xff]
          %652 = vst [vmem:[%s76 + $0x8f8] sm:$0xff] %v651
          %v653 = vld [vmem:[%s75 + $0x900] sm:$0xff]
          %654 = vst [vmem:[%s76 + $0x900] sm:$0xff] %v653
          %v655 = vld [vmem:[%s75 + $0x908] sm:$0xff]
          %656 = vst [vmem:[%s76 + $0x908] sm:$0xff] %v655
          %v657 = vld [vmem:[%s75 + $0x910] sm:$0xff]
          %658 = vst [vmem:[%s76 + $0x910] sm:$0xff] %v657
          %v659 = vld [vmem:[%s75 + $0x918] sm:$0xff]
          %660 = vst [vmem:[%s76 + $0x918] sm:$0xff] %v659
          %v661 = vld [vmem:[%s75 + $0x920] sm:$0xff]
          %662 = vst [vmem:[%s76 + $0x920] sm:$0xff] %v661
          %v663 = vld [vmem:[%s75 + $0x928] sm:$0xff]
          %664 = vst [vmem:[%s76 + $0x928] sm:$0xff] %v663
          %v665 = vld [vmem:[%s75 + $0x930] sm:$0xff]
          %666 = vst [vmem:[%s76 + $0x930] sm:$0xff] %v665
          %v667 = vld [vmem:[%s75 + $0x938] sm:$0xff]
          %668 = vst [vmem:[%s76 + $0x938] sm:$0xff] %v667
          %v669 = vld [vmem:[%s75 + $0x940] sm:$0xff]
          %670 = vst [vmem:[%s76 + $0x940] sm:$0xff] %v669
          %v671 = vld [vmem:[%s75 + $0x948] sm:$0xff]
          %672 = vst [vmem:[%s76 + $0x948] sm:$0xff] %v671
          %v673 = vld [vmem:[%s75 + $0x950] sm:$0xff]
          %674 = vst [vmem:[%s76 + $0x950] sm:$0xff] %v673
          %v675 = vld [vmem:[%s75 + $0x958] sm:$0xff]
          %676 = vst [vmem:[%s76 + $0x958] sm:$0xff] %v675
          %v677 = vld [vmem:[%s75 + $0x960] sm:$0xff]
          %678 = vst [vmem:[%s76 + $0x960] sm:$0xff] %v677
          %v679 = vld [vmem:[%s75 + $0x968] sm:$0xff]
          %680 = vst [vmem:[%s76 + $0x968] sm:$0xff] %v679
          %v681 = vld [vmem:[%s75 + $0x970] sm:$0xff]
          %682 = vst [vmem:[%s76 + $0x970] sm:$0xff] %v681
          %v683 = vld [vmem:[%s75 + $0x978] sm:$0xff]
          %684 = vst [vmem:[%s76 + $0x978] sm:$0xff] %v683
          %v685 = vld [vmem:[%s75 + $0x980] sm:$0xff]
          %686 = vst [vmem:[%s76 + $0x980] sm:$0xff] %v685
          %v687 = vld [vmem:[%s75 + $0x988] sm:$0xff]
          %688 = vst [vmem:[%s76 + $0x988] sm:$0xff] %v687
          %v689 = vld [vmem:[%s75 + $0x990] sm:$0xff]
          %690 = vst [vmem:[%s76 + $0x990] sm:$0xff] %v689
          %v691 = vld [vmem:[%s75 + $0x998] sm:$0xff]
          %692 = vst [vmem:[%s76 + $0x998] sm:$0xff] %v691
          %v693 = vld [vmem:[%s75 + $0x9a0] sm:$0xff]
          %694 = vst [vmem:[%s76 + $0x9a0] sm:$0xff] %v693
          %v695 = vld [vmem:[%s75 + $0x9a8] sm:$0xff]
          %696 = vst [vmem:[%s76 + $0x9a8] sm:$0xff] %v695
          %v697 = vld [vmem:[%s75 + $0x9b0] sm:$0xff]
          %698 = vst [vmem:[%s76 + $0x9b0] sm:$0xff] %v697
          %v699 = vld [vmem:[%s75 + $0x9b8] sm:$0xff]
          %700 = vst [vmem:[%s76 + $0x9b8] sm:$0xff] %v699
          %v701 = vld [vmem:[%s75 + $0x9c0] sm:$0xff]
          %702 = vst [vmem:[%s76 + $0x9c0] sm:$0xff] %v701
          %v703 = vld [vmem:[%s75 + $0x9c8] sm:$0xff]
          %704 = vst [vmem:[%s76 + $0x9c8] sm:$0xff] %v703
          %v705 = vld [vmem:[%s75 + $0x9d0] sm:$0xff]
          %706 = vst [vmem:[%s76 + $0x9d0] sm:$0xff] %v705
          %v707 = vld [vmem:[%s75 + $0x9d8] sm:$0xff]
          %708 = vst [vmem:[%s76 + $0x9d8] sm:$0xff] %v707
          %v709 = vld [vmem:[%s75 + $0x9e0] sm:$0xff]
          %710 = vst [vmem:[%s76 + $0x9e0] sm:$0xff] %v709
          %v711 = vld [vmem:[%s75 + $0x9e8] sm:$0xff]
          %712 = vst [vmem:[%s76 + $0x9e8] sm:$0xff] %v711
          %v713 = vld [vmem:[%s75 + $0x9f0] sm:$0xff]
          %714 = vst [vmem:[%s76 + $0x9f0] sm:$0xff] %v713
          %v715 = vld [vmem:[%s75 + $0x9f8] sm:$0xff]
          %716 = vst [vmem:[%s76 + $0x9f8] sm:$0xff] %v715
          %v717 = vld [vmem:[%s75 + $0xa00] sm:$0xff]
          %718 = vst [vmem:[%s76 + $0xa00] sm:$0xff] %v717
          %v719 = vld [vmem:[%s75 + $0xa08] sm:$0xff]
          %720 = vst [vmem:[%s76 + $0xa08] sm:$0xff] %v719
          %v721 = vld [vmem:[%s75 + $0xa10] sm:$0xff]
          %722 = vst [vmem:[%s76 + $0xa10] sm:$0xff] %v721
          %v723 = vld [vmem:[%s75 + $0xa18] sm:$0xff]
          %724 = vst [vmem:[%s76 + $0xa18] sm:$0xff] %v723
          %v725 = vld [vmem:[%s75 + $0xa20] sm:$0xff]
          %726 = vst [vmem:[%s76 + $0xa20] sm:$0xff] %v725
          %v727 = vld [vmem:[%s75 + $0xa28] sm:$0xff]
          %728 = vst [vmem:[%s76 + $0xa28] sm:$0xff] %v727
          %v729 = vld [vmem:[%s75 + $0xa30] sm:$0xff]
          %730 = vst [vmem:[%s76 + $0xa30] sm:$0xff] %v729
          %v731 = vld [vmem:[%s75 + $0xa38] sm:$0xff]
          %732 = vst [vmem:[%s76 + $0xa38] sm:$0xff] %v731
          %v733 = vld [vmem:[%s75 + $0xa40] sm:$0xff]
          %734 = vst [vmem:[%s76 + $0xa40] sm:$0xff] %v733
          %v735 = vld [vmem:[%s75 + $0xa48] sm:$0xff]
          %736 = vst [vmem:[%s76 + $0xa48] sm:$0xff] %v735
          %v737 = vld [vmem:[%s75 + $0xa50] sm:$0xff]
          %738 = vst [vmem:[%s76 + $0xa50] sm:$0xff] %v737
          %v739 = vld [vmem:[%s75 + $0xa58] sm:$0xff]
          %740 = vst [vmem:[%s76 + $0xa58] sm:$0xff] %v739
          %v741 = vld [vmem:[%s75 + $0xa60] sm:$0xff]
          %742 = vst [vmem:[%s76 + $0xa60] sm:$0xff] %v741
          %v743 = vld [vmem:[%s75 + $0xa68] sm:$0xff]
          %744 = vst [vmem:[%s76 + $0xa68] sm:$0xff] %v743
          %v745 = vld [vmem:[%s75 + $0xa70] sm:$0xff]
          %746 = vst [vmem:[%s76 + $0xa70] sm:$0xff] %v745
          %v747 = vld [vmem:[%s75 + $0xa78] sm:$0xff]
          %748 = vst [vmem:[%s76 + $0xa78] sm:$0xff] %v747
          %v749 = vld [vmem:[%s75 + $0xa80] sm:$0xff]
          %750 = vst [vmem:[%s76 + $0xa80] sm:$0xff] %v749
          %v751 = vld [vmem:[%s75 + $0xa88] sm:$0xff]
          %752 = vst [vmem:[%s76 + $0xa88] sm:$0xff] %v751
          %v753 = vld [vmem:[%s75 + $0xa90] sm:$0xff]
          %754 = vst [vmem:[%s76 + $0xa90] sm:$0xff] %v753
          %v755 = vld [vmem:[%s75 + $0xa98] sm:$0xff]
          %756 = vst [vmem:[%s76 + $0xa98] sm:$0xff] %v755
          %v757 = vld [vmem:[%s75 + $0xaa0] sm:$0xff]
          %758 = vst [vmem:[%s76 + $0xaa0] sm:$0xff] %v757
          %v759 = vld [vmem:[%s75 + $0xaa8] sm:$0xff]
          %760 = vst [vmem:[%s76 + $0xaa8] sm:$0xff] %v759
          %v761 = vld [vmem:[%s75 + $0xab0] sm:$0xff]
          %762 = vst [vmem:[%s76 + $0xab0] sm:$0xff] %v761
          %v763 = vld [vmem:[%s75 + $0xab8] sm:$0xff]
          %764 = vst [vmem:[%s76 + $0xab8] sm:$0xff] %v763
          %v765 = vld [vmem:[%s75 + $0xac0] sm:$0xff]
          %766 = vst [vmem:[%s76 + $0xac0] sm:$0xff] %v765
          %v767 = vld [vmem:[%s75 + $0xac8] sm:$0xff]
          %768 = vst [vmem:[%s76 + $0xac8] sm:$0xff] %v767
          %v769 = vld [vmem:[%s75 + $0xad0] sm:$0xff]
          %770 = vst [vmem:[%s76 + $0xad0] sm:$0xff] %v769
          %v771 = vld [vmem:[%s75 + $0xad8] sm:$0xff]
          %772 = vst [vmem:[%s76 + $0xad8] sm:$0xff] %v771
          %v773 = vld [vmem:[%s75 + $0xae0] sm:$0xff]
          %774 = vst [vmem:[%s76 + $0xae0] sm:$0xff] %v773
          %v775 = vld [vmem:[%s75 + $0xae8] sm:$0xff]
          %776 = vst [vmem:[%s76 + $0xae8] sm:$0xff] %v775
          %v777 = vld [vmem:[%s75 + $0xaf0] sm:$0xff]
          %778 = vst [vmem:[%s76 + $0xaf0] sm:$0xff] %v777
          %v779 = vld [vmem:[%s75 + $0xaf8] sm:$0xff]
          %780 = vst [vmem:[%s76 + $0xaf8] sm:$0xff] %v779
          %v781 = vld [vmem:[%s75 + $0xb00] sm:$0xff]
          %782 = vst [vmem:[%s76 + $0xb00] sm:$0xff] %v781
          %v783 = vld [vmem:[%s75 + $0xb08] sm:$0xff]
          %784 = vst [vmem:[%s76 + $0xb08] sm:$0xff] %v783
          %v785 = vld [vmem:[%s75 + $0xb10] sm:$0xff]
          %786 = vst [vmem:[%s76 + $0xb10] sm:$0xff] %v785
          %v787 = vld [vmem:[%s75 + $0xb18] sm:$0xff]
          %788 = vst [vmem:[%s76 + $0xb18] sm:$0xff] %v787
          %v789 = vld [vmem:[%s75 + $0xb20] sm:$0xff]
          %790 = vst [vmem:[%s76 + $0xb20] sm:$0xff] %v789
          %v791 = vld [vmem:[%s75 + $0xb28] sm:$0xff]
          %792 = vst [vmem:[%s76 + $0xb28] sm:$0xff] %v791
          %v793 = vld [vmem:[%s75 + $0xb30] sm:$0xff]
          %794 = vst [vmem:[%s76 + $0xb30] sm:$0xff] %v793
          %v795 = vld [vmem:[%s75 + $0xb38] sm:$0xff]
          %796 = vst [vmem:[%s76 + $0xb38] sm:$0xff] %v795
          %v797 = vld [vmem:[%s75 + $0xb40] sm:$0xff]
          %798 = vst [vmem:[%s76 + $0xb40] sm:$0xff] %v797
          %v799 = vld [vmem:[%s75 + $0xb48] sm:$0xff]
          %800 = vst [vmem:[%s76 + $0xb48] sm:$0xff] %v799
          %v801 = vld [vmem:[%s75 + $0xb50] sm:$0xff]
          %802 = vst [vmem:[%s76 + $0xb50] sm:$0xff] %v801
          %v803 = vld [vmem:[%s75 + $0xb58] sm:$0xff]
          %804 = vst [vmem:[%s76 + $0xb58] sm:$0xff] %v803
          %v805 = vld [vmem:[%s75 + $0xb60] sm:$0xff]
          %806 = vst [vmem:[%s76 + $0xb60] sm:$0xff] %v805
          %v807 = vld [vmem:[%s75 + $0xb68] sm:$0xff]
          %808 = vst [vmem:[%s76 + $0xb68] sm:$0xff] %v807
          %v809 = vld [vmem:[%s75 + $0xb70] sm:$0xff]
          %810 = vst [vmem:[%s76 + $0xb70] sm:$0xff] %v809
          %v811 = vld [vmem:[%s75 + $0xb78] sm:$0xff]
          %812 = vst [vmem:[%s76 + $0xb78] sm:$0xff] %v811
          %v813 = vld [vmem:[%s75 + $0xb80] sm:$0xff]
          %814 = vst [vmem:[%s76 + $0xb80] sm:$0xff] %v813
          %v815 = vld [vmem:[%s75 + $0xb88] sm:$0xff]
          %816 = vst [vmem:[%s76 + $0xb88] sm:$0xff] %v815
          %v817 = vld [vmem:[%s75 + $0xb90] sm:$0xff]
          %818 = vst [vmem:[%s76 + $0xb90] sm:$0xff] %v817
          %v819 = vld [vmem:[%s75 + $0xb98] sm:$0xff]
          %820 = vst [vmem:[%s76 + $0xb98] sm:$0xff] %v819
          %v821 = vld [vmem:[%s75 + $0xba0] sm:$0xff]
          %822 = vst [vmem:[%s76 + $0xba0] sm:$0xff] %v821
          %v823 = vld [vmem:[%s75 + $0xba8] sm:$0xff]
          %824 = vst [vmem:[%s76 + $0xba8] sm:$0xff] %v823
          %v825 = vld [vmem:[%s75 + $0xbb0] sm:$0xff]
          %826 = vst [vmem:[%s76 + $0xbb0] sm:$0xff] %v825
          %v827 = vld [vmem:[%s75 + $0xbb8] sm:$0xff]
          %828 = vst [vmem:[%s76 + $0xbb8] sm:$0xff] %v827
          %v829 = vld [vmem:[%s75 + $0xbc0] sm:$0xff]
          %830 = vst [vmem:[%s76 + $0xbc0] sm:$0xff] %v829
          %v831 = vld [vmem:[%s75 + $0xbc8] sm:$0xff]
          %832 = vst [vmem:[%s76 + $0xbc8] sm:$0xff] %v831
          %v833 = vld [vmem:[%s75 + $0xbd0] sm:$0xff]
          %834 = vst [vmem:[%s76 + $0xbd0] sm:$0xff] %v833
          %v835 = vld [vmem:[%s75 + $0xbd8] sm:$0xff]
          %836 = vst [vmem:[%s76 + $0xbd8] sm:$0xff] %v835
          %v837 = vld [vmem:[%s75 + $0xbe0] sm:$0xff]
          %838 = vst [vmem:[%s76 + $0xbe0] sm:$0xff] %v837
          %v839 = vld [vmem:[%s75 + $0xbe8] sm:$0xff]
          %840 = vst [vmem:[%s76 + $0xbe8] sm:$0xff] %v839
          %v841 = vld [vmem:[%s75 + $0xbf0] sm:$0xff]
          %842 = vst [vmem:[%s76 + $0xbf0] sm:$0xff] %v841
          %v843 = vld [vmem:[%s75 + $0xbf8] sm:$0xff]
          %844 = vst [vmem:[%s76 + $0xbf8] sm:$0xff] %v843
          %v845 = vld [vmem:[%s75 + $0xc00] sm:$0xff]
          %846 = vst [vmem:[%s76 + $0xc00] sm:$0xff] %v845
          %v847 = vld [vmem:[%s75 + $0xc08] sm:$0xff]
          %848 = vst [vmem:[%s76 + $0xc08] sm:$0xff] %v847
          %v849 = vld [vmem:[%s75 + $0xc10] sm:$0xff]
          %850 = vst [vmem:[%s76 + $0xc10] sm:$0xff] %v849
          %v851 = vld [vmem:[%s75 + $0xc18] sm:$0xff]
          %852 = vst [vmem:[%s76 + $0xc18] sm:$0xff] %v851
          %v853 = vld [vmem:[%s75 + $0xc20] sm:$0xff]
          %854 = vst [vmem:[%s76 + $0xc20] sm:$0xff] %v853
          %v855 = vld [vmem:[%s75 + $0xc28] sm:$0xff]
          %856 = vst [vmem:[%s76 + $0xc28] sm:$0xff] %v855
          %v857 = vld [vmem:[%s75 + $0xc30] sm:$0xff]
          %858 = vst [vmem:[%s76 + $0xc30] sm:$0xff] %v857
          %v859 = vld [vmem:[%s75 + $0xc38] sm:$0xff]
          %860 = vst [vmem:[%s76 + $0xc38] sm:$0xff] %v859
          %v861 = vld [vmem:[%s75 + $0xc40] sm:$0xff]
          %862 = vst [vmem:[%s76 + $0xc40] sm:$0xff] %v861
          %v863 = vld [vmem:[%s75 + $0xc48] sm:$0xff]
          %864 = vst [vmem:[%s76 + $0xc48] sm:$0xff] %v863
          %v865 = vld [vmem:[%s75 + $0xc50] sm:$0xff]
          %866 = vst [vmem:[%s76 + $0xc50] sm:$0xff] %v865
          %v867 = vld [vmem:[%s75 + $0xc58] sm:$0xff]
          %868 = vst [vmem:[%s76 + $0xc58] sm:$0xff] %v867
          %v869 = vld [vmem:[%s75 + $0xc60] sm:$0xff]
          %870 = vst [vmem:[%s76 + $0xc60] sm:$0xff] %v869
          %v871 = vld [vmem:[%s75 + $0xc68] sm:$0xff]
          %872 = vst [vmem:[%s76 + $0xc68] sm:$0xff] %v871
          %v873 = vld [vmem:[%s75 + $0xc70] sm:$0xff]
          %874 = vst [vmem:[%s76 + $0xc70] sm:$0xff] %v873
          %v875 = vld [vmem:[%s75 + $0xc78] sm:$0xff]
          %876 = vst [vmem:[%s76 + $0xc78] sm:$0xff] %v875
          %v877 = vld [vmem:[%s75 + $0xc80] sm:$0xff]
          %878 = vst [vmem:[%s76 + $0xc80] sm:$0xff] %v877
          %v879 = vld [vmem:[%s75 + $0xc88] sm:$0xff]
          %880 = vst [vmem:[%s76 + $0xc88] sm:$0xff] %v879
          %v881 = vld [vmem:[%s75 + $0xc90] sm:$0xff]
          %882 = vst [vmem:[%s76 + $0xc90] sm:$0xff] %v881
          %v883 = vld [vmem:[%s75 + $0xc98] sm:$0xff]
          %884 = vst [vmem:[%s76 + $0xc98] sm:$0xff] %v883
          %v885 = vld [vmem:[%s75 + $0xca0] sm:$0xff]
          %886 = vst [vmem:[%s76 + $0xca0] sm:$0xff] %v885
          %v887 = vld [vmem:[%s75 + $0xca8] sm:$0xff]
          %888 = vst [vmem:[%s76 + $0xca8] sm:$0xff] %v887
          %v889 = vld [vmem:[%s75 + $0xcb0] sm:$0xff]
          %890 = vst [vmem:[%s76 + $0xcb0] sm:$0xff] %v889
          %v891 = vld [vmem:[%s75 + $0xcb8] sm:$0xff]
          %892 = vst [vmem:[%s76 + $0xcb8] sm:$0xff] %v891
          %v893 = vld [vmem:[%s75 + $0xcc0] sm:$0xff]
          %894 = vst [vmem:[%s76 + $0xcc0] sm:$0xff] %v893
          %v895 = vld [vmem:[%s75 + $0xcc8] sm:$0xff]
          %896 = vst [vmem:[%s76 + $0xcc8] sm:$0xff] %v895
          %v897 = vld [vmem:[%s75 + $0xcd0] sm:$0xff]
          %898 = vst [vmem:[%s76 + $0xcd0] sm:$0xff] %v897
          %v899 = vld [vmem:[%s75 + $0xcd8] sm:$0xff]
          %900 = vst [vmem:[%s76 + $0xcd8] sm:$0xff] %v899
          %v901 = vld [vmem:[%s75 + $0xce0] sm:$0xff]
          %902 = vst [vmem:[%s76 + $0xce0] sm:$0xff] %v901
          %v903 = vld [vmem:[%s75 + $0xce8] sm:$0xff]
          %904 = vst [vmem:[%s76 + $0xce8] sm:$0xff] %v903
          %v905 = vld [vmem:[%s75 + $0xcf0] sm:$0xff]
          %906 = vst [vmem:[%s76 + $0xcf0] sm:$0xff] %v905
          %v907 = vld [vmem:[%s75 + $0xcf8] sm:$0xff]
          %908 = vst [vmem:[%s76 + $0xcf8] sm:$0xff] %v907
          %v909 = vld [vmem:[%s75 + $0xd00] sm:$0xff]
          %910 = vst [vmem:[%s76 + $0xd00] sm:$0xff] %v909
          %v911 = vld [vmem:[%s75 + $0xd08] sm:$0xff]
          %912 = vst [vmem:[%s76 + $0xd08] sm:$0xff] %v911
          %v913 = vld [vmem:[%s75 + $0xd10] sm:$0xff]
          %914 = vst [vmem:[%s76 + $0xd10] sm:$0xff] %v913
          %v915 = vld [vmem:[%s75 + $0xd18] sm:$0xff]
          %916 = vst [vmem:[%s76 + $0xd18] sm:$0xff] %v915
          %v917 = vld [vmem:[%s75 + $0xd20] sm:$0xff]
          %918 = vst [vmem:[%s76 + $0xd20] sm:$0xff] %v917
          %v919 = vld [vmem:[%s75 + $0xd28] sm:$0xff]
          %920 = vst [vmem:[%s76 + $0xd28] sm:$0xff] %v919
          %v921 = vld [vmem:[%s75 + $0xd30] sm:$0xff]
          %922 = vst [vmem:[%s76 + $0xd30] sm:$0xff] %v921
          %v923 = vld [vmem:[%s75 + $0xd38] sm:$0xff]
          %924 = vst [vmem:[%s76 + $0xd38] sm:$0xff] %v923
          %v925 = vld [vmem:[%s75 + $0xd40] sm:$0xff]
          %926 = vst [vmem:[%s76 + $0xd40] sm:$0xff] %v925
          %v927 = vld [vmem:[%s75 + $0xd48] sm:$0xff]
          %928 = vst [vmem:[%s76 + $0xd48] sm:$0xff] %v927
          %v929 = vld [vmem:[%s75 + $0xd50] sm:$0xff]
          %930 = vst [vmem:[%s76 + $0xd50] sm:$0xff] %v929
          %v931 = vld [vmem:[%s75 + $0xd58] sm:$0xff]
          %932 = vst [vmem:[%s76 + $0xd58] sm:$0xff] %v931
          %v933 = vld [vmem:[%s75 + $0xd60] sm:$0xff]
          %934 = vst [vmem:[%s76 + $0xd60] sm:$0xff] %v933
          %v935 = vld [vmem:[%s75 + $0xd68] sm:$0xff]
          %936 = vst [vmem:[%s76 + $0xd68] sm:$0xff] %v935
          %v937 = vld [vmem:[%s75 + $0xd70] sm:$0xff]
          %938 = vst [vmem:[%s76 + $0xd70] sm:$0xff] %v937
          %v939 = vld [vmem:[%s75 + $0xd78] sm:$0xff]
          %940 = vst [vmem:[%s76 + $0xd78] sm:$0xff] %v939
          %v941 = vld [vmem:[%s75 + $0xd80] sm:$0xff]
          %942 = vst [vmem:[%s76 + $0xd80] sm:$0xff] %v941
          %v943 = vld [vmem:[%s75 + $0xd88] sm:$0xff]
          %944 = vst [vmem:[%s76 + $0xd88] sm:$0xff] %v943
          %v945 = vld [vmem:[%s75 + $0xd90] sm:$0xff]
          %946 = vst [vmem:[%s76 + $0xd90] sm:$0xff] %v945
          %v947 = vld [vmem:[%s75 + $0xd98] sm:$0xff]
          %948 = vst [vmem:[%s76 + $0xd98] sm:$0xff] %v947
          %v949 = vld [vmem:[%s75 + $0xda0] sm:$0xff]
          %950 = vst [vmem:[%s76 + $0xda0] sm:$0xff] %v949
          %v951 = vld [vmem:[%s75 + $0xda8] sm:$0xff]
          %952 = vst [vmem:[%s76 + $0xda8] sm:$0xff] %v951
          %v953 = vld [vmem:[%s75 + $0xdb0] sm:$0xff]
          %954 = vst [vmem:[%s76 + $0xdb0] sm:$0xff] %v953
          %v955 = vld [vmem:[%s75 + $0xdb8] sm:$0xff]
          %956 = vst [vmem:[%s76 + $0xdb8] sm:$0xff] %v955
          %v957 = vld [vmem:[%s75 + $0xdc0] sm:$0xff]
          %958 = vst [vmem:[%s76 + $0xdc0] sm:$0xff] %v957
          %v959 = vld [vmem:[%s75 + $0xdc8] sm:$0xff]
          %960 = vst [vmem:[%s76 + $0xdc8] sm:$0xff] %v959
          %v961 = vld [vmem:[%s75 + $0xdd0] sm:$0xff]
          %962 = vst [vmem:[%s76 + $0xdd0] sm:$0xff] %v961
          %v963 = vld [vmem:[%s75 + $0xdd8] sm:$0xff]
          %964 = vst [vmem:[%s76 + $0xdd8] sm:$0xff] %v963
          %v965 = vld [vmem:[%s75 + $0xde0] sm:$0xff]
          %966 = vst [vmem:[%s76 + $0xde0] sm:$0xff] %v965
          %v967 = vld [vmem:[%s75 + $0xde8] sm:$0xff]
          %968 = vst [vmem:[%s76 + $0xde8] sm:$0xff] %v967
          %v969 = vld [vmem:[%s75 + $0xdf0] sm:$0xff]
          %970 = vst [vmem:[%s76 + $0xdf0] sm:$0xff] %v969
          %v971 = vld [vmem:[%s75 + $0xdf8] sm:$0xff]
          %972 = vst [vmem:[%s76 + $0xdf8] sm:$0xff] %v971
          %v973 = vld [vmem:[%s75 + $0xe00] sm:$0xff]
          %974 = vst [vmem:[%s76 + $0xe00] sm:$0xff] %v973
          %v975 = vld [vmem:[%s75 + $0xe08] sm:$0xff]
          %976 = vst [vmem:[%s76 + $0xe08] sm:$0xff] %v975
          %v977 = vld [vmem:[%s75 + $0xe10] sm:$0xff]
          %978 = vst [vmem:[%s76 + $0xe10] sm:$0xff] %v977
          %v979 = vld [vmem:[%s75 + $0xe18] sm:$0xff]
          %980 = vst [vmem:[%s76 + $0xe18] sm:$0xff] %v979
          %v981 = vld [vmem:[%s75 + $0xe20] sm:$0xff]
          %982 = vst [vmem:[%s76 + $0xe20] sm:$0xff] %v981
          %v983 = vld [vmem:[%s75 + $0xe28] sm:$0xff]
          %984 = vst [vmem:[%s76 + $0xe28] sm:$0xff] %v983
          %v985 = vld [vmem:[%s75 + $0xe30] sm:$0xff]
          %986 = vst [vmem:[%s76 + $0xe30] sm:$0xff] %v985
          %v987 = vld [vmem:[%s75 + $0xe38] sm:$0xff]
          %988 = vst [vmem:[%s76 + $0xe38] sm:$0xff] %v987
          %v989 = vld [vmem:[%s75 + $0xe40] sm:$0xff]
          %990 = vst [vmem:[%s76 + $0xe40] sm:$0xff] %v989
          %v991 = vld [vmem:[%s75 + $0xe48] sm:$0xff]
          %992 = vst [vmem:[%s76 + $0xe48] sm:$0xff] %v991
          %v993 = vld [vmem:[%s75 + $0xe50] sm:$0xff]
          %994 = vst [vmem:[%s76 + $0xe50] sm:$0xff] %v993
          %v995 = vld [vmem:[%s75 + $0xe58] sm:$0xff]
          %996 = vst [vmem:[%s76 + $0xe58] sm:$0xff] %v995
          %v997 = vld [vmem:[%s75 + $0xe60] sm:$0xff]
          %998 = vst [vmem:[%s76 + $0xe60] sm:$0xff] %v997
          %v999 = vld [vmem:[%s75 + $0xe68] sm:$0xff]
          %1000 = vst [vmem:[%s76 + $0xe68] sm:$0xff] %v999
          %v1001 = vld [vmem:[%s75 + $0xe70] sm:$0xff]
          %1002 = vst [vmem:[%s76 + $0xe70] sm:$0xff] %v1001
          %v1003 = vld [vmem:[%s75 + $0xe78] sm:$0xff]
          %1004 = vst [vmem:[%s76 + $0xe78] sm:$0xff] %v1003
          %v1005 = vld [vmem:[%s75 + $0xe80] sm:$0xff]
          %1006 = vst [vmem:[%s76 + $0xe80] sm:$0xff] %v1005
          %v1007 = vld [vmem:[%s75 + $0xe88] sm:$0xff]
          %1008 = vst [vmem:[%s76 + $0xe88] sm:$0xff] %v1007
          %v1009 = vld [vmem:[%s75 + $0xe90] sm:$0xff]
          %1010 = vst [vmem:[%s76 + $0xe90] sm:$0xff] %v1009
          %v1011 = vld [vmem:[%s75 + $0xe98] sm:$0xff]
          %1012 = vst [vmem:[%s76 + $0xe98] sm:$0xff] %v1011
          %v1013 = vld [vmem:[%s75 + $0xea0] sm:$0xff]
          %1014 = vst [vmem:[%s76 + $0xea0] sm:$0xff] %v1013
          %v1015 = vld [vmem:[%s75 + $0xea8] sm:$0xff]
          %1016 = vst [vmem:[%s76 + $0xea8] sm:$0xff] %v1015
          %v1017 = vld [vmem:[%s75 + $0xeb0] sm:$0xff]
          %1018 = vst [vmem:[%s76 + $0xeb0] sm:$0xff] %v1017
          %v1019 = vld [vmem:[%s75 + $0xeb8] sm:$0xff]
          %1020 = vst [vmem:[%s76 + $0xeb8] sm:$0xff] %v1019
          %v1021 = vld [vmem:[%s75 + $0xec0] sm:$0xff]
          %1022 = vst [vmem:[%s76 + $0xec0] sm:$0xff] %v1021
          %v1023 = vld [vmem:[%s75 + $0xec8] sm:$0xff]
          %1024 = vst [vmem:[%s76 + $0xec8] sm:$0xff] %v1023
          %v1025 = vld [vmem:[%s75 + $0xed0] sm:$0xff]
          %1026 = vst [vmem:[%s76 + $0xed0] sm:$0xff] %v1025
          %v1027 = vld [vmem:[%s75 + $0xed8] sm:$0xff]
          %1028 = vst [vmem:[%s76 + $0xed8] sm:$0xff] %v1027
          %v1029 = vld [vmem:[%s75 + $0xee0] sm:$0xff]
          %1030 = vst [vmem:[%s76 + $0xee0] sm:$0xff] %v1029
          %v1031 = vld [vmem:[%s75 + $0xee8] sm:$0xff]
          %1032 = vst [vmem:[%s76 + $0xee8] sm:$0xff] %v1031
          %v1033 = vld [vmem:[%s75 + $0xef0] sm:$0xff]
          %1034 = vst [vmem:[%s76 + $0xef0] sm:$0xff] %v1033
          %v1035 = vld [vmem:[%s75 + $0xef8] sm:$0xff]
          %1036 = vst [vmem:[%s76 + $0xef8] sm:$0xff] %v1035
          %v1037 = vld [vmem:[%s75 + $0xf00] sm:$0xff]
          %1038 = vst [vmem:[%s76 + $0xf00] sm:$0xff] %v1037
          %v1039 = vld [vmem:[%s75 + $0xf08] sm:$0xff]
          %1040 = vst [vmem:[%s76 + $0xf08] sm:$0xff] %v1039
          %v1041 = vld [vmem:[%s75 + $0xf10] sm:$0xff]
          %1042 = vst [vmem:[%s76 + $0xf10] sm:$0xff] %v1041
          %v1043 = vld [vmem:[%s75 + $0xf18] sm:$0xff]
          %1044 = vst [vmem:[%s76 + $0xf18] sm:$0xff] %v1043
          %v1045 = vld [vmem:[%s75 + $0xf20] sm:$0xff]
          %1046 = vst [vmem:[%s76 + $0xf20] sm:$0xff] %v1045
          %v1047 = vld [vmem:[%s75 + $0xf28] sm:$0xff]
          %1048 = vst [vmem:[%s76 + $0xf28] sm:$0xff] %v1047
          %v1049 = vld [vmem:[%s75 + $0xf30] sm:$0xff]
          %1050 = vst [vmem:[%s76 + $0xf30] sm:$0xff] %v1049
          %v1051 = vld [vmem:[%s75 + $0xf38] sm:$0xff]
          %1052 = vst [vmem:[%s76 + $0xf38] sm:$0xff] %v1051
          %v1053 = vld [vmem:[%s75 + $0xf40] sm:$0xff]
          %1054 = vst [vmem:[%s76 + $0xf40] sm:$0xff] %v1053
          %v1055 = vld [vmem:[%s75 + $0xf48] sm:$0xff]
          %1056 = vst [vmem:[%s76 + $0xf48] sm:$0xff] %v1055
          %v1057 = vld [vmem:[%s75 + $0xf50] sm:$0xff]
          %1058 = vst [vmem:[%s76 + $0xf50] sm:$0xff] %v1057
          %v1059 = vld [vmem:[%s75 + $0xf58] sm:$0xff]
          %1060 = vst [vmem:[%s76 + $0xf58] sm:$0xff] %v1059
          %v1061 = vld [vmem:[%s75 + $0xf60] sm:$0xff]
          %1062 = vst [vmem:[%s76 + $0xf60] sm:$0xff] %v1061
          %v1063 = vld [vmem:[%s75 + $0xf68] sm:$0xff]
          %1064 = vst [vmem:[%s76 + $0xf68] sm:$0xff] %v1063
          %v1065 = vld [vmem:[%s75 + $0xf70] sm:$0xff]
          %1066 = vst [vmem:[%s76 + $0xf70] sm:$0xff] %v1065
          %v1067 = vld [vmem:[%s75 + $0xf78] sm:$0xff]
          %1068 = vst [vmem:[%s76 + $0xf78] sm:$0xff] %v1067
          %v1069 = vld [vmem:[%s75 + $0xf80] sm:$0xff]
          %1070 = vst [vmem:[%s76 + $0xf80] sm:$0xff] %v1069
          %v1071 = vld [vmem:[%s75 + $0xf88] sm:$0xff]
          %1072 = vst [vmem:[%s76 + $0xf88] sm:$0xff] %v1071
          %v1073 = vld [vmem:[%s75 + $0xf90] sm:$0xff]
          %1074 = vst [vmem:[%s76 + $0xf90] sm:$0xff] %v1073
          %v1075 = vld [vmem:[%s75 + $0xf98] sm:$0xff]
          %1076 = vst [vmem:[%s76 + $0xf98] sm:$0xff] %v1075
          %v1077 = vld [vmem:[%s75 + $0xfa0] sm:$0xff]
          %1078 = vst [vmem:[%s76 + $0xfa0] sm:$0xff] %v1077
          %v1079 = vld [vmem:[%s75 + $0xfa8] sm:$0xff]
          %1080 = vst [vmem:[%s76 + $0xfa8] sm:$0xff] %v1079
          %v1081 = vld [vmem:[%s75 + $0xfb0] sm:$0xff]
          %1082 = vst [vmem:[%s76 + $0xfb0] sm:$0xff] %v1081
          %v1083 = vld [vmem:[%s75 + $0xfb8] sm:$0xff]
          %1084 = vst [vmem:[%s76 + $0xfb8] sm:$0xff] %v1083
          %v1085 = vld [vmem:[%s75 + $0xfc0] sm:$0xff]
          %1086 = vst [vmem:[%s76 + $0xfc0] sm:$0xff] %v1085
          %v1087 = vld [vmem:[%s75 + $0xfc8] sm:$0xff]
          %1088 = vst [vmem:[%s76 + $0xfc8] sm:$0xff] %v1087
          %v1089 = vld [vmem:[%s75 + $0xfd0] sm:$0xff]
          %1090 = vst [vmem:[%s76 + $0xfd0] sm:$0xff] %v1089
          %v1091 = vld [vmem:[%s75 + $0xfd8] sm:$0xff]
          %1092 = vst [vmem:[%s76 + $0xfd8] sm:$0xff] %v1091
          %v1093 = vld [vmem:[%s75 + $0xfe0] sm:$0xff]
          %1094 = vst [vmem:[%s76 + $0xfe0] sm:$0xff] %v1093
          %v1095 = vld [vmem:[%s75 + $0xfe8] sm:$0xff]
          %1096 = vst [vmem:[%s76 + $0xfe8] sm:$0xff] %v1095
          %v1097 = vld [vmem:[%s75 + $0xff0] sm:$0xff]
          %1098 = vst [vmem:[%s76 + $0xff0] sm:$0xff] %v1097
          %v1099 = vld [vmem:[%s75 + $0xff8] sm:$0xff]
          %1100 = vst [vmem:[%s76 + $0xff8] sm:$0xff] %v1099
          %v1101 = vld [vmem:[%s75 + $0x1000] sm:$0xff]
          %1102 = vst [vmem:[%s76 + $0x1000] sm:$0xff] %v1101
          %v1103 = vld [vmem:[%s75 + $0x1008] sm:$0xff]
          %1104 = vst [vmem:[%s76 + $0x1008] sm:$0xff] %v1103
          %v1105 = vld [vmem:[%s75 + $0x1010] sm:$0xff]
          %1106 = vst [vmem:[%s76 + $0x1010] sm:$0xff] %v1105
          %v1107 = vld [vmem:[%s75 + $0x1018] sm:$0xff]
          %1108 = vst [vmem:[%s76 + $0x1018] sm:$0xff] %v1107
          %v1109 = vld [vmem:[%s75 + $0x1020] sm:$0xff]
          %1110 = vst [vmem:[%s76 + $0x1020] sm:$0xff] %v1109
          %v1111 = vld [vmem:[%s75 + $0x1028] sm:$0xff]
          %1112 = vst [vmem:[%s76 + $0x1028] sm:$0xff] %v1111
          %v1113 = vld [vmem:[%s75 + $0x1030] sm:$0xff]
          %1114 = vst [vmem:[%s76 + $0x1030] sm:$0xff] %v1113
          %v1115 = vld [vmem:[%s75 + $0x1038] sm:$0xff]
          %1116 = vst [vmem:[%s76 + $0x1038] sm:$0xff] %v1115
          %v1117 = vld [vmem:[%s75 + $0x1040] sm:$0xff]
          %1118 = vst [vmem:[%s76 + $0x1040] sm:$0xff] %v1117
          %v1119 = vld [vmem:[%s75 + $0x1048] sm:$0xff]
          %1120 = vst [vmem:[%s76 + $0x1048] sm:$0xff] %v1119
          %v1121 = vld [vmem:[%s75 + $0x1050] sm:$0xff]
          %1122 = vst [vmem:[%s76 + $0x1050] sm:$0xff] %v1121
          %v1123 = vld [vmem:[%s75 + $0x1058] sm:$0xff]
          %1124 = vst [vmem:[%s76 + $0x1058] sm:$0xff] %v1123
          %v1125 = vld [vmem:[%s75 + $0x1060] sm:$0xff]
          %1126 = vst [vmem:[%s76 + $0x1060] sm:$0xff] %v1125
          %v1127 = vld [vmem:[%s75 + $0x1068] sm:$0xff]
          %1128 = vst [vmem:[%s76 + $0x1068] sm:$0xff] %v1127
          %v1129 = vld [vmem:[%s75 + $0x1070] sm:$0xff]
          %1130 = vst [vmem:[%s76 + $0x1070] sm:$0xff] %v1129
          %v1131 = vld [vmem:[%s75 + $0x1078] sm:$0xff]
          %1132 = vst [vmem:[%s76 + $0x1078] sm:$0xff] %v1131
          %v1133 = vld [vmem:[%s75 + $0x1080] sm:$0xff]
          %1134 = vst [vmem:[%s76 + $0x1080] sm:$0xff] %v1133
          %v1135 = vld [vmem:[%s75 + $0x1088] sm:$0xff]
          %1136 = vst [vmem:[%s76 + $0x1088] sm:$0xff] %v1135
          %v1137 = vld [vmem:[%s75 + $0x1090] sm:$0xff]
          %1138 = vst [vmem:[%s76 + $0x1090] sm:$0xff] %v1137
          %v1139 = vld [vmem:[%s75 + $0x1098] sm:$0xff]
          %1140 = vst [vmem:[%s76 + $0x1098] sm:$0xff] %v1139
          %v1141 = vld [vmem:[%s75 + $0x10a0] sm:$0xff]
          %1142 = vst [vmem:[%s76 + $0x10a0] sm:$0xff] %v1141
          %v1143 = vld [vmem:[%s75 + $0x10a8] sm:$0xff]
          %1144 = vst [vmem:[%s76 + $0x10a8] sm:$0xff] %v1143
          %v1145 = vld [vmem:[%s75 + $0x10b0] sm:$0xff]
          %1146 = vst [vmem:[%s76 + $0x10b0] sm:$0xff] %v1145
          %v1147 = vld [vmem:[%s75 + $0x10b8] sm:$0xff]
          %1148 = vst [vmem:[%s76 + $0x10b8] sm:$0xff] %v1147
          %v1149 = vld [vmem:[%s75 + $0x10c0] sm:$0xff]
          %1150 = vst [vmem:[%s76 + $0x10c0] sm:$0xff] %v1149
          %v1151 = vld [vmem:[%s75 + $0x10c8] sm:$0xff]
          %1152 = vst [vmem:[%s76 + $0x10c8] sm:$0xff] %v1151
          %v1153 = vld [vmem:[%s75 + $0x10d0] sm:$0xff]
          %1154 = vst [vmem:[%s76 + $0x10d0] sm:$0xff] %v1153
          %v1155 = vld [vmem:[%s75 + $0x10d8] sm:$0xff]
          %1156 = vst [vmem:[%s76 + $0x10d8] sm:$0xff] %v1155
          %v1157 = vld [vmem:[%s75 + $0x10e0] sm:$0xff]
          %1158 = vst [vmem:[%s76 + $0x10e0] sm:$0xff] %v1157
          %v1159 = vld [vmem:[%s75 + $0x10e8] sm:$0xff]
          %1160 = vst [vmem:[%s76 + $0x10e8] sm:$0xff] %v1159
          %v1161 = vld [vmem:[%s75 + $0x10f0] sm:$0xff]
          %1162 = vst [vmem:[%s76 + $0x10f0] sm:$0xff] %v1161
          %v1163 = vld [vmem:[%s75 + $0x10f8] sm:$0xff]
          %1164 = vst [vmem:[%s76 + $0x10f8] sm:$0xff] %v1163
          %v1165 = vld [vmem:[%s75 + $0x1100] sm:$0xff]
          %1166 = vst [vmem:[%s76 + $0x1100] sm:$0xff] %v1165
          %v1167 = vld [vmem:[%s75 + $0x1108] sm:$0xff]
          %1168 = vst [vmem:[%s76 + $0x1108] sm:$0xff] %v1167
          %v1169 = vld [vmem:[%s75 + $0x1110] sm:$0xff]
          %1170 = vst [vmem:[%s76 + $0x1110] sm:$0xff] %v1169
          %v1171 = vld [vmem:[%s75 + $0x1118] sm:$0xff]
          %1172 = vst [vmem:[%s76 + $0x1118] sm:$0xff] %v1171
          %v1173 = vld [vmem:[%s75 + $0x1120] sm:$0xff]
          %1174 = vst [vmem:[%s76 + $0x1120] sm:$0xff] %v1173
          %v1175 = vld [vmem:[%s75 + $0x1128] sm:$0xff]
          %1176 = vst [vmem:[%s76 + $0x1128] sm:$0xff] %v1175
          %v1177 = vld [vmem:[%s75 + $0x1130] sm:$0xff]
          %1178 = vst [vmem:[%s76 + $0x1130] sm:$0xff] %v1177
          %v1179 = vld [vmem:[%s75 + $0x1138] sm:$0xff]
          %1180 = vst [vmem:[%s76 + $0x1138] sm:$0xff] %v1179
          %v1181 = vld [vmem:[%s75 + $0x1140] sm:$0xff]
          %1182 = vst [vmem:[%s76 + $0x1140] sm:$0xff] %v1181
          %v1183 = vld [vmem:[%s75 + $0x1148] sm:$0xff]
          %1184 = vst [vmem:[%s76 + $0x1148] sm:$0xff] %v1183
          %v1185 = vld [vmem:[%s75 + $0x1150] sm:$0xff]
          %1186 = vst [vmem:[%s76 + $0x1150] sm:$0xff] %v1185
          %v1187 = vld [vmem:[%s75 + $0x1158] sm:$0xff]
          %1188 = vst [vmem:[%s76 + $0x1158] sm:$0xff] %v1187
          %v1189 = vld [vmem:[%s75 + $0x1160] sm:$0xff]
          %1190 = vst [vmem:[%s76 + $0x1160] sm:$0xff] %v1189
          %v1191 = vld [vmem:[%s75 + $0x1168] sm:$0xff]
          %1192 = vst [vmem:[%s76 + $0x1168] sm:$0xff] %v1191
          %v1193 = vld [vmem:[%s75 + $0x1170] sm:$0xff]
          %1194 = vst [vmem:[%s76 + $0x1170] sm:$0xff] %v1193
          %v1195 = vld [vmem:[%s75 + $0x1178] sm:$0xff]
          %1196 = vst [vmem:[%s76 + $0x1178] sm:$0xff] %v1195
          %v1197 = vld [vmem:[%s75 + $0x1180] sm:$0xff]
          %1198 = vst [vmem:[%s76 + $0x1180] sm:$0xff] %v1197
          %v1199 = vld [vmem:[%s75 + $0x1188] sm:$0xff]
          %1200 = vst [vmem:[%s76 + $0x1188] sm:$0xff] %v1199
          %v1201 = vld [vmem:[%s75 + $0x1190] sm:$0xff]
          %1202 = vst [vmem:[%s76 + $0x1190] sm:$0xff] %v1201
          %v1203 = vld [vmem:[%s75 + $0x1198] sm:$0xff]
          %1204 = vst [vmem:[%s76 + $0x1198] sm:$0xff] %v1203
          %v1205 = vld [vmem:[%s75 + $0x11a0] sm:$0xff]
          %1206 = vst [vmem:[%s76 + $0x11a0] sm:$0xff] %v1205
          %v1207 = vld [vmem:[%s75 + $0x11a8] sm:$0xff]
          %1208 = vst [vmem:[%s76 + $0x11a8] sm:$0xff] %v1207
          %v1209 = vld [vmem:[%s75 + $0x11b0] sm:$0xff]
          %1210 = vst [vmem:[%s76 + $0x11b0] sm:$0xff] %v1209
          %v1211 = vld [vmem:[%s75 + $0x11b8] sm:$0xff]
          %1212 = vst [vmem:[%s76 + $0x11b8] sm:$0xff] %v1211
          %v1213 = vld [vmem:[%s75 + $0x11c0] sm:$0xff]
          %1214 = vst [vmem:[%s76 + $0x11c0] sm:$0xff] %v1213
          %v1215 = vld [vmem:[%s75 + $0x11c8] sm:$0xff]
          %1216 = vst [vmem:[%s76 + $0x11c8] sm:$0xff] %v1215
          %v1217 = vld [vmem:[%s75 + $0x11d0] sm:$0xff]
          %1218 = vst [vmem:[%s76 + $0x11d0] sm:$0xff] %v1217
          %v1219 = vld [vmem:[%s75 + $0x11d8] sm:$0xff]
          %1220 = vst [vmem:[%s76 + $0x11d8] sm:$0xff] %v1219
          %v1221 = vld [vmem:[%s75 + $0x11e0] sm:$0xff]
          %1222 = vst [vmem:[%s76 + $0x11e0] sm:$0xff] %v1221
          %v1223 = vld [vmem:[%s75 + $0x11e8] sm:$0xff]
          %1224 = vst [vmem:[%s76 + $0x11e8] sm:$0xff] %v1223
          %v1225 = vld [vmem:[%s75 + $0x11f0] sm:$0xff]
          %1226 = vst [vmem:[%s76 + $0x11f0] sm:$0xff] %v1225
          %v1227 = vld [vmem:[%s75 + $0x11f8] sm:$0xff]
          %1228 = vst [vmem:[%s76 + $0x11f8] sm:$0xff] %v1227
          %v1229 = vld [vmem:[%s75 + $0x1200] sm:$0xff]
          %1230 = vst [vmem:[%s76 + $0x1200] sm:$0xff] %v1229
          %v1231 = vld [vmem:[%s75 + $0x1208] sm:$0xff]
          %1232 = vst [vmem:[%s76 + $0x1208] sm:$0xff] %v1231
          %v1233 = vld [vmem:[%s75 + $0x1210] sm:$0xff]
          %1234 = vst [vmem:[%s76 + $0x1210] sm:$0xff] %v1233
          %v1235 = vld [vmem:[%s75 + $0x1218] sm:$0xff]
          %1236 = vst [vmem:[%s76 + $0x1218] sm:$0xff] %v1235
          %v1237 = vld [vmem:[%s75 + $0x1220] sm:$0xff]
          %1238 = vst [vmem:[%s76 + $0x1220] sm:$0xff] %v1237
          %v1239 = vld [vmem:[%s75 + $0x1228] sm:$0xff]
          %1240 = vst [vmem:[%s76 + $0x1228] sm:$0xff] %v1239
          %v1241 = vld [vmem:[%s75 + $0x1230] sm:$0xff]
          %1242 = vst [vmem:[%s76 + $0x1230] sm:$0xff] %v1241
          %v1243 = vld [vmem:[%s75 + $0x1238] sm:$0xff]
          %1244 = vst [vmem:[%s76 + $0x1238] sm:$0xff] %v1243
          %v1245 = vld [vmem:[%s75 + $0x1240] sm:$0xff]
          %1246 = vst [vmem:[%s76 + $0x1240] sm:$0xff] %v1245
          %v1247 = vld [vmem:[%s75 + $0x1248] sm:$0xff]
          %1248 = vst [vmem:[%s76 + $0x1248] sm:$0xff] %v1247
          %v1249 = vld [vmem:[%s75 + $0x1250] sm:$0xff]
          %1250 = vst [vmem:[%s76 + $0x1250] sm:$0xff] %v1249
          %v1251 = vld [vmem:[%s75 + $0x1258] sm:$0xff]
          %1252 = vst [vmem:[%s76 + $0x1258] sm:$0xff] %v1251
          %v1253 = vld [vmem:[%s75 + $0x1260] sm:$0xff]
          %1254 = vst [vmem:[%s76 + $0x1260] sm:$0xff] %v1253
          %v1255 = vld [vmem:[%s75 + $0x1268] sm:$0xff]
          %1256 = vst [vmem:[%s76 + $0x1268] sm:$0xff] %v1255
          %v1257 = vld [vmem:[%s75 + $0x1270] sm:$0xff]
          %1258 = vst [vmem:[%s76 + $0x1270] sm:$0xff] %v1257
          %v1259 = vld [vmem:[%s75 + $0x1278] sm:$0xff]
          %1260 = vst [vmem:[%s76 + $0x1278] sm:$0xff] %v1259
          %v1261 = vld [vmem:[%s75 + $0x1280] sm:$0xff]
          %1262 = vst [vmem:[%s76 + $0x1280] sm:$0xff] %v1261
          %v1263 = vld [vmem:[%s75 + $0x1288] sm:$0xff]
          %1264 = vst [vmem:[%s76 + $0x1288] sm:$0xff] %v1263
          %v1265 = vld [vmem:[%s75 + $0x1290] sm:$0xff]
          %1266 = vst [vmem:[%s76 + $0x1290] sm:$0xff] %v1265
          %v1267 = vld [vmem:[%s75 + $0x1298] sm:$0xff]
          %1268 = vst [vmem:[%s76 + $0x1298] sm:$0xff] %v1267
          %v1269 = vld [vmem:[%s75 + $0x12a0] sm:$0xff]
          %1270 = vst [vmem:[%s76 + $0x12a0] sm:$0xff] %v1269
          %v1271 = vld [vmem:[%s75 + $0x12a8] sm:$0xff]
          %1272 = vst [vmem:[%s76 + $0x12a8] sm:$0xff] %v1271
          %v1273 = vld [vmem:[%s75 + $0x12b0] sm:$0xff]
          %1274 = vst [vmem:[%s76 + $0x12b0] sm:$0xff] %v1273
          %v1275 = vld [vmem:[%s75 + $0x12b8] sm:$0xff]
          %1276 = vst [vmem:[%s76 + $0x12b8] sm:$0xff] %v1275
          %v1277 = vld [vmem:[%s75 + $0x12c0] sm:$0xff]
          %1278 = vst [vmem:[%s76 + $0x12c0] sm:$0xff] %v1277
          %v1279 = vld [vmem:[%s75 + $0x12c8] sm:$0xff]
          %1280 = vst [vmem:[%s76 + $0x12c8] sm:$0xff] %v1279
          %v1281 = vld [vmem:[%s75 + $0x12d0] sm:$0xff]
          %1282 = vst [vmem:[%s76 + $0x12d0] sm:$0xff] %v1281
          %v1283 = vld [vmem:[%s75 + $0x12d8] sm:$0xff]
          %1284 = vst [vmem:[%s76 + $0x12d8] sm:$0xff] %v1283
          %v1285 = vld [vmem:[%s75 + $0x12e0] sm:$0xff]
          %1286 = vst [vmem:[%s76 + $0x12e0] sm:$0xff] %v1285
          %v1287 = vld [vmem:[%s75 + $0x12e8] sm:$0xff]
          %1288 = vst [vmem:[%s76 + $0x12e8] sm:$0xff] %v1287
          %v1289 = vld [vmem:[%s75 + $0x12f0] sm:$0xff]
          %1290 = vst [vmem:[%s76 + $0x12f0] sm:$0xff] %v1289
          %v1291 = vld [vmem:[%s75 + $0x12f8] sm:$0xff]
          %1292 = vst [vmem:[%s76 + $0x12f8] sm:$0xff] %v1291
          %v1293 = vld [vmem:[%s75 + $0x1300] sm:$0xff]
          %1294 = vst [vmem:[%s76 + $0x1300] sm:$0xff] %v1293
          %v1295 = vld [vmem:[%s75 + $0x1308] sm:$0xff]
          %1296 = vst [vmem:[%s76 + $0x1308] sm:$0xff] %v1295
          %v1297 = vld [vmem:[%s75 + $0x1310] sm:$0xff]
          %1298 = vst [vmem:[%s76 + $0x1310] sm:$0xff] %v1297
          %v1299 = vld [vmem:[%s75 + $0x1318] sm:$0xff]
          %1300 = vst [vmem:[%s76 + $0x1318] sm:$0xff] %v1299
          %v1301 = vld [vmem:[%s75 + $0x1320] sm:$0xff]
          %1302 = vst [vmem:[%s76 + $0x1320] sm:$0xff] %v1301
          %v1303 = vld [vmem:[%s75 + $0x1328] sm:$0xff]
          %1304 = vst [vmem:[%s76 + $0x1328] sm:$0xff] %v1303
          %v1305 = vld [vmem:[%s75 + $0x1330] sm:$0xff]
          %1306 = vst [vmem:[%s76 + $0x1330] sm:$0xff] %v1305
          %v1307 = vld [vmem:[%s75 + $0x1338] sm:$0xff]
          %1308 = vst [vmem:[%s76 + $0x1338] sm:$0xff] %v1307
          %v1309 = vld [vmem:[%s75 + $0x1340] sm:$0xff]
          %1310 = vst [vmem:[%s76 + $0x1340] sm:$0xff] %v1309
          %v1311 = vld [vmem:[%s75 + $0x1348] sm:$0xff]
          %1312 = vst [vmem:[%s76 + $0x1348] sm:$0xff] %v1311
          %v1313 = vld [vmem:[%s75 + $0x1350] sm:$0xff]
          %1314 = vst [vmem:[%s76 + $0x1350] sm:$0xff] %v1313
          %v1315 = vld [vmem:[%s75 + $0x1358] sm:$0xff]
          %1316 = vst [vmem:[%s76 + $0x1358] sm:$0xff] %v1315
          %v1317 = vld [vmem:[%s75 + $0x1360] sm:$0xff]
          %1318 = vst [vmem:[%s76 + $0x1360] sm:$0xff] %v1317
          %v1319 = vld [vmem:[%s75 + $0x1368] sm:$0xff]
          %1320 = vst [vmem:[%s76 + $0x1368] sm:$0xff] %v1319
          %v1321 = vld [vmem:[%s75 + $0x1370] sm:$0xff]
          %1322 = vst [vmem:[%s76 + $0x1370] sm:$0xff] %v1321
          %v1323 = vld [vmem:[%s75 + $0x1378] sm:$0xff]
          %1324 = vst [vmem:[%s76 + $0x1378] sm:$0xff] %v1323
          %v1325 = vld [vmem:[%s75 + $0x1380] sm:$0xff]
          %1326 = vst [vmem:[%s76 + $0x1380] sm:$0xff] %v1325
          %v1327 = vld [vmem:[%s75 + $0x1388] sm:$0xff]
          %1328 = vst [vmem:[%s76 + $0x1388] sm:$0xff] %v1327
          %v1329 = vld [vmem:[%s75 + $0x1390] sm:$0xff]
          %1330 = vst [vmem:[%s76 + $0x1390] sm:$0xff] %v1329
          %v1331 = vld [vmem:[%s75 + $0x1398] sm:$0xff]
          %1332 = vst [vmem:[%s76 + $0x1398] sm:$0xff] %v1331
          %v1333 = vld [vmem:[%s75 + $0x13a0] sm:$0xff]
          %1334 = vst [vmem:[%s76 + $0x13a0] sm:$0xff] %v1333
          %v1335 = vld [vmem:[%s75 + $0x13a8] sm:$0xff]
          %1336 = vst [vmem:[%s76 + $0x13a8] sm:$0xff] %v1335
          %v1337 = vld [vmem:[%s75 + $0x13b0] sm:$0xff]
          %1338 = vst [vmem:[%s76 + $0x13b0] sm:$0xff] %v1337
          %v1339 = vld [vmem:[%s75 + $0x13b8] sm:$0xff]
          %1340 = vst [vmem:[%s76 + $0x13b8] sm:$0xff] %v1339
          %v1341 = vld [vmem:[%s75 + $0x13c0] sm:$0xff]
          %1342 = vst [vmem:[%s76 + $0x13c0] sm:$0xff] %v1341
          %v1343 = vld [vmem:[%s75 + $0x13c8] sm:$0xff]
          %1344 = vst [vmem:[%s76 + $0x13c8] sm:$0xff] %v1343
          %v1345 = vld [vmem:[%s75 + $0x13d0] sm:$0xff]
          %1346 = vst [vmem:[%s76 + $0x13d0] sm:$0xff] %v1345
          %v1347 = vld [vmem:[%s75 + $0x13d8] sm:$0xff]
          %1348 = vst [vmem:[%s76 + $0x13d8] sm:$0xff] %v1347
          %v1349 = vld [vmem:[%s75 + $0x13e0] sm:$0xff]
          %1350 = vst [vmem:[%s76 + $0x13e0] sm:$0xff] %v1349
          %v1351 = vld [vmem:[%s75 + $0x13e8] sm:$0xff]
          %1352 = vst [vmem:[%s76 + $0x13e8] sm:$0xff] %v1351
          %v1353 = vld [vmem:[%s75 + $0x13f0] sm:$0xff]
          %1354 = vst [vmem:[%s76 + $0x13f0] sm:$0xff] %v1353
          %v1355 = vld [vmem:[%s75 + $0x13f8] sm:$0xff]
          %1356 = vst [vmem:[%s76 + $0x13f8] sm:$0xff] %v1355
          %v1357 = vld [vmem:[%s75 + $0x1400] sm:$0xff]
          %1358 = vst [vmem:[%s76 + $0x1400] sm:$0xff] %v1357
          %v1359 = vld [vmem:[%s75 + $0x1408] sm:$0xff]
          %1360 = vst [vmem:[%s76 + $0x1408] sm:$0xff] %v1359
          %v1361 = vld [vmem:[%s75 + $0x1410] sm:$0xff]
          %1362 = vst [vmem:[%s76 + $0x1410] sm:$0xff] %v1361
          %v1363 = vld [vmem:[%s75 + $0x1418] sm:$0xff]
          %1364 = vst [vmem:[%s76 + $0x1418] sm:$0xff] %v1363
          %v1365 = vld [vmem:[%s75 + $0x1420] sm:$0xff]
          %1366 = vst [vmem:[%s76 + $0x1420] sm:$0xff] %v1365
          %v1367 = vld [vmem:[%s75 + $0x1428] sm:$0xff]
          %1368 = vst [vmem:[%s76 + $0x1428] sm:$0xff] %v1367
          %v1369 = vld [vmem:[%s75 + $0x1430] sm:$0xff]
          %1370 = vst [vmem:[%s76 + $0x1430] sm:$0xff] %v1369
          %v1371 = vld [vmem:[%s75 + $0x1438] sm:$0xff]
          %1372 = vst [vmem:[%s76 + $0x1438] sm:$0xff] %v1371
          %v1373 = vld [vmem:[%s75 + $0x1440] sm:$0xff]
          %1374 = vst [vmem:[%s76 + $0x1440] sm:$0xff] %v1373
          %v1375 = vld [vmem:[%s75 + $0x1448] sm:$0xff]
          %1376 = vst [vmem:[%s76 + $0x1448] sm:$0xff] %v1375
          %v1377 = vld [vmem:[%s75 + $0x1450] sm:$0xff]
          %1378 = vst [vmem:[%s76 + $0x1450] sm:$0xff] %v1377
          %v1379 = vld [vmem:[%s75 + $0x1458] sm:$0xff]
          %1380 = vst [vmem:[%s76 + $0x1458] sm:$0xff] %v1379
          %v1381 = vld [vmem:[%s75 + $0x1460] sm:$0xff]
          %1382 = vst [vmem:[%s76 + $0x1460] sm:$0xff] %v1381
          %v1383 = vld [vmem:[%s75 + $0x1468] sm:$0xff]
          %1384 = vst [vmem:[%s76 + $0x1468] sm:$0xff] %v1383
          %v1385 = vld [vmem:[%s75 + $0x1470] sm:$0xff]
          %1386 = vst [vmem:[%s76 + $0x1470] sm:$0xff] %v1385
          %v1387 = vld [vmem:[%s75 + $0x1478] sm:$0xff]
          %1388 = vst [vmem:[%s76 + $0x1478] sm:$0xff] %v1387
          %v1389 = vld [vmem:[%s75 + $0x1480] sm:$0xff]
          %1390 = vst [vmem:[%s76 + $0x1480] sm:$0xff] %v1389
          %v1391 = vld [vmem:[%s75 + $0x1488] sm:$0xff]
          %1392 = vst [vmem:[%s76 + $0x1488] sm:$0xff] %v1391
          %v1393 = vld [vmem:[%s75 + $0x1490] sm:$0xff]
          %1394 = vst [vmem:[%s76 + $0x1490] sm:$0xff] %v1393
          %v1395 = vld [vmem:[%s75 + $0x1498] sm:$0xff]
          %1396 = vst [vmem:[%s76 + $0x1498] sm:$0xff] %v1395
          %v1397 = vld [vmem:[%s75 + $0x14a0] sm:$0xff]
          %1398 = vst [vmem:[%s76 + $0x14a0] sm:$0xff] %v1397
          %v1399 = vld [vmem:[%s75 + $0x14a8] sm:$0xff]
          %1400 = vst [vmem:[%s76 + $0x14a8] sm:$0xff] %v1399
          %v1401 = vld [vmem:[%s75 + $0x14b0] sm:$0xff]
          %1402 = vst [vmem:[%s76 + $0x14b0] sm:$0xff] %v1401
          %v1403 = vld [vmem:[%s75 + $0x14b8] sm:$0xff]
          %1404 = vst [vmem:[%s76 + $0x14b8] sm:$0xff] %v1403
          %v1405 = vld [vmem:[%s75 + $0x14c0] sm:$0xff]
          %1406 = vst [vmem:[%s76 + $0x14c0] sm:$0xff] %v1405
          %v1407 = vld [vmem:[%s75 + $0x14c8] sm:$0xff]
          %1408 = vst [vmem:[%s76 + $0x14c8] sm:$0xff] %v1407
          %v1409 = vld [vmem:[%s75 + $0x14d0] sm:$0xff]
          %1410 = vst [vmem:[%s76 + $0x14d0] sm:$0xff] %v1409
          %v1411 = vld [vmem:[%s75 + $0x14d8] sm:$0xff]
          %1412 = vst [vmem:[%s76 + $0x14d8] sm:$0xff] %v1411
          %v1413 = vld [vmem:[%s75 + $0x14e0] sm:$0xff]
          %1414 = vst [vmem:[%s76 + $0x14e0] sm:$0xff] %v1413
          %v1415 = vld [vmem:[%s75 + $0x14e8] sm:$0xff]
          %1416 = vst [vmem:[%s76 + $0x14e8] sm:$0xff] %v1415
          %v1417 = vld [vmem:[%s75 + $0x14f0] sm:$0xff]
          %1418 = vst [vmem:[%s76 + $0x14f0] sm:$0xff] %v1417
          %v1419 = vld [vmem:[%s75 + $0x14f8] sm:$0xff]
          %1420 = vst [vmem:[%s76 + $0x14f8] sm:$0xff] %v1419
          %v1421 = vld [vmem:[%s75 + $0x1500] sm:$0xff]
          %1422 = vst [vmem:[%s76 + $0x1500] sm:$0xff] %v1421
          %v1423 = vld [vmem:[%s75 + $0x1508] sm:$0xff]
          %1424 = vst [vmem:[%s76 + $0x1508] sm:$0xff] %v1423
          %v1425 = vld [vmem:[%s75 + $0x1510] sm:$0xff]
          %1426 = vst [vmem:[%s76 + $0x1510] sm:$0xff] %v1425
          %v1427 = vld [vmem:[%s75 + $0x1518] sm:$0xff]
          %1428 = vst [vmem:[%s76 + $0x1518] sm:$0xff] %v1427
          %v1429 = vld [vmem:[%s75 + $0x1520] sm:$0xff]
          %1430 = vst [vmem:[%s76 + $0x1520] sm:$0xff] %v1429
          %v1431 = vld [vmem:[%s75 + $0x1528] sm:$0xff]
          %1432 = vst [vmem:[%s76 + $0x1528] sm:$0xff] %v1431
          %v1433 = vld [vmem:[%s75 + $0x1530] sm:$0xff]
          %1434 = vst [vmem:[%s76 + $0x1530] sm:$0xff] %v1433
          %v1435 = vld [vmem:[%s75 + $0x1538] sm:$0xff]
          %1436 = vst [vmem:[%s76 + $0x1538] sm:$0xff] %v1435
          %v1437 = vld [vmem:[%s75 + $0x1540] sm:$0xff]
          %1438 = vst [vmem:[%s76 + $0x1540] sm:$0xff] %v1437
          %v1439 = vld [vmem:[%s75 + $0x1548] sm:$0xff]
          %1440 = vst [vmem:[%s76 + $0x1548] sm:$0xff] %v1439
          %v1441 = vld [vmem:[%s75 + $0x1550] sm:$0xff]
          %1442 = vst [vmem:[%s76 + $0x1550] sm:$0xff] %v1441
          %v1443 = vld [vmem:[%s75 + $0x1558] sm:$0xff]
          %1444 = vst [vmem:[%s76 + $0x1558] sm:$0xff] %v1443
          %v1445 = vld [vmem:[%s75 + $0x1560] sm:$0xff]
          %1446 = vst [vmem:[%s76 + $0x1560] sm:$0xff] %v1445
          %v1447 = vld [vmem:[%s75 + $0x1568] sm:$0xff]
          %1448 = vst [vmem:[%s76 + $0x1568] sm:$0xff] %v1447
          %v1449 = vld [vmem:[%s75 + $0x1570] sm:$0xff]
          %1450 = vst [vmem:[%s76 + $0x1570] sm:$0xff] %v1449
          %v1451 = vld [vmem:[%s75 + $0x1578] sm:$0xff]
          %1452 = vst [vmem:[%s76 + $0x1578] sm:$0xff] %v1451
          %v1453 = vld [vmem:[%s75 + $0x1580] sm:$0xff]
          %1454 = vst [vmem:[%s76 + $0x1580] sm:$0xff] %v1453
          %v1455 = vld [vmem:[%s75 + $0x1588] sm:$0xff]
          %1456 = vst [vmem:[%s76 + $0x1588] sm:$0xff] %v1455
          %v1457 = vld [vmem:[%s75 + $0x1590] sm:$0xff]
          %1458 = vst [vmem:[%s76 + $0x1590] sm:$0xff] %v1457
          %v1459 = vld [vmem:[%s75 + $0x1598] sm:$0xff]
          %1460 = vst [vmem:[%s76 + $0x1598] sm:$0xff] %v1459
          %v1461 = vld [vmem:[%s75 + $0x15a0] sm:$0xff]
          %1462 = vst [vmem:[%s76 + $0x15a0] sm:$0xff] %v1461
          %v1463 = vld [vmem:[%s75 + $0x15a8] sm:$0xff]
          %1464 = vst [vmem:[%s76 + $0x15a8] sm:$0xff] %v1463
          %v1465 = vld [vmem:[%s75 + $0x15b0] sm:$0xff]
          %1466 = vst [vmem:[%s76 + $0x15b0] sm:$0xff] %v1465
          %v1467 = vld [vmem:[%s75 + $0x15b8] sm:$0xff]
          %1468 = vst [vmem:[%s76 + $0x15b8] sm:$0xff] %v1467
          %v1469 = vld [vmem:[%s75 + $0x15c0] sm:$0xff]
          %1470 = vst [vmem:[%s76 + $0x15c0] sm:$0xff] %v1469
          %v1471 = vld [vmem:[%s75 + $0x15c8] sm:$0xff]
          %1472 = vst [vmem:[%s76 + $0x15c8] sm:$0xff] %v1471
          %v1473 = vld [vmem:[%s75 + $0x15d0] sm:$0xff]
          %1474 = vst [vmem:[%s76 + $0x15d0] sm:$0xff] %v1473
          %v1475 = vld [vmem:[%s75 + $0x15d8] sm:$0xff]
          %1476 = vst [vmem:[%s76 + $0x15d8] sm:$0xff] %v1475
          %v1477 = vld [vmem:[%s75 + $0x15e0] sm:$0xff]
          %1478 = vst [vmem:[%s76 + $0x15e0] sm:$0xff] %v1477
          %v1479 = vld [vmem:[%s75 + $0x15e8] sm:$0xff]
          %1480 = vst [vmem:[%s76 + $0x15e8] sm:$0xff] %v1479
          %v1481 = vld [vmem:[%s75 + $0x15f0] sm:$0xff]
          %1482 = vst [vmem:[%s76 + $0x15f0] sm:$0xff] %v1481
          %v1483 = vld [vmem:[%s75 + $0x15f8] sm:$0xff]
          %1484 = vst [vmem:[%s76 + $0x15f8] sm:$0xff] %v1483
          %v1485 = vld [vmem:[%s75 + $0x1600] sm:$0xff]
          %1486 = vst [vmem:[%s76 + $0x1600] sm:$0xff] %v1485
          %v1487 = vld [vmem:[%s75 + $0x1608] sm:$0xff]
          %1488 = vst [vmem:[%s76 + $0x1608] sm:$0xff] %v1487
          %v1489 = vld [vmem:[%s75 + $0x1610] sm:$0xff]
          %1490 = vst [vmem:[%s76 + $0x1610] sm:$0xff] %v1489
          %v1491 = vld [vmem:[%s75 + $0x1618] sm:$0xff]
          %1492 = vst [vmem:[%s76 + $0x1618] sm:$0xff] %v1491
          %v1493 = vld [vmem:[%s75 + $0x1620] sm:$0xff]
          %1494 = vst [vmem:[%s76 + $0x1620] sm:$0xff] %v1493
          %v1495 = vld [vmem:[%s75 + $0x1628] sm:$0xff]
          %1496 = vst [vmem:[%s76 + $0x1628] sm:$0xff] %v1495
          %v1497 = vld [vmem:[%s75 + $0x1630] sm:$0xff]
          %1498 = vst [vmem:[%s76 + $0x1630] sm:$0xff] %v1497
          %v1499 = vld [vmem:[%s75 + $0x1638] sm:$0xff]
          %1500 = vst [vmem:[%s76 + $0x1638] sm:$0xff] %v1499
          %v1501 = vld [vmem:[%s75 + $0x1640] sm:$0xff]
          %1502 = vst [vmem:[%s76 + $0x1640] sm:$0xff] %v1501
          %v1503 = vld [vmem:[%s75 + $0x1648] sm:$0xff]
          %1504 = vst [vmem:[%s76 + $0x1648] sm:$0xff] %v1503
          %v1505 = vld [vmem:[%s75 + $0x1650] sm:$0xff]
          %1506 = vst [vmem:[%s76 + $0x1650] sm:$0xff] %v1505
          %v1507 = vld [vmem:[%s75 + $0x1658] sm:$0xff]
          %1508 = vst [vmem:[%s76 + $0x1658] sm:$0xff] %v1507
          %v1509 = vld [vmem:[%s75 + $0x1660] sm:$0xff]
          %1510 = vst [vmem:[%s76 + $0x1660] sm:$0xff] %v1509
          %v1511 = vld [vmem:[%s75 + $0x1668] sm:$0xff]
          %1512 = vst [vmem:[%s76 + $0x1668] sm:$0xff] %v1511
          %v1513 = vld [vmem:[%s75 + $0x1670] sm:$0xff]
          %1514 = vst [vmem:[%s76 + $0x1670] sm:$0xff] %v1513
          %v1515 = vld [vmem:[%s75 + $0x1678] sm:$0xff]
          %1516 = vst [vmem:[%s76 + $0x1678] sm:$0xff] %v1515
          %v1517 = vld [vmem:[%s75 + $0x1680] sm:$0xff]
          %1518 = vst [vmem:[%s76 + $0x1680] sm:$0xff] %v1517
          %v1519 = vld [vmem:[%s75 + $0x1688] sm:$0xff]
          %1520 = vst [vmem:[%s76 + $0x1688] sm:$0xff] %v1519
          %v1521 = vld [vmem:[%s75 + $0x1690] sm:$0xff]
          %1522 = vst [vmem:[%s76 + $0x1690] sm:$0xff] %v1521
          %v1523 = vld [vmem:[%s75 + $0x1698] sm:$0xff]
          %1524 = vst [vmem:[%s76 + $0x1698] sm:$0xff] %v1523
          %v1525 = vld [vmem:[%s75 + $0x16a0] sm:$0xff]
          %1526 = vst [vmem:[%s76 + $0x16a0] sm:$0xff] %v1525
          %v1527 = vld [vmem:[%s75 + $0x16a8] sm:$0xff]
          %1528 = vst [vmem:[%s76 + $0x16a8] sm:$0xff] %v1527
          %v1529 = vld [vmem:[%s75 + $0x16b0] sm:$0xff]
          %1530 = vst [vmem:[%s76 + $0x16b0] sm:$0xff] %v1529
          %v1531 = vld [vmem:[%s75 + $0x16b8] sm:$0xff]
          %1532 = vst [vmem:[%s76 + $0x16b8] sm:$0xff] %v1531
          %v1533 = vld [vmem:[%s75 + $0x16c0] sm:$0xff]
          %1534 = vst [vmem:[%s76 + $0x16c0] sm:$0xff] %v1533
          %v1535 = vld [vmem:[%s75 + $0x16c8] sm:$0xff]
          %1536 = vst [vmem:[%s76 + $0x16c8] sm:$0xff] %v1535
          %v1537 = vld [vmem:[%s75 + $0x16d0] sm:$0xff]
          %1538 = vst [vmem:[%s76 + $0x16d0] sm:$0xff] %v1537
          %v1539 = vld [vmem:[%s75 + $0x16d8] sm:$0xff]
          %1540 = vst [vmem:[%s76 + $0x16d8] sm:$0xff] %v1539
          %v1541 = vld [vmem:[%s75 + $0x16e0] sm:$0xff]
          %1542 = vst [vmem:[%s76 + $0x16e0] sm:$0xff] %v1541
          %v1543 = vld [vmem:[%s75 + $0x16e8] sm:$0xff]
          %1544 = vst [vmem:[%s76 + $0x16e8] sm:$0xff] %v1543
          %v1545 = vld [vmem:[%s75 + $0x16f0] sm:$0xff]
          %1546 = vst [vmem:[%s76 + $0x16f0] sm:$0xff] %v1545
          %v1547 = vld [vmem:[%s75 + $0x16f8] sm:$0xff]
          %1548 = vst [vmem:[%s76 + $0x16f8] sm:$0xff] %v1547
          %v1549 = vld [vmem:[%s75 + $0x1700] sm:$0xff]
          %1550 = vst [vmem:[%s76 + $0x1700] sm:$0xff] %v1549
          %v1551 = vld [vmem:[%s75 + $0x1708] sm:$0xff]
          %1552 = vst [vmem:[%s76 + $0x1708] sm:$0xff] %v1551
          %v1553 = vld [vmem:[%s75 + $0x1710] sm:$0xff]
          %1554 = vst [vmem:[%s76 + $0x1710] sm:$0xff] %v1553
          %v1555 = vld [vmem:[%s75 + $0x1718] sm:$0xff]
          %1556 = vst [vmem:[%s76 + $0x1718] sm:$0xff] %v1555
          %v1557 = vld [vmem:[%s75 + $0x1720] sm:$0xff]
          %1558 = vst [vmem:[%s76 + $0x1720] sm:$0xff] %v1557
          %v1559 = vld [vmem:[%s75 + $0x1728] sm:$0xff]
          %1560 = vst [vmem:[%s76 + $0x1728] sm:$0xff] %v1559
          %v1561 = vld [vmem:[%s75 + $0x1730] sm:$0xff]
          %1562 = vst [vmem:[%s76 + $0x1730] sm:$0xff] %v1561
          %v1563 = vld [vmem:[%s75 + $0x1738] sm:$0xff]
          %1564 = vst [vmem:[%s76 + $0x1738] sm:$0xff] %v1563
          %v1565 = vld [vmem:[%s75 + $0x1740] sm:$0xff]
          %1566 = vst [vmem:[%s76 + $0x1740] sm:$0xff] %v1565
          %v1567 = vld [vmem:[%s75 + $0x1748] sm:$0xff]
          %1568 = vst [vmem:[%s76 + $0x1748] sm:$0xff] %v1567
          %v1569 = vld [vmem:[%s75 + $0x1750] sm:$0xff]
          %1570 = vst [vmem:[%s76 + $0x1750] sm:$0xff] %v1569
          %v1571 = vld [vmem:[%s75 + $0x1758] sm:$0xff]
          %1572 = vst [vmem:[%s76 + $0x1758] sm:$0xff] %v1571
          %v1573 = vld [vmem:[%s75 + $0x1760] sm:$0xff]
          %1574 = vst [vmem:[%s76 + $0x1760] sm:$0xff] %v1573
          %v1575 = vld [vmem:[%s75 + $0x1768] sm:$0xff]
          %1576 = vst [vmem:[%s76 + $0x1768] sm:$0xff] %v1575
          %v1577 = vld [vmem:[%s75 + $0x1770] sm:$0xff]
          %1578 = vst [vmem:[%s76 + $0x1770] sm:$0xff] %v1577
          %v1579 = vld [vmem:[%s75 + $0x1778] sm:$0xff]
          %1580 = vst [vmem:[%s76 + $0x1778] sm:$0xff] %v1579
          %v1581 = vld [vmem:[%s75 + $0x1780] sm:$0xff]
          %1582 = vst [vmem:[%s76 + $0x1780] sm:$0xff] %v1581
          %v1583 = vld [vmem:[%s75 + $0x1788] sm:$0xff]
          %1584 = vst [vmem:[%s76 + $0x1788] sm:$0xff] %v1583
          %v1585 = vld [vmem:[%s75 + $0x1790] sm:$0xff]
          %1586 = vst [vmem:[%s76 + $0x1790] sm:$0xff] %v1585
          %v1587 = vld [vmem:[%s75 + $0x1798] sm:$0xff]
          %1588 = vst [vmem:[%s76 + $0x1798] sm:$0xff] %v1587
          %v1589 = vld [vmem:[%s75 + $0x17a0] sm:$0xff]
          %1590 = vst [vmem:[%s76 + $0x17a0] sm:$0xff] %v1589
          %v1591 = vld [vmem:[%s75 + $0x17a8] sm:$0xff]
          %1592 = vst [vmem:[%s76 + $0x17a8] sm:$0xff] %v1591
          %v1593 = vld [vmem:[%s75 + $0x17b0] sm:$0xff]
          %1594 = vst [vmem:[%s76 + $0x17b0] sm:$0xff] %v1593
          %v1595 = vld [vmem:[%s75 + $0x17b8] sm:$0xff]
          %1596 = vst [vmem:[%s76 + $0x17b8] sm:$0xff] %v1595
          %v1597 = vld [vmem:[%s75 + $0x17c0] sm:$0xff]
          %1598 = vst [vmem:[%s76 + $0x17c0] sm:$0xff] %v1597
          %v1599 = vld [vmem:[%s75 + $0x17c8] sm:$0xff]
          %1600 = vst [vmem:[%s76 + $0x17c8] sm:$0xff] %v1599
          %v1601 = vld [vmem:[%s75 + $0x17d0] sm:$0xff]
          %1602 = vst [vmem:[%s76 + $0x17d0] sm:$0xff] %v1601
          %v1603 = vld [vmem:[%s75 + $0x17d8] sm:$0xff]
          %1604 = vst [vmem:[%s76 + $0x17d8] sm:$0xff] %v1603
          %v1605 = vld [vmem:[%s75 + $0x17e0] sm:$0xff]
          %1606 = vst [vmem:[%s76 + $0x17e0] sm:$0xff] %v1605
          %v1607 = vld [vmem:[%s75 + $0x17e8] sm:$0xff]
          %1608 = vst [vmem:[%s76 + $0x17e8] sm:$0xff] %v1607
          %v1609 = vld [vmem:[%s75 + $0x17f0] sm:$0xff]
          %1610 = vst [vmem:[%s76 + $0x17f0] sm:$0xff] %v1609
          %v1611 = vld [vmem:[%s75 + $0x17f8] sm:$0xff]
          %1612 = vst [vmem:[%s76 + $0x17f8] sm:$0xff] %v1611
          %v1613 = vld [vmem:[%s75 + $0x1800] sm:$0xff]
          %1614 = vst [vmem:[%s76 + $0x1800] sm:$0xff] %v1613
          %v1615 = vld [vmem:[%s75 + $0x1808] sm:$0xff]
          %1616 = vst [vmem:[%s76 + $0x1808] sm:$0xff] %v1615
          %v1617 = vld [vmem:[%s75 + $0x1810] sm:$0xff]
          %1618 = vst [vmem:[%s76 + $0x1810] sm:$0xff] %v1617
          %v1619 = vld [vmem:[%s75 + $0x1818] sm:$0xff]
          %1620 = vst [vmem:[%s76 + $0x1818] sm:$0xff] %v1619
          %v1621 = vld [vmem:[%s75 + $0x1820] sm:$0xff]
          %1622 = vst [vmem:[%s76 + $0x1820] sm:$0xff] %v1621
          %v1623 = vld [vmem:[%s75 + $0x1828] sm:$0xff]
          %1624 = vst [vmem:[%s76 + $0x1828] sm:$0xff] %v1623
          %v1625 = vld [vmem:[%s75 + $0x1830] sm:$0xff]
          %1626 = vst [vmem:[%s76 + $0x1830] sm:$0xff] %v1625
          %v1627 = vld [vmem:[%s75 + $0x1838] sm:$0xff]
          %1628 = vst [vmem:[%s76 + $0x1838] sm:$0xff] %v1627
          %v1629 = vld [vmem:[%s75 + $0x1840] sm:$0xff]
          %1630 = vst [vmem:[%s76 + $0x1840] sm:$0xff] %v1629
          %v1631 = vld [vmem:[%s75 + $0x1848] sm:$0xff]
          %1632 = vst [vmem:[%s76 + $0x1848] sm:$0xff] %v1631
          %v1633 = vld [vmem:[%s75 + $0x1850] sm:$0xff]
          %1634 = vst [vmem:[%s76 + $0x1850] sm:$0xff] %v1633
          %v1635 = vld [vmem:[%s75 + $0x1858] sm:$0xff]
          %1636 = vst [vmem:[%s76 + $0x1858] sm:$0xff] %v1635
          %v1637 = vld [vmem:[%s75 + $0x1860] sm:$0xff]
          %1638 = vst [vmem:[%s76 + $0x1860] sm:$0xff] %v1637
          %v1639 = vld [vmem:[%s75 + $0x1868] sm:$0xff]
          %1640 = vst [vmem:[%s76 + $0x1868] sm:$0xff] %v1639
          %v1641 = vld [vmem:[%s75 + $0x1870] sm:$0xff]
          %1642 = vst [vmem:[%s76 + $0x1870] sm:$0xff] %v1641
          %v1643 = vld [vmem:[%s75 + $0x1878] sm:$0xff]
          %1644 = vst [vmem:[%s76 + $0x1878] sm:$0xff] %v1643
        $region73: #{encoder_z_forward.1} parent=67 // loop_footer
          %s74 = sadd.s32 1, %s70
        $region74: #{encoder_z_forward.1} parent=67 // loop_footer_branch
          %69 = sbr.rel target = $region70
        $region75: #{encoder_z_forward.1} parent=67 // loop_exit
          _
      $region68: #{encoder_z_forward.1} parent=52 // pred_fallthru
        _
      %p1645 = pneg %p65
      // Predicated region
      $region76: #{encoder_z_forward.1} parent=52 // pred_check
        _
      $region77: #{encoder_z_forward.1} parent=52 // pred_check_branch
        %1647 = sbr.rel (%p65) target = $region79
      $region78: #{encoder_z_forward.1} parent=52 // pred_region
        %s1648 = sand.u32 6272, 7
      $region79: #{encoder_z_forward.1} parent=52 // pred_fallthru
        _
    $region53: #{encoder_z_forward.1} parent=1 // pred_fallthru
      _
    // Predicated region
    $region54: #{encoder_z_forward.1} parent=1 // pred_check
      %p49 = pneg %p45
    $region55: #{encoder_z_forward.1} parent=1 // pred_check_branch
      %51 = sbr.rel (%p49) target = $region57
    $region56: #{encoder_z_forward.1} parent=1 // pred_region
      %s52 = sshll.u32 1, 6272
      %s53 = ssub.s32 %s52, 1
      loop: start=0, step=1, limit=1
      $region58: #{encoder_z_forward.1} parent=56 // loop_pre_header
        _
      $region59: #{encoder_z_forward.1} parent=56 // loop_header
        %s55 = sphi 0, %s59
        %p56 = scmp.ge.s32.totalorder %s55, 1
        %s60 = sphi %s8, %s8
        %s61 = sphi [#allocation4], [#allocation4]
      $region60: #{encoder_z_forward.1} parent=56 // loop_header_branch
        %58 = sbr.rel (%p56) target = $region64
      $region61: #{encoder_z_forward.1} parent=56 // loop_body
        %v62 = vld [vmem:[%s60] sm:%s53]
        %63 = vst [vmem:[%s61] sm:%s53] %v62
      $region62: #{encoder_z_forward.1} parent=56 // loop_footer
        %s59 = sadd.s32 1, %s55
      $region63: #{encoder_z_forward.1} parent=56 // loop_footer_branch
        %54 = sbr.rel target = $region59
      $region64: #{encoder_z_forward.1} parent=56 // loop_exit
        _
    $region57: #{encoder_z_forward.1} parent=1 // pred_fallthru
      _
    // Predicated region
    $region80: #{encoder_z_forward.1} parent=1 // pred_check
      _
    $region81: #{encoder_z_forward.1} parent=1 // pred_check_branch
      %1651 = sbr.rel (0) target = $region83
    $region82: #{encoder_z_forward.1} parent=1 // pred_region
      %1652 = vsyncadd [#allocation5], 100352
    $region83: #{encoder_z_forward.1} parent=1 // pred_fallthru
      _
    %v1653 = vld [vmem:[%s0] sm:$0xff]
    %v1654 = vld [vmem:[%s0 + $0x8] sm:$0xff]
    %v1655 = vld [vmem:[%s0 + $0x10] sm:$0xff]
    %v1656 = vld [vmem:[%s0 + $0x18] sm:$0xff]
    %v1657 = vld [vmem:[%s0 + $0x20] sm:$0xff]
    %v1658 = vld [vmem:[%s0 + $0x28] sm:$0xff]
    %v1659 = vld [vmem:[%s0 + $0x30] sm:$0xff]
    %v1660 = vld [vmem:[%s0 + $0x38] sm:$0xff]
    %v1661 = vld [vmem:[%s0 + $0x40] sm:$0xff]
    %v1662 = vld [vmem:[%s0 + $0x48] sm:$0xff]
    %v1663 = vld [vmem:[%s0 + $0x50] sm:$0xff]
    %v1664 = vld [vmem:[%s0 + $0x58] sm:$0xff]
    %v1665 = vld [vmem:[%s0 + $0x60] sm:$0xff]
    %v1666 = vld [vmem:[%s0 + $0x68] sm:$0xff]
    %v1667 = vld [vmem:[%s0 + $0x70] sm:$0xff]
    %v1668 = vld [vmem:[%s0 + $0x78] sm:$0xff]
    %v1669 = vld [vmem:[%s0 + $0x80] sm:$0xff]
    %v1670 = vld [vmem:[%s0 + $0x88] sm:$0xff]
    %v1671 = vld [vmem:[%s0 + $0x90] sm:$0xff]
    %v1672 = vld [vmem:[%s0 + $0x98] sm:$0xff]
    %v1673 = vld [vmem:[%s0 + $0xa0] sm:$0xff]
    %v1674 = vld [vmem:[%s0 + $0xa8] sm:$0xff]
    %v1675 = vld [vmem:[%s0 + $0xb0] sm:$0xff]
    %v1676 = vld [vmem:[%s0 + $0xb8] sm:$0xff]
    %v1677 = vld [vmem:[%s0 + $0xc0] sm:$0xff]
    %v1678 = vld [vmem:[%s0 + $0xc8] sm:$0xff]
    %v1679 = vld [vmem:[%s0 + $0xd0] sm:$0xff]
    %v1680 = vld [vmem:[%s0 + $0xd8] sm:$0xff]
    %v1681 = vld [vmem:[%s0 + $0xe0] sm:$0xff]
    %v1682 = vld [vmem:[%s0 + $0xe8] sm:$0xff]
    %v1683 = vld [vmem:[%s0 + $0xf0] sm:$0xff]
    %v1684 = vld [vmem:[%s0 + $0xf8] sm:$0xff]
    %v1685 = vld [vmem:[%s0 + $0x100] sm:$0xff]
    %v1686 = vld [vmem:[%s0 + $0x108] sm:$0xff]
    %v1687 = vld [vmem:[%s0 + $0x110] sm:$0xff]
    %v1688 = vld [vmem:[%s0 + $0x118] sm:$0xff]
    %v1689 = vld [vmem:[%s0 + $0x120] sm:$0xff]
    %v1690 = vld [vmem:[%s0 + $0x128] sm:$0xff]
    %v1691 = vld [vmem:[%s0 + $0x130] sm:$0xff]
    %v1692 = vld [vmem:[%s0 + $0x138] sm:$0xff]
    %v1693 = vld [vmem:[%s0 + $0x140] sm:$0xff]
    %v1694 = vld [vmem:[%s0 + $0x148] sm:$0xff]
    %v1695 = vld [vmem:[%s0 + $0x150] sm:$0xff]
    %v1696 = vld [vmem:[%s0 + $0x158] sm:$0xff]
    %v1697 = vld [vmem:[%s0 + $0x160] sm:$0xff]
    %v1698 = vld [vmem:[%s0 + $0x168] sm:$0xff]
    %v1699 = vld [vmem:[%s0 + $0x170] sm:$0xff]
    %v1700 = vld [vmem:[%s0 + $0x178] sm:$0xff]
    %v1701 = vld [vmem:[%s0 + $0x180] sm:$0xff]
    %v1702 = vld [vmem:[%s0 + $0x188] sm:$0xff]
    %v1703 = vld [vmem:[%s0 + $0x190] sm:$0xff]
    %v1704 = vld [vmem:[%s0 + $0x198] sm:$0xff]
    %v1705 = vld [vmem:[%s0 + $0x1a0] sm:$0xff]
    %v1706 = vld [vmem:[%s0 + $0x1a8] sm:$0xff]
    %v1707 = vld [vmem:[%s0 + $0x1b0] sm:$0xff]
    %v1708 = vld [vmem:[%s0 + $0x1b8] sm:$0xff]
    %v1709 = vld [vmem:[%s0 + $0x1c0] sm:$0xff]
    %v1710 = vld [vmem:[%s0 + $0x1c8] sm:$0xff]
    %v1711 = vld [vmem:[%s0 + $0x1d0] sm:$0xff]
    %v1712 = vld [vmem:[%s0 + $0x1d8] sm:$0xff]
    %v1713 = vld [vmem:[%s0 + $0x1e0] sm:$0xff]
    %v1714 = vld [vmem:[%s0 + $0x1e8] sm:$0xff]
    %v1715 = vld [vmem:[%s0 + $0x1f0] sm:$0xff]
    %v1716 = vld [vmem:[%s0 + $0x1f8] sm:$0xff]
    %v1717 = vld [vmem:[%s2] sm:$0xff]
    %v1718 = vld [vmem:[%s2 + $0x8] sm:$0xff]
    %vm1719 = vcmask 130048
    %v1721 = vsel %vm1719, %v1653, 0
    %v1724 = vsel %vm1719, %v1654, 0
    %v1727 = vsel %vm1719, %v1655, 0
    %v1730 = vsel %vm1719, %v1656, 0
    %v1733 = vsel %vm1719, %v1657, 0
    %v1736 = vsel %vm1719, %v1658, 0
    %v1739 = vsel %vm1719, %v1659, 0
    %v1742 = vsel %vm1719, %v1660, 0
    %v1745 = vsel %vm1719, %v1661, 0
    %v1748 = vsel %vm1719, %v1662, 0
    %v1751 = vsel %vm1719, %v1663, 0
    %v1754 = vsel %vm1719, %v1664, 0
    %v1757 = vsel %vm1719, %v1665, 0
    %v1760 = vsel %vm1719, %v1666, 0
    %v1763 = vsel %vm1719, %v1667, 0
    %v1766 = vsel %vm1719, %v1668, 0
    %v1769 = vsel %vm1719, %v1669, 0
    %v1772 = vsel %vm1719, %v1670, 0
    %v1775 = vsel %vm1719, %v1671, 0
    %v1778 = vsel %vm1719, %v1672, 0
    %v1781 = vsel %vm1719, %v1673, 0
    %v1784 = vsel %vm1719, %v1674, 0
    %v1787 = vsel %vm1719, %v1675, 0
    %v1790 = vsel %vm1719, %v1676, 0
    %v1793 = vsel %vm1719, %v1677, 0
    %v1796 = vsel %vm1719, %v1678, 0
    %v1799 = vsel %vm1719, %v1679, 0
    %v1802 = vsel %vm1719, %v1680, 0
    %v1805 = vsel %vm1719, %v1681, 0
    %v1808 = vsel %vm1719, %v1682, 0
    %v1811 = vsel %vm1719, %v1683, 0
    %v1814 = vsel %vm1719, %v1684, 0
    %v1817 = vsel %vm1719, %v1685, 0
    %v1820 = vsel %vm1719, %v1686, 0
    %v1823 = vsel %vm1719, %v1687, 0
    %v1826 = vsel %vm1719, %v1688, 0
    %v1829 = vsel %vm1719, %v1689, 0
    %v1832 = vsel %vm1719, %v1690, 0
    %v1835 = vsel %vm1719, %v1691, 0
    %v1838 = vsel %vm1719, %v1692, 0
    %v1841 = vsel %vm1719, %v1693, 0
    %v1844 = vsel %vm1719, %v1694, 0
    %v1847 = vsel %vm1719, %v1695, 0
    %v1850 = vsel %vm1719, %v1696, 0
    %v1853 = vsel %vm1719, %v1697, 0
    %v1856 = vsel %vm1719, %v1698, 0
    %v1859 = vsel %vm1719, %v1699, 0
    %v1862 = vsel %vm1719, %v1700, 0
    %v1865 = vsel %vm1719, %v1701, 0
    %v1868 = vsel %vm1719, %v1702, 0
    %v1871 = vsel %vm1719, %v1703, 0
    %v1874 = vsel %vm1719, %v1704, 0
    %v1877 = vsel %vm1719, %v1705, 0
    %v1880 = vsel %vm1719, %v1706, 0
    %v1883 = vsel %vm1719, %v1707, 0
    %v1886 = vsel %vm1719, %v1708, 0
    %v1889 = vsel %vm1719, %v1709, 0
    %v1892 = vsel %vm1719, %v1710, 0
    %v1895 = vsel %vm1719, %v1711, 0
    %v1898 = vsel %vm1719, %v1712, 0
    %v1901 = vsel %vm1719, %v1713, 0
    %v1904 = vsel %vm1719, %v1714, 0
    %v1907 = vsel %vm1719, %v1715, 0
    %v1910 = vsel %vm1719, %v1716, 0
    %1912 = vmatprep.subr.mxu0 0.0
    %1913 = vmatpush1.msra.mxu0 0.0
    %1914 = vmatprep.subr.mxu0 0.0
    %1915 = vmatpush1.msra.mxu0 0.0
    %1916 = vmatprep.subr.mxu0 0.0
    %1917 = vmatpush1.msra.mxu0 0.0
    %1918 = vmatprep.subr.mxu0 0.0
    %1919 = vmatpush1.msra.mxu0 0.0
    %1920 = vmatprep.subr.mxu0 0.0
    %1921 = vmatpush1.msra.mxu0 0.0
    %1922 = vmatprep.subr.mxu0 0.0
    %1923 = vmatpush1.msra.mxu0 0.0
    %1924 = vmatprep.subr.mxu0 0.0
    %1925 = vmatpush1.msra.mxu0 0.0
    %1926 = vmatprep.subr.mxu0 0.0
    %1927 = vmatpush1.msra.mxu0 0.0
    %1928 = vmatprep.subr.mxu0 0.0
    %1929 = vmatpush1.msra.mxu0 0.0
    %1930 = vmatprep.subr.mxu0 0.0
    %1931 = vmatpush1.msra.mxu0 0.0
    %1932 = vmatprep.subr.mxu0 0.0
    %1933 = vmatpush1.msra.mxu0 0.0
    %1934 = vmatprep.subr.mxu0 0.0
    %1935 = vmatpush1.msra.mxu0 0.0
    %1936 = vmatprep.subr.mxu0 0.0
    %1937 = vmatpush1.msra.mxu0 0.0
    %1938 = vmatprep.subr.mxu0 0.0
    %1939 = vmatpush1.msra.mxu0 0.0
    %1940 = vmatprep.subr.mxu0 0.0
    %1941 = vmatpush1.msra.mxu0 %v1718
    %1942 = vmatprep.subr.mxu0 0.0
    %1943 = vmatpush1.msra.mxu0 %v1717
    %1944 = vmatprep.subr.mxu0 0.0
    %1945 = vmatpush2.msra.mxu0 0.0
    %1946 = vmatprep.subr.mxu0 0.0
    %1947 = vmatpush2.msra.mxu0 0.0
    %1948 = vmatprep.subr.mxu0 0.0
    %1949 = vmatpush2.msra.mxu0 0.0
    %1950 = vmatprep.subr.mxu0 0.0
    %1951 = vmatpush2.msra.mxu0 0.0
    %1952 = vmatprep.subr.mxu0 0.0
    %1953 = vmatpush2.msra.mxu0 0.0
    %1954 = vmatprep.subr.mxu0 0.0
    %1955 = vmatpush2.msra.mxu0 0.0
    %1956 = vmatprep.subr.mxu0 0.0
    %1957 = vmatpush2.msra.mxu0 0.0
    %1958 = vmatprep.subr.mxu0 0.0
    %1959 = vmatpush2.msra.mxu0 0.0
    %1960 = vmatprep.subr.mxu0 0.0
    %1961 = vmatpush2.msra.mxu0 0.0
    %1962 = vmatprep.subr.mxu0 0.0
    %1963 = vmatpush2.msra.mxu0 0.0
    %1964 = vmatprep.subr.mxu0 0.0
    %1965 = vmatpush2.msra.mxu0 0.0
    %1966 = vmatprep.subr.mxu0 0.0
    %1967 = vmatpush2.msra.mxu0 0.0
    %1968 = vmatprep.subr.mxu0 0.0
    %1969 = vmatpush2.msra.mxu0 0.0
    %1970 = vmatprep.subr.mxu0 0.0
    %1971 = vmatpush2.msra.mxu0 0.0
    %1972 = vmatprep.subr.mxu0 0.0
    %1973 = vmatpush2.msra.mxu0 0.0
    %1974 = vmatprep.subr.mxu0 0.0
    %1975 = vmatpush2.msra.mxu0 0.0
    %1976 = vmatprep.mubr.f32.mxu0 0.0
    %1977 = vmatmul.mubr.f32.gmra.mxu0 %v1721
    %v1978 = vpop.f32.mrf.mxu0
    %v1979 = vadd.f32 0.0, %v1978
    %v1980 = vpop.f32.mrf.mxu0
    %1981 = vmatprep.mubr.f32.mxu0 0.0
    %1982 = vmatmul.mubr.f32.gmra.mxu0 %v1724
    %v1983 = vpop.f32.mrf.mxu0
    %v1984 = vadd.f32 0.0, %v1983
    %v1985 = vpop.f32.mrf.mxu0
    %1986 = vmatprep.mubr.f32.mxu0 0.0
    %1987 = vmatmul.mubr.f32.gmra.mxu0 %v1727
    %v1988 = vpop.f32.mrf.mxu0
    %v1989 = vadd.f32 0.0, %v1988
    %v1990 = vpop.f32.mrf.mxu0
    %1991 = vmatprep.mubr.f32.mxu0 0.0
    %1992 = vmatmul.mubr.f32.gmra.mxu0 %v1730
    %v1993 = vpop.f32.mrf.mxu0
    %v1994 = vadd.f32 0.0, %v1993
    %v1995 = vpop.f32.mrf.mxu0
    %1996 = vmatprep.mubr.f32.mxu0 0.0
    %1997 = vmatmul.mubr.f32.gmra.mxu0 %v1733
    %v1998 = vpop.f32.mrf.mxu0
    %v1999 = vadd.f32 0.0, %v1998
    %v2000 = vpop.f32.mrf.mxu0
    %2001 = vmatprep.mubr.f32.mxu0 0.0
    %2002 = vmatmul.mubr.f32.gmra.mxu0 %v1736
    %v2003 = vpop.f32.mrf.mxu0
    %v2004 = vadd.f32 0.0, %v2003
    %v2005 = vpop.f32.mrf.mxu0
    %2006 = vmatprep.mubr.f32.mxu0 0.0
    %2007 = vmatmul.mubr.f32.gmra.mxu0 %v1739
    %v2008 = vpop.f32.mrf.mxu0
    %v2009 = vadd.f32 0.0, %v2008
    %v2010 = vpop.f32.mrf.mxu0
    %2011 = vmatprep.mubr.f32.mxu0 0.0
    %2012 = vmatmul.mubr.f32.gmra.mxu0 %v1742
    %v2013 = vpop.f32.mrf.mxu0
    %v2014 = vadd.f32 0.0, %v2013
    %v2015 = vpop.f32.mrf.mxu0
    %2016 = vmatprep.mubr.f32.mxu0 0.0
    %2017 = vmatmul.mubr.f32.gmra.mxu0 %v1745
    %v2018 = vpop.f32.mrf.mxu0
    %v2019 = vadd.f32 0.0, %v2018
    %v2020 = vpop.f32.mrf.mxu0
    %2021 = vmatprep.mubr.f32.mxu0 0.0
    %2022 = vmatmul.mubr.f32.gmra.mxu0 %v1748
    %v2023 = vpop.f32.mrf.mxu0
    %v2024 = vadd.f32 0.0, %v2023
    %v2025 = vpop.f32.mrf.mxu0
    %2026 = vmatprep.mubr.f32.mxu0 0.0
    %2027 = vmatmul.mubr.f32.gmra.mxu0 %v1751
    %v2028 = vpop.f32.mrf.mxu0
    %v2029 = vadd.f32 0.0, %v2028
    %v2030 = vpop.f32.mrf.mxu0
    %2031 = vmatprep.mubr.f32.mxu0 0.0
    %2032 = vmatmul.mubr.f32.gmra.mxu0 %v1754
    %v2033 = vpop.f32.mrf.mxu0
    %v2034 = vadd.f32 0.0, %v2033
    %v2035 = vpop.f32.mrf.mxu0
    %2036 = vmatprep.mubr.f32.mxu0 0.0
    %2037 = vmatmul.mubr.f32.gmra.mxu0 %v1757
    %v2038 = vpop.f32.mrf.mxu0
    %v2039 = vadd.f32 0.0, %v2038
    %v2040 = vpop.f32.mrf.mxu0
    %2041 = vmatprep.mubr.f32.mxu0 0.0
    %2042 = vmatmul.mubr.f32.gmra.mxu0 %v1760
    %v2043 = vpop.f32.mrf.mxu0
    %v2044 = vadd.f32 0.0, %v2043
    %v2045 = vpop.f32.mrf.mxu0
    %2046 = vmatprep.mubr.f32.mxu0 0.0
    %2047 = vmatmul.mubr.f32.gmra.mxu0 %v1763
    %v2048 = vpop.f32.mrf.mxu0
    %v2049 = vadd.f32 0.0, %v2048
    %v2050 = vpop.f32.mrf.mxu0
    %2051 = vmatprep.mubr.f32.mxu0 0.0
    %2052 = vmatmul.mubr.f32.gmra.mxu0 %v1766
    %v2053 = vpop.f32.mrf.mxu0
    %v2054 = vadd.f32 0.0, %v2053
    %v2055 = vpop.f32.mrf.mxu0
    %2056 = vmatprep.mubr.f32.mxu0 0.0
    %2057 = vmatmul.mubr.f32.gmra.mxu0 %v1769
    %v2058 = vpop.f32.mrf.mxu0
    %v2059 = vadd.f32 0.0, %v2058
    %v2060 = vpop.f32.mrf.mxu0
    %2061 = vmatprep.mubr.f32.mxu0 0.0
    %2062 = vmatmul.mubr.f32.gmra.mxu0 %v1772
    %v2063 = vpop.f32.mrf.mxu0
    %v2064 = vadd.f32 0.0, %v2063
    %v2065 = vpop.f32.mrf.mxu0
    %2066 = vmatprep.mubr.f32.mxu0 0.0
    %2067 = vmatmul.mubr.f32.gmra.mxu0 %v1775
    %v2068 = vpop.f32.mrf.mxu0
    %v2069 = vadd.f32 0.0, %v2068
    %v2070 = vpop.f32.mrf.mxu0
    %2071 = vmatprep.mubr.f32.mxu0 0.0
    %2072 = vmatmul.mubr.f32.gmra.mxu0 %v1778
    %v2073 = vpop.f32.mrf.mxu0
    %v2074 = vadd.f32 0.0, %v2073
    %v2075 = vpop.f32.mrf.mxu0
    %2076 = vmatprep.mubr.f32.mxu0 0.0
    %2077 = vmatmul.mubr.f32.gmra.mxu0 %v1781
    %v2078 = vpop.f32.mrf.mxu0
    %v2079 = vadd.f32 0.0, %v2078
    %v2080 = vpop.f32.mrf.mxu0
    %2081 = vmatprep.mubr.f32.mxu0 0.0
    %2082 = vmatmul.mubr.f32.gmra.mxu0 %v1784
    %v2083 = vpop.f32.mrf.mxu0
    %v2084 = vadd.f32 0.0, %v2083
    %v2085 = vpop.f32.mrf.mxu0
    %2086 = vmatprep.mubr.f32.mxu0 0.0
    %2087 = vmatmul.mubr.f32.gmra.mxu0 %v1787
    %v2088 = vpop.f32.mrf.mxu0
    %v2089 = vadd.f32 0.0, %v2088
    %v2090 = vpop.f32.mrf.mxu0
    %2091 = vmatprep.mubr.f32.mxu0 0.0
    %2092 = vmatmul.mubr.f32.gmra.mxu0 %v1790
    %v2093 = vpop.f32.mrf.mxu0
    %v2094 = vadd.f32 0.0, %v2093
    %v2095 = vpop.f32.mrf.mxu0
    %2096 = vmatprep.mubr.f32.mxu0 0.0
    %2097 = vmatmul.mubr.f32.gmra.mxu0 %v1793
    %v2098 = vpop.f32.mrf.mxu0
    %v2099 = vadd.f32 0.0, %v2098
    %v2100 = vpop.f32.mrf.mxu0
    %2101 = vmatprep.mubr.f32.mxu0 0.0
    %2102 = vmatmul.mubr.f32.gmra.mxu0 %v1796
    %v2103 = vpop.f32.mrf.mxu0
    %v2104 = vadd.f32 0.0, %v2103
    %v2105 = vpop.f32.mrf.mxu0
    %2106 = vmatprep.mubr.f32.mxu0 0.0
    %2107 = vmatmul.mubr.f32.gmra.mxu0 %v1799
    %v2108 = vpop.f32.mrf.mxu0
    %v2109 = vadd.f32 0.0, %v2108
    %v2110 = vpop.f32.mrf.mxu0
    %2111 = vmatprep.mubr.f32.mxu0 0.0
    %2112 = vmatmul.mubr.f32.gmra.mxu0 %v1802
    %v2113 = vpop.f32.mrf.mxu0
    %v2114 = vadd.f32 0.0, %v2113
    %v2115 = vpop.f32.mrf.mxu0
    %2116 = vmatprep.mubr.f32.mxu0 0.0
    %2117 = vmatmul.mubr.f32.gmra.mxu0 %v1805
    %v2118 = vpop.f32.mrf.mxu0
    %v2119 = vadd.f32 0.0, %v2118
    %v2120 = vpop.f32.mrf.mxu0
    %2121 = vmatprep.mubr.f32.mxu0 0.0
    %2122 = vmatmul.mubr.f32.gmra.mxu0 %v1808
    %v2123 = vpop.f32.mrf.mxu0
    %v2124 = vadd.f32 0.0, %v2123
    %v2125 = vpop.f32.mrf.mxu0
    %2126 = vmatprep.mubr.f32.mxu0 0.0
    %2127 = vmatmul.mubr.f32.gmra.mxu0 %v1811
    %v2128 = vpop.f32.mrf.mxu0
    %v2129 = vadd.f32 0.0, %v2128
    %v2130 = vpop.f32.mrf.mxu0
    %2131 = vmatprep.mubr.f32.mxu0 0.0
    %2132 = vmatmul.mubr.f32.gmra.mxu0 %v1814
    %v2133 = vpop.f32.mrf.mxu0
    %v2134 = vadd.f32 0.0, %v2133
    %v2135 = vpop.f32.mrf.mxu0
    %2136 = vmatprep.mubr.f32.mxu0 0.0
    %2137 = vmatmul.mubr.f32.gmra.mxu0 %v1817
    %v2138 = vpop.f32.mrf.mxu0
    %v2139 = vadd.f32 0.0, %v2138
    %v2140 = vpop.f32.mrf.mxu0
    %2141 = vmatprep.mubr.f32.mxu0 0.0
    %2142 = vmatmul.mubr.f32.gmra.mxu0 %v1820
    %v2143 = vpop.f32.mrf.mxu0
    %v2144 = vadd.f32 0.0, %v2143
    %v2145 = vpop.f32.mrf.mxu0
    %2146 = vmatprep.mubr.f32.mxu0 0.0
    %2147 = vmatmul.mubr.f32.gmra.mxu0 %v1823
    %v2148 = vpop.f32.mrf.mxu0
    %v2149 = vadd.f32 0.0, %v2148
    %v2150 = vpop.f32.mrf.mxu0
    %2151 = vmatprep.mubr.f32.mxu0 0.0
    %2152 = vmatmul.mubr.f32.gmra.mxu0 %v1826
    %v2153 = vpop.f32.mrf.mxu0
    %v2154 = vadd.f32 0.0, %v2153
    %v2155 = vpop.f32.mrf.mxu0
    %2156 = vmatprep.mubr.f32.mxu0 0.0
    %2157 = vmatmul.mubr.f32.gmra.mxu0 %v1829
    %v2158 = vpop.f32.mrf.mxu0
    %v2159 = vadd.f32 0.0, %v2158
    %v2160 = vpop.f32.mrf.mxu0
    %2161 = vmatprep.mubr.f32.mxu0 0.0
    %2162 = vmatmul.mubr.f32.gmra.mxu0 %v1832
    %v2163 = vpop.f32.mrf.mxu0
    %v2164 = vadd.f32 0.0, %v2163
    %v2165 = vpop.f32.mrf.mxu0
    %2166 = vmatprep.mubr.f32.mxu0 0.0
    %2167 = vmatmul.mubr.f32.gmra.mxu0 %v1835
    %v2168 = vpop.f32.mrf.mxu0
    %v2169 = vadd.f32 0.0, %v2168
    %v2170 = vpop.f32.mrf.mxu0
    %2171 = vmatprep.mubr.f32.mxu0 0.0
    %2172 = vmatmul.mubr.f32.gmra.mxu0 %v1838
    %v2173 = vpop.f32.mrf.mxu0
    %v2174 = vadd.f32 0.0, %v2173
    %v2175 = vpop.f32.mrf.mxu0
    %2176 = vmatprep.mubr.f32.mxu0 0.0
    %2177 = vmatmul.mubr.f32.gmra.mxu0 %v1841
    %v2178 = vpop.f32.mrf.mxu0
    %v2179 = vadd.f32 0.0, %v2178
    %v2180 = vpop.f32.mrf.mxu0
    %2181 = vmatprep.mubr.f32.mxu0 0.0
    %2182 = vmatmul.mubr.f32.gmra.mxu0 %v1844
    %v2183 = vpop.f32.mrf.mxu0
    %v2184 = vadd.f32 0.0, %v2183
    %v2185 = vpop.f32.mrf.mxu0
    %2186 = vmatprep.mubr.f32.mxu0 0.0
    %2187 = vmatmul.mubr.f32.gmra.mxu0 %v1847
    %v2188 = vpop.f32.mrf.mxu0
    %v2189 = vadd.f32 0.0, %v2188
    %v2190 = vpop.f32.mrf.mxu0
    %2191 = vmatprep.mubr.f32.mxu0 0.0
    %2192 = vmatmul.mubr.f32.gmra.mxu0 %v1850
    %v2193 = vpop.f32.mrf.mxu0
    %v2194 = vadd.f32 0.0, %v2193
    %v2195 = vpop.f32.mrf.mxu0
    %2196 = vmatprep.mubr.f32.mxu0 0.0
    %2197 = vmatmul.mubr.f32.gmra.mxu0 %v1853
    %v2198 = vpop.f32.mrf.mxu0
    %v2199 = vadd.f32 0.0, %v2198
    %v2200 = vpop.f32.mrf.mxu0
    %2201 = vmatprep.mubr.f32.mxu0 0.0
    %2202 = vmatmul.mubr.f32.gmra.mxu0 %v1856
    %v2203 = vpop.f32.mrf.mxu0
    %v2204 = vadd.f32 0.0, %v2203
    %v2205 = vpop.f32.mrf.mxu0
    %2206 = vmatprep.mubr.f32.mxu0 0.0
    %2207 = vmatmul.mubr.f32.gmra.mxu0 %v1859
    %v2208 = vpop.f32.mrf.mxu0
    %v2209 = vadd.f32 0.0, %v2208
    %v2210 = vpop.f32.mrf.mxu0
    %2211 = vmatprep.mubr.f32.mxu0 0.0
    %2212 = vmatmul.mubr.f32.gmra.mxu0 %v1862
    %v2213 = vpop.f32.mrf.mxu0
    %v2214 = vadd.f32 0.0, %v2213
    %v2215 = vpop.f32.mrf.mxu0
    %2216 = vmatprep.mubr.f32.mxu0 0.0
    %2217 = vmatmul.mubr.f32.gmra.mxu0 %v1865
    %v2218 = vpop.f32.mrf.mxu0
    %v2219 = vadd.f32 0.0, %v2218
    %v2220 = vpop.f32.mrf.mxu0
    %2221 = vmatprep.mubr.f32.mxu0 0.0
    %2222 = vmatmul.mubr.f32.gmra.mxu0 %v1868
    %v2223 = vpop.f32.mrf.mxu0
    %v2224 = vadd.f32 0.0, %v2223
    %v2225 = vpop.f32.mrf.mxu0
    %2226 = vmatprep.mubr.f32.mxu0 0.0
    %2227 = vmatmul.mubr.f32.gmra.mxu0 %v1871
    %v2228 = vpop.f32.mrf.mxu0
    %v2229 = vadd.f32 0.0, %v2228
    %v2230 = vpop.f32.mrf.mxu0
    %2231 = vmatprep.mubr.f32.mxu0 0.0
    %2232 = vmatmul.mubr.f32.gmra.mxu0 %v1874
    %v2233 = vpop.f32.mrf.mxu0
    %v2234 = vadd.f32 0.0, %v2233
    %v2235 = vpop.f32.mrf.mxu0
    %2236 = vmatprep.mubr.f32.mxu0 0.0
    %2237 = vmatmul.mubr.f32.gmra.mxu0 %v1877
    %v2238 = vpop.f32.mrf.mxu0
    %v2239 = vadd.f32 0.0, %v2238
    %v2240 = vpop.f32.mrf.mxu0
    %2241 = vmatprep.mubr.f32.mxu0 0.0
    %2242 = vmatmul.mubr.f32.gmra.mxu0 %v1880
    %v2243 = vpop.f32.mrf.mxu0
    %v2244 = vadd.f32 0.0, %v2243
    %v2245 = vpop.f32.mrf.mxu0
    %2246 = vmatprep.mubr.f32.mxu0 0.0
    %2247 = vmatmul.mubr.f32.gmra.mxu0 %v1883
    %v2248 = vpop.f32.mrf.mxu0
    %v2249 = vadd.f32 0.0, %v2248
    %v2250 = vpop.f32.mrf.mxu0
    %2251 = vmatprep.mubr.f32.mxu0 0.0
    %2252 = vmatmul.mubr.f32.gmra.mxu0 %v1886
    %v2253 = vpop.f32.mrf.mxu0
    %v2254 = vadd.f32 0.0, %v2253
    %v2255 = vpop.f32.mrf.mxu0
    %2256 = vmatprep.mubr.f32.mxu0 0.0
    %2257 = vmatmul.mubr.f32.gmra.mxu0 %v1889
    %v2258 = vpop.f32.mrf.mxu0
    %v2259 = vadd.f32 0.0, %v2258
    %v2260 = vpop.f32.mrf.mxu0
    %2261 = vmatprep.mubr.f32.mxu0 0.0
    %2262 = vmatmul.mubr.f32.gmra.mxu0 %v1892
    %v2263 = vpop.f32.mrf.mxu0
    %v2264 = vadd.f32 0.0, %v2263
    %v2265 = vpop.f32.mrf.mxu0
    %2266 = vmatprep.mubr.f32.mxu0 0.0
    %2267 = vmatmul.mubr.f32.gmra.mxu0 %v1895
    %v2268 = vpop.f32.mrf.mxu0
    %v2269 = vadd.f32 0.0, %v2268
    %v2270 = vpop.f32.mrf.mxu0
    %2271 = vmatprep.mubr.f32.mxu0 0.0
    %2272 = vmatmul.mubr.f32.gmra.mxu0 %v1898
    %v2273 = vpop.f32.mrf.mxu0
    %v2274 = vadd.f32 0.0, %v2273
    %v2275 = vpop.f32.mrf.mxu0
    %2276 = vmatprep.mubr.f32.mxu0 0.0
    %2277 = vmatmul.mubr.f32.gmra.mxu0 %v1901
    %v2278 = vpop.f32.mrf.mxu0
    %v2279 = vadd.f32 0.0, %v2278
    %v2280 = vpop.f32.mrf.mxu0
    %2281 = vmatprep.mubr.f32.mxu0 0.0
    %2282 = vmatmul.mubr.f32.gmra.mxu0 %v1904
    %v2283 = vpop.f32.mrf.mxu0
    %v2284 = vadd.f32 0.0, %v2283
    %v2285 = vpop.f32.mrf.mxu0
    %2286 = vmatprep.mubr.f32.mxu0 0.0
    %2287 = vmatmul.mubr.f32.gmra.mxu0 %v1907
    %v2288 = vpop.f32.mrf.mxu0
    %v2289 = vadd.f32 0.0, %v2288
    %v2290 = vpop.f32.mrf.mxu0
    %2291 = vmatprep.mubr.f32.mxu0 0.0
    %2292 = vmatmul.mubr.f32.gmra.mxu0 %v1910
    %v2293 = vpop.f32.mrf.mxu0
    %v2294 = vadd.f32 0.0, %v2293
    %v2295 = vpop.f32.mrf.mxu0
    %2296 = vdwg.mxu0
    %vm2297 = vcmask 261120
    %v2298 = vsel %vm2297, %v1979, 0.0
    %v2299 = vsel %vm2297, %v1984, 0.0
    %v2300 = vadd.f32 %v2298, %v2299
    %v2301 = vsel %vm2297, %v1989, 0.0
    %v2302 = vadd.f32 %v2300, %v2301
    %v2303 = vsel %vm2297, %v1994, 0.0
    %v2304 = vadd.f32 %v2302, %v2303
    %v2305 = vsel %vm2297, %v1999, 0.0
    %v2306 = vadd.f32 %v2304, %v2305
    %v2307 = vsel %vm2297, %v2004, 0.0
    %v2308 = vadd.f32 %v2306, %v2307
    %v2309 = vsel %vm2297, %v2009, 0.0
    %v2310 = vadd.f32 %v2308, %v2309
    %v2311 = vsel %vm2297, %v2014, 0.0
    %v2312 = vadd.f32 %v2310, %v2311
    %v2313 = vsel %vm2297, %v2019, 0.0
    %v2314 = vadd.f32 %v2312, %v2313
    %v2315 = vsel %vm2297, %v2024, 0.0
    %v2316 = vadd.f32 %v2314, %v2315
    %v2317 = vsel %vm2297, %v2029, 0.0
    %v2318 = vadd.f32 %v2316, %v2317
    %v2319 = vsel %vm2297, %v2034, 0.0
    %v2320 = vadd.f32 %v2318, %v2319
    %v2321 = vsel %vm2297, %v2039, 0.0
    %v2322 = vadd.f32 %v2320, %v2321
    %v2323 = vsel %vm2297, %v2044, 0.0
    %v2324 = vadd.f32 %v2322, %v2323
    %v2325 = vsel %vm2297, %v2049, 0.0
    %v2326 = vadd.f32 %v2324, %v2325
    %v2327 = vsel %vm2297, %v2054, 0.0
    %v2328 = vadd.f32 %v2326, %v2327
    %v2329 = vsel %vm2297, %v2059, 0.0
    %v2330 = vadd.f32 %v2328, %v2329
    %v2331 = vsel %vm2297, %v2064, 0.0
    %v2332 = vadd.f32 %v2330, %v2331
    %v2333 = vsel %vm2297, %v2069, 0.0
    %v2334 = vadd.f32 %v2332, %v2333
    %v2335 = vsel %vm2297, %v2074, 0.0
    %v2336 = vadd.f32 %v2334, %v2335
    %v2337 = vsel %vm2297, %v2079, 0.0
    %v2338 = vadd.f32 %v2336, %v2337
    %v2339 = vsel %vm2297, %v2084, 0.0
    %v2340 = vadd.f32 %v2338, %v2339
    %v2341 = vsel %vm2297, %v2089, 0.0
    %v2342 = vadd.f32 %v2340, %v2341
    %v2343 = vsel %vm2297, %v2094, 0.0
    %v2344 = vadd.f32 %v2342, %v2343
    %v2345 = vsel %vm2297, %v2099, 0.0
    %v2346 = vadd.f32 %v2344, %v2345
    %v2347 = vsel %vm2297, %v2104, 0.0
    %v2348 = vadd.f32 %v2346, %v2347
    %v2349 = vsel %vm2297, %v2109, 0.0
    %v2350 = vadd.f32 %v2348, %v2349
    %v2351 = vsel %vm2297, %v2114, 0.0
    %v2352 = vadd.f32 %v2350, %v2351
    %v2353 = vsel %vm2297, %v2119, 0.0
    %v2354 = vadd.f32 %v2352, %v2353
    %v2355 = vsel %vm2297, %v2124, 0.0
    %v2356 = vadd.f32 %v2354, %v2355
    %v2357 = vsel %vm2297, %v2129, 0.0
    %v2358 = vadd.f32 %v2356, %v2357
    %v2359 = vsel %vm2297, %v2134, 0.0
    %v2360 = vadd.f32 %v2358, %v2359
    %v2361 = vsel %vm2297, %v2139, 0.0
    %v2362 = vadd.f32 %v2360, %v2361
    %v2363 = vsel %vm2297, %v2144, 0.0
    %v2364 = vadd.f32 %v2362, %v2363
    %v2365 = vsel %vm2297, %v2149, 0.0
    %v2366 = vadd.f32 %v2364, %v2365
    %v2367 = vsel %vm2297, %v2154, 0.0
    %v2368 = vadd.f32 %v2366, %v2367
    %v2369 = vsel %vm2297, %v2159, 0.0
    %v2370 = vadd.f32 %v2368, %v2369
    %v2371 = vsel %vm2297, %v2164, 0.0
    %v2372 = vadd.f32 %v2370, %v2371
    %v2373 = vsel %vm2297, %v2169, 0.0
    %v2374 = vadd.f32 %v2372, %v2373
    %v2375 = vsel %vm2297, %v2174, 0.0
    %v2376 = vadd.f32 %v2374, %v2375
    %v2377 = vsel %vm2297, %v2179, 0.0
    %v2378 = vadd.f32 %v2376, %v2377
    %v2379 = vsel %vm2297, %v2184, 0.0
    %v2380 = vadd.f32 %v2378, %v2379
    %v2381 = vsel %vm2297, %v2189, 0.0
    %v2382 = vadd.f32 %v2380, %v2381
    %v2383 = vsel %vm2297, %v2194, 0.0
    %v2384 = vadd.f32 %v2382, %v2383
    %v2385 = vsel %vm2297, %v2199, 0.0
    %v2386 = vadd.f32 %v2384, %v2385
    %v2387 = vsel %vm2297, %v2204, 0.0
    %v2388 = vadd.f32 %v2386, %v2387
    %v2389 = vsel %vm2297, %v2209, 0.0
    %v2390 = vadd.f32 %v2388, %v2389
    %v2391 = vsel %vm2297, %v2214, 0.0
    %v2392 = vadd.f32 %v2390, %v2391
    %v2393 = vsel %vm2297, %v2219, 0.0
    %v2394 = vadd.f32 %v2392, %v2393
    %v2395 = vsel %vm2297, %v2224, 0.0
    %v2396 = vadd.f32 %v2394, %v2395
    %v2397 = vsel %vm2297, %v2229, 0.0
    %v2398 = vadd.f32 %v2396, %v2397
    %v2399 = vsel %vm2297, %v2234, 0.0
    %v2400 = vadd.f32 %v2398, %v2399
    %v2401 = vsel %vm2297, %v2239, 0.0
    %v2402 = vadd.f32 %v2400, %v2401
    %v2403 = vsel %vm2297, %v2244, 0.0
    %v2404 = vadd.f32 %v2402, %v2403
    %v2405 = vsel %vm2297, %v2249, 0.0
    %v2406 = vadd.f32 %v2404, %v2405
    %v2407 = vsel %vm2297, %v2254, 0.0
    %v2408 = vadd.f32 %v2406, %v2407
    %v2409 = vsel %vm2297, %v2259, 0.0
    %v2410 = vadd.f32 %v2408, %v2409
    %v2411 = vsel %vm2297, %v2264, 0.0
    %v2412 = vadd.f32 %v2410, %v2411
    %v2413 = vsel %vm2297, %v2269, 0.0
    %v2414 = vadd.f32 %v2412, %v2413
    %v2415 = vsel %vm2297, %v2274, 0.0
    %v2416 = vadd.f32 %v2414, %v2415
    %v2417 = vsel %vm2297, %v2279, 0.0
    %v2418 = vadd.f32 %v2416, %v2417
    %v2419 = vsel %vm2297, %v2284, 0.0
    %v2420 = vadd.f32 %v2418, %v2419
    %v2421 = vsel %vm2297, %v2289, 0.0
    %v2422 = vadd.f32 %v2420, %v2421
    %v2423 = vsel %vm2297, %v2294, 0.0
    %v2424 = vadd.f32 %v2422, %v2423
    %v2425 = vrot.slane %v2424, 4
    %v2426 = vadd.f32 %v2424, %v2425
    %v2427 = vrot.slane %v2426, 2
    %v2428 = vadd.f32 %v2426, %v2427
    %v2429 = vrot.slane %v2428, 1
    %v2430 = vadd.f32 %v2428, %v2429
    %v2431 = vmul.f32 %v1979, %v1979
    %v2432 = vmul.f32 %v1984, %v1984
    %v2433 = vmul.f32 %v1989, %v1989
    %v2434 = vmul.f32 %v1994, %v1994
    %v2435 = vmul.f32 %v1999, %v1999
    %v2436 = vmul.f32 %v2004, %v2004
    %v2437 = vmul.f32 %v2009, %v2009
    %v2438 = vmul.f32 %v2014, %v2014
    %v2439 = vmul.f32 %v2019, %v2019
    %v2440 = vmul.f32 %v2024, %v2024
    %v2441 = vmul.f32 %v2029, %v2029
    %v2442 = vmul.f32 %v2034, %v2034
    %v2443 = vmul.f32 %v2039, %v2039
    %v2444 = vmul.f32 %v2044, %v2044
    %v2445 = vmul.f32 %v2049, %v2049
    %v2446 = vmul.f32 %v2054, %v2054
    %v2447 = vmul.f32 %v2059, %v2059
    %v2448 = vmul.f32 %v2064, %v2064
    %v2449 = vmul.f32 %v2069, %v2069
    %v2450 = vmul.f32 %v2074, %v2074
    %v2451 = vmul.f32 %v2079, %v2079
    %v2452 = vmul.f32 %v2084, %v2084
    %v2453 = vmul.f32 %v2089, %v2089
    %v2454 = vmul.f32 %v2094, %v2094
    %v2455 = vmul.f32 %v2099, %v2099
    %v2456 = vmul.f32 %v2104, %v2104
    %v2457 = vmul.f32 %v2109, %v2109
    %v2458 = vmul.f32 %v2114, %v2114
    %v2459 = vmul.f32 %v2119, %v2119
    %v2460 = vmul.f32 %v2124, %v2124
    %v2461 = vmul.f32 %v2129, %v2129
    %v2462 = vmul.f32 %v2134, %v2134
    %v2463 = vmul.f32 %v2139, %v2139
    %v2464 = vmul.f32 %v2144, %v2144
    %v2465 = vmul.f32 %v2149, %v2149
    %v2466 = vmul.f32 %v2154, %v2154
    %v2467 = vmul.f32 %v2159, %v2159
    %v2468 = vmul.f32 %v2164, %v2164
    %v2469 = vmul.f32 %v2169, %v2169
    %v2470 = vmul.f32 %v2174, %v2174
    %v2471 = vmul.f32 %v2179, %v2179
    %v2472 = vmul.f32 %v2184, %v2184
    %v2473 = vmul.f32 %v2189, %v2189
    %v2474 = vmul.f32 %v2194, %v2194
    %v2475 = vmul.f32 %v2199, %v2199
    %v2476 = vmul.f32 %v2204, %v2204
    %v2477 = vmul.f32 %v2209, %v2209
    %v2478 = vmul.f32 %v2214, %v2214
    %v2479 = vmul.f32 %v2219, %v2219
    %v2480 = vmul.f32 %v2224, %v2224
    %v2481 = vmul.f32 %v2229, %v2229
    %v2482 = vmul.f32 %v2234, %v2234
    %v2483 = vmul.f32 %v2239, %v2239
    %v2484 = vmul.f32 %v2244, %v2244
    %v2485 = vmul.f32 %v2249, %v2249
    %v2486 = vmul.f32 %v2254, %v2254
    %v2487 = vmul.f32 %v2259, %v2259
    %v2488 = vmul.f32 %v2264, %v2264
    %v2489 = vmul.f32 %v2269, %v2269
    %v2490 = vmul.f32 %v2274, %v2274
    %v2491 = vmul.f32 %v2279, %v2279
    %v2492 = vmul.f32 %v2284, %v2284
    %v2493 = vmul.f32 %v2289, %v2289
    %v2494 = vmul.f32 %v2294, %v2294
    %v2495 = vsel %vm2297, %v2431, 0.0
    %v2496 = vsel %vm2297, %v2432, 0.0
    %v2497 = vadd.f32 %v2495, %v2496
    %v2498 = vsel %vm2297, %v2433, 0.0
    %v2499 = vadd.f32 %v2497, %v2498
    %v2500 = vsel %vm2297, %v2434, 0.0
    %v2501 = vadd.f32 %v2499, %v2500
    %v2502 = vsel %vm2297, %v2435, 0.0
    %v2503 = vadd.f32 %v2501, %v2502
    %v2504 = vsel %vm2297, %v2436, 0.0
    %v2505 = vadd.f32 %v2503, %v2504
    %v2506 = vsel %vm2297, %v2437, 0.0
    %v2507 = vadd.f32 %v2505, %v2506
    %v2508 = vsel %vm2297, %v2438, 0.0
    %v2509 = vadd.f32 %v2507, %v2508
    %v2510 = vsel %vm2297, %v2439, 0.0
    %v2511 = vadd.f32 %v2509, %v2510
    %v2512 = vsel %vm2297, %v2440, 0.0
    %v2513 = vadd.f32 %v2511, %v2512
    %v2514 = vsel %vm2297, %v2441, 0.0
    %v2515 = vadd.f32 %v2513, %v2514
    %v2516 = vsel %vm2297, %v2442, 0.0
    %v2517 = vadd.f32 %v2515, %v2516
    %v2518 = vsel %vm2297, %v2443, 0.0
    %v2519 = vadd.f32 %v2517, %v2518
    %v2520 = vsel %vm2297, %v2444, 0.0
    %v2521 = vadd.f32 %v2519, %v2520
    %v2522 = vsel %vm2297, %v2445, 0.0
    %v2523 = vadd.f32 %v2521, %v2522
    %v2524 = vsel %vm2297, %v2446, 0.0
    %v2525 = vadd.f32 %v2523, %v2524
    %v2526 = vsel %vm2297, %v2447, 0.0
    %v2527 = vadd.f32 %v2525, %v2526
    %v2528 = vsel %vm2297, %v2448, 0.0
    %v2529 = vadd.f32 %v2527, %v2528
    %v2530 = vsel %vm2297, %v2449, 0.0
    %v2531 = vadd.f32 %v2529, %v2530
    %v2532 = vsel %vm2297, %v2450, 0.0
    %v2533 = vadd.f32 %v2531, %v2532
    %v2534 = vsel %vm2297, %v2451, 0.0
    %v2535 = vadd.f32 %v2533, %v2534
    %v2536 = vsel %vm2297, %v2452, 0.0
    %v2537 = vadd.f32 %v2535, %v2536
    %v2538 = vsel %vm2297, %v2453, 0.0
    %v2539 = vadd.f32 %v2537, %v2538
    %v2540 = vsel %vm2297, %v2454, 0.0
    %v2541 = vadd.f32 %v2539, %v2540
    %v2542 = vsel %vm2297, %v2455, 0.0
    %v2543 = vadd.f32 %v2541, %v2542
    %v2544 = vsel %vm2297, %v2456, 0.0
    %v2545 = vadd.f32 %v2543, %v2544
    %v2546 = vsel %vm2297, %v2457, 0.0
    %v2547 = vadd.f32 %v2545, %v2546
    %v2548 = vsel %vm2297, %v2458, 0.0
    %v2549 = vadd.f32 %v2547, %v2548
    %v2550 = vsel %vm2297, %v2459, 0.0
    %v2551 = vadd.f32 %v2549, %v2550
    %v2552 = vsel %vm2297, %v2460, 0.0
    %v2553 = vadd.f32 %v2551, %v2552
    %v2554 = vsel %vm2297, %v2461, 0.0
    %v2555 = vadd.f32 %v2553, %v2554
    %v2556 = vsel %vm2297, %v2462, 0.0
    %v2557 = vadd.f32 %v2555, %v2556
    %v2558 = vsel %vm2297, %v2463, 0.0
    %v2559 = vadd.f32 %v2557, %v2558
    %v2560 = vsel %vm2297, %v2464, 0.0
    %v2561 = vadd.f32 %v2559, %v2560
    %v2562 = vsel %vm2297, %v2465, 0.0
    %v2563 = vadd.f32 %v2561, %v2562
    %v2564 = vsel %vm2297, %v2466, 0.0
    %v2565 = vadd.f32 %v2563, %v2564
    %v2566 = vsel %vm2297, %v2467, 0.0
    %v2567 = vadd.f32 %v2565, %v2566
    %v2568 = vsel %vm2297, %v2468, 0.0
    %v2569 = vadd.f32 %v2567, %v2568
    %v2570 = vsel %vm2297, %v2469, 0.0
    %v2571 = vadd.f32 %v2569, %v2570
    %v2572 = vsel %vm2297, %v2470, 0.0
    %v2573 = vadd.f32 %v2571, %v2572
    %v2574 = vsel %vm2297, %v2471, 0.0
    %v2575 = vadd.f32 %v2573, %v2574
    %v2576 = vsel %vm2297, %v2472, 0.0
    %v2577 = vadd.f32 %v2575, %v2576
    %v2578 = vsel %vm2297, %v2473, 0.0
    %v2579 = vadd.f32 %v2577, %v2578
    %v2580 = vsel %vm2297, %v2474, 0.0
    %v2581 = vadd.f32 %v2579, %v2580
    %v2582 = vsel %vm2297, %v2475, 0.0
    %v2583 = vadd.f32 %v2581, %v2582
    %v2584 = vsel %vm2297, %v2476, 0.0
    %v2585 = vadd.f32 %v2583, %v2584
    %v2586 = vsel %vm2297, %v2477, 0.0
    %v2587 = vadd.f32 %v2585, %v2586
    %v2588 = vsel %vm2297, %v2478, 0.0
    %v2589 = vadd.f32 %v2587, %v2588
    %v2590 = vsel %vm2297, %v2479, 0.0
    %v2591 = vadd.f32 %v2589, %v2590
    %v2592 = vsel %vm2297, %v2480, 0.0
    %v2593 = vadd.f32 %v2591, %v2592
    %v2594 = vsel %vm2297, %v2481, 0.0
    %v2595 = vadd.f32 %v2593, %v2594
    %v2596 = vsel %vm2297, %v2482, 0.0
    %v2597 = vadd.f32 %v2595, %v2596
    %v2598 = vsel %vm2297, %v2483, 0.0
    %v2599 = vadd.f32 %v2597, %v2598
    %v2600 = vsel %vm2297, %v2484, 0.0
    %v2601 = vadd.f32 %v2599, %v2600
    %v2602 = vsel %vm2297, %v2485, 0.0
    %v2603 = vadd.f32 %v2601, %v2602
    %v2604 = vsel %vm2297, %v2486, 0.0
    %v2605 = vadd.f32 %v2603, %v2604
    %v2606 = vsel %vm2297, %v2487, 0.0
    %v2607 = vadd.f32 %v2605, %v2606
    %v2608 = vsel %vm2297, %v2488, 0.0
    %v2609 = vadd.f32 %v2607, %v2608
    %v2610 = vsel %vm2297, %v2489, 0.0
    %v2611 = vadd.f32 %v2609, %v2610
    %v2612 = vsel %vm2297, %v2490, 0.0
    %v2613 = vadd.f32 %v2611, %v2612
    %v2614 = vsel %vm2297, %v2491, 0.0
    %v2615 = vadd.f32 %v2613, %v2614
    %v2616 = vsel %vm2297, %v2492, 0.0
    %v2617 = vadd.f32 %v2615, %v2616
    %v2618 = vsel %vm2297, %v2493, 0.0
    %v2619 = vadd.f32 %v2617, %v2618
    %v2620 = vsel %vm2297, %v2494, 0.0
    %v2621 = vadd.f32 %v2619, %v2620
    %v2622 = vrot.slane %v2621, 4
    %v2623 = vadd.f32 %v2621, %v2622
    %v2624 = vrot.slane %v2623, 2
    %v2625 = vadd.f32 %v2623, %v2624
    %v2626 = vrot.slane %v2625, 1
    %v2627 = vadd.f32 %v2625, %v2626
    %v2628 = vrcp.pop 392.0
    %v2629 = vmul.f32 %v2430, %v2628
    %v2630 = vmul.f32 %v2627, %v2628
    %v2631 = vmul.f32 %v2629, %v2629
    %v2632 = vsub.f32 %v2630, %v2631
    %v2633 = vsub.f32 %v1979, %v2629
    %v2634 = vsub.f32 %v1984, %v2629
    %v2635 = vsub.f32 %v1989, %v2629
    %v2636 = vsub.f32 %v1994, %v2629
    %v2637 = vsub.f32 %v1999, %v2629
    %v2638 = vsub.f32 %v2004, %v2629
    %v2639 = vsub.f32 %v2009, %v2629
    %v2640 = vsub.f32 %v2014, %v2629
    %v2641 = vsub.f32 %v2019, %v2629
    %v2642 = vsub.f32 %v2024, %v2629
    %v2643 = vsub.f32 %v2029, %v2629
    %v2644 = vsub.f32 %v2034, %v2629
    %v2645 = vsub.f32 %v2039, %v2629
    %v2646 = vsub.f32 %v2044, %v2629
    %v2647 = vsub.f32 %v2049, %v2629
    %v2648 = vsub.f32 %v2054, %v2629
    %v2649 = vsub.f32 %v2059, %v2629
    %v2650 = vsub.f32 %v2064, %v2629
    %v2651 = vsub.f32 %v2069, %v2629
    %v2652 = vsub.f32 %v2074, %v2629
    %v2653 = vsub.f32 %v2079, %v2629
    %v2654 = vsub.f32 %v2084, %v2629
    %v2655 = vsub.f32 %v2089, %v2629
    %v2656 = vsub.f32 %v2094, %v2629
    %v2657 = vsub.f32 %v2099, %v2629
    %v2658 = vsub.f32 %v2104, %v2629
    %v2659 = vsub.f32 %v2109, %v2629
    %v2660 = vsub.f32 %v2114, %v2629
    %v2661 = vsub.f32 %v2119, %v2629
    %v2662 = vsub.f32 %v2124, %v2629
    %v2663 = vsub.f32 %v2129, %v2629
    %v2664 = vsub.f32 %v2134, %v2629
    %v2665 = vsub.f32 %v2139, %v2629
    %v2666 = vsub.f32 %v2144, %v2629
    %v2667 = vsub.f32 %v2149, %v2629
    %v2668 = vsub.f32 %v2154, %v2629
    %v2669 = vsub.f32 %v2159, %v2629
    %v2670 = vsub.f32 %v2164, %v2629
    %v2671 = vsub.f32 %v2169, %v2629
    %v2672 = vsub.f32 %v2174, %v2629
    %v2673 = vsub.f32 %v2179, %v2629
    %v2674 = vsub.f32 %v2184, %v2629
    %v2675 = vsub.f32 %v2189, %v2629
    %v2676 = vsub.f32 %v2194, %v2629
    %v2677 = vsub.f32 %v2199, %v2629
    %v2678 = vsub.f32 %v2204, %v2629
    %v2679 = vsub.f32 %v2209, %v2629
    %v2680 = vsub.f32 %v2214, %v2629
    %v2681 = vsub.f32 %v2219, %v2629
    %v2682 = vsub.f32 %v2224, %v2629
    %v2683 = vsub.f32 %v2229, %v2629
    %v2684 = vsub.f32 %v2234, %v2629
    %v2685 = vsub.f32 %v2239, %v2629
    %v2686 = vsub.f32 %v2244, %v2629
    %v2687 = vsub.f32 %v2249, %v2629
    %v2688 = vsub.f32 %v2254, %v2629
    %v2689 = vsub.f32 %v2259, %v2629
    %v2690 = vsub.f32 %v2264, %v2629
    %v2691 = vsub.f32 %v2269, %v2629
    %v2692 = vsub.f32 %v2274, %v2629
    %v2693 = vsub.f32 %v2279, %v2629
    %v2694 = vsub.f32 %v2284, %v2629
    %v2695 = vsub.f32 %v2289, %v2629
    %v2696 = vsub.f32 %v2294, %v2629
    %v2697 = vadd.f32 %v2632, 1e-05
    %v2698 = vrsqrt.pop %v2697
    %v2699 = vmul.f32 %v2633, %v2698
    %v2700 = vmul.f32 %v2634, %v2698
    %v2701 = vmul.f32 %v2635, %v2698
    %v2702 = vmul.f32 %v2636, %v2698
    %v2703 = vmul.f32 %v2637, %v2698
    %v2704 = vmul.f32 %v2638, %v2698
    %v2705 = vmul.f32 %v2639, %v2698
    %v2706 = vmul.f32 %v2640, %v2698
    %v2707 = vmul.f32 %v2641, %v2698
    %v2708 = vmul.f32 %v2642, %v2698
    %v2709 = vmul.f32 %v2643, %v2698
    %v2710 = vmul.f32 %v2644, %v2698
    %v2711 = vmul.f32 %v2645, %v2698
    %v2712 = vmul.f32 %v2646, %v2698
    %v2713 = vmul.f32 %v2647, %v2698
    %v2714 = vmul.f32 %v2648, %v2698
    %v2715 = vmul.f32 %v2649, %v2698
    %v2716 = vmul.f32 %v2650, %v2698
    %v2717 = vmul.f32 %v2651, %v2698
    %v2718 = vmul.f32 %v2652, %v2698
    %v2719 = vmul.f32 %v2653, %v2698
    %v2720 = vmul.f32 %v2654, %v2698
    %v2721 = vmul.f32 %v2655, %v2698
    %v2722 = vmul.f32 %v2656, %v2698
    %v2723 = vmul.f32 %v2657, %v2698
    %v2724 = vmul.f32 %v2658, %v2698
    %v2725 = vmul.f32 %v2659, %v2698
    %v2726 = vmul.f32 %v2660, %v2698
    %v2727 = vmul.f32 %v2661, %v2698
    %v2728 = vmul.f32 %v2662, %v2698
    %v2729 = vmul.f32 %v2663, %v2698
    %v2730 = vmul.f32 %v2664, %v2698
    %v2731 = vmul.f32 %v2665, %v2698
    %v2732 = vmul.f32 %v2666, %v2698
    %v2733 = vmul.f32 %v2667, %v2698
    %v2734 = vmul.f32 %v2668, %v2698
    %v2735 = vmul.f32 %v2669, %v2698
    %v2736 = vmul.f32 %v2670, %v2698
    %v2737 = vmul.f32 %v2671, %v2698
    %v2738 = vmul.f32 %v2672, %v2698
    %v2739 = vmul.f32 %v2673, %v2698
    %v2740 = vmul.f32 %v2674, %v2698
    %v2741 = vmul.f32 %v2675, %v2698
    %v2742 = vmul.f32 %v2676, %v2698
    %v2743 = vmul.f32 %v2677, %v2698
    %v2744 = vmul.f32 %v2678, %v2698
    %v2745 = vmul.f32 %v2679, %v2698
    %v2746 = vmul.f32 %v2680, %v2698
    %v2747 = vmul.f32 %v2681, %v2698
    %v2748 = vmul.f32 %v2682, %v2698
    %v2749 = vmul.f32 %v2683, %v2698
    %v2750 = vmul.f32 %v2684, %v2698
    %v2751 = vmul.f32 %v2685, %v2698
    %v2752 = vmul.f32 %v2686, %v2698
    %v2753 = vmul.f32 %v2687, %v2698
    %v2754 = vmul.f32 %v2688, %v2698
    %v2755 = vmul.f32 %v2689, %v2698
    %v2756 = vmul.f32 %v2690, %v2698
    %v2757 = vmul.f32 %v2691, %v2698
    %v2758 = vmul.f32 %v2692, %v2698
    %v2759 = vmul.f32 %v2693, %v2698
    %v2760 = vmul.f32 %v2694, %v2698
    %v2761 = vmul.f32 %v2695, %v2698
    %v2762 = vmul.f32 %v2696, %v2698
    %v2763 = vld [vmem:[%s3] sm:$0x1]
    %v2765 = vlaneseq
    %v2766 = vshrl.u32 %v2765, 7
    %v2767 = vsub.s32 0, %v2766
    %v2768 = vrot.slane %v2763, %v2767
    %v2770 = vmul.f32 %v2699, %v2768
    %v2771 = vmul.f32 %v2700, %v2768
    %v2772 = vmul.f32 %v2701, %v2768
    %v2773 = vmul.f32 %v2702, %v2768
    %v2774 = vmul.f32 %v2703, %v2768
    %v2775 = vmul.f32 %v2704, %v2768
    %v2776 = vmul.f32 %v2705, %v2768
    %v2777 = vmul.f32 %v2706, %v2768
    %v2778 = vmul.f32 %v2707, %v2768
    %v2779 = vmul.f32 %v2708, %v2768
    %v2780 = vmul.f32 %v2709, %v2768
    %v2781 = vmul.f32 %v2710, %v2768
    %v2782 = vmul.f32 %v2711, %v2768
    %v2783 = vmul.f32 %v2712, %v2768
    %v2784 = vmul.f32 %v2713, %v2768
    %v2785 = vmul.f32 %v2714, %v2768
    %v2786 = vmul.f32 %v2715, %v2768
    %v2787 = vmul.f32 %v2716, %v2768
    %v2788 = vmul.f32 %v2717, %v2768
    %v2789 = vmul.f32 %v2718, %v2768
    %v2790 = vmul.f32 %v2719, %v2768
    %v2791 = vmul.f32 %v2720, %v2768
    %v2792 = vmul.f32 %v2721, %v2768
    %v2793 = vmul.f32 %v2722, %v2768
    %v2794 = vmul.f32 %v2723, %v2768
    %v2795 = vmul.f32 %v2724, %v2768
    %v2796 = vmul.f32 %v2725, %v2768
    %v2797 = vmul.f32 %v2726, %v2768
    %v2798 = vmul.f32 %v2727, %v2768
    %v2799 = vmul.f32 %v2728, %v2768
    %v2800 = vmul.f32 %v2729, %v2768
    %v2801 = vmul.f32 %v2730, %v2768
    %v2802 = vmul.f32 %v2731, %v2768
    %v2803 = vmul.f32 %v2732, %v2768
    %v2804 = vmul.f32 %v2733, %v2768
    %v2805 = vmul.f32 %v2734, %v2768
    %v2806 = vmul.f32 %v2735, %v2768
    %v2807 = vmul.f32 %v2736, %v2768
    %v2808 = vmul.f32 %v2737, %v2768
    %v2809 = vmul.f32 %v2738, %v2768
    %v2810 = vmul.f32 %v2739, %v2768
    %v2811 = vmul.f32 %v2740, %v2768
    %v2812 = vmul.f32 %v2741, %v2768
    %v2813 = vmul.f32 %v2742, %v2768
    %v2814 = vmul.f32 %v2743, %v2768
    %v2815 = vmul.f32 %v2744, %v2768
    %v2816 = vmul.f32 %v2745, %v2768
    %v2817 = vmul.f32 %v2746, %v2768
    %v2818 = vmul.f32 %v2747, %v2768
    %v2819 = vmul.f32 %v2748, %v2768
    %v2820 = vmul.f32 %v2749, %v2768
    %v2821 = vmul.f32 %v2750, %v2768
    %v2822 = vmul.f32 %v2751, %v2768
    %v2823 = vmul.f32 %v2752, %v2768
    %v2824 = vmul.f32 %v2753, %v2768
    %v2825 = vmul.f32 %v2754, %v2768
    %v2826 = vmul.f32 %v2755, %v2768
    %v2827 = vmul.f32 %v2756, %v2768
    %v2828 = vmul.f32 %v2757, %v2768
    %v2829 = vmul.f32 %v2758, %v2768
    %v2830 = vmul.f32 %v2759, %v2768
    %v2831 = vmul.f32 %v2760, %v2768
    %v2832 = vmul.f32 %v2761, %v2768
    %v2833 = vmul.f32 %v2762, %v2768
    %v2834 = vld [vmem:[%s4] sm:$0x1]
    %v2836 = vlaneseq
    %v2837 = vshrl.u32 %v2836, 7
    %v2838 = vsub.s32 0, %v2837
    %v2839 = vrot.slane %v2834, %v2838
    %v2841 = vadd.f32 %v2770, %v2839
    %v2842 = vadd.f32 %v2771, %v2839
    %v2843 = vadd.f32 %v2772, %v2839
    %v2844 = vadd.f32 %v2773, %v2839
    %v2845 = vadd.f32 %v2774, %v2839
    %v2846 = vadd.f32 %v2775, %v2839
    %v2847 = vadd.f32 %v2776, %v2839
    %v2848 = vadd.f32 %v2777, %v2839
    %v2849 = vadd.f32 %v2778, %v2839
    %v2850 = vadd.f32 %v2779, %v2839
    %v2851 = vadd.f32 %v2780, %v2839
    %v2852 = vadd.f32 %v2781, %v2839
    %v2853 = vadd.f32 %v2782, %v2839
    %v2854 = vadd.f32 %v2783, %v2839
    %v2855 = vadd.f32 %v2784, %v2839
    %v2856 = vadd.f32 %v2785, %v2839
    %v2857 = vadd.f32 %v2786, %v2839
    %v2858 = vadd.f32 %v2787, %v2839
    %v2859 = vadd.f32 %v2788, %v2839
    %v2860 = vadd.f32 %v2789, %v2839
    %v2861 = vadd.f32 %v2790, %v2839
    %v2862 = vadd.f32 %v2791, %v2839
    %v2863 = vadd.f32 %v2792, %v2839
    %v2864 = vadd.f32 %v2793, %v2839
    %v2865 = vadd.f32 %v2794, %v2839
    %v2866 = vadd.f32 %v2795, %v2839
    %v2867 = vadd.f32 %v2796, %v2839
    %v2868 = vadd.f32 %v2797, %v2839
    %v2869 = vadd.f32 %v2798, %v2839
    %v2870 = vadd.f32 %v2799, %v2839
    %v2871 = vadd.f32 %v2800, %v2839
    %v2872 = vadd.f32 %v2801, %v2839
    %v2873 = vadd.f32 %v2802, %v2839
    %v2874 = vadd.f32 %v2803, %v2839
    %v2875 = vadd.f32 %v2804, %v2839
    %v2876 = vadd.f32 %v2805, %v2839
    %v2877 = vadd.f32 %v2806, %v2839
    %v2878 = vadd.f32 %v2807, %v2839
    %v2879 = vadd.f32 %v2808, %v2839
    %v2880 = vadd.f32 %v2809, %v2839
    %v2881 = vadd.f32 %v2810, %v2839
    %v2882 = vadd.f32 %v2811, %v2839
    %v2883 = vadd.f32 %v2812, %v2839
    %v2884 = vadd.f32 %v2813, %v2839
    %v2885 = vadd.f32 %v2814, %v2839
    %v2886 = vadd.f32 %v2815, %v2839
    %v2887 = vadd.f32 %v2816, %v2839
    %v2888 = vadd.f32 %v2817, %v2839
    %v2889 = vadd.f32 %v2818, %v2839
    %v2890 = vadd.f32 %v2819, %v2839
    %v2891 = vadd.f32 %v2820, %v2839
    %v2892 = vadd.f32 %v2821, %v2839
    %v2893 = vadd.f32 %v2822, %v2839
    %v2894 = vadd.f32 %v2823, %v2839
    %v2895 = vadd.f32 %v2824, %v2839
    %v2896 = vadd.f32 %v2825, %v2839
    %v2897 = vadd.f32 %v2826, %v2839
    %v2898 = vadd.f32 %v2827, %v2839
    %v2899 = vadd.f32 %v2828, %v2839
    %v2900 = vadd.f32 %v2829, %v2839
    %v2901 = vadd.f32 %v2830, %v2839
    %v2902 = vadd.f32 %v2831, %v2839
    %v2903 = vadd.f32 %v2832, %v2839
    %v2904 = vadd.f32 %v2833, %v2839
    %v2905 = vmax.f32 %v2841, 0.0
    %v2906 = vmax.f32 %v2842, 0.0
    %v2907 = vmax.f32 %v2843, 0.0
    %v2908 = vmax.f32 %v2844, 0.0
    %v2909 = vmax.f32 %v2845, 0.0
    %v2910 = vmax.f32 %v2846, 0.0
    %v2911 = vmax.f32 %v2847, 0.0
    %v2912 = vmax.f32 %v2848, 0.0
    %v2913 = vmax.f32 %v2849, 0.0
    %v2914 = vmax.f32 %v2850, 0.0
    %v2915 = vmax.f32 %v2851, 0.0
    %v2916 = vmax.f32 %v2852, 0.0
    %v2917 = vmax.f32 %v2853, 0.0
    %v2918 = vmax.f32 %v2854, 0.0
    %v2919 = vmax.f32 %v2855, 0.0
    %v2920 = vmax.f32 %v2856, 0.0
    %v2921 = vmax.f32 %v2857, 0.0
    %v2922 = vmax.f32 %v2858, 0.0
    %v2923 = vmax.f32 %v2859, 0.0
    %v2924 = vmax.f32 %v2860, 0.0
    %v2925 = vmax.f32 %v2861, 0.0
    %v2926 = vmax.f32 %v2862, 0.0
    %v2927 = vmax.f32 %v2863, 0.0
    %v2928 = vmax.f32 %v2864, 0.0
    %v2929 = vmax.f32 %v2865, 0.0
    %v2930 = vmax.f32 %v2866, 0.0
    %v2931 = vmax.f32 %v2867, 0.0
    %v2932 = vmax.f32 %v2868, 0.0
    %v2933 = vmax.f32 %v2869, 0.0
    %v2934 = vmax.f32 %v2870, 0.0
    %v2935 = vmax.f32 %v2871, 0.0
    %v2936 = vmax.f32 %v2872, 0.0
    %v2937 = vmax.f32 %v2873, 0.0
    %v2938 = vmax.f32 %v2874, 0.0
    %v2939 = vmax.f32 %v2875, 0.0
    %v2940 = vmax.f32 %v2876, 0.0
    %v2941 = vmax.f32 %v2877, 0.0
    %v2942 = vmax.f32 %v2878, 0.0
    %v2943 = vmax.f32 %v2879, 0.0
    %v2944 = vmax.f32 %v2880, 0.0
    %v2945 = vmax.f32 %v2881, 0.0
    %v2946 = vmax.f32 %v2882, 0.0
    %v2947 = vmax.f32 %v2883, 0.0
    %v2948 = vmax.f32 %v2884, 0.0
    %v2949 = vmax.f32 %v2885, 0.0
    %v2950 = vmax.f32 %v2886, 0.0
    %v2951 = vmax.f32 %v2887, 0.0
    %v2952 = vmax.f32 %v2888, 0.0
    %v2953 = vmax.f32 %v2889, 0.0
    %v2954 = vmax.f32 %v2890, 0.0
    %v2955 = vmax.f32 %v2891, 0.0
    %v2956 = vmax.f32 %v2892, 0.0
    %v2957 = vmax.f32 %v2893, 0.0
    %v2958 = vmax.f32 %v2894, 0.0
    %v2959 = vmax.f32 %v2895, 0.0
    %v2960 = vmax.f32 %v2896, 0.0
    %v2961 = vmax.f32 %v2897, 0.0
    %v2962 = vmax.f32 %v2898, 0.0
    %v2963 = vmax.f32 %v2899, 0.0
    %v2964 = vmax.f32 %v2900, 0.0
    %v2965 = vmax.f32 %v2901, 0.0
    %v2966 = vmax.f32 %v2902, 0.0
    %v2967 = vmax.f32 %v2903, 0.0
    %v2968 = vmax.f32 %v2904, 0.0
    %v2969 = vld [vmem:[%s1] sm:$0xff]
    %v2970 = vld [vmem:[%s1 + $0x8] sm:$0xff]
    %v2971 = vld [vmem:[%s1 + $0x10] sm:$0xff]
    %v2972 = vld [vmem:[%s1 + $0x18] sm:$0xff]
    %v2973 = vld [vmem:[%s1 + $0x20] sm:$0xff]
    %v2974 = vld [vmem:[%s1 + $0x28] sm:$0xff]
    %v2975 = vld [vmem:[%s1 + $0x30] sm:$0xff]
    %v2976 = vld [vmem:[%s1 + $0x38] sm:$0xff]
    %v2977 = vld [vmem:[%s1 + $0x40] sm:$0xff]
    %v2978 = vld [vmem:[%s1 + $0x48] sm:$0xff]
    %v2979 = vld [vmem:[%s1 + $0x50] sm:$0xff]
    %v2980 = vld [vmem:[%s1 + $0x58] sm:$0xff]
    %v2981 = vld [vmem:[%s1 + $0x60] sm:$0xff]
    %v2982 = vld [vmem:[%s1 + $0x68] sm:$0xff]
    %v2983 = vld [vmem:[%s1 + $0x70] sm:$0xff]
    %v2984 = vld [vmem:[%s1 + $0x78] sm:$0xff]
    %2985 = vst [vmem:[#allocation2] sm:$0xf] 0
    %2986 = vst [vmem:[#allocation2 + $0x4] sm:$0xf] 0
    %2987 = vst [vmem:[#allocation2 + $0x8] sm:$0xf] 0
    %2988 = vst [vmem:[#allocation2 + $0xc] sm:$0xf] 0
    %2989 = vst [vmem:[#allocation2 + $0x10] sm:$0xf] 0
    %2990 = vst [vmem:[#allocation2 + $0x14] sm:$0xf] 0
    %2991 = vst [vmem:[#allocation2 + $0x18] sm:$0xf] 0
    %2992 = vst [vmem:[#allocation2 + $0x1c] sm:$0xf] 0
    %2993 = vst [vmem:[#allocation2 + $0x20] sm:$0xf] 0
    %2994 = vst [vmem:[#allocation2 + $0x24] sm:$0xf] 0
    %2995 = vst [vmem:[#allocation2 + $0x28] sm:$0xf] 0
    %2996 = vst [vmem:[#allocation2 + $0x2c] sm:$0xf] 0
    %2997 = vst [vmem:[#allocation2 + $0x30] sm:$0xf] 0
    %2998 = vst [vmem:[#allocation2 + $0x34] sm:$0xf] 0
    %2999 = vst [vmem:[#allocation2 + $0x38] sm:$0xf] 0
    %3000 = vst [vmem:[#allocation2 + $0x3c] sm:$0xf] 0
    %3001 = vst [vmem:[#allocation2 + $0x40] sm:$0xf] 0
    %3002 = vst [vmem:[#allocation2 + $0x44] sm:$0xf] 0
    %3003 = vst [vmem:[#allocation2 + $0x48] sm:$0xf] 0
    %3004 = vst [vmem:[#allocation2 + $0x4c] sm:$0xf] 0
    %3006 = vset.pattern.permute.xlu0 0
    %3007 = vperm.xlu0 %3006, %v2969
    %v3008 = vpop.permute.xlu0 %3007
    %3011 = vset.pattern.permute.xlu0 0
    %3012 = vperm.xlu0 %3011, %v2970
    %v3013 = vpop.permute.xlu0 %3012
    %3016 = vset.pattern.permute.xlu0 0
    %3017 = vperm.xlu0 %3016, %v2971
    %v3018 = vpop.permute.xlu0 %3017
    %3021 = vset.pattern.permute.xlu0 0
    %3022 = vperm.xlu0 %3021, %v2972
    %v3023 = vpop.permute.xlu0 %3022
    %3026 = vset.pattern.permute.xlu0 0
    %3027 = vperm.xlu0 %3026, %v2973
    %v3028 = vpop.permute.xlu0 %3027
    %3031 = vset.pattern.permute.xlu0 0
    %3032 = vperm.xlu0 %3031, %v2974
    %v3033 = vpop.permute.xlu0 %3032
    %3036 = vset.pattern.permute.xlu0 0
    %3037 = vperm.xlu0 %3036, %v2975
    %v3038 = vpop.permute.xlu0 %3037
    %3041 = vset.pattern.permute.xlu0 0
    %3042 = vperm.xlu0 %3041, %v2976
    %v3043 = vpop.permute.xlu0 %3042
    %3046 = vset.pattern.permute.xlu0 0
    %3047 = vperm.xlu0 %3046, %v2977
    %v3048 = vpop.permute.xlu0 %3047
    %3051 = vset.pattern.permute.xlu0 0
    %3052 = vperm.xlu0 %3051, %v2978
    %v3053 = vpop.permute.xlu0 %3052
    %3056 = vset.pattern.permute.xlu0 0
    %3057 = vperm.xlu0 %3056, %v2979
    %v3058 = vpop.permute.xlu0 %3057
    %3061 = vset.pattern.permute.xlu0 0
    %3062 = vperm.xlu0 %3061, %v2980
    %v3063 = vpop.permute.xlu0 %3062
    %3066 = vset.pattern.permute.xlu0 0
    %3067 = vperm.xlu0 %3066, %v2981
    %v3068 = vpop.permute.xlu0 %3067
    %3071 = vset.pattern.permute.xlu0 0
    %3072 = vperm.xlu0 %3071, %v2982
    %v3073 = vpop.permute.xlu0 %3072
    %3076 = vset.pattern.permute.xlu0 0
    %3077 = vperm.xlu0 %3076, %v2983
    %v3078 = vpop.permute.xlu0 %3077
    %3081 = vset.pattern.permute.xlu0 0
    %3082 = vperm.xlu0 %3081, %v2984
    %v3083 = vpop.permute.xlu0 %3082
    %v3085 = vmul.f32 %v2905, %v3008
    %v3086 = vmul.f32 %v2906, %v3013
    %v3087 = vmul.f32 %v2907, %v3018
    %v3088 = vmul.f32 %v2908, %v3023
    %v3089 = vmul.f32 %v2909, %v3028
    %v3090 = vmul.f32 %v2910, %v3033
    %v3091 = vmul.f32 %v2911, %v3038
    %v3092 = vmul.f32 %v2912, %v3043
    %v3093 = vmul.f32 %v2913, %v3048
    %v3094 = vmul.f32 %v2914, %v3053
    %v3095 = vmul.f32 %v2915, %v3058
    %v3096 = vmul.f32 %v2916, %v3063
    %v3097 = vmul.f32 %v2917, %v3068
    %v3098 = vmul.f32 %v2918, %v3073
    %v3099 = vmul.f32 %v2919, %v3078
    %v3100 = vmul.f32 %v2920, %v3083
    %v3101 = vpack.c.bf16 %v3086, %v3085
    %v3102 = vpack.c.bf16 %v3088, %v3087
    %v3103 = vpack.c.bf16 %v3090, %v3089
    %v3104 = vpack.c.bf16 %v3092, %v3091
    %v3105 = vpack.c.bf16 %v3094, %v3093
    %v3106 = vpack.c.bf16 %v3096, %v3095
    %v3107 = vpack.c.bf16 %v3098, %v3097
    %v3108 = vpack.c.bf16 %v3100, %v3099
    %v3117 = vunpack.c.l.b16 %v3101
    %v3118 = vunpack.c.h.b16 %v3101
    %v3119 = vunpack.c.l.b16 %v3102
    %v3120 = vunpack.c.h.b16 %v3102
    %v3121 = vunpack.c.l.b16 %v3103
    %v3122 = vunpack.c.h.b16 %v3103
    %v3123 = vunpack.c.l.b16 %v3104
    %v3124 = vunpack.c.h.b16 %v3104
    %v3125 = vunpack.c.l.b16 %v3105
    %v3126 = vunpack.c.h.b16 %v3105
    %v3127 = vunpack.c.l.b16 %v3106
    %v3128 = vunpack.c.h.b16 %v3106
    %v3129 = vunpack.c.l.b16 %v3107
    %v3130 = vunpack.c.h.b16 %v3107
    %v3131 = vunpack.c.l.b16 %v3108
    %v3132 = vunpack.c.h.b16 %v3108
    %v3133 = vpack.c.b16 %v3117, %v3117
    %v3134 = vpack.c.b16 %v3118, %v3118
    %v3135 = vpack.c.b16 %v3119, %v3119
    %v3136 = vpack.c.b16 %v3120, %v3120
    %v3137 = vpack.c.b16 %v3121, %v3121
    %v3138 = vpack.c.b16 %v3122, %v3122
    %v3139 = vpack.c.b16 %v3123, %v3123
    %v3140 = vpack.c.b16 %v3124, %v3124
    %v3141 = vpack.c.b16 %v3125, %v3125
    %v3142 = vpack.c.b16 %v3126, %v3126
    %v3143 = vpack.c.b16 %v3127, %v3127
    %v3144 = vpack.c.b16 %v3128, %v3128
    %v3145 = vpack.c.b16 %v3129, %v3129
    %v3146 = vpack.c.b16 %v3130, %v3130
    %v3147 = vpack.c.b16 %v3131, %v3131
    %v3148 = vpack.c.b16 %v3132, %v3132
    %3149 = vrot.lane.b32.xlu0 %v3133, 96
    %v3150 = vpop.permute.xlu0 %3149
    %3151 = vrot.lane.b32.xlu0 %v3134, 96
    %v3152 = vpop.permute.xlu0 %3151
    %3153 = vrot.lane.b32.xlu0 %v3135, 96
    %v3154 = vpop.permute.xlu0 %3153
    %3155 = vrot.lane.b32.xlu0 %v3136, 96
    %v3156 = vpop.permute.xlu0 %3155
    %3157 = vrot.lane.b32.xlu0 %v3137, 96
    %v3158 = vpop.permute.xlu0 %3157
    %3159 = vrot.lane.b32.xlu0 %v3138, 96
    %v3160 = vpop.permute.xlu0 %3159
    %3161 = vrot.lane.b32.xlu0 %v3139, 96
    %v3162 = vpop.permute.xlu0 %3161
    %3163 = vrot.lane.b32.xlu0 %v3140, 96
    %v3164 = vpop.permute.xlu0 %3163
    %3165 = vrot.lane.b32.xlu0 %v3141, 96
    %v3166 = vpop.permute.xlu0 %3165
    %3167 = vrot.lane.b32.xlu0 %v3142, 96
    %v3168 = vpop.permute.xlu0 %3167
    %3169 = vrot.lane.b32.xlu0 %v3143, 96
    %v3170 = vpop.permute.xlu0 %3169
    %3171 = vrot.lane.b32.xlu0 %v3144, 96
    %v3172 = vpop.permute.xlu0 %3171
    %3173 = vrot.lane.b32.xlu0 %v3145, 96
    %v3174 = vpop.permute.xlu0 %3173
    %3175 = vrot.lane.b32.xlu0 %v3146, 96
    %v3176 = vpop.permute.xlu0 %3175
    %3177 = vrot.lane.b32.xlu0 %v3147, 96
    %v3178 = vpop.permute.xlu0 %3177
    %3179 = vrot.lane.b32.xlu0 %v3148, 96
    %v3180 = vpop.permute.xlu0 %3179
    %vm3197 = vcmask 1044224
    %3198 = vst.msk [vmem:[#allocation2] sm:$0xf] %vm3197, %v3150
    %3199 = vst.msk [vmem:[#allocation2 + $0x4] sm:$0xf] %vm3197, %v3152
    %3200 = vst.msk [vmem:[#allocation2 + $0x8] sm:$0xf] %vm3197, %v3154
    %3201 = vst.msk [vmem:[#allocation2 + $0xc] sm:$0xf] %vm3197, %v3156
    %3202 = vst.msk [vmem:[#allocation2 + $0x10] sm:$0xf] %vm3197, %v3158
    %3203 = vst.msk [vmem:[#allocation2 + $0x14] sm:$0xf] %vm3197, %v3160
    %3204 = vst.msk [vmem:[#allocation2 + $0x18] sm:$0xf] %vm3197, %v3162
    %3205 = vst.msk [vmem:[#allocation2 + $0x1c] sm:$0xf] %vm3197, %v3164
    %3206 = vst.msk [vmem:[#allocation2 + $0x20] sm:$0xf] %vm3197, %v3166
    %3207 = vst.msk [vmem:[#allocation2 + $0x24] sm:$0xf] %vm3197, %v3168
    %3208 = vst.msk [vmem:[#allocation2 + $0x28] sm:$0xf] %vm3197, %v3170
    %3209 = vst.msk [vmem:[#allocation2 + $0x2c] sm:$0xf] %vm3197, %v3172
    %3210 = vst.msk [vmem:[#allocation2 + $0x30] sm:$0xf] %vm3197, %v3174
    %3211 = vst.msk [vmem:[#allocation2 + $0x34] sm:$0xf] %vm3197, %v3176
    %3212 = vst.msk [vmem:[#allocation2 + $0x38] sm:$0xf] %vm3197, %v3178
    %3213 = vst.msk [vmem:[#allocation2 + $0x3c] sm:$0xf] %vm3197, %v3180
    %v3214 = vmul.f32 %v2921, %v3008
    %v3215 = vmul.f32 %v2922, %v3013
    %v3216 = vmul.f32 %v2923, %v3018
    %v3217 = vmul.f32 %v2924, %v3023
    %v3218 = vmul.f32 %v2925, %v3028
    %v3219 = vmul.f32 %v2926, %v3033
    %v3220 = vmul.f32 %v2927, %v3038
    %v3221 = vmul.f32 %v2928, %v3043
    %v3222 = vmul.f32 %v2929, %v3048
    %v3223 = vmul.f32 %v2930, %v3053
    %v3224 = vmul.f32 %v2931, %v3058
    %v3225 = vmul.f32 %v2932, %v3063
    %v3226 = vmul.f32 %v2933, %v3068
    %v3227 = vmul.f32 %v2934, %v3073
    %v3228 = vmul.f32 %v2935, %v3078
    %v3229 = vmul.f32 %v2936, %v3083
    %v3230 = vpack.c.bf16 %v3215, %v3214
    %v3231 = vpack.c.bf16 %v3217, %v3216
    %v3232 = vpack.c.bf16 %v3219, %v3218
    %v3233 = vpack.c.bf16 %v3221, %v3220
    %v3234 = vpack.c.bf16 %v3223, %v3222
    %v3235 = vpack.c.bf16 %v3225, %v3224
    %v3236 = vpack.c.bf16 %v3227, %v3226
    %v3237 = vpack.c.bf16 %v3229, %v3228
    %v3246 = vunpack.c.l.b16 %v3230
    %v3247 = vunpack.c.h.b16 %v3230
    %v3248 = vunpack.c.l.b16 %v3231
    %v3249 = vunpack.c.h.b16 %v3231
    %v3250 = vunpack.c.l.b16 %v3232
    %v3251 = vunpack.c.h.b16 %v3232
    %v3252 = vunpack.c.l.b16 %v3233
    %v3253 = vunpack.c.h.b16 %v3233
    %v3254 = vunpack.c.l.b16 %v3234
    %v3255 = vunpack.c.h.b16 %v3234
    %v3256 = vunpack.c.l.b16 %v3235
    %v3257 = vunpack.c.h.b16 %v3235
    %v3258 = vunpack.c.l.b16 %v3236
    %v3259 = vunpack.c.h.b16 %v3236
    %v3260 = vunpack.c.l.b16 %v3237
    %v3261 = vunpack.c.h.b16 %v3237
    %v3262 = vpack.c.b16 %v3246, %v3246
    %v3263 = vpack.c.b16 %v3247, %v3247
    %v3264 = vpack.c.b16 %v3248, %v3248
    %v3265 = vpack.c.b16 %v3249, %v3249
    %v3266 = vpack.c.b16 %v3250, %v3250
    %v3267 = vpack.c.b16 %v3251, %v3251
    %v3268 = vpack.c.b16 %v3252, %v3252
    %v3269 = vpack.c.b16 %v3253, %v3253
    %v3270 = vpack.c.b16 %v3254, %v3254
    %v3271 = vpack.c.b16 %v3255, %v3255
    %v3272 = vpack.c.b16 %v3256, %v3256
    %v3273 = vpack.c.b16 %v3257, %v3257
    %v3274 = vpack.c.b16 %v3258, %v3258
    %v3275 = vpack.c.b16 %v3259, %v3259
    %v3276 = vpack.c.b16 %v3260, %v3260
    %v3277 = vpack.c.b16 %v3261, %v3261
    %vm3278 = vcmask 1040384
    %vm3279 = vcmask 1044484
    %vm3280 = vmor %vm3278, %vm3279
    %v3281 = vrot.slane %v3262, 7
    %v3282 = vrot.slane %v3281, 4
    %v3283 = vrot.slane %v3263, 7
    %v3284 = vsel %vm3280, %v3282, %v3283
    %v3285 = vrot.slane %v3283, 4
    %v3286 = vrot.slane %v3264, 7
    %v3287 = vsel %vm3280, %v3285, %v3286
    %v3288 = vrot.slane %v3286, 4
    %v3289 = vrot.slane %v3265, 7
    %v3290 = vsel %vm3280, %v3288, %v3289
    %v3291 = vrot.slane %v3289, 4
    %v3292 = vrot.slane %v3266, 7
    %v3293 = vsel %vm3280, %v3291, %v3292
    %v3294 = vrot.slane %v3292, 4
    %v3295 = vrot.slane %v3267, 7
    %v3296 = vsel %vm3280, %v3294, %v3295
    %v3297 = vrot.slane %v3295, 4
    %v3298 = vrot.slane %v3268, 7
    %v3299 = vsel %vm3280, %v3297, %v3298
    %v3300 = vrot.slane %v3298, 4
    %v3301 = vrot.slane %v3269, 7
    %v3302 = vsel %vm3280, %v3300, %v3301
    %v3303 = vrot.slane %v3301, 4
    %v3304 = vrot.slane %v3270, 7
    %v3305 = vsel %vm3280, %v3303, %v3304
    %v3306 = vrot.slane %v3304, 4
    %v3307 = vrot.slane %v3271, 7
    %v3308 = vsel %vm3280, %v3306, %v3307
    %v3309 = vrot.slane %v3307, 4
    %v3310 = vrot.slane %v3272, 7
    %v3311 = vsel %vm3280, %v3309, %v3310
    %v3312 = vrot.slane %v3310, 4
    %v3313 = vrot.slane %v3273, 7
    %v3314 = vsel %vm3280, %v3312, %v3313
    %v3315 = vrot.slane %v3313, 4
    %v3316 = vrot.slane %v3274, 7
    %v3317 = vsel %vm3280, %v3315, %v3316
    %v3318 = vrot.slane %v3316, 4
    %v3319 = vrot.slane %v3275, 7
    %v3320 = vsel %vm3280, %v3318, %v3319
    %v3321 = vrot.slane %v3319, 4
    %v3322 = vrot.slane %v3276, 7
    %v3323 = vsel %vm3280, %v3321, %v3322
    %v3324 = vrot.slane %v3322, 4
    %v3325 = vrot.slane %v3277, 7
    %v3326 = vsel %vm3280, %v3324, %v3325
    %v3327 = vrot.slane %v3325, 4
    %3328 = vrot.lane.b32.xlu0 %v3281, 64
    %v3329 = vpop.permute.xlu0 %3328
    %3330 = vrot.lane.b32.xlu0 %v3284, 64
    %v3331 = vpop.permute.xlu0 %3330
    %3332 = vrot.lane.b32.xlu0 %v3287, 64
    %v3333 = vpop.permute.xlu0 %3332
    %3334 = vrot.lane.b32.xlu0 %v3290, 64
    %v3335 = vpop.permute.xlu0 %3334
    %3336 = vrot.lane.b32.xlu0 %v3293, 64
    %v3337 = vpop.permute.xlu0 %3336
    %3338 = vrot.lane.b32.xlu0 %v3296, 64
    %v3339 = vpop.permute.xlu0 %3338
    %3340 = vrot.lane.b32.xlu0 %v3299, 64
    %v3341 = vpop.permute.xlu0 %3340
    %3342 = vrot.lane.b32.xlu0 %v3302, 64
    %v3343 = vpop.permute.xlu0 %3342
    %3344 = vrot.lane.b32.xlu0 %v3305, 64
    %v3345 = vpop.permute.xlu0 %3344
    %3346 = vrot.lane.b32.xlu0 %v3308, 64
    %v3347 = vpop.permute.xlu0 %3346
    %3348 = vrot.lane.b32.xlu0 %v3311, 64
    %v3349 = vpop.permute.xlu0 %3348
    %3350 = vrot.lane.b32.xlu0 %v3314, 64
    %v3351 = vpop.permute.xlu0 %3350
    %3352 = vrot.lane.b32.xlu0 %v3317, 64
    %v3353 = vpop.permute.xlu0 %3352
    %3354 = vrot.lane.b32.xlu0 %v3320, 64
    %v3355 = vpop.permute.xlu0 %3354
    %3356 = vrot.lane.b32.xlu0 %v3323, 64
    %v3357 = vpop.permute.xlu0 %3356
    %3358 = vrot.lane.b32.xlu0 %v3326, 64
    %v3359 = vpop.permute.xlu0 %3358
    %3360 = vrot.lane.b32.xlu0 %v3327, 64
    %v3361 = vpop.permute.xlu0 %3360
    %vm3379 = vcmask 781825
    %3380 = vst.msk [vmem:[#allocation2] sm:$0xe] %vm3379, %v3329
    %vm3381 = vcmask 781824
    %3382 = vst.msk [vmem:[#allocation2 + $0x4] sm:$0xf] %vm3381, %v3331
    %3383 = vst.msk [vmem:[#allocation2 + $0x8] sm:$0xf] %vm3381, %v3333
    %3384 = vst.msk [vmem:[#allocation2 + $0xc] sm:$0xf] %vm3381, %v3335
    %3385 = vst.msk [vmem:[#allocation2 + $0x10] sm:$0xf] %vm3381, %v3337
    %3386 = vst.msk [vmem:[#allocation2 + $0x14] sm:$0xf] %vm3381, %v3339
    %3387 = vst.msk [vmem:[#allocation2 + $0x18] sm:$0xf] %vm3381, %v3341
    %3388 = vst.msk [vmem:[#allocation2 + $0x1c] sm:$0xf] %vm3381, %v3343
    %3389 = vst.msk [vmem:[#allocation2 + $0x20] sm:$0xf] %vm3381, %v3345
    %3390 = vst.msk [vmem:[#allocation2 + $0x24] sm:$0xf] %vm3381, %v3347
    %3391 = vst.msk [vmem:[#allocation2 + $0x28] sm:$0xf] %vm3381, %v3349
    %3392 = vst.msk [vmem:[#allocation2 + $0x2c] sm:$0xf] %vm3381, %v3351
    %3393 = vst.msk [vmem:[#allocation2 + $0x30] sm:$0xf] %vm3381, %v3353
    %3394 = vst.msk [vmem:[#allocation2 + $0x34] sm:$0xf] %vm3381, %v3355
    %3395 = vst.msk [vmem:[#allocation2 + $0x38] sm:$0xf] %vm3381, %v3357
    %3396 = vst.msk [vmem:[#allocation2 + $0x3c] sm:$0xf] %vm3381, %v3359
    %vm3397 = vcmask 778752
    %3398 = vst.msk [vmem:[#allocation2 + $0x40] sm:$0x1] %vm3397, %v3361
    %v3399 = vmul.f32 %v2937, %v3008
    %v3400 = vmul.f32 %v2938, %v3013
    %v3401 = vmul.f32 %v2939, %v3018
    %v3402 = vmul.f32 %v2940, %v3023
    %v3403 = vmul.f32 %v2941, %v3028
    %v3404 = vmul.f32 %v2942, %v3033
    %v3405 = vmul.f32 %v2943, %v3038
    %v3406 = vmul.f32 %v2944, %v3043
    %v3407 = vmul.f32 %v2945, %v3048
    %v3408 = vmul.f32 %v2946, %v3053
    %v3409 = vmul.f32 %v2947, %v3058
    %v3410 = vmul.f32 %v2948, %v3063
    %v3411 = vmul.f32 %v2949, %v3068
    %v3412 = vmul.f32 %v2950, %v3073
    %v3413 = vmul.f32 %v2951, %v3078
    %v3414 = vmul.f32 %v2952, %v3083
    %v3415 = vpack.c.bf16 %v3400, %v3399
    %v3416 = vpack.c.bf16 %v3402, %v3401
    %v3417 = vpack.c.bf16 %v3404, %v3403
    %v3418 = vpack.c.bf16 %v3406, %v3405
    %v3419 = vpack.c.bf16 %v3408, %v3407
    %v3420 = vpack.c.bf16 %v3410, %v3409
    %v3421 = vpack.c.bf16 %v3412, %v3411
    %v3422 = vpack.c.bf16 %v3414, %v3413
    %v3431 = vunpack.c.l.b16 %v3415
    %v3432 = vunpack.c.h.b16 %v3415
    %v3433 = vunpack.c.l.b16 %v3416
    %v3434 = vunpack.c.h.b16 %v3416
    %v3435 = vunpack.c.l.b16 %v3417
    %v3436 = vunpack.c.h.b16 %v3417
    %v3437 = vunpack.c.l.b16 %v3418
    %v3438 = vunpack.c.h.b16 %v3418
    %v3439 = vunpack.c.l.b16 %v3419
    %v3440 = vunpack.c.h.b16 %v3419
    %v3441 = vunpack.c.l.b16 %v3420
    %v3442 = vunpack.c.h.b16 %v3420
    %v3443 = vunpack.c.l.b16 %v3421
    %v3444 = vunpack.c.h.b16 %v3421
    %v3445 = vunpack.c.l.b16 %v3422
    %v3446 = vunpack.c.h.b16 %v3422
    %v3447 = vpack.c.b16 %v3431, %v3431
    %v3448 = vpack.c.b16 %v3432, %v3432
    %v3449 = vpack.c.b16 %v3433, %v3433
    %v3450 = vpack.c.b16 %v3434, %v3434
    %v3451 = vpack.c.b16 %v3435, %v3435
    %v3452 = vpack.c.b16 %v3436, %v3436
    %v3453 = vpack.c.b16 %v3437, %v3437
    %v3454 = vpack.c.b16 %v3438, %v3438
    %v3455 = vpack.c.b16 %v3439, %v3439
    %v3456 = vpack.c.b16 %v3440, %v3440
    %v3457 = vpack.c.b16 %v3441, %v3441
    %v3458 = vpack.c.b16 %v3442, %v3442
    %v3459 = vpack.c.b16 %v3443, %v3443
    %v3460 = vpack.c.b16 %v3444, %v3444
    %v3461 = vpack.c.b16 %v3445, %v3445
    %v3462 = vpack.c.b16 %v3446, %v3446
    %3463 = vrot.lane.b32.xlu0 %v3447, 32
    %v3464 = vpop.permute.xlu0 %3463
    %3465 = vrot.lane.b32.xlu0 %v3448, 32
    %v3466 = vpop.permute.xlu0 %3465
    %3467 = vrot.lane.b32.xlu0 %v3449, 32
    %v3468 = vpop.permute.xlu0 %3467
    %3469 = vrot.lane.b32.xlu0 %v3450, 32
    %v3470 = vpop.permute.xlu0 %3469
    %3471 = vrot.lane.b32.xlu0 %v3451, 32
    %v3472 = vpop.permute.xlu0 %3471
    %3473 = vrot.lane.b32.xlu0 %v3452, 32
    %v3474 = vpop.permute.xlu0 %3473
    %3475 = vrot.lane.b32.xlu0 %v3453, 32
    %v3476 = vpop.permute.xlu0 %3475
    %3477 = vrot.lane.b32.xlu0 %v3454, 32
    %v3478 = vpop.permute.xlu0 %3477
    %3479 = vrot.lane.b32.xlu0 %v3455, 32
    %v3480 = vpop.permute.xlu0 %3479
    %3481 = vrot.lane.b32.xlu0 %v3456, 32
    %v3482 = vpop.permute.xlu0 %3481
    %3483 = vrot.lane.b32.xlu0 %v3457, 32
    %v3484 = vpop.permute.xlu0 %3483
    %3485 = vrot.lane.b32.xlu0 %v3458, 32
    %v3486 = vpop.permute.xlu0 %3485
    %3487 = vrot.lane.b32.xlu0 %v3459, 32
    %v3488 = vpop.permute.xlu0 %3487
    %3489 = vrot.lane.b32.xlu0 %v3460, 32
    %v3490 = vpop.permute.xlu0 %3489
    %3491 = vrot.lane.b32.xlu0 %v3461, 32
    %v3492 = vpop.permute.xlu0 %3491
    %3493 = vrot.lane.b32.xlu0 %v3462, 32
    %v3494 = vpop.permute.xlu0 %3493
    %vm3511 = vcmask 519424
    %3512 = vst.msk [vmem:[#allocation2 + $0x8] sm:$0xf] %vm3511, %v3464
    %3513 = vst.msk [vmem:[#allocation2 + $0xc] sm:$0xf] %vm3511, %v3466
    %3514 = vst.msk [vmem:[#allocation2 + $0x10] sm:$0xf] %vm3511, %v3468
    %3515 = vst.msk [vmem:[#allocation2 + $0x14] sm:$0xf] %vm3511, %v3470
    %3516 = vst.msk [vmem:[#allocation2 + $0x18] sm:$0xf] %vm3511, %v3472
    %3517 = vst.msk [vmem:[#allocation2 + $0x1c] sm:$0xf] %vm3511, %v3474
    %3518 = vst.msk [vmem:[#allocation2 + $0x20] sm:$0xf] %vm3511, %v3476
    %3519 = vst.msk [vmem:[#allocation2 + $0x24] sm:$0xf] %vm3511, %v3478
    %3520 = vst.msk [vmem:[#allocation2 + $0x28] sm:$0xf] %vm3511, %v3480
    %3521 = vst.msk [vmem:[#allocation2 + $0x2c] sm:$0xf] %vm3511, %v3482
    %3522 = vst.msk [vmem:[#allocation2 + $0x30] sm:$0xf] %vm3511, %v3484
    %3523 = vst.msk [vmem:[#allocation2 + $0x34] sm:$0xf] %vm3511, %v3486
    %3524 = vst.msk [vmem:[#allocation2 + $0x38] sm:$0xf] %vm3511, %v3488
    %3525 = vst.msk [vmem:[#allocation2 + $0x3c] sm:$0xf] %vm3511, %v3490
    %3526 = vst.msk [vmem:[#allocation2 + $0x40] sm:$0xf] %vm3511, %v3492
    %3527 = vst.msk [vmem:[#allocation2 + $0x44] sm:$0xf] %vm3511, %v3494
    %v3528 = vmul.f32 %v2953, %v3008
    %v3529 = vmul.f32 %v2954, %v3013
    %v3530 = vmul.f32 %v2955, %v3018
    %v3531 = vmul.f32 %v2956, %v3023
    %v3532 = vmul.f32 %v2957, %v3028
    %v3533 = vmul.f32 %v2958, %v3033
    %v3534 = vmul.f32 %v2959, %v3038
    %v3535 = vmul.f32 %v2960, %v3043
    %v3536 = vmul.f32 %v2961, %v3048
    %v3537 = vmul.f32 %v2962, %v3053
    %v3538 = vmul.f32 %v2963, %v3058
    %v3539 = vmul.f32 %v2964, %v3063
    %v3540 = vmul.f32 %v2965, %v3068
    %v3541 = vmul.f32 %v2966, %v3073
    %v3542 = vmul.f32 %v2967, %v3078
    %v3543 = vmul.f32 %v2968, %v3083
    %v3544 = vpack.c.bf16 %v3529, %v3528
    %v3545 = vpack.c.bf16 %v3531, %v3530
    %v3546 = vpack.c.bf16 %v3533, %v3532
    %v3547 = vpack.c.bf16 %v3535, %v3534
    %v3548 = vpack.c.bf16 %v3537, %v3536
    %v3549 = vpack.c.bf16 %v3539, %v3538
    %v3550 = vpack.c.bf16 %v3541, %v3540
    %v3551 = vpack.c.bf16 %v3543, %v3542
    %v3560 = vunpack.c.l.b16 %v3544
    %v3561 = vunpack.c.h.b16 %v3544
    %v3562 = vunpack.c.l.b16 %v3545
    %v3563 = vunpack.c.h.b16 %v3545
    %v3564 = vunpack.c.l.b16 %v3546
    %v3565 = vunpack.c.h.b16 %v3546
    %v3566 = vunpack.c.l.b16 %v3547
    %v3567 = vunpack.c.h.b16 %v3547
    %v3568 = vunpack.c.l.b16 %v3548
    %v3569 = vunpack.c.h.b16 %v3548
    %v3570 = vunpack.c.l.b16 %v3549
    %v3571 = vunpack.c.h.b16 %v3549
    %v3572 = vunpack.c.l.b16 %v3550
    %v3573 = vunpack.c.h.b16 %v3550
    %v3574 = vunpack.c.l.b16 %v3551
    %v3575 = vunpack.c.h.b16 %v3551
    %v3576 = vpack.c.b16 %v3560, %v3560
    %v3577 = vpack.c.b16 %v3561, %v3561
    %v3578 = vpack.c.b16 %v3562, %v3562
    %v3579 = vpack.c.b16 %v3563, %v3563
    %v3580 = vpack.c.b16 %v3564, %v3564
    %v3581 = vpack.c.b16 %v3565, %v3565
    %v3582 = vpack.c.b16 %v3566, %v3566
    %v3583 = vpack.c.b16 %v3567, %v3567
    %v3584 = vpack.c.b16 %v3568, %v3568
    %v3585 = vpack.c.b16 %v3569, %v3569
    %v3586 = vpack.c.b16 %v3570, %v3570
    %v3587 = vpack.c.b16 %v3571, %v3571
    %v3588 = vpack.c.b16 %v3572, %v3572
    %v3589 = vpack.c.b16 %v3573, %v3573
    %v3590 = vpack.c.b16 %v3574, %v3574
    %v3591 = vpack.c.b16 %v3575, %v3575
    %v3592 = vrot.slane %v3576, 7
    %v3593 = vrot.slane %v3592, 4
    %v3594 = vrot.slane %v3577, 7
    %v3595 = vsel %vm3280, %v3593, %v3594
    %v3596 = vrot.slane %v3594, 4
    %v3597 = vrot.slane %v3578, 7
    %v3598 = vsel %vm3280, %v3596, %v3597
    %v3599 = vrot.slane %v3597, 4
    %v3600 = vrot.slane %v3579, 7
    %v3601 = vsel %vm3280, %v3599, %v3600
    %v3602 = vrot.slane %v3600, 4
    %v3603 = vrot.slane %v3580, 7
    %v3604 = vsel %vm3280, %v3602, %v3603
    %v3605 = vrot.slane %v3603, 4
    %v3606 = vrot.slane %v3581, 7
    %v3607 = vsel %vm3280, %v3605, %v3606
    %v3608 = vrot.slane %v3606, 4
    %v3609 = vrot.slane %v3582, 7
    %v3610 = vsel %vm3280, %v3608, %v3609
    %v3611 = vrot.slane %v3609, 4
    %v3612 = vrot.slane %v3583, 7
    %v3613 = vsel %vm3280, %v3611, %v3612
    %v3614 = vrot.slane %v3612, 4
    %v3615 = vrot.slane %v3584, 7
    %v3616 = vsel %vm3280, %v3614, %v3615
    %v3617 = vrot.slane %v3615, 4
    %v3618 = vrot.slane %v3585, 7
    %v3619 = vsel %vm3280, %v3617, %v3618
    %v3620 = vrot.slane %v3618, 4
    %v3621 = vrot.slane %v3586, 7
    %v3622 = vsel %vm3280, %v3620, %v3621
    %v3623 = vrot.slane %v3621, 4
    %v3624 = vrot.slane %v3587, 7
    %v3625 = vsel %vm3280, %v3623, %v3624
    %v3626 = vrot.slane %v3624, 4
    %v3627 = vrot.slane %v3588, 7
    %v3628 = vsel %vm3280, %v3626, %v3627
    %v3629 = vrot.slane %v3627, 4
    %v3630 = vrot.slane %v3589, 7
    %v3631 = vsel %vm3280, %v3629, %v3630
    %v3632 = vrot.slane %v3630, 4
    %v3633 = vrot.slane %v3590, 7
    %v3634 = vsel %vm3280, %v3632, %v3633
    %v3635 = vrot.slane %v3633, 4
    %v3636 = vrot.slane %v3591, 7
    %v3637 = vsel %vm3280, %v3635, %v3636
    %v3638 = vrot.slane %v3636, 4
    %vm3656 = vcmask 257025
    %3657 = vst.msk [vmem:[#allocation2 + $0x8] sm:$0xe] %vm3656, %v3592
    %vm3658 = vcmask 257024
    %3659 = vst.msk [vmem:[#allocation2 + $0xc] sm:$0xf] %vm3658, %v3595
    %3660 = vst.msk [vmem:[#allocation2 + $0x10] sm:$0xf] %vm3658, %v3598
    %3661 = vst.msk [vmem:[#allocation2 + $0x14] sm:$0xf] %vm3658, %v3601
    %3662 = vst.msk [vmem:[#allocation2 + $0x18] sm:$0xf] %vm3658, %v3604
    %3663 = vst.msk [vmem:[#allocation2 + $0x1c] sm:$0xf] %vm3658, %v3607
    %3664 = vst.msk [vmem:[#allocation2 + $0x20] sm:$0xf] %vm3658, %v3610
    %3665 = vst.msk [vmem:[#allocation2 + $0x24] sm:$0xf] %vm3658, %v3613
    %3666 = vst.msk [vmem:[#allocation2 + $0x28] sm:$0xf] %vm3658, %v3616
    %3667 = vst.msk [vmem:[#allocation2 + $0x2c] sm:$0xf] %vm3658, %v3619
    %3668 = vst.msk [vmem:[#allocation2 + $0x30] sm:$0xf] %vm3658, %v3622
    %3669 = vst.msk [vmem:[#allocation2 + $0x34] sm:$0xf] %vm3658, %v3625
    %3670 = vst.msk [vmem:[#allocation2 + $0x38] sm:$0xf] %vm3658, %v3628
    %3671 = vst.msk [vmem:[#allocation2 + $0x3c] sm:$0xf] %vm3658, %v3631
    %3672 = vst.msk [vmem:[#allocation2 + $0x40] sm:$0xf] %vm3658, %v3634
    %3673 = vst.msk [vmem:[#allocation2 + $0x44] sm:$0xf] %vm3658, %v3637
    %vm3674 = vcmask 253952
    %3675 = vst.msk [vmem:[#allocation2 + $0x48] sm:$0x1] %vm3674, %v3638
    %v3676 = vld [vmem:[#allocation2] sm:$0xf]
    %v3677 = vld [vmem:[#allocation2 + $0x4] sm:$0xf]
    %v3678 = vld [vmem:[#allocation2 + $0x8] sm:$0xf]
    %v3679 = vld [vmem:[#allocation2 + $0xc] sm:$0xf]
    %v3680 = vld [vmem:[#allocation2 + $0x10] sm:$0xf]
    %v3681 = vld [vmem:[#allocation2 + $0x14] sm:$0xf]
    %v3682 = vld [vmem:[#allocation2 + $0x18] sm:$0xf]
    %v3683 = vld [vmem:[#allocation2 + $0x1c] sm:$0xf]
    %v3684 = vld [vmem:[#allocation2 + $0x20] sm:$0xf]
    %v3685 = vld [vmem:[#allocation2 + $0x24] sm:$0xf]
    %v3686 = vld [vmem:[#allocation2 + $0x28] sm:$0xf]
    %v3687 = vld [vmem:[#allocation2 + $0x2c] sm:$0xf]
    %v3688 = vld [vmem:[#allocation2 + $0x30] sm:$0xf]
    %v3689 = vld [vmem:[#allocation2 + $0x34] sm:$0xf]
    %v3690 = vld [vmem:[#allocation2 + $0x38] sm:$0xf]
    %v3691 = vld [vmem:[#allocation2 + $0x3c] sm:$0xf]
    %v3692 = vld [vmem:[%s5] sm:$0xf]
    %v3693 = vld [vmem:[%s5 + $0x4] sm:$0xf]
    %v3694 = vld [vmem:[%s5 + $0x8] sm:$0xf]
    %v3695 = vld [vmem:[%s5 + $0xc] sm:$0xf]
    %v3696 = vld [vmem:[%s5 + $0x10] sm:$0xf]
    %v3697 = vld [vmem:[%s5 + $0x14] sm:$0xf]
    %v3698 = vld [vmem:[%s5 + $0x18] sm:$0xf]
    %v3699 = vld [vmem:[%s5 + $0x1c] sm:$0xf]
    %v3700 = vld [vmem:[%s5 + $0x20] sm:$0xf]
    %v3701 = vld [vmem:[%s5 + $0x24] sm:$0xf]
    %v3702 = vld [vmem:[%s5 + $0x28] sm:$0xf]
    %v3703 = vld [vmem:[%s5 + $0x2c] sm:$0xf]
    %v3704 = vld [vmem:[%s5 + $0x30] sm:$0xf]
    %v3705 = vld [vmem:[%s5 + $0x34] sm:$0xf]
    %v3706 = vld [vmem:[%s5 + $0x38] sm:$0xf]
    %v3707 = vld [vmem:[%s5 + $0x3c] sm:$0xf]
    %v3708 = vld [vmem:[#allocation2] sm:$0xe]
    %v3709 = vld [vmem:[#allocation2 + $0x40] sm:$0x1]
    %s3710 = scalar_lea.vmem %s5, 64
    %v3711 = vld [vmem:[%s3710] sm:$0xf]
    %v3712 = vld [vmem:[%s3710 + $0x4] sm:$0xf]
    %v3713 = vld [vmem:[%s3710 + $0x8] sm:$0xf]
    %v3714 = vld [vmem:[%s3710 + $0xc] sm:$0xf]
    %v3715 = vld [vmem:[%s3710 + $0x10] sm:$0xf]
    %v3716 = vld [vmem:[%s3710 + $0x14] sm:$0xf]
    %v3717 = vld [vmem:[%s3710 + $0x18] sm:$0xf]
    %v3718 = vld [vmem:[%s3710 + $0x1c] sm:$0xf]
    %v3719 = vld [vmem:[%s3710 + $0x20] sm:$0xf]
    %v3720 = vld [vmem:[%s3710 + $0x24] sm:$0xf]
    %v3721 = vld [vmem:[%s3710 + $0x28] sm:$0xf]
    %v3722 = vld [vmem:[%s3710 + $0x2c] sm:$0xf]
    %v3723 = vld [vmem:[%s3710 + $0x30] sm:$0xf]
    %v3724 = vld [vmem:[%s3710 + $0x34] sm:$0xf]
    %v3725 = vld [vmem:[%s3710 + $0x38] sm:$0xf]
    %v3726 = vld [vmem:[%s3710 + $0x3c] sm:$0xf]
    %v3744 = vunpack.c.l.b16 %v3708
    %v3745 = vunpack.c.l.b16 %v3677
    %v3746 = vunpack.c.l.b16 %v3678
    %v3747 = vunpack.c.l.b16 %v3679
    %v3748 = vunpack.c.l.b16 %v3680
    %v3749 = vunpack.c.l.b16 %v3681
    %v3750 = vunpack.c.l.b16 %v3682
    %v3751 = vunpack.c.l.b16 %v3683
    %v3752 = vunpack.c.l.b16 %v3684
    %v3753 = vunpack.c.l.b16 %v3685
    %v3754 = vunpack.c.l.b16 %v3686
    %v3755 = vunpack.c.l.b16 %v3687
    %v3756 = vunpack.c.l.b16 %v3688
    %v3757 = vunpack.c.l.b16 %v3689
    %v3758 = vunpack.c.l.b16 %v3690
    %v3759 = vunpack.c.l.b16 %v3691
    %v3760 = vunpack.c.l.b16 %v3709
    %v3761 = vpack.c.b16 %v3745, %v3744
    %v3762 = vpack.c.b16 %v3747, %v3746
    %v3763 = vpack.c.b16 %v3749, %v3748
    %v3764 = vpack.c.b16 %v3751, %v3750
    %v3765 = vpack.c.b16 %v3753, %v3752
    %v3766 = vpack.c.b16 %v3755, %v3754
    %v3767 = vpack.c.b16 %v3757, %v3756
    %v3768 = vpack.c.b16 %v3759, %v3758
    %v3769 = vpack.c.b16 %v3760, %v3760
    %vm3770 = vcmask 1046528
    %v3771 = vrot.slane %v3761, 1
    %v3772 = vrot.slane %v3762, 1
    %v3773 = vsel %vm3770, %v3771, %v3772
    %v3774 = vrot.slane %v3763, 1
    %v3775 = vsel %vm3770, %v3772, %v3774
    %v3776 = vrot.slane %v3764, 1
    %v3777 = vsel %vm3770, %v3774, %v3776
    %v3778 = vrot.slane %v3765, 1
    %v3779 = vsel %vm3770, %v3776, %v3778
    %v3780 = vrot.slane %v3766, 1
    %v3781 = vsel %vm3770, %v3778, %v3780
    %v3782 = vrot.slane %v3767, 1
    %v3783 = vsel %vm3770, %v3780, %v3782
    %v3784 = vrot.slane %v3768, 1
    %v3785 = vsel %vm3770, %v3782, %v3784
    %v3786 = vrot.slane %v3769, 1
    %v3787 = vsel %vm3770, %v3784, %v3786
    %v3812 = vunpack.c.l.b16 %v3711
    %v3813 = vunpack.c.l.b16 %v3712
    %v3814 = vunpack.c.l.b16 %v3713
    %v3815 = vunpack.c.l.b16 %v3714
    %v3816 = vunpack.c.l.b16 %v3715
    %v3817 = vunpack.c.l.b16 %v3716
    %v3818 = vunpack.c.l.b16 %v3717
    %v3819 = vunpack.c.l.b16 %v3718
    %v3820 = vunpack.c.l.b16 %v3719
    %v3821 = vunpack.c.l.b16 %v3720
    %v3822 = vunpack.c.l.b16 %v3721
    %v3823 = vunpack.c.l.b16 %v3722
    %v3824 = vunpack.c.l.b16 %v3723
    %v3825 = vunpack.c.l.b16 %v3724
    %v3826 = vunpack.c.l.b16 %v3725
    %v3827 = vunpack.c.l.b16 %v3726
    %v3828 = vpack.c.b16 %v3813, %v3812
    %v3829 = vpack.c.b16 %v3815, %v3814
    %v3830 = vpack.c.b16 %v3817, %v3816
    %v3831 = vpack.c.b16 %v3819, %v3818
    %v3832 = vpack.c.b16 %v3821, %v3820
    %v3833 = vpack.c.b16 %v3823, %v3822
    %v3834 = vpack.c.b16 %v3825, %v3824
    %v3835 = vpack.c.b16 %v3827, %v3826
    %3844 = vmatprep.subr.bf16.mxu0 0
    %3845 = vmatpush1.bf16.msra.mxu0 %v3835
    %3846 = vmatprep.subr.bf16.mxu0 0
    %3847 = vmatpush1.bf16.msra.mxu0 %v3834
    %3848 = vmatprep.subr.bf16.mxu0 0
    %3849 = vmatpush1.bf16.msra.mxu0 %v3833
    %3850 = vmatprep.subr.bf16.mxu0 0
    %3851 = vmatpush1.bf16.msra.mxu0 %v3832
    %3852 = vmatprep.subr.bf16.mxu0 0
    %3853 = vmatpush1.bf16.msra.mxu0 %v3831
    %3854 = vmatprep.subr.bf16.mxu0 0
    %3855 = vmatpush1.bf16.msra.mxu0 %v3830
    %3856 = vmatprep.subr.bf16.mxu0 0
    %3857 = vmatpush1.bf16.msra.mxu0 %v3829
    %3858 = vmatprep.subr.bf16.mxu0 0
    %3859 = vmatpush1.bf16.msra.mxu0 %v3828
    %3860 = vmatprep.subr.bf16.mxu0 0
    %3861 = vmatpush2.bf16.msra.mxu0 0
    %3862 = vmatprep.subr.bf16.mxu0 0
    %3863 = vmatpush2.bf16.msra.mxu0 0
    %3864 = vmatprep.subr.bf16.mxu0 0
    %3865 = vmatpush2.bf16.msra.mxu0 0
    %3866 = vmatprep.subr.bf16.mxu0 0
    %3867 = vmatpush2.bf16.msra.mxu0 0
    %3868 = vmatprep.subr.bf16.mxu0 0
    %3869 = vmatpush2.bf16.msra.mxu0 0
    %3870 = vmatprep.subr.bf16.mxu0 0
    %3871 = vmatpush2.bf16.msra.mxu0 0
    %3872 = vmatprep.subr.bf16.mxu0 0
    %3873 = vmatpush2.bf16.msra.mxu0 0
    %3874 = vmatprep.subr.bf16.mxu0 0
    %3875 = vmatpush2.bf16.msra.mxu0 0
    %3876 = vmatprep.mubr.bf16.mxu0 0
    %3877 = vmatmul.mubr.bf16.gmra.mxu0 %v3773
    %v3878 = vpop.f32.mrf.mxu0
    %v3879 = vadd.f32 0.0, %v3878
    %v3880 = vpop.f32.mrf.mxu0
    %v3881 = vpop.f32.mrf.mxu0
    %v3882 = vadd.f32 0.0, %v3881
    %v3883 = vpop.f32.mrf.mxu0
    %3884 = vmatprep.mubr.bf16.mxu0 0
    %3885 = vmatmul.mubr.bf16.gmra.mxu0 %v3775
    %v3886 = vpop.f32.mrf.mxu0
    %v3887 = vadd.f32 0.0, %v3886
    %v3888 = vpop.f32.mrf.mxu0
    %v3889 = vpop.f32.mrf.mxu0
    %v3890 = vadd.f32 0.0, %v3889
    %v3891 = vpop.f32.mrf.mxu0
    %3892 = vmatprep.mubr.bf16.mxu0 0
    %3893 = vmatmul.mubr.bf16.gmra.mxu0 %v3777
    %v3894 = vpop.f32.mrf.mxu0
    %v3895 = vadd.f32 0.0, %v3894
    %v3896 = vpop.f32.mrf.mxu0
    %v3897 = vpop.f32.mrf.mxu0
    %v3898 = vadd.f32 0.0, %v3897
    %v3899 = vpop.f32.mrf.mxu0
    %3900 = vmatprep.mubr.bf16.mxu0 0
    %3901 = vmatmul.mubr.bf16.gmra.mxu0 %v3779
    %v3902 = vpop.f32.mrf.mxu0
    %v3903 = vadd.f32 0.0, %v3902
    %v3904 = vpop.f32.mrf.mxu0
    %v3905 = vpop.f32.mrf.mxu0
    %v3906 = vadd.f32 0.0, %v3905
    %v3907 = vpop.f32.mrf.mxu0
    %3908 = vmatprep.mubr.bf16.mxu0 0
    %3909 = vmatmul.mubr.bf16.gmra.mxu0 %v3781
    %v3910 = vpop.f32.mrf.mxu0
    %v3911 = vadd.f32 0.0, %v3910
    %v3912 = vpop.f32.mrf.mxu0
    %v3913 = vpop.f32.mrf.mxu0
    %v3914 = vadd.f32 0.0, %v3913
    %v3915 = vpop.f32.mrf.mxu0
    %3916 = vmatprep.mubr.bf16.mxu0 0
    %3917 = vmatmul.mubr.bf16.gmra.mxu0 %v3783
    %v3918 = vpop.f32.mrf.mxu0
    %v3919 = vadd.f32 0.0, %v3918
    %v3920 = vpop.f32.mrf.mxu0
    %v3921 = vpop.f32.mrf.mxu0
    %v3922 = vadd.f32 0.0, %v3921
    %v3923 = vpop.f32.mrf.mxu0
    %3924 = vmatprep.mubr.bf16.mxu0 0
    %3925 = vmatmul.mubr.bf16.gmra.mxu0 %v3785
    %v3926 = vpop.f32.mrf.mxu0
    %v3927 = vadd.f32 0.0, %v3926
    %v3928 = vpop.f32.mrf.mxu0
    %v3929 = vpop.f32.mrf.mxu0
    %v3930 = vadd.f32 0.0, %v3929
    %v3931 = vpop.f32.mrf.mxu0
    %3932 = vmatprep.mubr.bf16.mxu0 0
    %3933 = vmatmul.mubr.bf16.gmra.mxu0 %v3787
    %v3934 = vpop.f32.mrf.mxu0
    %v3935 = vadd.f32 0.0, %v3934
    %v3936 = vpop.f32.mrf.mxu0
    %v3937 = vpop.f32.mrf.mxu0
    %v3938 = vadd.f32 0.0, %v3937
    %v3939 = vpop.f32.mrf.mxu0
    %3940 = vdwg.mxu0
    %v3942 = vunpack.c.l.b16 %v3676
    %v3943 = vpack.c.b16 %v3745, %v3942
    %v3968 = vunpack.c.l.b16 %v3692
    %v3969 = vunpack.c.l.b16 %v3693
    %v3970 = vunpack.c.l.b16 %v3694
    %v3971 = vunpack.c.l.b16 %v3695
    %v3972 = vunpack.c.l.b16 %v3696
    %v3973 = vunpack.c.l.b16 %v3697
    %v3974 = vunpack.c.l.b16 %v3698
    %v3975 = vunpack.c.l.b16 %v3699
    %v3976 = vunpack.c.l.b16 %v3700
    %v3977 = vunpack.c.l.b16 %v3701
    %v3978 = vunpack.c.l.b16 %v3702
    %v3979 = vunpack.c.l.b16 %v3703
    %v3980 = vunpack.c.l.b16 %v3704
    %v3981 = vunpack.c.l.b16 %v3705
    %v3982 = vunpack.c.l.b16 %v3706
    %v3983 = vunpack.c.l.b16 %v3707
    %v3984 = vpack.c.b16 %v3969, %v3968
    %v3985 = vpack.c.b16 %v3971, %v3970
    %v3986 = vpack.c.b16 %v3973, %v3972
    %v3987 = vpack.c.b16 %v3975, %v3974
    %v3988 = vpack.c.b16 %v3977, %v3976
    %v3989 = vpack.c.b16 %v3979, %v3978
    %v3990 = vpack.c.b16 %v3981, %v3980
    %v3991 = vpack.c.b16 %v3983, %v3982
    %4000 = vmatprep.subr.bf16.mxu0 0
    %4001 = vmatpush1.bf16.msra.mxu0 %v3991
    %4002 = vmatprep.subr.bf16.mxu0 0
    %4003 = vmatpush1.bf16.msra.mxu0 %v3990
    %4004 = vmatprep.subr.bf16.mxu0 0
    %4005 = vmatpush1.bf16.msra.mxu0 %v3989
    %4006 = vmatprep.subr.bf16.mxu0 0
    %4007 = vmatpush1.bf16.msra.mxu0 %v3988
    %4008 = vmatprep.subr.bf16.mxu0 0
    %4009 = vmatpush1.bf16.msra.mxu0 %v3987
    %4010 = vmatprep.subr.bf16.mxu0 0
    %4011 = vmatpush1.bf16.msra.mxu0 %v3986
    %4012 = vmatprep.subr.bf16.mxu0 0
    %4013 = vmatpush1.bf16.msra.mxu0 %v3985
    %4014 = vmatprep.subr.bf16.mxu0 0
    %4015 = vmatpush1.bf16.msra.mxu0 %v3984
    %4016 = vmatprep.subr.bf16.mxu0 0
    %4017 = vmatpush2.bf16.msra.mxu0 0
    %4018 = vmatprep.subr.bf16.mxu0 0
    %4019 = vmatpush2.bf16.msra.mxu0 0
    %4020 = vmatprep.subr.bf16.mxu0 0
    %4021 = vmatpush2.bf16.msra.mxu0 0
    %4022 = vmatprep.subr.bf16.mxu0 0
    %4023 = vmatpush2.bf16.msra.mxu0 0
    %4024 = vmatprep.subr.bf16.mxu0 0
    %4025 = vmatpush2.bf16.msra.mxu0 0
    %4026 = vmatprep.subr.bf16.mxu0 0
    %4027 = vmatpush2.bf16.msra.mxu0 0
    %4028 = vmatprep.subr.bf16.mxu0 0
    %4029 = vmatpush2.bf16.msra.mxu0 0
    %4030 = vmatprep.subr.bf16.mxu0 0
    %4031 = vmatpush2.bf16.msra.mxu0 0
    %4032 = vmatprep.mubr.bf16.mxu0 0
    %4033 = vmatmul.mubr.bf16.gmra.mxu0 %v3943
    %v4034 = vpop.f32.mrf.mxu0
    %v4035 = vadd.f32 %v3879, %v4034
    %v4036 = vpop.f32.mrf.mxu0
    %v4037 = vpop.f32.mrf.mxu0
    %v4038 = vadd.f32 %v3882, %v4037
    %v4039 = vpop.f32.mrf.mxu0
    %4040 = vmatprep.mubr.bf16.mxu0 0
    %4041 = vmatmul.mubr.bf16.gmra.mxu0 %v3762
    %v4042 = vpop.f32.mrf.mxu0
    %v4043 = vadd.f32 %v3887, %v4042
    %v4044 = vpop.f32.mrf.mxu0
    %v4045 = vpop.f32.mrf.mxu0
    %v4046 = vadd.f32 %v3890, %v4045
    %v4047 = vpop.f32.mrf.mxu0
    %4048 = vmatprep.mubr.bf16.mxu0 0
    %4049 = vmatmul.mubr.bf16.gmra.mxu0 %v3763
    %v4050 = vpop.f32.mrf.mxu0
    %v4051 = vadd.f32 %v3895, %v4050
    %v4052 = vpop.f32.mrf.mxu0
    %v4053 = vpop.f32.mrf.mxu0
    %v4054 = vadd.f32 %v3898, %v4053
    %v4055 = vpop.f32.mrf.mxu0
    %4056 = vmatprep.mubr.bf16.mxu0 0
    %4057 = vmatmul.mubr.bf16.gmra.mxu0 %v3764
    %v4058 = vpop.f32.mrf.mxu0
    %v4059 = vadd.f32 %v3903, %v4058
    %v4060 = vpop.f32.mrf.mxu0
    %v4061 = vpop.f32.mrf.mxu0
    %v4062 = vadd.f32 %v3906, %v4061
    %v4063 = vpop.f32.mrf.mxu0
    %4064 = vmatprep.mubr.bf16.mxu0 0
    %4065 = vmatmul.mubr.bf16.gmra.mxu0 %v3765
    %v4066 = vpop.f32.mrf.mxu0
    %v4067 = vadd.f32 %v3911, %v4066
    %v4068 = vpop.f32.mrf.mxu0
    %v4069 = vpop.f32.mrf.mxu0
    %v4070 = vadd.f32 %v3914, %v4069
    %v4071 = vpop.f32.mrf.mxu0
    %4072 = vmatprep.mubr.bf16.mxu0 0
    %4073 = vmatmul.mubr.bf16.gmra.mxu0 %v3766
    %v4074 = vpop.f32.mrf.mxu0
    %v4075 = vadd.f32 %v3919, %v4074
    %v4076 = vpop.f32.mrf.mxu0
    %v4077 = vpop.f32.mrf.mxu0
    %v4078 = vadd.f32 %v3922, %v4077
    %v4079 = vpop.f32.mrf.mxu0
    %4080 = vmatprep.mubr.bf16.mxu0 0
    %4081 = vmatmul.mubr.bf16.gmra.mxu0 %v3767
    %v4082 = vpop.f32.mrf.mxu0
    %v4083 = vadd.f32 %v3927, %v4082
    %v4084 = vpop.f32.mrf.mxu0
    %v4085 = vpop.f32.mrf.mxu0
    %v4086 = vadd.f32 %v3930, %v4085
    %v4087 = vpop.f32.mrf.mxu0
    %4088 = vmatprep.mubr.bf16.mxu0 0
    %4089 = vmatmul.mubr.bf16.gmra.mxu0 %v3768
    %v4090 = vpop.f32.mrf.mxu0
    %v4091 = vadd.f32 %v3935, %v4090
    %v4092 = vpop.f32.mrf.mxu0
    %v4093 = vpop.f32.mrf.mxu0
    %v4094 = vadd.f32 %v3938, %v4093
    %v4095 = vpop.f32.mrf.mxu0
    %4096 = vdwg.mxu0
    %v4097 = vld [vmem:[#allocation2 + $0x8] sm:$0xf]
    %v4098 = vld [vmem:[#allocation2 + $0xc] sm:$0xf]
    %v4099 = vld [vmem:[#allocation2 + $0x10] sm:$0xf]
    %v4100 = vld [vmem:[#allocation2 + $0x14] sm:$0xf]
    %v4101 = vld [vmem:[#allocation2 + $0x18] sm:$0xf]
    %v4102 = vld [vmem:[#allocation2 + $0x1c] sm:$0xf]
    %v4103 = vld [vmem:[#allocation2 + $0x20] sm:$0xf]
    %v4104 = vld [vmem:[#allocation2 + $0x24] sm:$0xf]
    %v4105 = vld [vmem:[#allocation2 + $0x28] sm:$0xf]
    %v4106 = vld [vmem:[#allocation2 + $0x2c] sm:$0xf]
    %v4107 = vld [vmem:[#allocation2 + $0x30] sm:$0xf]
    %v4108 = vld [vmem:[#allocation2 + $0x34] sm:$0xf]
    %v4109 = vld [vmem:[#allocation2 + $0x38] sm:$0xf]
    %v4110 = vld [vmem:[#allocation2 + $0x3c] sm:$0xf]
    %v4111 = vld [vmem:[#allocation2 + $0x40] sm:$0xf]
    %v4112 = vld [vmem:[#allocation2 + $0x44] sm:$0xf]
    %s4113 = scalar_lea.vmem %s5, 128
    %v4114 = vld [vmem:[%s4113] sm:$0xf]
    %v4115 = vld [vmem:[%s4113 + $0x4] sm:$0xf]
    %v4116 = vld [vmem:[%s4113 + $0x8] sm:$0xf]
    %v4117 = vld [vmem:[%s4113 + $0xc] sm:$0xf]
    %v4118 = vld [vmem:[%s4113 + $0x10] sm:$0xf]
    %v4119 = vld [vmem:[%s4113 + $0x14] sm:$0xf]
    %v4120 = vld [vmem:[%s4113 + $0x18] sm:$0xf]
    %v4121 = vld [vmem:[%s4113 + $0x1c] sm:$0xf]
    %v4122 = vld [vmem:[%s4113 + $0x20] sm:$0xf]
    %v4123 = vld [vmem:[%s4113 + $0x24] sm:$0xf]
    %v4124 = vld [vmem:[%s4113 + $0x28] sm:$0xf]
    %v4125 = vld [vmem:[%s4113 + $0x2c] sm:$0xf]
    %v4126 = vld [vmem:[%s4113 + $0x30] sm:$0xf]
    %v4127 = vld [vmem:[%s4113 + $0x34] sm:$0xf]
    %v4128 = vld [vmem:[%s4113 + $0x38] sm:$0xf]
    %v4129 = vld [vmem:[%s4113 + $0x3c] sm:$0xf]
    %v4146 = vunpack.c.l.b16 %v4097
    %v4147 = vunpack.c.l.b16 %v4098
    %v4148 = vunpack.c.l.b16 %v4099
    %v4149 = vunpack.c.l.b16 %v4100
    %v4150 = vunpack.c.l.b16 %v4101
    %v4151 = vunpack.c.l.b16 %v4102
    %v4152 = vunpack.c.l.b16 %v4103
    %v4153 = vunpack.c.l.b16 %v4104
    %v4154 = vunpack.c.l.b16 %v4105
    %v4155 = vunpack.c.l.b16 %v4106
    %v4156 = vunpack.c.l.b16 %v4107
    %v4157 = vunpack.c.l.b16 %v4108
    %v4158 = vunpack.c.l.b16 %v4109
    %v4159 = vunpack.c.l.b16 %v4110
    %v4160 = vunpack.c.l.b16 %v4111
    %v4161 = vunpack.c.l.b16 %v4112
    %v4162 = vpack.c.b16 %v4147, %v4146
    %v4163 = vpack.c.b16 %v4149, %v4148
    %v4164 = vpack.c.b16 %v4151, %v4150
    %v4165 = vpack.c.b16 %v4153, %v4152
    %v4166 = vpack.c.b16 %v4155, %v4154
    %v4167 = vpack.c.b16 %v4157, %v4156
    %v4168 = vpack.c.b16 %v4159, %v4158
    %v4169 = vpack.c.b16 %v4161, %v4160
    %v4194 = vunpack.c.l.b16 %v4114
    %v4195 = vunpack.c.l.b16 %v4115
    %v4196 = vunpack.c.l.b16 %v4116
    %v4197 = vunpack.c.l.b16 %v4117
    %v4198 = vunpack.c.l.b16 %v4118
    %v4199 = vunpack.c.l.b16 %v4119
    %v4200 = vunpack.c.l.b16 %v4120
    %v4201 = vunpack.c.l.b16 %v4121
    %v4202 = vunpack.c.l.b16 %v4122
    %v4203 = vunpack.c.l.b16 %v4123
    %v4204 = vunpack.c.l.b16 %v4124
    %v4205 = vunpack.c.l.b16 %v4125
    %v4206 = vunpack.c.l.b16 %v4126
    %v4207 = vunpack.c.l.b16 %v4127
    %v4208 = vunpack.c.l.b16 %v4128
    %v4209 = vunpack.c.l.b16 %v4129
    %v4210 = vpack.c.b16 %v4195, %v4194
    %v4211 = vpack.c.b16 %v4197, %v4196
    %v4212 = vpack.c.b16 %v4199, %v4198
    %v4213 = vpack.c.b16 %v4201, %v4200
    %v4214 = vpack.c.b16 %v4203, %v4202
    %v4215 = vpack.c.b16 %v4205, %v4204
    %v4216 = vpack.c.b16 %v4207, %v4206
    %v4217 = vpack.c.b16 %v4209, %v4208
    %4226 = vmatprep.subr.bf16.mxu0 0
    %4227 = vmatpush1.bf16.msra.mxu0 %v4217
    %4228 = vmatprep.subr.bf16.mxu0 0
    %4229 = vmatpush1.bf16.msra.mxu0 %v4216
    %4230 = vmatprep.subr.bf16.mxu0 0
    %4231 = vmatpush1.bf16.msra.mxu0 %v4215
    %4232 = vmatprep.subr.bf16.mxu0 0
    %4233 = vmatpush1.bf16.msra.mxu0 %v4214
    %4234 = vmatprep.subr.bf16.mxu0 0
    %4235 = vmatpush1.bf16.msra.mxu0 %v4213
    %4236 = vmatprep.subr.bf16.mxu0 0
    %4237 = vmatpush1.bf16.msra.mxu0 %v4212
    %4238 = vmatprep.subr.bf16.mxu0 0
    %4239 = vmatpush1.bf16.msra.mxu0 %v4211
    %4240 = vmatprep.subr.bf16.mxu0 0
    %4241 = vmatpush1.bf16.msra.mxu0 %v4210
    %4242 = vmatprep.subr.bf16.mxu0 0
    %4243 = vmatpush2.bf16.msra.mxu0 0
    %4244 = vmatprep.subr.bf16.mxu0 0
    %4245 = vmatpush2.bf16.msra.mxu0 0
    %4246 = vmatprep.subr.bf16.mxu0 0
    %4247 = vmatpush2.bf16.msra.mxu0 0
    %4248 = vmatprep.subr.bf16.mxu0 0
    %4249 = vmatpush2.bf16.msra.mxu0 0
    %4250 = vmatprep.subr.bf16.mxu0 0
    %4251 = vmatpush2.bf16.msra.mxu0 0
    %4252 = vmatprep.subr.bf16.mxu0 0
    %4253 = vmatpush2.bf16.msra.mxu0 0
    %4254 = vmatprep.subr.bf16.mxu0 0
    %4255 = vmatpush2.bf16.msra.mxu0 0
    %4256 = vmatprep.subr.bf16.mxu0 0
    %4257 = vmatpush2.bf16.msra.mxu0 0
    %4258 = vmatprep.mubr.bf16.mxu0 0
    %4259 = vmatmul.mubr.bf16.gmra.mxu0 %v4162
    %v4260 = vpop.f32.mrf.mxu0
    %v4261 = vadd.f32 0.0, %v4260
    %v4262 = vpop.f32.mrf.mxu0
    %v4263 = vpop.f32.mrf.mxu0
    %v4264 = vadd.f32 0.0, %v4263
    %v4265 = vpop.f32.mrf.mxu0
    %4266 = vmatprep.mubr.bf16.mxu0 0
    %4267 = vmatmul.mubr.bf16.gmra.mxu0 %v4163
    %v4268 = vpop.f32.mrf.mxu0
    %v4269 = vadd.f32 0.0, %v4268
    %v4270 = vpop.f32.mrf.mxu0
    %v4271 = vpop.f32.mrf.mxu0
    %v4272 = vadd.f32 0.0, %v4271
    %v4273 = vpop.f32.mrf.mxu0
    %4274 = vmatprep.mubr.bf16.mxu0 0
    %4275 = vmatmul.mubr.bf16.gmra.mxu0 %v4164
    %v4276 = vpop.f32.mrf.mxu0
    %v4277 = vadd.f32 0.0, %v4276
    %v4278 = vpop.f32.mrf.mxu0
    %v4279 = vpop.f32.mrf.mxu0
    %v4280 = vadd.f32 0.0, %v4279
    %v4281 = vpop.f32.mrf.mxu0
    %4282 = vmatprep.mubr.bf16.mxu0 0
    %4283 = vmatmul.mubr.bf16.gmra.mxu0 %v4165
    %v4284 = vpop.f32.mrf.mxu0
    %v4285 = vadd.f32 0.0, %v4284
    %v4286 = vpop.f32.mrf.mxu0
    %v4287 = vpop.f32.mrf.mxu0
    %v4288 = vadd.f32 0.0, %v4287
    %v4289 = vpop.f32.mrf.mxu0
    %4290 = vmatprep.mubr.bf16.mxu0 0
    %4291 = vmatmul.mubr.bf16.gmra.mxu0 %v4166
    %v4292 = vpop.f32.mrf.mxu0
    %v4293 = vadd.f32 0.0, %v4292
    %v4294 = vpop.f32.mrf.mxu0
    %v4295 = vpop.f32.mrf.mxu0
    %v4296 = vadd.f32 0.0, %v4295
    %v4297 = vpop.f32.mrf.mxu0
    %4298 = vmatprep.mubr.bf16.mxu0 0
    %4299 = vmatmul.mubr.bf16.gmra.mxu0 %v4167
    %v4300 = vpop.f32.mrf.mxu0
    %v4301 = vadd.f32 0.0, %v4300
    %v4302 = vpop.f32.mrf.mxu0
    %v4303 = vpop.f32.mrf.mxu0
    %v4304 = vadd.f32 0.0, %v4303
    %v4305 = vpop.f32.mrf.mxu0
    %4306 = vmatprep.mubr.bf16.mxu0 0
    %4307 = vmatmul.mubr.bf16.gmra.mxu0 %v4168
    %v4308 = vpop.f32.mrf.mxu0
    %v4309 = vadd.f32 0.0, %v4308
    %v4310 = vpop.f32.mrf.mxu0
    %v4311 = vpop.f32.mrf.mxu0
    %v4312 = vadd.f32 0.0, %v4311
    %v4313 = vpop.f32.mrf.mxu0
    %4314 = vmatprep.mubr.bf16.mxu0 0
    %4315 = vmatmul.mubr.bf16.gmra.mxu0 %v4169
    %v4316 = vpop.f32.mrf.mxu0
    %v4317 = vadd.f32 0.0, %v4316
    %v4318 = vpop.f32.mrf.mxu0
    %v4319 = vpop.f32.mrf.mxu0
    %v4320 = vadd.f32 0.0, %v4319
    %v4321 = vpop.f32.mrf.mxu0
    %4322 = vdwg.mxu0
    %v4323 = vadd.f32 %v4035, %v4261
    %v4324 = vadd.f32 %v4038, %v4264
    %v4325 = vadd.f32 %v4043, %v4269
    %v4326 = vadd.f32 %v4046, %v4272
    %v4327 = vadd.f32 %v4051, %v4277
    %v4328 = vadd.f32 %v4054, %v4280
    %v4329 = vadd.f32 %v4059, %v4285
    %v4330 = vadd.f32 %v4062, %v4288
    %v4331 = vadd.f32 %v4067, %v4293
    %v4332 = vadd.f32 %v4070, %v4296
    %v4333 = vadd.f32 %v4075, %v4301
    %v4334 = vadd.f32 %v4078, %v4304
    %v4335 = vadd.f32 %v4083, %v4309
    %v4336 = vadd.f32 %v4086, %v4312
    %v4337 = vadd.f32 %v4091, %v4317
    %v4338 = vadd.f32 %v4094, %v4320
    %v4339 = vld [vmem:[#allocation2 + $0x8] sm:$0xe]
    %v4340 = vld [vmem:[#allocation2 + $0xc] sm:$0xf]
    %v4341 = vld [vmem:[#allocation2 + $0x10] sm:$0xf]
    %v4342 = vld [vmem:[#allocation2 + $0x14] sm:$0xf]
    %v4343 = vld [vmem:[#allocation2 + $0x18] sm:$0xf]
    %v4344 = vld [vmem:[#allocation2 + $0x1c] sm:$0xf]
    %v4345 = vld [vmem:[#allocation2 + $0x20] sm:$0xf]
    %v4346 = vld [vmem:[#allocation2 + $0x24] sm:$0xf]
    %v4347 = vld [vmem:[#allocation2 + $0x28] sm:$0xf]
    %v4348 = vld [vmem:[#allocation2 + $0x2c] sm:$0xf]
    %v4349 = vld [vmem:[#allocation2 + $0x30] sm:$0xf]
    %v4350 = vld [vmem:[#allocation2 + $0x34] sm:$0xf]
    %v4351 = vld [vmem:[#allocation2 + $0x38] sm:$0xf]
    %v4352 = vld [vmem:[#allocation2 + $0x3c] sm:$0xf]
    %v4353 = vld [vmem:[#allocation2 + $0x40] sm:$0xf]
    %v4354 = vld [vmem:[#allocation2 + $0x44] sm:$0xf]
    %v4355 = vld [vmem:[#allocation2 + $0x48] sm:$0x1]
    %s4356 = scalar_lea.vmem %s5, 192
    %v4357 = vld [vmem:[%s4356] sm:$0xf]
    %v4358 = vld [vmem:[%s4356 + $0x4] sm:$0xf]
    %v4359 = vld [vmem:[%s4356 + $0x8] sm:$0xf]
    %v4360 = vld [vmem:[%s4356 + $0xc] sm:$0xf]
    %v4361 = vld [vmem:[%s4356 + $0x10] sm:$0xf]
    %v4362 = vld [vmem:[%s4356 + $0x14] sm:$0xf]
    %v4363 = vld [vmem:[%s4356 + $0x18] sm:$0xf]
    %v4364 = vld [vmem:[%s4356 + $0x1c] sm:$0xf]
    %v4365 = vld [vmem:[%s4356 + $0x20] sm:$0xf]
    %v4366 = vld [vmem:[%s4356 + $0x24] sm:$0xf]
    %v4367 = vld [vmem:[%s4356 + $0x28] sm:$0xf]
    %v4368 = vld [vmem:[%s4356 + $0x2c] sm:$0xf]
    %v4369 = vld [vmem:[%s4356 + $0x30] sm:$0xf]
    %v4370 = vld [vmem:[%s4356 + $0x34] sm:$0xf]
    %v4371 = vld [vmem:[%s4356 + $0x38] sm:$0xf]
    %v4372 = vld [vmem:[%s4356 + $0x3c] sm:$0xf]
    %v4390 = vunpack.c.l.b16 %v4339
    %v4391 = vunpack.c.l.b16 %v4340
    %v4392 = vunpack.c.l.b16 %v4341
    %v4393 = vunpack.c.l.b16 %v4342
    %v4394 = vunpack.c.l.b16 %v4343
    %v4395 = vunpack.c.l.b16 %v4344
    %v4396 = vunpack.c.l.b16 %v4345
    %v4397 = vunpack.c.l.b16 %v4346
    %v4398 = vunpack.c.l.b16 %v4347
    %v4399 = vunpack.c.l.b16 %v4348
    %v4400 = vunpack.c.l.b16 %v4349
    %v4401 = vunpack.c.l.b16 %v4350
    %v4402 = vunpack.c.l.b16 %v4351
    %v4403 = vunpack.c.l.b16 %v4352
    %v4404 = vunpack.c.l.b16 %v4353
    %v4405 = vunpack.c.l.b16 %v4354
    %v4406 = vunpack.c.l.b16 %v4355
    %v4407 = vpack.c.b16 %v4391, %v4390
    %v4408 = vpack.c.b16 %v4393, %v4392
    %v4409 = vpack.c.b16 %v4395, %v4394
    %v4410 = vpack.c.b16 %v4397, %v4396
    %v4411 = vpack.c.b16 %v4399, %v4398
    %v4412 = vpack.c.b16 %v4401, %v4400
    %v4413 = vpack.c.b16 %v4403, %v4402
    %v4414 = vpack.c.b16 %v4405, %v4404
    %v4415 = vpack.c.b16 %v4406, %v4406
    %v4416 = vrot.slane %v4407, 1
    %v4417 = vrot.slane %v4408, 1
    %v4418 = vsel %vm3770, %v4416, %v4417
    %v4419 = vrot.slane %v4409, 1
    %v4420 = vsel %vm3770, %v4417, %v4419
    %v4421 = vrot.slane %v4410, 1
    %v4422 = vsel %vm3770, %v4419, %v4421
    %v4423 = vrot.slane %v4411, 1
    %v4424 = vsel %vm3770, %v4421, %v4423
    %v4425 = vrot.slane %v4412, 1
    %v4426 = vsel %vm3770, %v4423, %v4425
    %v4427 = vrot.slane %v4413, 1
    %v4428 = vsel %vm3770, %v4425, %v4427
    %v4429 = vrot.slane %v4414, 1
    %v4430 = vsel %vm3770, %v4427, %v4429
    %v4431 = vrot.slane %v4415, 1
    %v4432 = vsel %vm3770, %v4429, %v4431
    %v4457 = vunpack.c.l.b16 %v4357
    %v4458 = vunpack.c.l.b16 %v4358
    %v4459 = vunpack.c.l.b16 %v4359
    %v4460 = vunpack.c.l.b16 %v4360
    %v4461 = vunpack.c.l.b16 %v4361
    %v4462 = vunpack.c.l.b16 %v4362
    %v4463 = vunpack.c.l.b16 %v4363
    %v4464 = vunpack.c.l.b16 %v4364
    %v4465 = vunpack.c.l.b16 %v4365
    %v4466 = vunpack.c.l.b16 %v4366
    %v4467 = vunpack.c.l.b16 %v4367
    %v4468 = vunpack.c.l.b16 %v4368
    %v4469 = vunpack.c.l.b16 %v4369
    %v4470 = vunpack.c.l.b16 %v4370
    %v4471 = vunpack.c.l.b16 %v4371
    %v4472 = vunpack.c.l.b16 %v4372
    %v4473 = vpack.c.b16 %v4458, %v4457
    %v4474 = vpack.c.b16 %v4460, %v4459
    %v4475 = vpack.c.b16 %v4462, %v4461
    %v4476 = vpack.c.b16 %v4464, %v4463
    %v4477 = vpack.c.b16 %v4466, %v4465
    %v4478 = vpack.c.b16 %v4468, %v4467
    %v4479 = vpack.c.b16 %v4470, %v4469
    %v4480 = vpack.c.b16 %v4472, %v4471
    %4489 = vmatprep.subr.bf16.mxu0 0
    %4490 = vmatpush1.bf16.msra.mxu0 %v4480
    %4491 = vmatprep.subr.bf16.mxu0 0
    %4492 = vmatpush1.bf16.msra.mxu0 %v4479
    %4493 = vmatprep.subr.bf16.mxu0 0
    %4494 = vmatpush1.bf16.msra.mxu0 %v4478
    %4495 = vmatprep.subr.bf16.mxu0 0
    %4496 = vmatpush1.bf16.msra.mxu0 %v4477
    %4497 = vmatprep.subr.bf16.mxu0 0
    %4498 = vmatpush1.bf16.msra.mxu0 %v4476
    %4499 = vmatprep.subr.bf16.mxu0 0
    %4500 = vmatpush1.bf16.msra.mxu0 %v4475
    %4501 = vmatprep.subr.bf16.mxu0 0
    %4502 = vmatpush1.bf16.msra.mxu0 %v4474
    %4503 = vmatprep.subr.bf16.mxu0 0
    %4504 = vmatpush1.bf16.msra.mxu0 %v4473
    %4505 = vmatprep.subr.bf16.mxu0 0
    %4506 = vmatpush2.bf16.msra.mxu0 0
    %4507 = vmatprep.subr.bf16.mxu0 0
    %4508 = vmatpush2.bf16.msra.mxu0 0
    %4509 = vmatprep.subr.bf16.mxu0 0
    %4510 = vmatpush2.bf16.msra.mxu0 0
    %4511 = vmatprep.subr.bf16.mxu0 0
    %4512 = vmatpush2.bf16.msra.mxu0 0
    %4513 = vmatprep.subr.bf16.mxu0 0
    %4514 = vmatpush2.bf16.msra.mxu0 0
    %4515 = vmatprep.subr.bf16.mxu0 0
    %4516 = vmatpush2.bf16.msra.mxu0 0
    %4517 = vmatprep.subr.bf16.mxu0 0
    %4518 = vmatpush2.bf16.msra.mxu0 0
    %4519 = vmatprep.subr.bf16.mxu0 0
    %4520 = vmatpush2.bf16.msra.mxu0 0
    %4521 = vmatprep.mubr.bf16.mxu0 0
    %4522 = vmatmul.mubr.bf16.gmra.mxu0 %v4418
    %v4523 = vpop.f32.mrf.mxu0
    %v4524 = vadd.f32 0.0, %v4523
    %v4525 = vpop.f32.mrf.mxu0
    %v4526 = vpop.f32.mrf.mxu0
    %v4527 = vadd.f32 0.0, %v4526
    %v4528 = vpop.f32.mrf.mxu0
    %4529 = vmatprep.mubr.bf16.mxu0 0
    %4530 = vmatmul.mubr.bf16.gmra.mxu0 %v4420
    %v4531 = vpop.f32.mrf.mxu0
    %v4532 = vadd.f32 0.0, %v4531
    %v4533 = vpop.f32.mrf.mxu0
    %v4534 = vpop.f32.mrf.mxu0
    %v4535 = vadd.f32 0.0, %v4534
    %v4536 = vpop.f32.mrf.mxu0
    %4537 = vmatprep.mubr.bf16.mxu0 0
    %4538 = vmatmul.mubr.bf16.gmra.mxu0 %v4422
    %v4539 = vpop.f32.mrf.mxu0
    %v4540 = vadd.f32 0.0, %v4539
    %v4541 = vpop.f32.mrf.mxu0
    %v4542 = vpop.f32.mrf.mxu0
    %v4543 = vadd.f32 0.0, %v4542
    %v4544 = vpop.f32.mrf.mxu0
    %4545 = vmatprep.mubr.bf16.mxu0 0
    %4546 = vmatmul.mubr.bf16.gmra.mxu0 %v4424
    %v4547 = vpop.f32.mrf.mxu0
    %v4548 = vadd.f32 0.0, %v4547
    %v4549 = vpop.f32.mrf.mxu0
    %v4550 = vpop.f32.mrf.mxu0
    %v4551 = vadd.f32 0.0, %v4550
    %v4552 = vpop.f32.mrf.mxu0
    %4553 = vmatprep.mubr.bf16.mxu0 0
    %4554 = vmatmul.mubr.bf16.gmra.mxu0 %v4426
    %v4555 = vpop.f32.mrf.mxu0
    %v4556 = vadd.f32 0.0, %v4555
    %v4557 = vpop.f32.mrf.mxu0
    %v4558 = vpop.f32.mrf.mxu0
    %v4559 = vadd.f32 0.0, %v4558
    %v4560 = vpop.f32.mrf.mxu0
    %4561 = vmatprep.mubr.bf16.mxu0 0
    %4562 = vmatmul.mubr.bf16.gmra.mxu0 %v4428
    %v4563 = vpop.f32.mrf.mxu0
    %v4564 = vadd.f32 0.0, %v4563
    %v4565 = vpop.f32.mrf.mxu0
    %v4566 = vpop.f32.mrf.mxu0
    %v4567 = vadd.f32 0.0, %v4566
    %v4568 = vpop.f32.mrf.mxu0
    %4569 = vmatprep.mubr.bf16.mxu0 0
    %4570 = vmatmul.mubr.bf16.gmra.mxu0 %v4430
    %v4571 = vpop.f32.mrf.mxu0
    %v4572 = vadd.f32 0.0, %v4571
    %v4573 = vpop.f32.mrf.mxu0
    %v4574 = vpop.f32.mrf.mxu0
    %v4575 = vadd.f32 0.0, %v4574
    %v4576 = vpop.f32.mrf.mxu0
    %4577 = vmatprep.mubr.bf16.mxu0 0
    %4578 = vmatmul.mubr.bf16.gmra.mxu0 %v4432
    %v4579 = vpop.f32.mrf.mxu0
    %v4580 = vadd.f32 0.0, %v4579
    %v4581 = vpop.f32.mrf.mxu0
    %v4582 = vpop.f32.mrf.mxu0
    %v4583 = vadd.f32 0.0, %v4582
    %v4584 = vpop.f32.mrf.mxu0
    %4585 = vdwg.mxu0
    %v4586 = vadd.f32 %v4323, %v4524
    %v4587 = vadd.f32 %v4324, %v4527
    %v4588 = vadd.f32 %v4325, %v4532
    %v4589 = vadd.f32 %v4326, %v4535
    %v4590 = vadd.f32 %v4327, %v4540
    %v4591 = vadd.f32 %v4328, %v4543
    %v4592 = vadd.f32 %v4329, %v4548
    %v4593 = vadd.f32 %v4330, %v4551
    %v4594 = vadd.f32 %v4331, %v4556
    %v4595 = vadd.f32 %v4332, %v4559
    %v4596 = vadd.f32 %v4333, %v4564
    %v4597 = vadd.f32 %v4334, %v4567
    %v4598 = vadd.f32 %v4335, %v4572
    %v4599 = vadd.f32 %v4336, %v4575
    %v4600 = vadd.f32 %v4337, %v4580
    %v4601 = vadd.f32 %v4338, %v4583
    %v4602 = vmul.f32 %v4586, %v3008
    %v4603 = vmul.f32 %v4587, %v3013
    %v4604 = vmul.f32 %v4588, %v3018
    %v4605 = vmul.f32 %v4589, %v3023
    %v4606 = vmul.f32 %v4590, %v3028
    %v4607 = vmul.f32 %v4591, %v3033
    %v4608 = vmul.f32 %v4592, %v3038
    %v4609 = vmul.f32 %v4593, %v3043
    %v4610 = vmul.f32 %v4594, %v3048
    %v4611 = vmul.f32 %v4595, %v3053
    %v4612 = vmul.f32 %v4596, %v3058
    %v4613 = vmul.f32 %v4597, %v3063
    %v4614 = vmul.f32 %v4598, %v3068
    %v4615 = vmul.f32 %v4599, %v3073
    %v4616 = vmul.f32 %v4600, %v3078
    %v4617 = vmul.f32 %v4601, %v3083
    %vm4618 = vcmask 523264
    %v4619 = vsel %vm4618, %v4602, 0.0
    %v4620 = vsel %vm4618, %v4603, 0.0
    %v4621 = vadd.f32 %v4619, %v4620
    %v4622 = vsel %vm4618, %v4604, 0.0
    %v4623 = vadd.f32 %v4621, %v4622
    %v4624 = vsel %vm4618, %v4605, 0.0
    %v4625 = vadd.f32 %v4623, %v4624
    %v4626 = vsel %vm4618, %v4606, 0.0
    %v4627 = vadd.f32 %v4625, %v4626
    %v4628 = vsel %vm4618, %v4607, 0.0
    %v4629 = vadd.f32 %v4627, %v4628
    %v4630 = vsel %vm4618, %v4608, 0.0
    %v4631 = vadd.f32 %v4629, %v4630
    %v4632 = vsel %vm4618, %v4609, 0.0
    %v4633 = vadd.f32 %v4631, %v4632
    %v4634 = vsel %vm4618, %v4610, 0.0
    %v4635 = vadd.f32 %v4633, %v4634
    %v4636 = vsel %vm4618, %v4611, 0.0
    %v4637 = vadd.f32 %v4635, %v4636
    %v4638 = vsel %vm4618, %v4612, 0.0
    %v4639 = vadd.f32 %v4637, %v4638
    %v4640 = vsel %vm4618, %v4613, 0.0
    %v4641 = vadd.f32 %v4639, %v4640
    %v4642 = vsel %vm4618, %v4614, 0.0
    %v4643 = vadd.f32 %v4641, %v4642
    %v4644 = vsel %vm4618, %v4615, 0.0
    %v4645 = vadd.f32 %v4643, %v4644
    %v4646 = vsel %vm4618, %v4616, 0.0
    %v4647 = vadd.f32 %v4645, %v4646
    %v4648 = vsel %vm4618, %v4617, 0.0
    %v4649 = vadd.f32 %v4647, %v4648
    %v4650 = vrot.slane %v4649, 4
    %v4651 = vadd.f32 %v4649, %v4650
    %v4652 = vrot.slane %v4651, 2
    %v4653 = vadd.f32 %v4651, %v4652
    %v4654 = vrot.slane %v4653, 1
    %v4655 = vadd.f32 %v4653, %v4654
    %v4656 = vrcp.pop 98.0
    %v4657 = vmul.f32 %v4655, %v4656
    %v4658 = vmul.f32 %v4602, %v4586
    %v4659 = vmul.f32 %v4603, %v4587
    %v4660 = vmul.f32 %v4604, %v4588
    %v4661 = vmul.f32 %v4605, %v4589
    %v4662 = vmul.f32 %v4606, %v4590
    %v4663 = vmul.f32 %v4607, %v4591
    %v4664 = vmul.f32 %v4608, %v4592
    %v4665 = vmul.f32 %v4609, %v4593
    %v4666 = vmul.f32 %v4610, %v4594
    %v4667 = vmul.f32 %v4611, %v4595
    %v4668 = vmul.f32 %v4612, %v4596
    %v4669 = vmul.f32 %v4613, %v4597
    %v4670 = vmul.f32 %v4614, %v4598
    %v4671 = vmul.f32 %v4615, %v4599
    %v4672 = vmul.f32 %v4616, %v4600
    %v4673 = vmul.f32 %v4617, %v4601
    %v4674 = vsel %vm4618, %v4658, 0.0
    %v4675 = vsel %vm4618, %v4659, 0.0
    %v4676 = vadd.f32 %v4674, %v4675
    %v4677 = vsel %vm4618, %v4660, 0.0
    %v4678 = vadd.f32 %v4676, %v4677
    %v4679 = vsel %vm4618, %v4661, 0.0
    %v4680 = vadd.f32 %v4678, %v4679
    %v4681 = vsel %vm4618, %v4662, 0.0
    %v4682 = vadd.f32 %v4680, %v4681
    %v4683 = vsel %vm4618, %v4663, 0.0
    %v4684 = vadd.f32 %v4682, %v4683
    %v4685 = vsel %vm4618, %v4664, 0.0
    %v4686 = vadd.f32 %v4684, %v4685
    %v4687 = vsel %vm4618, %v4665, 0.0
    %v4688 = vadd.f32 %v4686, %v4687
    %v4689 = vsel %vm4618, %v4666, 0.0
    %v4690 = vadd.f32 %v4688, %v4689
    %v4691 = vsel %vm4618, %v4667, 0.0
    %v4692 = vadd.f32 %v4690, %v4691
    %v4693 = vsel %vm4618, %v4668, 0.0
    %v4694 = vadd.f32 %v4692, %v4693
    %v4695 = vsel %vm4618, %v4669, 0.0
    %v4696 = vadd.f32 %v4694, %v4695
    %v4697 = vsel %vm4618, %v4670, 0.0
    %v4698 = vadd.f32 %v4696, %v4697
    %v4699 = vsel %vm4618, %v4671, 0.0
    %v4700 = vadd.f32 %v4698, %v4699
    %v4701 = vsel %vm4618, %v4672, 0.0
    %v4702 = vadd.f32 %v4700, %v4701
    %v4703 = vsel %vm4618, %v4673, 0.0
    %v4704 = vadd.f32 %v4702, %v4703
    %v4705 = vrot.slane %v4704, 4
    %v4706 = vadd.f32 %v4704, %v4705
    %v4707 = vrot.slane %v4706, 2
    %v4708 = vadd.f32 %v4706, %v4707
    %v4709 = vrot.slane %v4708, 1
    %v4710 = vadd.f32 %v4708, %v4709
    %v4711 = vmul.f32 %v4710, %v4656
    %v4712 = vmul.f32 %v4657, %v4657
    %v4713 = vsub.f32 %v4711, %v4712
    %v4714 = vsub.f32 %v4586, %v4657
    %v4715 = vsub.f32 %v4587, %v4657
    %v4716 = vsub.f32 %v4588, %v4657
    %v4717 = vsub.f32 %v4589, %v4657
    %v4718 = vsub.f32 %v4590, %v4657
    %v4719 = vsub.f32 %v4591, %v4657
    %v4720 = vsub.f32 %v4592, %v4657
    %v4721 = vsub.f32 %v4593, %v4657
    %v4722 = vsub.f32 %v4594, %v4657
    %v4723 = vsub.f32 %v4595, %v4657
    %v4724 = vsub.f32 %v4596, %v4657
    %v4725 = vsub.f32 %v4597, %v4657
    %v4726 = vsub.f32 %v4598, %v4657
    %v4727 = vsub.f32 %v4599, %v4657
    %v4728 = vsub.f32 %v4600, %v4657
    %v4729 = vsub.f32 %v4601, %v4657
    %v4730 = vadd.f32 %v4713, 1e-05
    %v4731 = vrsqrt.pop %v4730
    %v4732 = vmul.f32 %v4714, %v4731
    %v4733 = vmul.f32 %v4715, %v4731
    %v4734 = vmul.f32 %v4716, %v4731
    %v4735 = vmul.f32 %v4717, %v4731
    %v4736 = vmul.f32 %v4718, %v4731
    %v4737 = vmul.f32 %v4719, %v4731
    %v4738 = vmul.f32 %v4720, %v4731
    %v4739 = vmul.f32 %v4721, %v4731
    %v4740 = vmul.f32 %v4722, %v4731
    %v4741 = vmul.f32 %v4723, %v4731
    %v4742 = vmul.f32 %v4724, %v4731
    %v4743 = vmul.f32 %v4725, %v4731
    %v4744 = vmul.f32 %v4726, %v4731
    %v4745 = vmul.f32 %v4727, %v4731
    %v4746 = vmul.f32 %v4728, %v4731
    %v4747 = vmul.f32 %v4729, %v4731
    %v4748 = vld [vmem:[%s6] sm:$0x1]
    %v4750 = vlaneseq
    %v4751 = vshrl.u32 %v4750, 7
    %v4752 = vsub.s32 0, %v4751
    %v4753 = vrot.slane %v4748, %v4752
    %v4755 = vmul.f32 %v4732, %v4753
    %v4756 = vmul.f32 %v4733, %v4753
    %v4757 = vmul.f32 %v4734, %v4753
    %v4758 = vmul.f32 %v4735, %v4753
    %v4759 = vmul.f32 %v4736, %v4753
    %v4760 = vmul.f32 %v4737, %v4753
    %v4761 = vmul.f32 %v4738, %v4753
    %v4762 = vmul.f32 %v4739, %v4753
    %v4763 = vmul.f32 %v4740, %v4753
    %v4764 = vmul.f32 %v4741, %v4753
    %v4765 = vmul.f32 %v4742, %v4753
    %v4766 = vmul.f32 %v4743, %v4753
    %v4767 = vmul.f32 %v4744, %v4753
    %v4768 = vmul.f32 %v4745, %v4753
    %v4769 = vmul.f32 %v4746, %v4753
    %v4770 = vmul.f32 %v4747, %v4753
    %v4771 = vld [vmem:[%s7] sm:$0x1]
    %v4773 = vlaneseq
    %v4774 = vshrl.u32 %v4773, 7
    %v4775 = vsub.s32 0, %v4774
    %v4776 = vrot.slane %v4771, %v4775
    %v4778 = vadd.f32 %v4755, %v4776
    %v4779 = vadd.f32 %v4756, %v4776
    %v4780 = vadd.f32 %v4757, %v4776
    %v4781 = vadd.f32 %v4758, %v4776
    %v4782 = vadd.f32 %v4759, %v4776
    %v4783 = vadd.f32 %v4760, %v4776
    %v4784 = vadd.f32 %v4761, %v4776
    %v4785 = vadd.f32 %v4762, %v4776
    %v4786 = vadd.f32 %v4763, %v4776
    %v4787 = vadd.f32 %v4764, %v4776
    %v4788 = vadd.f32 %v4765, %v4776
    %v4789 = vadd.f32 %v4766, %v4776
    %v4790 = vadd.f32 %v4767, %v4776
    %v4791 = vadd.f32 %v4768, %v4776
    %v4792 = vadd.f32 %v4769, %v4776
    %v4793 = vadd.f32 %v4770, %v4776
    %v4794 = vmax.f32 %v4778, 0.0
    %v4795 = vmax.f32 %v4779, 0.0
    %v4796 = vmax.f32 %v4780, 0.0
    %v4797 = vmax.f32 %v4781, 0.0
    %v4798 = vmax.f32 %v4782, 0.0
    %v4799 = vmax.f32 %v4783, 0.0
    %v4800 = vmax.f32 %v4784, 0.0
    %v4801 = vmax.f32 %v4785, 0.0
    %v4802 = vmax.f32 %v4786, 0.0
    %v4803 = vmax.f32 %v4787, 0.0
    %v4804 = vmax.f32 %v4788, 0.0
    %v4805 = vmax.f32 %v4789, 0.0
    %v4806 = vmax.f32 %v4790, 0.0
    %v4807 = vmax.f32 %v4791, 0.0
    %v4808 = vmax.f32 %v4792, 0.0
    %v4809 = vmax.f32 %v4793, 0.0
    %v4810 = vpack.c.bf16 %v4795, %v4794
    %v4811 = vpack.c.bf16 %v4797, %v4796
    %v4812 = vpack.c.bf16 %v4799, %v4798
    %v4813 = vpack.c.bf16 %v4801, %v4800
    %v4814 = vpack.c.bf16 %v4803, %v4802
    %v4815 = vpack.c.bf16 %v4805, %v4804
    %v4816 = vpack.c.bf16 %v4807, %v4806
    %v4817 = vpack.c.bf16 %v4809, %v4808
    %v4826 = vunpack.c.l.b16 %v4810
    %v4827 = vunpack.c.h.b16 %v4810
    %v4828 = vunpack.c.l.b16 %v4811
    %v4829 = vunpack.c.h.b16 %v4811
    %v4830 = vunpack.c.l.b16 %v4812
    %v4831 = vunpack.c.h.b16 %v4812
    %v4832 = vunpack.c.l.b16 %v4813
    %v4833 = vunpack.c.h.b16 %v4813
    %v4834 = vunpack.c.l.b16 %v4814
    %v4835 = vunpack.c.h.b16 %v4814
    %v4836 = vunpack.c.l.b16 %v4815
    %v4837 = vunpack.c.h.b16 %v4815
    %v4838 = vunpack.c.l.b16 %v4816
    %v4839 = vunpack.c.h.b16 %v4816
    %v4840 = vunpack.c.l.b16 %v4817
    %v4841 = vunpack.c.h.b16 %v4817
    %v4842 = vpack.c.b16 %v4826, %v4826
    %v4843 = vpack.c.b16 %v4827, %v4827
    %v4844 = vpack.c.b16 %v4828, %v4828
    %v4845 = vpack.c.b16 %v4829, %v4829
    %v4846 = vpack.c.b16 %v4830, %v4830
    %v4847 = vpack.c.b16 %v4831, %v4831
    %v4848 = vpack.c.b16 %v4832, %v4832
    %v4849 = vpack.c.b16 %v4833, %v4833
    %v4850 = vpack.c.b16 %v4834, %v4834
    %v4851 = vpack.c.b16 %v4835, %v4835
    %v4852 = vpack.c.b16 %v4836, %v4836
    %v4853 = vpack.c.b16 %v4837, %v4837
    %v4854 = vpack.c.b16 %v4838, %v4838
    %v4855 = vpack.c.b16 %v4839, %v4839
    %v4856 = vpack.c.b16 %v4840, %v4840
    %v4857 = vpack.c.b16 %v4841, %v4841
    %vm4874 = vcmask 519168
    %4875 = vst.msk [vmem:[#allocation3] sm:$0xf] %vm4874, %v4842
    %4876 = vst.msk [vmem:[#allocation3 + $0x4] sm:$0xf] %vm4874, %v4843
    %4877 = vst.msk [vmem:[#allocation3 + $0x8] sm:$0xf] %vm4874, %v4844
    %4878 = vst.msk [vmem:[#allocation3 + $0xc] sm:$0xf] %vm4874, %v4845
    %4879 = vst.msk [vmem:[#allocation3 + $0x10] sm:$0xf] %vm4874, %v4846
    %4880 = vst.msk [vmem:[#allocation3 + $0x14] sm:$0xf] %vm4874, %v4847
    %4881 = vst.msk [vmem:[#allocation3 + $0x18] sm:$0xf] %vm4874, %v4848
    %4882 = vst.msk [vmem:[#allocation3 + $0x1c] sm:$0xf] %vm4874, %v4849
    %4883 = vst.msk [vmem:[#allocation3 + $0x20] sm:$0xf] %vm4874, %v4850
    %4884 = vst.msk [vmem:[#allocation3 + $0x24] sm:$0xf] %vm4874, %v4851
    %4885 = vst.msk [vmem:[#allocation3 + $0x28] sm:$0xf] %vm4874, %v4852
    %4886 = vst.msk [vmem:[#allocation3 + $0x2c] sm:$0xf] %vm4874, %v4853
    %4887 = vst.msk [vmem:[#allocation3 + $0x30] sm:$0xf] %vm4874, %v4854
    %4888 = vst.msk [vmem:[#allocation3 + $0x34] sm:$0xf] %vm4874, %v4855
    %4889 = vst.msk [vmem:[#allocation3 + $0x38] sm:$0xf] %vm4874, %v4856
    %4890 = vst.msk [vmem:[#allocation3 + $0x3c] sm:$0xf] %vm4874, %v4857
    %v4891 = vld [vmem:[#allocation3] sm:$0x1]
    %v4892 = vld [vmem:[#allocation3] sm:$0x2]
    %v4893 = vld [vmem:[#allocation3] sm:$0x4]
    %v4894 = vld [vmem:[#allocation3] sm:$0x8]
    %v4895 = vld [vmem:[#allocation3 + $0x4] sm:$0x1]
    %v4896 = vld [vmem:[#allocation3 + $0x4] sm:$0x2]
    %v4897 = vld [vmem:[#allocation3 + $0x4] sm:$0x4]
    %v4898 = vld [vmem:[#allocation3 + $0x8] sm:$0x1]
    %v4899 = vld [vmem:[#allocation3 + $0x8] sm:$0x2]
    %v4900 = vld [vmem:[#allocation3 + $0x8] sm:$0x4]
    %v4901 = vld [vmem:[#allocation3 + $0x8] sm:$0x8]
    %v4902 = vld [vmem:[#allocation3 + $0xc] sm:$0x1]
    %v4903 = vld [vmem:[#allocation3 + $0xc] sm:$0x2]
    %v4904 = vld [vmem:[#allocation3 + $0xc] sm:$0x4]
    %v4905 = vld [vmem:[#allocation3 + $0x10] sm:$0x1]
    %v4906 = vld [vmem:[#allocation3 + $0x10] sm:$0x2]
    %v4907 = vld [vmem:[#allocation3 + $0x10] sm:$0x4]
    %v4908 = vld [vmem:[#allocation3 + $0x10] sm:$0x8]
    %v4909 = vld [vmem:[#allocation3 + $0x14] sm:$0x1]
    %v4910 = vld [vmem:[#allocation3 + $0x14] sm:$0x2]
    %v4911 = vld [vmem:[#allocation3 + $0x14] sm:$0x4]
    %v4912 = vld [vmem:[#allocation3 + $0x18] sm:$0x1]
    %v4913 = vld [vmem:[#allocation3 + $0x18] sm:$0x2]
    %v4914 = vld [vmem:[#allocation3 + $0x18] sm:$0x4]
    %v4915 = vld [vmem:[#allocation3 + $0x18] sm:$0x8]
    %v4916 = vld [vmem:[#allocation3 + $0x1c] sm:$0x1]
    %v4917 = vld [vmem:[#allocation3 + $0x1c] sm:$0x2]
    %v4918 = vld [vmem:[#allocation3 + $0x1c] sm:$0x4]
    %v4919 = vld [vmem:[#allocation3 + $0x20] sm:$0x1]
    %v4920 = vld [vmem:[#allocation3 + $0x20] sm:$0x2]
    %v4921 = vld [vmem:[#allocation3 + $0x20] sm:$0x4]
    %v4922 = vld [vmem:[#allocation3 + $0x20] sm:$0x8]
    %v4923 = vld [vmem:[#allocation3 + $0x24] sm:$0x1]
    %v4924 = vld [vmem:[#allocation3 + $0x24] sm:$0x2]
    %v4925 = vld [vmem:[#allocation3 + $0x24] sm:$0x4]
    %v4926 = vld [vmem:[#allocation3 + $0x28] sm:$0x1]
    %v4927 = vld [vmem:[#allocation3 + $0x28] sm:$0x2]
    %v4928 = vld [vmem:[#allocation3 + $0x28] sm:$0x4]
    %v4929 = vld [vmem:[#allocation3 + $0x28] sm:$0x8]
    %v4930 = vld [vmem:[#allocation3 + $0x2c] sm:$0x1]
    %v4931 = vld [vmem:[#allocation3 + $0x2c] sm:$0x2]
    %v4932 = vld [vmem:[#allocation3 + $0x2c] sm:$0x4]
    %v4933 = vld [vmem:[#allocation3 + $0x30] sm:$0x1]
    %v4934 = vld [vmem:[#allocation3 + $0x30] sm:$0x2]
    %v4935 = vld [vmem:[#allocation3 + $0x30] sm:$0x4]
    %v4936 = vld [vmem:[#allocation3 + $0x30] sm:$0x8]
    %v4937 = vld [vmem:[#allocation3 + $0x34] sm:$0x1]
    %v4938 = vld [vmem:[#allocation3 + $0x34] sm:$0x2]
    %v4939 = vld [vmem:[#allocation3 + $0x34] sm:$0x4]
    %v4941 = vunpack.c.l.b16 %v4892
    %v4942 = vpack.c.b16 %v4941, %v4941
    %v4943 = vrot.slane %v4942, 1
    %4944 = vrot.lane.b32.xlu0 %v4943, 64
    %v4945 = vpop.permute.xlu0 %4944
    %v4947 = vunpack.c.l.b16 %v4893
    %v4948 = vpack.c.b16 %v4947, %v4947
    %v4949 = vrot.slane %v4948, 2
    %v4951 = vunpack.c.l.b16 %v4894
    %v4952 = vpack.c.b16 %v4951, %v4951
    %v4953 = vrot.slane %v4952, 3
    %4954 = vrot.lane.b32.xlu0 %v4953, 64
    %v4955 = vpop.permute.xlu0 %4954
    %v4957 = vunpack.c.l.b16 %v4896
    %v4958 = vpack.c.b16 %v4957, %v4957
    %v4959 = vrot.slane %v4958, 1
    %4960 = vrot.lane.b32.xlu0 %v4959, 64
    %v4961 = vpop.permute.xlu0 %4960
    %v4963 = vunpack.c.l.b16 %v4897
    %v4964 = vpack.c.b16 %v4963, %v4963
    %v4965 = vrot.slane %v4964, 2
    %v4967 = vunpack.c.l.b16 %v4898
    %v4968 = vpack.c.b16 %v4967, %v4967
    %4969 = vrot.lane.b32.xlu0 %v4968, 64
    %v4970 = vpop.permute.xlu0 %4969
    %v4972 = vunpack.c.l.b16 %v4899
    %v4973 = vpack.c.b16 %v4972, %v4972
    %v4974 = vrot.slane %v4973, 1
    %v4976 = vunpack.c.l.b16 %v4900
    %v4977 = vpack.c.b16 %v4976, %v4976
    %v4978 = vrot.slane %v4977, 2
    %4979 = vrot.lane.b32.xlu0 %v4978, 64
    %v4980 = vpop.permute.xlu0 %4979
    %v4982 = vunpack.c.l.b16 %v4901
    %v4983 = vpack.c.b16 %v4982, %v4982
    %v4984 = vrot.slane %v4983, 3
    %v4986 = vunpack.c.l.b16 %v4902
    %v4987 = vpack.c.b16 %v4986, %v4986
    %4988 = vrot.lane.b32.xlu0 %v4987, 64
    %v4989 = vpop.permute.xlu0 %4988
    %v4991 = vunpack.c.l.b16 %v4903
    %v4992 = vpack.c.b16 %v4991, %v4991
    %v4993 = vrot.slane %v4992, 1
    %v4995 = vunpack.c.l.b16 %v4904
    %v4996 = vpack.c.b16 %v4995, %v4995
    %v4997 = vrot.slane %v4996, 2
    %4998 = vrot.lane.b32.xlu0 %v4997, 64
    %v4999 = vpop.permute.xlu0 %4998
    %v5001 = vunpack.c.l.b16 %v4906
    %v5002 = vpack.c.b16 %v5001, %v5001
    %v5003 = vrot.slane %v5002, 1
    %5004 = vrot.lane.b32.xlu0 %v5003, 64
    %v5005 = vpop.permute.xlu0 %5004
    %v5008 = vsel %vm4618, %v4891, %v4945
    %v5012 = vsel %vm4618, %v4949, %v4955
    %v5016 = vsel %vm4618, %v4895, %v4961
    %v5020 = vsel %vm4618, %v4965, %v4970
    %v5024 = vsel %vm4618, %v4974, %v4980
    %v5028 = vsel %vm4618, %v4984, %v4989
    %v5032 = vsel %vm4618, %v4993, %v4999
    %v5036 = vsel %vm4618, %v4905, %v5005
    %v5039 = vunpack.c.l.b16 %v4908
    %v5040 = vpack.c.b16 %v5039, %v5039
    %v5041 = vrot.slane %v5040, 1
    %5042 = vrot.lane.b32.xlu0 %v5041, 64
    %v5043 = vpop.permute.xlu0 %5042
    %v5045 = vunpack.c.l.b16 %v4909
    %v5046 = vpack.c.b16 %v5045, %v5045
    %v5047 = vrot.slane %v5046, 6
    %v5049 = vunpack.c.l.b16 %v4910
    %v5050 = vpack.c.b16 %v5049, %v5049
    %v5051 = vrot.slane %v5050, 7
    %5052 = vrot.lane.b32.xlu0 %v5051, 64
    %v5053 = vpop.permute.xlu0 %5052
    %v5055 = vunpack.c.l.b16 %v4912
    %v5056 = vpack.c.b16 %v5055, %v5055
    %v5057 = vrot.slane %v5056, 6
    %5058 = vrot.lane.b32.xlu0 %v5057, 64
    %v5059 = vpop.permute.xlu0 %5058
    %v5061 = vunpack.c.l.b16 %v4913
    %v5062 = vpack.c.b16 %v5061, %v5061
    %v5063 = vrot.slane %v5062, 7
    %v5065 = vunpack.c.l.b16 %v4914
    %v5066 = vpack.c.b16 %v5065, %v5065
    %5067 = vrot.lane.b32.xlu0 %v5066, 64
    %v5068 = vpop.permute.xlu0 %5067
    %v5070 = vunpack.c.l.b16 %v4915
    %v5071 = vpack.c.b16 %v5070, %v5070
    %v5072 = vrot.slane %v5071, 1
    %v5074 = vunpack.c.l.b16 %v4916
    %v5075 = vpack.c.b16 %v5074, %v5074
    %v5076 = vrot.slane %v5075, 6
    %5077 = vrot.lane.b32.xlu0 %v5076, 64
    %v5078 = vpop.permute.xlu0 %5077
    %v5080 = vunpack.c.l.b16 %v4917
    %v5081 = vpack.c.b16 %v5080, %v5080
    %v5082 = vrot.slane %v5081, 7
    %v5084 = vunpack.c.l.b16 %v4918
    %v5085 = vpack.c.b16 %v5084, %v5084
    %5086 = vrot.lane.b32.xlu0 %v5085, 64
    %v5087 = vpop.permute.xlu0 %5086
    %v5089 = vunpack.c.l.b16 %v4919
    %v5090 = vpack.c.b16 %v5089, %v5089
    %v5091 = vrot.slane %v5090, 6
    %v5093 = vunpack.c.l.b16 %v4920
    %v5094 = vpack.c.b16 %v5093, %v5093
    %v5095 = vrot.slane %v5094, 7
    %5096 = vrot.lane.b32.xlu0 %v5095, 64
    %v5097 = vpop.permute.xlu0 %5096
    %v5099 = vunpack.c.l.b16 %v4922
    %v5100 = vpack.c.b16 %v5099, %v5099
    %v5101 = vrot.slane %v5100, 1
    %5102 = vrot.lane.b32.xlu0 %v5101, 64
    %v5103 = vpop.permute.xlu0 %5102
    %v5106 = vsel %vm4618, %v4907, %v5043
    %v5109 = vsel %vm4618, %v5047, %v5053
    %v5112 = vsel %vm4618, %v4911, %v5059
    %v5115 = vsel %vm4618, %v5063, %v5068
    %v5118 = vsel %vm4618, %v5072, %v5078
    %v5121 = vsel %vm4618, %v5082, %v5087
    %v5124 = vsel %vm4618, %v5091, %v5097
    %v5127 = vsel %vm4618, %v4921, %v5103
    %v5129 = vunpack.c.l.b16 %v4924
    %v5130 = vpack.c.b16 %v5129, %v5129
    %v5131 = vrot.slane %v5130, 1
    %5132 = vrot.lane.b32.xlu0 %v5131, 64
    %v5133 = vpop.permute.xlu0 %5132
    %v5135 = vunpack.c.l.b16 %v4925
    %v5136 = vpack.c.b16 %v5135, %v5135
    %v5137 = vrot.slane %v5136, 2
    %v5139 = vunpack.c.l.b16 %v4926
    %v5140 = vpack.c.b16 %v5139, %v5139
    %5141 = vrot.lane.b32.xlu0 %v5140, 64
    %v5142 = vpop.permute.xlu0 %5141
    %v5144 = vunpack.c.l.b16 %v4927
    %v5145 = vpack.c.b16 %v5144, %v5144
    %v5146 = vrot.slane %v5145, 1
    %v5148 = vunpack.c.l.b16 %v4928
    %v5149 = vpack.c.b16 %v5148, %v5148
    %v5150 = vrot.slane %v5149, 2
    %5151 = vrot.lane.b32.xlu0 %v5150, 64
    %v5152 = vpop.permute.xlu0 %5151
    %v5154 = vunpack.c.l.b16 %v4929
    %v5155 = vpack.c.b16 %v5154, %v5154
    %v5156 = vrot.slane %v5155, 3
    %v5158 = vunpack.c.l.b16 %v4930
    %v5159 = vpack.c.b16 %v5158, %v5158
    %5160 = vrot.lane.b32.xlu0 %v5159, 64
    %v5161 = vpop.permute.xlu0 %5160
    %v5163 = vunpack.c.l.b16 %v4931
    %v5164 = vpack.c.b16 %v5163, %v5163
    %v5165 = vrot.slane %v5164, 1
    %v5167 = vunpack.c.l.b16 %v4932
    %v5168 = vpack.c.b16 %v5167, %v5167
    %v5169 = vrot.slane %v5168, 2
    %5170 = vrot.lane.b32.xlu0 %v5169, 64
    %v5171 = vpop.permute.xlu0 %5170
    %v5173 = vunpack.c.l.b16 %v4934
    %v5174 = vpack.c.b16 %v5173, %v5173
    %v5175 = vrot.slane %v5174, 1
    %5176 = vrot.lane.b32.xlu0 %v5175, 64
    %v5177 = vpop.permute.xlu0 %5176
    %v5179 = vunpack.c.l.b16 %v4935
    %v5180 = vpack.c.b16 %v5179, %v5179
    %v5181 = vrot.slane %v5180, 2
    %v5183 = vunpack.c.l.b16 %v4936
    %v5184 = vpack.c.b16 %v5183, %v5183
    %v5185 = vrot.slane %v5184, 3
    %5186 = vrot.lane.b32.xlu0 %v5185, 64
    %v5187 = vpop.permute.xlu0 %5186
    %v5189 = vunpack.c.l.b16 %v4938
    %v5190 = vpack.c.b16 %v5189, %v5189
    %v5191 = vrot.slane %v5190, 1
    %5192 = vrot.lane.b32.xlu0 %v5191, 64
    %v5193 = vpop.permute.xlu0 %5192
    %v5196 = vsel %vm4618, %v4923, %v5133
    %v5200 = vsel %vm4618, %v5137, %v5142
    %v5204 = vsel %vm4618, %v5146, %v5152
    %v5208 = vsel %vm4618, %v5156, %v5161
    %v5212 = vsel %vm4618, %v5165, %v5171
    %v5216 = vsel %vm4618, %v4933, %v5177
    %v5220 = vsel %vm4618, %v5181, %v5187
    %v5224 = vsel %vm4618, %v4937, %v5193
    %v5234 = vrot.slane %v5106, 2
    %v5235 = vrot.slane %v5109, 2
    %v5236 = vrot.slane %v5112, 2
    %v5237 = vrot.slane %v5115, 2
    %v5238 = vrot.slane %v5118, 2
    %v5239 = vrot.slane %v5121, 2
    %v5240 = vrot.slane %v5124, 2
    %v5241 = vrot.slane %v5127, 2
    %v5251 = vunpack.c.l.b16 %v4939
    %v5252 = vpack.c.b16 %v5251, %v5251
    %v5253 = vrot.slane %v5252, 2
    %s5254 = smul.u32 4, 392
    %s5255 = smul.u32 %s5254, 4
    %s5256 = sshll.u32 %s5255, 4
    %5257 = dma.done [#allocation5], %s5256
    %v5258 = vld [vmem:[#allocation4] sm:$0xff]
    %v5259 = vld [vmem:[#allocation4 + $0x8] sm:$0xff]
    %v5260 = vld [vmem:[#allocation4 + $0x10] sm:$0xff]
    %v5261 = vld [vmem:[#allocation4 + $0x18] sm:$0xff]
    %v5262 = vld [vmem:[#allocation4 + $0x20] sm:$0xff]
    %v5263 = vld [vmem:[#allocation4 + $0x28] sm:$0xff]
    %v5264 = vld [vmem:[#allocation4 + $0x30] sm:$0xff]
    %v5265 = vld [vmem:[#allocation4 + $0x38] sm:$0xff]
    %v5266 = vld [vmem:[#allocation4 + $0x40] sm:$0xff]
    %v5267 = vld [vmem:[#allocation4 + $0x48] sm:$0xff]
    %v5268 = vld [vmem:[#allocation4 + $0x50] sm:$0xff]
    %v5269 = vld [vmem:[#allocation4 + $0x58] sm:$0xff]
    %v5270 = vld [vmem:[#allocation4 + $0x60] sm:$0xff]
    %v5271 = vld [vmem:[#allocation4 + $0x68] sm:$0xff]
    %v5272 = vld [vmem:[#allocation4 + $0x70] sm:$0xff]
    %v5273 = vld [vmem:[#allocation4 + $0x78] sm:$0xff]
    %v5274 = vld [vmem:[#allocation4 + $0x80] sm:$0xff]
    %v5275 = vld [vmem:[#allocation4 + $0x88] sm:$0xff]
    %v5276 = vld [vmem:[#allocation4 + $0x90] sm:$0xff]
    %v5277 = vld [vmem:[#allocation4 + $0x98] sm:$0xff]
    %v5278 = vld [vmem:[#allocation4 + $0xa0] sm:$0xff]
    %v5279 = vld [vmem:[#allocation4 + $0xa8] sm:$0xff]
    %v5280 = vld [vmem:[#allocation4 + $0xb0] sm:$0xff]
    %v5281 = vld [vmem:[#allocation4 + $0xb8] sm:$0xff]
    %v5282 = vld [vmem:[#allocation4 + $0xc0] sm:$0xff]
    %v5283 = vld [vmem:[#allocation4 + $0xc8] sm:$0xff]
    %v5284 = vld [vmem:[#allocation4 + $0xd0] sm:$0xff]
    %v5285 = vld [vmem:[#allocation4 + $0xd8] sm:$0xff]
    %v5286 = vld [vmem:[#allocation4 + $0xe0] sm:$0xff]
    %v5287 = vld [vmem:[#allocation4 + $0xe8] sm:$0xff]
    %v5288 = vld [vmem:[#allocation4 + $0xf0] sm:$0xff]
    %v5289 = vld [vmem:[#allocation4 + $0xf8] sm:$0xff]
    %v5290 = vld [vmem:[#allocation4 + $0x100] sm:$0xff]
    %v5291 = vld [vmem:[#allocation4 + $0x108] sm:$0xff]
    %v5292 = vld [vmem:[#allocation4 + $0x110] sm:$0xff]
    %v5293 = vld [vmem:[#allocation4 + $0x118] sm:$0xff]
    %v5294 = vld [vmem:[#allocation4 + $0x120] sm:$0xff]
    %v5295 = vld [vmem:[#allocation4 + $0x128] sm:$0xff]
    %v5296 = vld [vmem:[#allocation4 + $0x130] sm:$0xff]
    %v5297 = vld [vmem:[#allocation4 + $0x138] sm:$0xff]
    %v5298 = vld [vmem:[#allocation4 + $0x140] sm:$0xff]
    %v5299 = vld [vmem:[#allocation4 + $0x148] sm:$0xff]
    %v5300 = vld [vmem:[#allocation4 + $0x150] sm:$0xff]
    %v5301 = vld [vmem:[#allocation4 + $0x158] sm:$0xff]
    %v5302 = vld [vmem:[#allocation4 + $0x160] sm:$0xff]
    %v5303 = vld [vmem:[#allocation4 + $0x168] sm:$0xff]
    %v5304 = vld [vmem:[#allocation4 + $0x170] sm:$0xff]
    %v5305 = vld [vmem:[#allocation4 + $0x178] sm:$0xff]
    %v5306 = vld [vmem:[#allocation4 + $0x180] sm:$0xff]
    %v5307 = vld [vmem:[#allocation4 + $0x188] sm:$0xff]
    %v5308 = vld [vmem:[#allocation4 + $0x190] sm:$0xff]
    %v5309 = vld [vmem:[#allocation4 + $0x198] sm:$0xff]
    %v5310 = vld [vmem:[#allocation4 + $0x1a0] sm:$0xff]
    %v5311 = vld [vmem:[#allocation4 + $0x1a8] sm:$0xff]
    %v5312 = vld [vmem:[#allocation4 + $0x1b0] sm:$0xff]
    %v5313 = vld [vmem:[#allocation4 + $0x1b8] sm:$0xff]
    %v5314 = vld [vmem:[#allocation4 + $0x1c0] sm:$0xff]
    %v5315 = vld [vmem:[#allocation4 + $0x1c8] sm:$0xff]
    %v5316 = vld [vmem:[#allocation4 + $0x1d0] sm:$0xff]
    %v5317 = vld [vmem:[#allocation4 + $0x1d8] sm:$0xff]
    %v5318 = vld [vmem:[#allocation4 + $0x1e0] sm:$0xff]
    %v5319 = vld [vmem:[#allocation4 + $0x1e8] sm:$0xff]
    %v5320 = vld [vmem:[#allocation4 + $0x1f0] sm:$0xff]
    %v5321 = vld [vmem:[#allocation4 + $0x1f8] sm:$0xff]
    %v5322 = vld [vmem:[#allocation4 + $0x200] sm:$0xff]
    %v5323 = vld [vmem:[#allocation4 + $0x208] sm:$0xff]
    %v5324 = vld [vmem:[#allocation4 + $0x210] sm:$0xff]
    %v5325 = vld [vmem:[#allocation4 + $0x218] sm:$0xff]
    %v5326 = vld [vmem:[#allocation4 + $0x220] sm:$0xff]
    %v5327 = vld [vmem:[#allocation4 + $0x228] sm:$0xff]
    %v5328 = vld [vmem:[#allocation4 + $0x230] sm:$0xff]
    %v5329 = vld [vmem:[#allocation4 + $0x238] sm:$0xff]
    %v5330 = vld [vmem:[#allocation4 + $0x240] sm:$0xff]
    %v5331 = vld [vmem:[#allocation4 + $0x248] sm:$0xff]
    %v5332 = vld [vmem:[#allocation4 + $0x250] sm:$0xff]
    %v5333 = vld [vmem:[#allocation4 + $0x258] sm:$0xff]
    %v5334 = vld [vmem:[#allocation4 + $0x260] sm:$0xff]
    %v5335 = vld [vmem:[#allocation4 + $0x268] sm:$0xff]
    %v5336 = vld [vmem:[#allocation4 + $0x270] sm:$0xff]
    %v5337 = vld [vmem:[#allocation4 + $0x278] sm:$0xff]
    %v5338 = vld [vmem:[#allocation4 + $0x280] sm:$0xff]
    %v5339 = vld [vmem:[#allocation4 + $0x288] sm:$0xff]
    %v5340 = vld [vmem:[#allocation4 + $0x290] sm:$0xff]
    %v5341 = vld [vmem:[#allocation4 + $0x298] sm:$0xff]
    %v5342 = vld [vmem:[#allocation4 + $0x2a0] sm:$0xff]
    %v5343 = vld [vmem:[#allocation4 + $0x2a8] sm:$0xff]
    %v5344 = vld [vmem:[#allocation4 + $0x2b0] sm:$0xff]
    %v5345 = vld [vmem:[#allocation4 + $0x2b8] sm:$0xff]
    %v5346 = vld [vmem:[#allocation4 + $0x2c0] sm:$0xff]
    %v5347 = vld [vmem:[#allocation4 + $0x2c8] sm:$0xff]
    %v5348 = vld [vmem:[#allocation4 + $0x2d0] sm:$0xff]
    %v5349 = vld [vmem:[#allocation4 + $0x2d8] sm:$0xff]
    %v5350 = vld [vmem:[#allocation4 + $0x2e0] sm:$0xff]
    %v5351 = vld [vmem:[#allocation4 + $0x2e8] sm:$0xff]
    %v5352 = vld [vmem:[#allocation4 + $0x2f0] sm:$0xff]
    %v5353 = vld [vmem:[#allocation4 + $0x2f8] sm:$0xff]
    %v5354 = vld [vmem:[#allocation4 + $0x300] sm:$0xff]
    %v5355 = vld [vmem:[#allocation4 + $0x308] sm:$0xff]
    %v5356 = vld [vmem:[#allocation4 + $0x310] sm:$0xff]
    %v5357 = vld [vmem:[#allocation4 + $0x318] sm:$0xff]
    %v5358 = vld [vmem:[#allocation4 + $0x320] sm:$0xff]
    %v5359 = vld [vmem:[#allocation4 + $0x328] sm:$0xff]
    %v5360 = vld [vmem:[#allocation4 + $0x330] sm:$0xff]
    %v5361 = vld [vmem:[#allocation4 + $0x338] sm:$0xff]
    %v5362 = vld [vmem:[#allocation4 + $0x340] sm:$0xff]
    %v5363 = vld [vmem:[#allocation4 + $0x348] sm:$0xff]
    %v5364 = vld [vmem:[#allocation4 + $0x350] sm:$0xff]
    %v5365 = vld [vmem:[#allocation4 + $0x358] sm:$0xff]
    %v5366 = vld [vmem:[#allocation4 + $0x360] sm:$0xff]
    %v5367 = vld [vmem:[#allocation4 + $0x368] sm:$0xff]
    %v5368 = vld [vmem:[#allocation4 + $0x370] sm:$0xff]
    %v5369 = vld [vmem:[#allocation4 + $0x378] sm:$0xff]
    %v5370 = vld [vmem:[#allocation4 + $0x380] sm:$0xff]
    %v5371 = vld [vmem:[#allocation4 + $0x388] sm:$0xff]
    %v5372 = vld [vmem:[#allocation4 + $0x390] sm:$0xff]
    %v5373 = vld [vmem:[#allocation4 + $0x398] sm:$0xff]
    %v5374 = vld [vmem:[#allocation4 + $0x3a0] sm:$0xff]
    %v5375 = vld [vmem:[#allocation4 + $0x3a8] sm:$0xff]
    %v5376 = vld [vmem:[#allocation4 + $0x3b0] sm:$0xff]
    %v5377 = vld [vmem:[#allocation4 + $0x3b8] sm:$0xff]
    %v5378 = vld [vmem:[#allocation4 + $0x3c0] sm:$0xff]
    %v5379 = vld [vmem:[#allocation4 + $0x3c8] sm:$0xff]
    %v5380 = vld [vmem:[#allocation4 + $0x3d0] sm:$0xff]
    %v5381 = vld [vmem:[#allocation4 + $0x3d8] sm:$0xff]
    %v5382 = vld [vmem:[#allocation4 + $0x3e0] sm:$0xff]
    %v5383 = vld [vmem:[#allocation4 + $0x3e8] sm:$0xff]
    %v5384 = vld [vmem:[#allocation4 + $0x3f0] sm:$0xff]
    %v5385 = vld [vmem:[#allocation4 + $0x3f8] sm:$0xff]
    %v5386 = vld [vmem:[#allocation4 + $0x400] sm:$0xff]
    %v5387 = vld [vmem:[#allocation4 + $0x408] sm:$0xff]
    %v5388 = vld [vmem:[#allocation4 + $0x410] sm:$0xff]
    %v5389 = vld [vmem:[#allocation4 + $0x418] sm:$0xff]
    %v5390 = vld [vmem:[#allocation4 + $0x420] sm:$0xff]
    %v5391 = vld [vmem:[#allocation4 + $0x428] sm:$0xff]
    %v5392 = vld [vmem:[#allocation4 + $0x430] sm:$0xff]
    %v5393 = vld [vmem:[#allocation4 + $0x438] sm:$0xff]
    %v5394 = vld [vmem:[#allocation4 + $0x440] sm:$0xff]
    %v5395 = vld [vmem:[#allocation4 + $0x448] sm:$0xff]
    %v5396 = vld [vmem:[#allocation4 + $0x450] sm:$0xff]
    %v5397 = vld [vmem:[#allocation4 + $0x458] sm:$0xff]
    %v5398 = vld [vmem:[#allocation4 + $0x460] sm:$0xff]
    %v5399 = vld [vmem:[#allocation4 + $0x468] sm:$0xff]
    %v5400 = vld [vmem:[#allocation4 + $0x470] sm:$0xff]
    %v5401 = vld [vmem:[#allocation4 + $0x478] sm:$0xff]
    %v5402 = vld [vmem:[#allocation4 + $0x480] sm:$0xff]
    %v5403 = vld [vmem:[#allocation4 + $0x488] sm:$0xff]
    %v5404 = vld [vmem:[#allocation4 + $0x490] sm:$0xff]
    %v5405 = vld [vmem:[#allocation4 + $0x498] sm:$0xff]
    %v5406 = vld [vmem:[#allocation4 + $0x4a0] sm:$0xff]
    %v5407 = vld [vmem:[#allocation4 + $0x4a8] sm:$0xff]
    %v5408 = vld [vmem:[#allocation4 + $0x4b0] sm:$0xff]
    %v5409 = vld [vmem:[#allocation4 + $0x4b8] sm:$0xff]
    %v5410 = vld [vmem:[#allocation4 + $0x4c0] sm:$0xff]
    %v5411 = vld [vmem:[#allocation4 + $0x4c8] sm:$0xff]
    %v5412 = vld [vmem:[#allocation4 + $0x4d0] sm:$0xff]
    %v5413 = vld [vmem:[#allocation4 + $0x4d8] sm:$0xff]
    %v5414 = vld [vmem:[#allocation4 + $0x4e0] sm:$0xff]
    %v5415 = vld [vmem:[#allocation4 + $0x4e8] sm:$0xff]
    %v5416 = vld [vmem:[#allocation4 + $0x4f0] sm:$0xff]
    %v5417 = vld [vmem:[#allocation4 + $0x4f8] sm:$0xff]
    %v5418 = vld [vmem:[#allocation4 + $0x500] sm:$0xff]
    %v5419 = vld [vmem:[#allocation4 + $0x508] sm:$0xff]
    %v5420 = vld [vmem:[#allocation4 + $0x510] sm:$0xff]
    %v5421 = vld [vmem:[#allocation4 + $0x518] sm:$0xff]
    %v5422 = vld [vmem:[#allocation4 + $0x520] sm:$0xff]
    %v5423 = vld [vmem:[#allocation4 + $0x528] sm:$0xff]
    %v5424 = vld [vmem:[#allocation4 + $0x530] sm:$0xff]
    %v5425 = vld [vmem:[#allocation4 + $0x538] sm:$0xff]
    %v5426 = vld [vmem:[#allocation4 + $0x540] sm:$0xff]
    %v5427 = vld [vmem:[#allocation4 + $0x548] sm:$0xff]
    %v5428 = vld [vmem:[#allocation4 + $0x550] sm:$0xff]
    %v5429 = vld [vmem:[#allocation4 + $0x558] sm:$0xff]
    %v5430 = vld [vmem:[#allocation4 + $0x560] sm:$0xff]
    %v5431 = vld [vmem:[#allocation4 + $0x568] sm:$0xff]
    %v5432 = vld [vmem:[#allocation4 + $0x570] sm:$0xff]
    %v5433 = vld [vmem:[#allocation4 + $0x578] sm:$0xff]
    %v5434 = vld [vmem:[#allocation4 + $0x580] sm:$0xff]
    %v5435 = vld [vmem:[#allocation4 + $0x588] sm:$0xff]
    %v5436 = vld [vmem:[#allocation4 + $0x590] sm:$0xff]
    %v5437 = vld [vmem:[#allocation4 + $0x598] sm:$0xff]
    %v5438 = vld [vmem:[#allocation4 + $0x5a0] sm:$0xff]
    %v5439 = vld [vmem:[#allocation4 + $0x5a8] sm:$0xff]
    %v5440 = vld [vmem:[#allocation4 + $0x5b0] sm:$0xff]
    %v5441 = vld [vmem:[#allocation4 + $0x5b8] sm:$0xff]
    %v5442 = vld [vmem:[#allocation4 + $0x5c0] sm:$0xff]
    %v5443 = vld [vmem:[#allocation4 + $0x5c8] sm:$0xff]
    %v5444 = vld [vmem:[#allocation4 + $0x5d0] sm:$0xff]
    %v5445 = vld [vmem:[#allocation4 + $0x5d8] sm:$0xff]
    %v5446 = vld [vmem:[#allocation4 + $0x5e0] sm:$0xff]
    %v5447 = vld [vmem:[#allocation4 + $0x5e8] sm:$0xff]
    %v5448 = vld [vmem:[#allocation4 + $0x5f0] sm:$0xff]
    %v5449 = vld [vmem:[#allocation4 + $0x5f8] sm:$0xff]
    %v5450 = vld [vmem:[#allocation4 + $0x600] sm:$0xff]
    %v5451 = vld [vmem:[#allocation4 + $0x608] sm:$0xff]
    %v5452 = vld [vmem:[#allocation4 + $0x610] sm:$0xff]
    %v5453 = vld [vmem:[#allocation4 + $0x618] sm:$0xff]
    %v5454 = vld [vmem:[#allocation4 + $0x620] sm:$0xff]
    %v5455 = vld [vmem:[#allocation4 + $0x628] sm:$0xff]
    %v5456 = vld [vmem:[#allocation4 + $0x630] sm:$0xff]
    %v5457 = vld [vmem:[#allocation4 + $0x638] sm:$0xff]
    %v5458 = vld [vmem:[#allocation4 + $0x640] sm:$0xff]
    %v5459 = vld [vmem:[#allocation4 + $0x648] sm:$0xff]
    %v5460 = vld [vmem:[#allocation4 + $0x650] sm:$0xff]
    %v5461 = vld [vmem:[#allocation4 + $0x658] sm:$0xff]
    %v5462 = vld [vmem:[#allocation4 + $0x660] sm:$0xff]
    %v5463 = vld [vmem:[#allocation4 + $0x668] sm:$0xff]
    %v5464 = vld [vmem:[#allocation4 + $0x670] sm:$0xff]
    %v5465 = vld [vmem:[#allocation4 + $0x678] sm:$0xff]
    %v5466 = vld [vmem:[#allocation4 + $0x680] sm:$0xff]
    %v5467 = vld [vmem:[#allocation4 + $0x688] sm:$0xff]
    %v5468 = vld [vmem:[#allocation4 + $0x690] sm:$0xff]
    %v5469 = vld [vmem:[#allocation4 + $0x698] sm:$0xff]
    %v5470 = vld [vmem:[#allocation4 + $0x6a0] sm:$0xff]
    %v5471 = vld [vmem:[#allocation4 + $0x6a8] sm:$0xff]
    %v5472 = vld [vmem:[#allocation4 + $0x6b0] sm:$0xff]
    %v5473 = vld [vmem:[#allocation4 + $0x6b8] sm:$0xff]
    %v5474 = vld [vmem:[#allocation4 + $0x6c0] sm:$0xff]
    %v5475 = vld [vmem:[#allocation4 + $0x6c8] sm:$0xff]
    %v5476 = vld [vmem:[#allocation4 + $0x6d0] sm:$0xff]
    %v5477 = vld [vmem:[#allocation4 + $0x6d8] sm:$0xff]
    %v5478 = vld [vmem:[#allocation4 + $0x6e0] sm:$0xff]
    %v5479 = vld [vmem:[#allocation4 + $0x6e8] sm:$0xff]
    %v5480 = vld [vmem:[#allocation4 + $0x6f0] sm:$0xff]
    %v5481 = vld [vmem:[#allocation4 + $0x6f8] sm:$0xff]
    %v5482 = vld [vmem:[#allocation4 + $0x700] sm:$0xff]
    %v5483 = vld [vmem:[#allocation4 + $0x708] sm:$0xff]
    %v5484 = vld [vmem:[#allocation4 + $0x710] sm:$0xff]
    %v5485 = vld [vmem:[#allocation4 + $0x718] sm:$0xff]
    %v5486 = vld [vmem:[#allocation4 + $0x720] sm:$0xff]
    %v5487 = vld [vmem:[#allocation4 + $0x728] sm:$0xff]
    %v5488 = vld [vmem:[#allocation4 + $0x730] sm:$0xff]
    %v5489 = vld [vmem:[#allocation4 + $0x738] sm:$0xff]
    %v5490 = vld [vmem:[#allocation4 + $0x740] sm:$0xff]
    %v5491 = vld [vmem:[#allocation4 + $0x748] sm:$0xff]
    %v5492 = vld [vmem:[#allocation4 + $0x750] sm:$0xff]
    %v5493 = vld [vmem:[#allocation4 + $0x758] sm:$0xff]
    %v5494 = vld [vmem:[#allocation4 + $0x760] sm:$0xff]
    %v5495 = vld [vmem:[#allocation4 + $0x768] sm:$0xff]
    %v5496 = vld [vmem:[#allocation4 + $0x770] sm:$0xff]
    %v5497 = vld [vmem:[#allocation4 + $0x778] sm:$0xff]
    %v5498 = vld [vmem:[#allocation4 + $0x780] sm:$0xff]
    %v5499 = vld [vmem:[#allocation4 + $0x788] sm:$0xff]
    %v5500 = vld [vmem:[#allocation4 + $0x790] sm:$0xff]
    %v5501 = vld [vmem:[#allocation4 + $0x798] sm:$0xff]
    %v5502 = vld [vmem:[#allocation4 + $0x7a0] sm:$0xff]
    %v5503 = vld [vmem:[#allocation4 + $0x7a8] sm:$0xff]
    %v5504 = vld [vmem:[#allocation4 + $0x7b0] sm:$0xff]
    %v5505 = vld [vmem:[#allocation4 + $0x7b8] sm:$0xff]
    %v5506 = vld [vmem:[#allocation4 + $0x7c0] sm:$0xff]
    %v5507 = vld [vmem:[#allocation4 + $0x7c8] sm:$0xff]
    %v5508 = vld [vmem:[#allocation4 + $0x7d0] sm:$0xff]
    %v5509 = vld [vmem:[#allocation4 + $0x7d8] sm:$0xff]
    %v5510 = vld [vmem:[#allocation4 + $0x7e0] sm:$0xff]
    %v5511 = vld [vmem:[#allocation4 + $0x7e8] sm:$0xff]
    %v5512 = vld [vmem:[#allocation4 + $0x7f0] sm:$0xff]
    %v5513 = vld [vmem:[#allocation4 + $0x7f8] sm:$0xff]
    %v5514 = vld [vmem:[#allocation4 + $0x800] sm:$0xff]
    %v5515 = vld [vmem:[#allocation4 + $0x808] sm:$0xff]
    %v5516 = vld [vmem:[#allocation4 + $0x810] sm:$0xff]
    %v5517 = vld [vmem:[#allocation4 + $0x818] sm:$0xff]
    %v5518 = vld [vmem:[#allocation4 + $0x820] sm:$0xff]
    %v5519 = vld [vmem:[#allocation4 + $0x828] sm:$0xff]
    %v5520 = vld [vmem:[#allocation4 + $0x830] sm:$0xff]
    %v5521 = vld [vmem:[#allocation4 + $0x838] sm:$0xff]
    %v5522 = vld [vmem:[#allocation4 + $0x840] sm:$0xff]
    %v5523 = vld [vmem:[#allocation4 + $0x848] sm:$0xff]
    %v5524 = vld [vmem:[#allocation4 + $0x850] sm:$0xff]
    %v5525 = vld [vmem:[#allocation4 + $0x858] sm:$0xff]
    %v5526 = vld [vmem:[#allocation4 + $0x860] sm:$0xff]
    %v5527 = vld [vmem:[#allocation4 + $0x868] sm:$0xff]
    %v5528 = vld [vmem:[#allocation4 + $0x870] sm:$0xff]
    %v5529 = vld [vmem:[#allocation4 + $0x878] sm:$0xff]
    %v5530 = vld [vmem:[#allocation4 + $0x880] sm:$0xff]
    %v5531 = vld [vmem:[#allocation4 + $0x888] sm:$0xff]
    %v5532 = vld [vmem:[#allocation4 + $0x890] sm:$0xff]
    %v5533 = vld [vmem:[#allocation4 + $0x898] sm:$0xff]
    %v5534 = vld [vmem:[#allocation4 + $0x8a0] sm:$0xff]
    %v5535 = vld [vmem:[#allocation4 + $0x8a8] sm:$0xff]
    %v5536 = vld [vmem:[#allocation4 + $0x8b0] sm:$0xff]
    %v5537 = vld [vmem:[#allocation4 + $0x8b8] sm:$0xff]
    %v5538 = vld [vmem:[#allocation4 + $0x8c0] sm:$0xff]
    %v5539 = vld [vmem:[#allocation4 + $0x8c8] sm:$0xff]
    %v5540 = vld [vmem:[#allocation4 + $0x8d0] sm:$0xff]
    %v5541 = vld [vmem:[#allocation4 + $0x8d8] sm:$0xff]
    %v5542 = vld [vmem:[#allocation4 + $0x8e0] sm:$0xff]
    %v5543 = vld [vmem:[#allocation4 + $0x8e8] sm:$0xff]
    %v5544 = vld [vmem:[#allocation4 + $0x8f0] sm:$0xff]
    %v5545 = vld [vmem:[#allocation4 + $0x8f8] sm:$0xff]
    %v5546 = vld [vmem:[#allocation4 + $0x900] sm:$0xff]
    %v5547 = vld [vmem:[#allocation4 + $0x908] sm:$0xff]
    %v5548 = vld [vmem:[#allocation4 + $0x910] sm:$0xff]
    %v5549 = vld [vmem:[#allocation4 + $0x918] sm:$0xff]
    %v5550 = vld [vmem:[#allocation4 + $0x920] sm:$0xff]
    %v5551 = vld [vmem:[#allocation4 + $0x928] sm:$0xff]
    %v5552 = vld [vmem:[#allocation4 + $0x930] sm:$0xff]
    %v5553 = vld [vmem:[#allocation4 + $0x938] sm:$0xff]
    %v5554 = vld [vmem:[#allocation4 + $0x940] sm:$0xff]
    %v5555 = vld [vmem:[#allocation4 + $0x948] sm:$0xff]
    %v5556 = vld [vmem:[#allocation4 + $0x950] sm:$0xff]
    %v5557 = vld [vmem:[#allocation4 + $0x958] sm:$0xff]
    %v5558 = vld [vmem:[#allocation4 + $0x960] sm:$0xff]
    %v5559 = vld [vmem:[#allocation4 + $0x968] sm:$0xff]
    %v5560 = vld [vmem:[#allocation4 + $0x970] sm:$0xff]
    %v5561 = vld [vmem:[#allocation4 + $0x978] sm:$0xff]
    %v5562 = vld [vmem:[#allocation4 + $0x980] sm:$0xff]
    %v5563 = vld [vmem:[#allocation4 + $0x988] sm:$0xff]
    %v5564 = vld [vmem:[#allocation4 + $0x990] sm:$0xff]
    %v5565 = vld [vmem:[#allocation4 + $0x998] sm:$0xff]
    %v5566 = vld [vmem:[#allocation4 + $0x9a0] sm:$0xff]
    %v5567 = vld [vmem:[#allocation4 + $0x9a8] sm:$0xff]
    %v5568 = vld [vmem:[#allocation4 + $0x9b0] sm:$0xff]
    %v5569 = vld [vmem:[#allocation4 + $0x9b8] sm:$0xff]
    %v5570 = vld [vmem:[#allocation4 + $0x9c0] sm:$0xff]
    %v5571 = vld [vmem:[#allocation4 + $0x9c8] sm:$0xff]
    %v5572 = vld [vmem:[#allocation4 + $0x9d0] sm:$0xff]
    %v5573 = vld [vmem:[#allocation4 + $0x9d8] sm:$0xff]
    %v5574 = vld [vmem:[#allocation4 + $0x9e0] sm:$0xff]
    %v5575 = vld [vmem:[#allocation4 + $0x9e8] sm:$0xff]
    %v5576 = vld [vmem:[#allocation4 + $0x9f0] sm:$0xff]
    %v5577 = vld [vmem:[#allocation4 + $0x9f8] sm:$0xff]
    %v5578 = vld [vmem:[#allocation4 + $0xa00] sm:$0xff]
    %v5579 = vld [vmem:[#allocation4 + $0xa08] sm:$0xff]
    %v5580 = vld [vmem:[#allocation4 + $0xa10] sm:$0xff]
    %v5581 = vld [vmem:[#allocation4 + $0xa18] sm:$0xff]
    %v5582 = vld [vmem:[#allocation4 + $0xa20] sm:$0xff]
    %v5583 = vld [vmem:[#allocation4 + $0xa28] sm:$0xff]
    %v5584 = vld [vmem:[#allocation4 + $0xa30] sm:$0xff]
    %v5585 = vld [vmem:[#allocation4 + $0xa38] sm:$0xff]
    %v5586 = vld [vmem:[#allocation4 + $0xa40] sm:$0xff]
    %v5587 = vld [vmem:[#allocation4 + $0xa48] sm:$0xff]
    %v5588 = vld [vmem:[#allocation4 + $0xa50] sm:$0xff]
    %v5589 = vld [vmem:[#allocation4 + $0xa58] sm:$0xff]
    %v5590 = vld [vmem:[#allocation4 + $0xa60] sm:$0xff]
    %v5591 = vld [vmem:[#allocation4 + $0xa68] sm:$0xff]
    %v5592 = vld [vmem:[#allocation4 + $0xa70] sm:$0xff]
    %v5593 = vld [vmem:[#allocation4 + $0xa78] sm:$0xff]
    %v5594 = vld [vmem:[#allocation4 + $0xa80] sm:$0xff]
    %v5595 = vld [vmem:[#allocation4 + $0xa88] sm:$0xff]
    %v5596 = vld [vmem:[#allocation4 + $0xa90] sm:$0xff]
    %v5597 = vld [vmem:[#allocation4 + $0xa98] sm:$0xff]
    %v5598 = vld [vmem:[#allocation4 + $0xaa0] sm:$0xff]
    %v5599 = vld [vmem:[#allocation4 + $0xaa8] sm:$0xff]
    %v5600 = vld [vmem:[#allocation4 + $0xab0] sm:$0xff]
    %v5601 = vld [vmem:[#allocation4 + $0xab8] sm:$0xff]
    %v5602 = vld [vmem:[#allocation4 + $0xac0] sm:$0xff]
    %v5603 = vld [vmem:[#allocation4 + $0xac8] sm:$0xff]
    %v5604 = vld [vmem:[#allocation4 + $0xad0] sm:$0xff]
    %v5605 = vld [vmem:[#allocation4 + $0xad8] sm:$0xff]
    %v5606 = vld [vmem:[#allocation4 + $0xae0] sm:$0xff]
    %v5607 = vld [vmem:[#allocation4 + $0xae8] sm:$0xff]
    %v5608 = vld [vmem:[#allocation4 + $0xaf0] sm:$0xff]
    %v5609 = vld [vmem:[#allocation4 + $0xaf8] sm:$0xff]
    %v5610 = vld [vmem:[#allocation4 + $0xb00] sm:$0xff]
    %v5611 = vld [vmem:[#allocation4 + $0xb08] sm:$0xff]
    %v5612 = vld [vmem:[#allocation4 + $0xb10] sm:$0xff]
    %v5613 = vld [vmem:[#allocation4 + $0xb18] sm:$0xff]
    %v5614 = vld [vmem:[#allocation4 + $0xb20] sm:$0xff]
    %v5615 = vld [vmem:[#allocation4 + $0xb28] sm:$0xff]
    %v5616 = vld [vmem:[#allocation4 + $0xb30] sm:$0xff]
    %v5617 = vld [vmem:[#allocation4 + $0xb38] sm:$0xff]
    %v5618 = vld [vmem:[#allocation4 + $0xb40] sm:$0xff]
    %v5619 = vld [vmem:[#allocation4 + $0xb48] sm:$0xff]
    %v5620 = vld [vmem:[#allocation4 + $0xb50] sm:$0xff]
    %v5621 = vld [vmem:[#allocation4 + $0xb58] sm:$0xff]
    %v5622 = vld [vmem:[#allocation4 + $0xb60] sm:$0xff]
    %v5623 = vld [vmem:[#allocation4 + $0xb68] sm:$0xff]
    %v5624 = vld [vmem:[#allocation4 + $0xb70] sm:$0xff]
    %v5625 = vld [vmem:[#allocation4 + $0xb78] sm:$0xff]
    %v5626 = vld [vmem:[#allocation4 + $0xb80] sm:$0xff]
    %v5627 = vld [vmem:[#allocation4 + $0xb88] sm:$0xff]
    %v5628 = vld [vmem:[#allocation4 + $0xb90] sm:$0xff]
    %v5629 = vld [vmem:[#allocation4 + $0xb98] sm:$0xff]
    %v5630 = vld [vmem:[#allocation4 + $0xba0] sm:$0xff]
    %v5631 = vld [vmem:[#allocation4 + $0xba8] sm:$0xff]
    %v5632 = vld [vmem:[#allocation4 + $0xbb0] sm:$0xff]
    %v5633 = vld [vmem:[#allocation4 + $0xbb8] sm:$0xff]
    %v5634 = vld [vmem:[#allocation4 + $0xbc0] sm:$0xff]
    %v5635 = vld [vmem:[#allocation4 + $0xbc8] sm:$0xff]
    %v5636 = vld [vmem:[#allocation4 + $0xbd0] sm:$0xff]
    %v5637 = vld [vmem:[#allocation4 + $0xbd8] sm:$0xff]
    %v5638 = vld [vmem:[#allocation4 + $0xbe0] sm:$0xff]
    %v5639 = vld [vmem:[#allocation4 + $0xbe8] sm:$0xff]
    %v5640 = vld [vmem:[#allocation4 + $0xbf0] sm:$0xff]
    %v5641 = vld [vmem:[#allocation4 + $0xbf8] sm:$0xff]
    %v5642 = vld [vmem:[#allocation4 + $0xc00] sm:$0xff]
    %v5643 = vld [vmem:[#allocation4 + $0xc08] sm:$0xff]
    %v5644 = vld [vmem:[#allocation4 + $0xc10] sm:$0xff]
    %v5645 = vld [vmem:[#allocation4 + $0xc18] sm:$0xff]
    %v5646 = vld [vmem:[#allocation4 + $0xc20] sm:$0xff]
    %v5647 = vld [vmem:[#allocation4 + $0xc28] sm:$0xff]
    %v5648 = vld [vmem:[#allocation4 + $0xc30] sm:$0xff]
    %v5649 = vld [vmem:[#allocation4 + $0xc38] sm:$0xff]
    %v5650 = vld [vmem:[#allocation4 + $0xc40] sm:$0xff]
    %v5651 = vld [vmem:[#allocation4 + $0xc48] sm:$0xff]
    %v5652 = vld [vmem:[#allocation4 + $0xc50] sm:$0xff]
    %v5653 = vld [vmem:[#allocation4 + $0xc58] sm:$0xff]
    %v5654 = vld [vmem:[#allocation4 + $0xc60] sm:$0xff]
    %v5655 = vld [vmem:[#allocation4 + $0xc68] sm:$0xff]
    %v5656 = vld [vmem:[#allocation4 + $0xc70] sm:$0xff]
    %v5657 = vld [vmem:[#allocation4 + $0xc78] sm:$0xff]
    %v5658 = vld [vmem:[#allocation4 + $0xc80] sm:$0xff]
    %v5659 = vld [vmem:[#allocation4 + $0xc88] sm:$0xff]
    %v5660 = vld [vmem:[#allocation4 + $0xc90] sm:$0xff]
    %v5661 = vld [vmem:[#allocation4 + $0xc98] sm:$0xff]
    %v5662 = vld [vmem:[#allocation4 + $0xca0] sm:$0xff]
    %v5663 = vld [vmem:[#allocation4 + $0xca8] sm:$0xff]
    %v5664 = vld [vmem:[#allocation4 + $0xcb0] sm:$0xff]
    %v5665 = vld [vmem:[#allocation4 + $0xcb8] sm:$0xff]
    %v5666 = vld [vmem:[#allocation4 + $0xcc0] sm:$0xff]
    %v5667 = vld [vmem:[#allocation4 + $0xcc8] sm:$0xff]
    %v5668 = vld [vmem:[#allocation4 + $0xcd0] sm:$0xff]
    %v5669 = vld [vmem:[#allocation4 + $0xcd8] sm:$0xff]
    %v5670 = vld [vmem:[#allocation4 + $0xce0] sm:$0xff]
    %v5671 = vld [vmem:[#allocation4 + $0xce8] sm:$0xff]
    %v5672 = vld [vmem:[#allocation4 + $0xcf0] sm:$0xff]
    %v5673 = vld [vmem:[#allocation4 + $0xcf8] sm:$0xff]
    %v5674 = vld [vmem:[#allocation4 + $0xd00] sm:$0xff]
    %v5675 = vld [vmem:[#allocation4 + $0xd08] sm:$0xff]
    %v5676 = vld [vmem:[#allocation4 + $0xd10] sm:$0xff]
    %v5677 = vld [vmem:[#allocation4 + $0xd18] sm:$0xff]
    %v5678 = vld [vmem:[#allocation4 + $0xd20] sm:$0xff]
    %v5679 = vld [vmem:[#allocation4 + $0xd28] sm:$0xff]
    %v5680 = vld [vmem:[#allocation4 + $0xd30] sm:$0xff]
    %v5681 = vld [vmem:[#allocation4 + $0xd38] sm:$0xff]
    %v5682 = vld [vmem:[#allocation4 + $0xd40] sm:$0xff]
    %v5683 = vld [vmem:[#allocation4 + $0xd48] sm:$0xff]
    %v5684 = vld [vmem:[#allocation4 + $0xd50] sm:$0xff]
    %v5685 = vld [vmem:[#allocation4 + $0xd58] sm:$0xff]
    %v5686 = vld [vmem:[#allocation4 + $0xd60] sm:$0xff]
    %v5687 = vld [vmem:[#allocation4 + $0xd68] sm:$0xff]
    %v5688 = vld [vmem:[#allocation4 + $0xd70] sm:$0xff]
    %v5689 = vld [vmem:[#allocation4 + $0xd78] sm:$0xff]
    %v5690 = vld [vmem:[#allocation4 + $0xd80] sm:$0xff]
    %v5691 = vld [vmem:[#allocation4 + $0xd88] sm:$0xff]
    %v5692 = vld [vmem:[#allocation4 + $0xd90] sm:$0xff]
    %v5693 = vld [vmem:[#allocation4 + $0xd98] sm:$0xff]
    %v5694 = vld [vmem:[#allocation4 + $0xda0] sm:$0xff]
    %v5695 = vld [vmem:[#allocation4 + $0xda8] sm:$0xff]
    %v5696 = vld [vmem:[#allocation4 + $0xdb0] sm:$0xff]
    %v5697 = vld [vmem:[#allocation4 + $0xdb8] sm:$0xff]
    %v5698 = vld [vmem:[#allocation4 + $0xdc0] sm:$0xff]
    %v5699 = vld [vmem:[#allocation4 + $0xdc8] sm:$0xff]
    %v5700 = vld [vmem:[#allocation4 + $0xdd0] sm:$0xff]
    %v5701 = vld [vmem:[#allocation4 + $0xdd8] sm:$0xff]
    %v5702 = vld [vmem:[#allocation4 + $0xde0] sm:$0xff]
    %v5703 = vld [vmem:[#allocation4 + $0xde8] sm:$0xff]
    %v5704 = vld [vmem:[#allocation4 + $0xdf0] sm:$0xff]
    %v5705 = vld [vmem:[#allocation4 + $0xdf8] sm:$0xff]
    %v5706 = vld [vmem:[#allocation4 + $0xe00] sm:$0xff]
    %v5707 = vld [vmem:[#allocation4 + $0xe08] sm:$0xff]
    %v5708 = vld [vmem:[#allocation4 + $0xe10] sm:$0xff]
    %v5709 = vld [vmem:[#allocation4 + $0xe18] sm:$0xff]
    %v5710 = vld [vmem:[#allocation4 + $0xe20] sm:$0xff]
    %v5711 = vld [vmem:[#allocation4 + $0xe28] sm:$0xff]
    %v5712 = vld [vmem:[#allocation4 + $0xe30] sm:$0xff]
    %v5713 = vld [vmem:[#allocation4 + $0xe38] sm:$0xff]
    %v5714 = vld [vmem:[#allocation4 + $0xe40] sm:$0xff]
    %v5715 = vld [vmem:[#allocation4 + $0xe48] sm:$0xff]
    %v5716 = vld [vmem:[#allocation4 + $0xe50] sm:$0xff]
    %v5717 = vld [vmem:[#allocation4 + $0xe58] sm:$0xff]
    %v5718 = vld [vmem:[#allocation4 + $0xe60] sm:$0xff]
    %v5719 = vld [vmem:[#allocation4 + $0xe68] sm:$0xff]
    %v5720 = vld [vmem:[#allocation4 + $0xe70] sm:$0xff]
    %v5721 = vld [vmem:[#allocation4 + $0xe78] sm:$0xff]
    %v5722 = vld [vmem:[#allocation4 + $0xe80] sm:$0xff]
    %v5723 = vld [vmem:[#allocation4 + $0xe88] sm:$0xff]
    %v5724 = vld [vmem:[#allocation4 + $0xe90] sm:$0xff]
    %v5725 = vld [vmem:[#allocation4 + $0xe98] sm:$0xff]
    %v5726 = vld [vmem:[#allocation4 + $0xea0] sm:$0xff]
    %v5727 = vld [vmem:[#allocation4 + $0xea8] sm:$0xff]
    %v5728 = vld [vmem:[#allocation4 + $0xeb0] sm:$0xff]
    %v5729 = vld [vmem:[#allocation4 + $0xeb8] sm:$0xff]
    %v5730 = vld [vmem:[#allocation4 + $0xec0] sm:$0xff]
    %v5731 = vld [vmem:[#allocation4 + $0xec8] sm:$0xff]
    %v5732 = vld [vmem:[#allocation4 + $0xed0] sm:$0xff]
    %v5733 = vld [vmem:[#allocation4 + $0xed8] sm:$0xff]
    %v5734 = vld [vmem:[#allocation4 + $0xee0] sm:$0xff]
    %v5735 = vld [vmem:[#allocation4 + $0xee8] sm:$0xff]
    %v5736 = vld [vmem:[#allocation4 + $0xef0] sm:$0xff]
    %v5737 = vld [vmem:[#allocation4 + $0xef8] sm:$0xff]
    %v5738 = vld [vmem:[#allocation4 + $0xf00] sm:$0xff]
    %v5739 = vld [vmem:[#allocation4 + $0xf08] sm:$0xff]
    %v5740 = vld [vmem:[#allocation4 + $0xf10] sm:$0xff]
    %v5741 = vld [vmem:[#allocation4 + $0xf18] sm:$0xff]
    %v5742 = vld [vmem:[#allocation4 + $0xf20] sm:$0xff]
    %v5743 = vld [vmem:[#allocation4 + $0xf28] sm:$0xff]
    %v5744 = vld [vmem:[#allocation4 + $0xf30] sm:$0xff]
    %v5745 = vld [vmem:[#allocation4 + $0xf38] sm:$0xff]
    %v5746 = vld [vmem:[#allocation4 + $0xf40] sm:$0xff]
    %v5747 = vld [vmem:[#allocation4 + $0xf48] sm:$0xff]
    %v5748 = vld [vmem:[#allocation4 + $0xf50] sm:$0xff]
    %v5749 = vld [vmem:[#allocation4 + $0xf58] sm:$0xff]
    %v5750 = vld [vmem:[#allocation4 + $0xf60] sm:$0xff]
    %v5751 = vld [vmem:[#allocation4 + $0xf68] sm:$0xff]
    %v5752 = vld [vmem:[#allocation4 + $0xf70] sm:$0xff]
    %v5753 = vld [vmem:[#allocation4 + $0xf78] sm:$0xff]
    %v5754 = vld [vmem:[#allocation4 + $0xf80] sm:$0xff]
    %v5755 = vld [vmem:[#allocation4 + $0xf88] sm:$0xff]
    %v5756 = vld [vmem:[#allocation4 + $0xf90] sm:$0xff]
    %v5757 = vld [vmem:[#allocation4 + $0xf98] sm:$0xff]
    %v5758 = vld [vmem:[#allocation4 + $0xfa0] sm:$0xff]
    %v5759 = vld [vmem:[#allocation4 + $0xfa8] sm:$0xff]
    %v5760 = vld [vmem:[#allocation4 + $0xfb0] sm:$0xff]
    %v5761 = vld [vmem:[#allocation4 + $0xfb8] sm:$0xff]
    %v5762 = vld [vmem:[#allocation4 + $0xfc0] sm:$0xff]
    %v5763 = vld [vmem:[#allocation4 + $0xfc8] sm:$0xff]
    %v5764 = vld [vmem:[#allocation4 + $0xfd0] sm:$0xff]
    %v5765 = vld [vmem:[#allocation4 + $0xfd8] sm:$0xff]
    %v5766 = vld [vmem:[#allocation4 + $0xfe0] sm:$0xff]
    %v5767 = vld [vmem:[#allocation4 + $0xfe8] sm:$0xff]
    %v5768 = vld [vmem:[#allocation4 + $0xff0] sm:$0xff]
    %v5769 = vld [vmem:[#allocation4 + $0xff8] sm:$0xff]
    %v5770 = vld [vmem:[#allocation4 + $0x1000] sm:$0xff]
    %v5771 = vld [vmem:[#allocation4 + $0x1008] sm:$0xff]
    %v5772 = vld [vmem:[#allocation4 + $0x1010] sm:$0xff]
    %v5773 = vld [vmem:[#allocation4 + $0x1018] sm:$0xff]
    %v5774 = vld [vmem:[#allocation4 + $0x1020] sm:$0xff]
    %v5775 = vld [vmem:[#allocation4 + $0x1028] sm:$0xff]
    %v5776 = vld [vmem:[#allocation4 + $0x1030] sm:$0xff]
    %v5777 = vld [vmem:[#allocation4 + $0x1038] sm:$0xff]
    %v5778 = vld [vmem:[#allocation4 + $0x1040] sm:$0xff]
    %v5779 = vld [vmem:[#allocation4 + $0x1048] sm:$0xff]
    %v5780 = vld [vmem:[#allocation4 + $0x1050] sm:$0xff]
    %v5781 = vld [vmem:[#allocation4 + $0x1058] sm:$0xff]
    %v5782 = vld [vmem:[#allocation4 + $0x1060] sm:$0xff]
    %v5783 = vld [vmem:[#allocation4 + $0x1068] sm:$0xff]
    %v5784 = vld [vmem:[#allocation4 + $0x1070] sm:$0xff]
    %v5785 = vld [vmem:[#allocation4 + $0x1078] sm:$0xff]
    %v5786 = vld [vmem:[#allocation4 + $0x1080] sm:$0xff]
    %v5787 = vld [vmem:[#allocation4 + $0x1088] sm:$0xff]
    %v5788 = vld [vmem:[#allocation4 + $0x1090] sm:$0xff]
    %v5789 = vld [vmem:[#allocation4 + $0x1098] sm:$0xff]
    %v5790 = vld [vmem:[#allocation4 + $0x10a0] sm:$0xff]
    %v5791 = vld [vmem:[#allocation4 + $0x10a8] sm:$0xff]
    %v5792 = vld [vmem:[#allocation4 + $0x10b0] sm:$0xff]
    %v5793 = vld [vmem:[#allocation4 + $0x10b8] sm:$0xff]
    %v5794 = vld [vmem:[#allocation4 + $0x10c0] sm:$0xff]
    %v5795 = vld [vmem:[#allocation4 + $0x10c8] sm:$0xff]
    %v5796 = vld [vmem:[#allocation4 + $0x10d0] sm:$0xff]
    %v5797 = vld [vmem:[#allocation4 + $0x10d8] sm:$0xff]
    %v5798 = vld [vmem:[#allocation4 + $0x10e0] sm:$0xff]
    %v5799 = vld [vmem:[#allocation4 + $0x10e8] sm:$0xff]
    %v5800 = vld [vmem:[#allocation4 + $0x10f0] sm:$0xff]
    %v5801 = vld [vmem:[#allocation4 + $0x10f8] sm:$0xff]
    %v5802 = vld [vmem:[#allocation4 + $0x1100] sm:$0xff]
    %v5803 = vld [vmem:[#allocation4 + $0x1108] sm:$0xff]
    %v5804 = vld [vmem:[#allocation4 + $0x1110] sm:$0xff]
    %v5805 = vld [vmem:[#allocation4 + $0x1118] sm:$0xff]
    %v5806 = vld [vmem:[#allocation4 + $0x1120] sm:$0xff]
    %v5807 = vld [vmem:[#allocation4 + $0x1128] sm:$0xff]
    %v5808 = vld [vmem:[#allocation4 + $0x1130] sm:$0xff]
    %v5809 = vld [vmem:[#allocation4 + $0x1138] sm:$0xff]
    %v5810 = vld [vmem:[#allocation4 + $0x1140] sm:$0xff]
    %v5811 = vld [vmem:[#allocation4 + $0x1148] sm:$0xff]
    %v5812 = vld [vmem:[#allocation4 + $0x1150] sm:$0xff]
    %v5813 = vld [vmem:[#allocation4 + $0x1158] sm:$0xff]
    %v5814 = vld [vmem:[#allocation4 + $0x1160] sm:$0xff]
    %v5815 = vld [vmem:[#allocation4 + $0x1168] sm:$0xff]
    %v5816 = vld [vmem:[#allocation4 + $0x1170] sm:$0xff]
    %v5817 = vld [vmem:[#allocation4 + $0x1178] sm:$0xff]
    %v5818 = vld [vmem:[#allocation4 + $0x1180] sm:$0xff]
    %v5819 = vld [vmem:[#allocation4 + $0x1188] sm:$0xff]
    %v5820 = vld [vmem:[#allocation4 + $0x1190] sm:$0xff]
    %v5821 = vld [vmem:[#allocation4 + $0x1198] sm:$0xff]
    %v5822 = vld [vmem:[#allocation4 + $0x11a0] sm:$0xff]
    %v5823 = vld [vmem:[#allocation4 + $0x11a8] sm:$0xff]
    %v5824 = vld [vmem:[#allocation4 + $0x11b0] sm:$0xff]
    %v5825 = vld [vmem:[#allocation4 + $0x11b8] sm:$0xff]
    %v5826 = vld [vmem:[#allocation4 + $0x11c0] sm:$0xff]
    %v5827 = vld [vmem:[#allocation4 + $0x11c8] sm:$0xff]
    %v5828 = vld [vmem:[#allocation4 + $0x11d0] sm:$0xff]
    %v5829 = vld [vmem:[#allocation4 + $0x11d8] sm:$0xff]
    %v5830 = vld [vmem:[#allocation4 + $0x11e0] sm:$0xff]
    %v5831 = vld [vmem:[#allocation4 + $0x11e8] sm:$0xff]
    %v5832 = vld [vmem:[#allocation4 + $0x11f0] sm:$0xff]
    %v5833 = vld [vmem:[#allocation4 + $0x11f8] sm:$0xff]
    %v5834 = vld [vmem:[#allocation4 + $0x1200] sm:$0xff]
    %v5835 = vld [vmem:[#allocation4 + $0x1208] sm:$0xff]
    %v5836 = vld [vmem:[#allocation4 + $0x1210] sm:$0xff]
    %v5837 = vld [vmem:[#allocation4 + $0x1218] sm:$0xff]
    %v5838 = vld [vmem:[#allocation4 + $0x1220] sm:$0xff]
    %v5839 = vld [vmem:[#allocation4 + $0x1228] sm:$0xff]
    %v5840 = vld [vmem:[#allocation4 + $0x1230] sm:$0xff]
    %v5841 = vld [vmem:[#allocation4 + $0x1238] sm:$0xff]
    %v5842 = vld [vmem:[#allocation4 + $0x1240] sm:$0xff]
    %v5843 = vld [vmem:[#allocation4 + $0x1248] sm:$0xff]
    %v5844 = vld [vmem:[#allocation4 + $0x1250] sm:$0xff]
    %v5845 = vld [vmem:[#allocation4 + $0x1258] sm:$0xff]
    %v5846 = vld [vmem:[#allocation4 + $0x1260] sm:$0xff]
    %v5847 = vld [vmem:[#allocation4 + $0x1268] sm:$0xff]
    %v5848 = vld [vmem:[#allocation4 + $0x1270] sm:$0xff]
    %v5849 = vld [vmem:[#allocation4 + $0x1278] sm:$0xff]
    %v5850 = vld [vmem:[#allocation4 + $0x1280] sm:$0xff]
    %v5851 = vld [vmem:[#allocation4 + $0x1288] sm:$0xff]
    %v5852 = vld [vmem:[#allocation4 + $0x1290] sm:$0xff]
    %v5853 = vld [vmem:[#allocation4 + $0x1298] sm:$0xff]
    %v5854 = vld [vmem:[#allocation4 + $0x12a0] sm:$0xff]
    %v5855 = vld [vmem:[#allocation4 + $0x12a8] sm:$0xff]
    %v5856 = vld [vmem:[#allocation4 + $0x12b0] sm:$0xff]
    %v5857 = vld [vmem:[#allocation4 + $0x12b8] sm:$0xff]
    %v5858 = vld [vmem:[#allocation4 + $0x12c0] sm:$0xff]
    %v5859 = vld [vmem:[#allocation4 + $0x12c8] sm:$0xff]
    %v5860 = vld [vmem:[#allocation4 + $0x12d0] sm:$0xff]
    %v5861 = vld [vmem:[#allocation4 + $0x12d8] sm:$0xff]
    %v5862 = vld [vmem:[#allocation4 + $0x12e0] sm:$0xff]
    %v5863 = vld [vmem:[#allocation4 + $0x12e8] sm:$0xff]
    %v5864 = vld [vmem:[#allocation4 + $0x12f0] sm:$0xff]
    %v5865 = vld [vmem:[#allocation4 + $0x12f8] sm:$0xff]
    %v5866 = vld [vmem:[#allocation4 + $0x1300] sm:$0xff]
    %v5867 = vld [vmem:[#allocation4 + $0x1308] sm:$0xff]
    %v5868 = vld [vmem:[#allocation4 + $0x1310] sm:$0xff]
    %v5869 = vld [vmem:[#allocation4 + $0x1318] sm:$0xff]
    %v5870 = vld [vmem:[#allocation4 + $0x1320] sm:$0xff]
    %v5871 = vld [vmem:[#allocation4 + $0x1328] sm:$0xff]
    %v5872 = vld [vmem:[#allocation4 + $0x1330] sm:$0xff]
    %v5873 = vld [vmem:[#allocation4 + $0x1338] sm:$0xff]
    %v5874 = vld [vmem:[#allocation4 + $0x1340] sm:$0xff]
    %v5875 = vld [vmem:[#allocation4 + $0x1348] sm:$0xff]
    %v5876 = vld [vmem:[#allocation4 + $0x1350] sm:$0xff]
    %v5877 = vld [vmem:[#allocation4 + $0x1358] sm:$0xff]
    %v5878 = vld [vmem:[#allocation4 + $0x1360] sm:$0xff]
    %v5879 = vld [vmem:[#allocation4 + $0x1368] sm:$0xff]
    %v5880 = vld [vmem:[#allocation4 + $0x1370] sm:$0xff]
    %v5881 = vld [vmem:[#allocation4 + $0x1378] sm:$0xff]
    %v5882 = vld [vmem:[#allocation4 + $0x1380] sm:$0xff]
    %v5883 = vld [vmem:[#allocation4 + $0x1388] sm:$0xff]
    %v5884 = vld [vmem:[#allocation4 + $0x1390] sm:$0xff]
    %v5885 = vld [vmem:[#allocation4 + $0x1398] sm:$0xff]
    %v5886 = vld [vmem:[#allocation4 + $0x13a0] sm:$0xff]
    %v5887 = vld [vmem:[#allocation4 + $0x13a8] sm:$0xff]
    %v5888 = vld [vmem:[#allocation4 + $0x13b0] sm:$0xff]
    %v5889 = vld [vmem:[#allocation4 + $0x13b8] sm:$0xff]
    %v5890 = vld [vmem:[#allocation4 + $0x13c0] sm:$0xff]
    %v5891 = vld [vmem:[#allocation4 + $0x13c8] sm:$0xff]
    %v5892 = vld [vmem:[#allocation4 + $0x13d0] sm:$0xff]
    %v5893 = vld [vmem:[#allocation4 + $0x13d8] sm:$0xff]
    %v5894 = vld [vmem:[#allocation4 + $0x13e0] sm:$0xff]
    %v5895 = vld [vmem:[#allocation4 + $0x13e8] sm:$0xff]
    %v5896 = vld [vmem:[#allocation4 + $0x13f0] sm:$0xff]
    %v5897 = vld [vmem:[#allocation4 + $0x13f8] sm:$0xff]
    %v5898 = vld [vmem:[#allocation4 + $0x1400] sm:$0xff]
    %v5899 = vld [vmem:[#allocation4 + $0x1408] sm:$0xff]
    %v5900 = vld [vmem:[#allocation4 + $0x1410] sm:$0xff]
    %v5901 = vld [vmem:[#allocation4 + $0x1418] sm:$0xff]
    %v5902 = vld [vmem:[#allocation4 + $0x1420] sm:$0xff]
    %v5903 = vld [vmem:[#allocation4 + $0x1428] sm:$0xff]
    %v5904 = vld [vmem:[#allocation4 + $0x1430] sm:$0xff]
    %v5905 = vld [vmem:[#allocation4 + $0x1438] sm:$0xff]
    %v5906 = vld [vmem:[#allocation4 + $0x1440] sm:$0xff]
    %v5907 = vld [vmem:[#allocation4 + $0x1448] sm:$0xff]
    %v5908 = vld [vmem:[#allocation4 + $0x1450] sm:$0xff]
    %v5909 = vld [vmem:[#allocation4 + $0x1458] sm:$0xff]
    %v5910 = vld [vmem:[#allocation4 + $0x1460] sm:$0xff]
    %v5911 = vld [vmem:[#allocation4 + $0x1468] sm:$0xff]
    %v5912 = vld [vmem:[#allocation4 + $0x1470] sm:$0xff]
    %v5913 = vld [vmem:[#allocation4 + $0x1478] sm:$0xff]
    %v5914 = vld [vmem:[#allocation4 + $0x1480] sm:$0xff]
    %v5915 = vld [vmem:[#allocation4 + $0x1488] sm:$0xff]
    %v5916 = vld [vmem:[#allocation4 + $0x1490] sm:$0xff]
    %v5917 = vld [vmem:[#allocation4 + $0x1498] sm:$0xff]
    %v5918 = vld [vmem:[#allocation4 + $0x14a0] sm:$0xff]
    %v5919 = vld [vmem:[#allocation4 + $0x14a8] sm:$0xff]
    %v5920 = vld [vmem:[#allocation4 + $0x14b0] sm:$0xff]
    %v5921 = vld [vmem:[#allocation4 + $0x14b8] sm:$0xff]
    %v5922 = vld [vmem:[#allocation4 + $0x14c0] sm:$0xff]
    %v5923 = vld [vmem:[#allocation4 + $0x14c8] sm:$0xff]
    %v5924 = vld [vmem:[#allocation4 + $0x14d0] sm:$0xff]
    %v5925 = vld [vmem:[#allocation4 + $0x14d8] sm:$0xff]
    %v5926 = vld [vmem:[#allocation4 + $0x14e0] sm:$0xff]
    %v5927 = vld [vmem:[#allocation4 + $0x14e8] sm:$0xff]
    %v5928 = vld [vmem:[#allocation4 + $0x14f0] sm:$0xff]
    %v5929 = vld [vmem:[#allocation4 + $0x14f8] sm:$0xff]
    %v5930 = vld [vmem:[#allocation4 + $0x1500] sm:$0xff]
    %v5931 = vld [vmem:[#allocation4 + $0x1508] sm:$0xff]
    %v5932 = vld [vmem:[#allocation4 + $0x1510] sm:$0xff]
    %v5933 = vld [vmem:[#allocation4 + $0x1518] sm:$0xff]
    %v5934 = vld [vmem:[#allocation4 + $0x1520] sm:$0xff]
    %v5935 = vld [vmem:[#allocation4 + $0x1528] sm:$0xff]
    %v5936 = vld [vmem:[#allocation4 + $0x1530] sm:$0xff]
    %v5937 = vld [vmem:[#allocation4 + $0x1538] sm:$0xff]
    %v5938 = vld [vmem:[#allocation4 + $0x1540] sm:$0xff]
    %v5939 = vld [vmem:[#allocation4 + $0x1548] sm:$0xff]
    %v5940 = vld [vmem:[#allocation4 + $0x1550] sm:$0xff]
    %v5941 = vld [vmem:[#allocation4 + $0x1558] sm:$0xff]
    %v5942 = vld [vmem:[#allocation4 + $0x1560] sm:$0xff]
    %v5943 = vld [vmem:[#allocation4 + $0x1568] sm:$0xff]
    %v5944 = vld [vmem:[#allocation4 + $0x1570] sm:$0xff]
    %v5945 = vld [vmem:[#allocation4 + $0x1578] sm:$0xff]
    %v5946 = vld [vmem:[#allocation4 + $0x1580] sm:$0xff]
    %v5947 = vld [vmem:[#allocation4 + $0x1588] sm:$0xff]
    %v5948 = vld [vmem:[#allocation4 + $0x1590] sm:$0xff]
    %v5949 = vld [vmem:[#allocation4 + $0x1598] sm:$0xff]
    %v5950 = vld [vmem:[#allocation4 + $0x15a0] sm:$0xff]
    %v5951 = vld [vmem:[#allocation4 + $0x15a8] sm:$0xff]
    %v5952 = vld [vmem:[#allocation4 + $0x15b0] sm:$0xff]
    %v5953 = vld [vmem:[#allocation4 + $0x15b8] sm:$0xff]
    %v5954 = vld [vmem:[#allocation4 + $0x15c0] sm:$0xff]
    %v5955 = vld [vmem:[#allocation4 + $0x15c8] sm:$0xff]
    %v5956 = vld [vmem:[#allocation4 + $0x15d0] sm:$0xff]
    %v5957 = vld [vmem:[#allocation4 + $0x15d8] sm:$0xff]
    %v5958 = vld [vmem:[#allocation4 + $0x15e0] sm:$0xff]
    %v5959 = vld [vmem:[#allocation4 + $0x15e8] sm:$0xff]
    %v5960 = vld [vmem:[#allocation4 + $0x15f0] sm:$0xff]
    %v5961 = vld [vmem:[#allocation4 + $0x15f8] sm:$0xff]
    %v5962 = vld [vmem:[#allocation4 + $0x1600] sm:$0xff]
    %v5963 = vld [vmem:[#allocation4 + $0x1608] sm:$0xff]
    %v5964 = vld [vmem:[#allocation4 + $0x1610] sm:$0xff]
    %v5965 = vld [vmem:[#allocation4 + $0x1618] sm:$0xff]
    %v5966 = vld [vmem:[#allocation4 + $0x1620] sm:$0xff]
    %v5967 = vld [vmem:[#allocation4 + $0x1628] sm:$0xff]
    %v5968 = vld [vmem:[#allocation4 + $0x1630] sm:$0xff]
    %v5969 = vld [vmem:[#allocation4 + $0x1638] sm:$0xff]
    %v5970 = vld [vmem:[#allocation4 + $0x1640] sm:$0xff]
    %v5971 = vld [vmem:[#allocation4 + $0x1648] sm:$0xff]
    %v5972 = vld [vmem:[#allocation4 + $0x1650] sm:$0xff]
    %v5973 = vld [vmem:[#allocation4 + $0x1658] sm:$0xff]
    %v5974 = vld [vmem:[#allocation4 + $0x1660] sm:$0xff]
    %v5975 = vld [vmem:[#allocation4 + $0x1668] sm:$0xff]
    %v5976 = vld [vmem:[#allocation4 + $0x1670] sm:$0xff]
    %v5977 = vld [vmem:[#allocation4 + $0x1678] sm:$0xff]
    %v5978 = vld [vmem:[#allocation4 + $0x1680] sm:$0xff]
    %v5979 = vld [vmem:[#allocation4 + $0x1688] sm:$0xff]
    %v5980 = vld [vmem:[#allocation4 + $0x1690] sm:$0xff]
    %v5981 = vld [vmem:[#allocation4 + $0x1698] sm:$0xff]
    %v5982 = vld [vmem:[#allocation4 + $0x16a0] sm:$0xff]
    %v5983 = vld [vmem:[#allocation4 + $0x16a8] sm:$0xff]
    %v5984 = vld [vmem:[#allocation4 + $0x16b0] sm:$0xff]
    %v5985 = vld [vmem:[#allocation4 + $0x16b8] sm:$0xff]
    %v5986 = vld [vmem:[#allocation4 + $0x16c0] sm:$0xff]
    %v5987 = vld [vmem:[#allocation4 + $0x16c8] sm:$0xff]
    %v5988 = vld [vmem:[#allocation4 + $0x16d0] sm:$0xff]
    %v5989 = vld [vmem:[#allocation4 + $0x16d8] sm:$0xff]
    %v5990 = vld [vmem:[#allocation4 + $0x16e0] sm:$0xff]
    %v5991 = vld [vmem:[#allocation4 + $0x16e8] sm:$0xff]
    %v5992 = vld [vmem:[#allocation4 + $0x16f0] sm:$0xff]
    %v5993 = vld [vmem:[#allocation4 + $0x16f8] sm:$0xff]
    %v5994 = vld [vmem:[#allocation4 + $0x1700] sm:$0xff]
    %v5995 = vld [vmem:[#allocation4 + $0x1708] sm:$0xff]
    %v5996 = vld [vmem:[#allocation4 + $0x1710] sm:$0xff]
    %v5997 = vld [vmem:[#allocation4 + $0x1718] sm:$0xff]
    %v5998 = vld [vmem:[#allocation4 + $0x1720] sm:$0xff]
    %v5999 = vld [vmem:[#allocation4 + $0x1728] sm:$0xff]
    %v6000 = vld [vmem:[#allocation4 + $0x1730] sm:$0xff]
    %v6001 = vld [vmem:[#allocation4 + $0x1738] sm:$0xff]
    %v6002 = vld [vmem:[#allocation4 + $0x1740] sm:$0xff]
    %v6003 = vld [vmem:[#allocation4 + $0x1748] sm:$0xff]
    %v6004 = vld [vmem:[#allocation4 + $0x1750] sm:$0xff]
    %v6005 = vld [vmem:[#allocation4 + $0x1758] sm:$0xff]
    %v6006 = vld [vmem:[#allocation4 + $0x1760] sm:$0xff]
    %v6007 = vld [vmem:[#allocation4 + $0x1768] sm:$0xff]
    %v6008 = vld [vmem:[#allocation4 + $0x1770] sm:$0xff]
    %v6009 = vld [vmem:[#allocation4 + $0x1778] sm:$0xff]
    %v6010 = vld [vmem:[#allocation4 + $0x1780] sm:$0xff]
    %v6011 = vld [vmem:[#allocation4 + $0x1788] sm:$0xff]
    %v6012 = vld [vmem:[#allocation4 + $0x1790] sm:$0xff]
    %v6013 = vld [vmem:[#allocation4 + $0x1798] sm:$0xff]
    %v6014 = vld [vmem:[#allocation4 + $0x17a0] sm:$0xff]
    %v6015 = vld [vmem:[#allocation4 + $0x17a8] sm:$0xff]
    %v6016 = vld [vmem:[#allocation4 + $0x17b0] sm:$0xff]
    %v6017 = vld [vmem:[#allocation4 + $0x17b8] sm:$0xff]
    %v6018 = vld [vmem:[#allocation4 + $0x17c0] sm:$0xff]
    %v6019 = vld [vmem:[#allocation4 + $0x17c8] sm:$0xff]
    %v6020 = vld [vmem:[#allocation4 + $0x17d0] sm:$0xff]
    %v6021 = vld [vmem:[#allocation4 + $0x17d8] sm:$0xff]
    %v6022 = vld [vmem:[#allocation4 + $0x17e0] sm:$0xff]
    %v6023 = vld [vmem:[#allocation4 + $0x17e8] sm:$0xff]
    %v6024 = vld [vmem:[#allocation4 + $0x17f0] sm:$0xff]
    %v6025 = vld [vmem:[#allocation4 + $0x17f8] sm:$0xff]
    %v6026 = vld [vmem:[#allocation4 + $0x1800] sm:$0xff]
    %v6027 = vld [vmem:[#allocation4 + $0x1808] sm:$0xff]
    %v6028 = vld [vmem:[#allocation4 + $0x1810] sm:$0xff]
    %v6029 = vld [vmem:[#allocation4 + $0x1818] sm:$0xff]
    %v6030 = vld [vmem:[#allocation4 + $0x1820] sm:$0xff]
    %v6031 = vld [vmem:[#allocation4 + $0x1828] sm:$0xff]
    %v6032 = vld [vmem:[#allocation4 + $0x1830] sm:$0xff]
    %v6033 = vld [vmem:[#allocation4 + $0x1838] sm:$0xff]
    %v6034 = vld [vmem:[#allocation4 + $0x1840] sm:$0xff]
    %v6035 = vld [vmem:[#allocation4 + $0x1848] sm:$0xff]
    %v6036 = vld [vmem:[#allocation4 + $0x1850] sm:$0xff]
    %v6037 = vld [vmem:[#allocation4 + $0x1858] sm:$0xff]
    %v6038 = vld [vmem:[#allocation4 + $0x1860] sm:$0xff]
    %v6039 = vld [vmem:[#allocation4 + $0x1868] sm:$0xff]
    %v6040 = vld [vmem:[#allocation4 + $0x1870] sm:$0xff]
    %v6041 = vld [vmem:[#allocation4 + $0x1878] sm:$0xff]
    %v6826 = vunpack.c.l.b16 %v5258
    %v6827 = vunpack.c.h.b16 %v5258
    %v6828 = vunpack.c.l.b16 %v5259
    %v6829 = vunpack.c.h.b16 %v5259
    %v6830 = vunpack.c.l.b16 %v5260
    %v6831 = vunpack.c.h.b16 %v5260
    %v6832 = vunpack.c.l.b16 %v5261
    %v6833 = vunpack.c.h.b16 %v5261
    %v6834 = vunpack.c.l.b16 %v5262
    %v6835 = vunpack.c.h.b16 %v5262
    %v6836 = vunpack.c.l.b16 %v5263
    %v6837 = vunpack.c.h.b16 %v5263
    %v6838 = vunpack.c.l.b16 %v5264
    %v6839 = vunpack.c.h.b16 %v5264
    %v6840 = vunpack.c.l.b16 %v5265
    %v6841 = vunpack.c.h.b16 %v5265
    %v6842 = vunpack.c.l.b16 %v5266
    %v6843 = vunpack.c.h.b16 %v5266
    %v6844 = vunpack.c.l.b16 %v5267
    %v6845 = vunpack.c.h.b16 %v5267
    %v6846 = vunpack.c.l.b16 %v5268
    %v6847 = vunpack.c.h.b16 %v5268
    %v6848 = vunpack.c.l.b16 %v5269
    %v6849 = vunpack.c.h.b16 %v5269
    %v6850 = vunpack.c.l.b16 %v5270
    %v6851 = vunpack.c.h.b16 %v5270
    %v6852 = vunpack.c.l.b16 %v5271
    %v6853 = vunpack.c.h.b16 %v5271
    %v6854 = vunpack.c.l.b16 %v5272
    %v6855 = vunpack.c.h.b16 %v5272
    %v6856 = vunpack.c.l.b16 %v5273
    %v6857 = vunpack.c.h.b16 %v5273
    %v6858 = vunpack.c.l.b16 %v5274
    %v6859 = vunpack.c.h.b16 %v5274
    %v6860 = vunpack.c.l.b16 %v5275
    %v6861 = vunpack.c.h.b16 %v5275
    %v6862 = vunpack.c.l.b16 %v5276
    %v6863 = vunpack.c.h.b16 %v5276
    %v6864 = vunpack.c.l.b16 %v5277
    %v6865 = vunpack.c.h.b16 %v5277
    %v6866 = vunpack.c.l.b16 %v5278
    %v6867 = vunpack.c.h.b16 %v5278
    %v6868 = vunpack.c.l.b16 %v5279
    %v6869 = vunpack.c.h.b16 %v5279
    %v6870 = vunpack.c.l.b16 %v5280
    %v6871 = vunpack.c.h.b16 %v5280
    %v6872 = vunpack.c.l.b16 %v5281
    %v6873 = vunpack.c.h.b16 %v5281
    %v6874 = vunpack.c.l.b16 %v5282
    %v6875 = vunpack.c.h.b16 %v5282
    %v6876 = vunpack.c.l.b16 %v5283
    %v6877 = vunpack.c.h.b16 %v5283
    %v6878 = vunpack.c.l.b16 %v5284
    %v6879 = vunpack.c.h.b16 %v5284
    %v6880 = vunpack.c.l.b16 %v5285
    %v6881 = vunpack.c.h.b16 %v5285
    %v6882 = vunpack.c.l.b16 %v5286
    %v6883 = vunpack.c.h.b16 %v5286
    %v6884 = vunpack.c.l.b16 %v5287
    %v6885 = vunpack.c.h.b16 %v5287
    %v6886 = vunpack.c.l.b16 %v5288
    %v6887 = vunpack.c.h.b16 %v5288
    %v6888 = vunpack.c.l.b16 %v5289
    %v6889 = vunpack.c.h.b16 %v5289
    %v6890 = vunpack.c.l.b16 %v5290
    %v6891 = vunpack.c.h.b16 %v5290
    %v6892 = vunpack.c.l.b16 %v5291
    %v6893 = vunpack.c.h.b16 %v5291
    %v6894 = vunpack.c.l.b16 %v5292
    %v6895 = vunpack.c.h.b16 %v5292
    %v6896 = vunpack.c.l.b16 %v5293
    %v6897 = vunpack.c.h.b16 %v5293
    %v6898 = vunpack.c.l.b16 %v5294
    %v6899 = vunpack.c.h.b16 %v5294
    %v6900 = vunpack.c.l.b16 %v5295
    %v6901 = vunpack.c.h.b16 %v5295
    %v6902 = vunpack.c.l.b16 %v5296
    %v6903 = vunpack.c.h.b16 %v5296
    %v6904 = vunpack.c.l.b16 %v5297
    %v6905 = vunpack.c.h.b16 %v5297
    %v6906 = vunpack.c.l.b16 %v5298
    %v6907 = vunpack.c.h.b16 %v5298
    %v6908 = vunpack.c.l.b16 %v5299
    %v6909 = vunpack.c.h.b16 %v5299
    %v6910 = vunpack.c.l.b16 %v5300
    %v6911 = vunpack.c.h.b16 %v5300
    %v6912 = vunpack.c.l.b16 %v5301
    %v6913 = vunpack.c.h.b16 %v5301
    %v6914 = vunpack.c.l.b16 %v5302
    %v6915 = vunpack.c.h.b16 %v5302
    %v6916 = vunpack.c.l.b16 %v5303
    %v6917 = vunpack.c.h.b16 %v5303
    %v6918 = vunpack.c.l.b16 %v5304
    %v6919 = vunpack.c.h.b16 %v5304
    %v6920 = vunpack.c.l.b16 %v5305
    %v6921 = vunpack.c.h.b16 %v5305
    %v6922 = vunpack.c.l.b16 %v5306
    %v6923 = vunpack.c.h.b16 %v5306
    %v6924 = vunpack.c.l.b16 %v5307
    %v6925 = vunpack.c.h.b16 %v5307
    %v6926 = vunpack.c.l.b16 %v5308
    %v6927 = vunpack.c.h.b16 %v5308
    %v6928 = vunpack.c.l.b16 %v5309
    %v6929 = vunpack.c.h.b16 %v5309
    %v6930 = vunpack.c.l.b16 %v5310
    %v6931 = vunpack.c.h.b16 %v5310
    %v6932 = vunpack.c.l.b16 %v5311
    %v6933 = vunpack.c.h.b16 %v5311
    %v6934 = vunpack.c.l.b16 %v5312
    %v6935 = vunpack.c.h.b16 %v5312
    %v6936 = vunpack.c.l.b16 %v5313
    %v6937 = vunpack.c.h.b16 %v5313
    %v6938 = vunpack.c.l.b16 %v5314
    %v6939 = vunpack.c.h.b16 %v5314
    %v6940 = vunpack.c.l.b16 %v5315
    %v6941 = vunpack.c.h.b16 %v5315
    %v6942 = vunpack.c.l.b16 %v5316
    %v6943 = vunpack.c.h.b16 %v5316
    %v6944 = vunpack.c.l.b16 %v5317
    %v6945 = vunpack.c.h.b16 %v5317
    %v6946 = vunpack.c.l.b16 %v5318
    %v6947 = vunpack.c.h.b16 %v5318
    %v6948 = vunpack.c.l.b16 %v5319
    %v6949 = vunpack.c.h.b16 %v5319
    %v6950 = vunpack.c.l.b16 %v5320
    %v6951 = vunpack.c.h.b16 %v5320
    %v6952 = vunpack.c.l.b16 %v5321
    %v6953 = vunpack.c.h.b16 %v5321
    %v6954 = vunpack.c.l.b16 %v5322
    %v6955 = vunpack.c.h.b16 %v5322
    %v6956 = vunpack.c.l.b16 %v5323
    %v6957 = vunpack.c.h.b16 %v5323
    %v6958 = vunpack.c.l.b16 %v5324
    %v6959 = vunpack.c.h.b16 %v5324
    %v6960 = vunpack.c.l.b16 %v5325
    %v6961 = vunpack.c.h.b16 %v5325
    %v6962 = vunpack.c.l.b16 %v5326
    %v6963 = vunpack.c.h.b16 %v5326
    %v6964 = vunpack.c.l.b16 %v5327
    %v6965 = vunpack.c.h.b16 %v5327
    %v6966 = vunpack.c.l.b16 %v5328
    %v6967 = vunpack.c.h.b16 %v5328
    %v6968 = vunpack.c.l.b16 %v5329
    %v6969 = vunpack.c.h.b16 %v5329
    %v6970 = vunpack.c.l.b16 %v5330
    %v6971 = vunpack.c.h.b16 %v5330
    %v6972 = vunpack.c.l.b16 %v5331
    %v6973 = vunpack.c.h.b16 %v5331
    %v6974 = vunpack.c.l.b16 %v5332
    %v6975 = vunpack.c.h.b16 %v5332
    %v6976 = vunpack.c.l.b16 %v5333
    %v6977 = vunpack.c.h.b16 %v5333
    %v6978 = vunpack.c.l.b16 %v5334
    %v6979 = vunpack.c.h.b16 %v5334
    %v6980 = vunpack.c.l.b16 %v5335
    %v6981 = vunpack.c.h.b16 %v5335
    %v6982 = vunpack.c.l.b16 %v5336
    %v6983 = vunpack.c.h.b16 %v5336
    %v6984 = vunpack.c.l.b16 %v5337
    %v6985 = vunpack.c.h.b16 %v5337
    %v6986 = vunpack.c.l.b16 %v5338
    %v6987 = vunpack.c.h.b16 %v5338
    %v6988 = vunpack.c.l.b16 %v5339
    %v6989 = vunpack.c.h.b16 %v5339
    %v6990 = vunpack.c.l.b16 %v5340
    %v6991 = vunpack.c.h.b16 %v5340
    %v6992 = vunpack.c.l.b16 %v5341
    %v6993 = vunpack.c.h.b16 %v5341
    %v6994 = vunpack.c.l.b16 %v5342
    %v6995 = vunpack.c.h.b16 %v5342
    %v6996 = vunpack.c.l.b16 %v5343
    %v6997 = vunpack.c.h.b16 %v5343
    %v6998 = vunpack.c.l.b16 %v5344
    %v6999 = vunpack.c.h.b16 %v5344
    %v7000 = vunpack.c.l.b16 %v5345
    %v7001 = vunpack.c.h.b16 %v5345
    %v7002 = vunpack.c.l.b16 %v5346
    %v7003 = vunpack.c.h.b16 %v5346
    %v7004 = vunpack.c.l.b16 %v5347
    %v7005 = vunpack.c.h.b16 %v5347
    %v7006 = vunpack.c.l.b16 %v5348
    %v7007 = vunpack.c.h.b16 %v5348
    %v7008 = vunpack.c.l.b16 %v5349
    %v7009 = vunpack.c.h.b16 %v5349
    %v7010 = vunpack.c.l.b16 %v5350
    %v7011 = vunpack.c.h.b16 %v5350
    %v7012 = vunpack.c.l.b16 %v5351
    %v7013 = vunpack.c.h.b16 %v5351
    %v7014 = vunpack.c.l.b16 %v5352
    %v7015 = vunpack.c.h.b16 %v5352
    %v7016 = vunpack.c.l.b16 %v5353
    %v7017 = vunpack.c.h.b16 %v5353
    %v7018 = vunpack.c.l.b16 %v5354
    %v7019 = vunpack.c.h.b16 %v5354
    %v7020 = vunpack.c.l.b16 %v5355
    %v7021 = vunpack.c.h.b16 %v5355
    %v7022 = vunpack.c.l.b16 %v5356
    %v7023 = vunpack.c.h.b16 %v5356
    %v7024 = vunpack.c.l.b16 %v5357
    %v7025 = vunpack.c.h.b16 %v5357
    %v7026 = vunpack.c.l.b16 %v5358
    %v7027 = vunpack.c.h.b16 %v5358
    %v7028 = vunpack.c.l.b16 %v5359
    %v7029 = vunpack.c.h.b16 %v5359
    %v7030 = vunpack.c.l.b16 %v5360
    %v7031 = vunpack.c.h.b16 %v5360
    %v7032 = vunpack.c.l.b16 %v5361
    %v7033 = vunpack.c.h.b16 %v5361
    %v7034 = vunpack.c.l.b16 %v5362
    %v7035 = vunpack.c.h.b16 %v5362
    %v7036 = vunpack.c.l.b16 %v5363
    %v7037 = vunpack.c.h.b16 %v5363
    %v7038 = vunpack.c.l.b16 %v5364
    %v7039 = vunpack.c.h.b16 %v5364
    %v7040 = vunpack.c.l.b16 %v5365
    %v7041 = vunpack.c.h.b16 %v5365
    %v7042 = vunpack.c.l.b16 %v5366
    %v7043 = vunpack.c.h.b16 %v5366
    %v7044 = vunpack.c.l.b16 %v5367
    %v7045 = vunpack.c.h.b16 %v5367
    %v7046 = vunpack.c.l.b16 %v5368
    %v7047 = vunpack.c.h.b16 %v5368
    %v7048 = vunpack.c.l.b16 %v5369
    %v7049 = vunpack.c.h.b16 %v5369
    %v7050 = vunpack.c.l.b16 %v5370
    %v7051 = vunpack.c.h.b16 %v5370
    %v7052 = vunpack.c.l.b16 %v5371
    %v7053 = vunpack.c.h.b16 %v5371
    %v7054 = vunpack.c.l.b16 %v5372
    %v7055 = vunpack.c.h.b16 %v5372
    %v7056 = vunpack.c.l.b16 %v5373
    %v7057 = vunpack.c.h.b16 %v5373
    %v7058 = vunpack.c.l.b16 %v5374
    %v7059 = vunpack.c.h.b16 %v5374
    %v7060 = vunpack.c.l.b16 %v5375
    %v7061 = vunpack.c.h.b16 %v5375
    %v7062 = vunpack.c.l.b16 %v5376
    %v7063 = vunpack.c.h.b16 %v5376
    %v7064 = vunpack.c.l.b16 %v5377
    %v7065 = vunpack.c.h.b16 %v5377
    %v7066 = vunpack.c.l.b16 %v5378
    %v7067 = vunpack.c.h.b16 %v5378
    %v7068 = vunpack.c.l.b16 %v5379
    %v7069 = vunpack.c.h.b16 %v5379
    %v7070 = vunpack.c.l.b16 %v5380
    %v7071 = vunpack.c.h.b16 %v5380
    %v7072 = vunpack.c.l.b16 %v5381
    %v7073 = vunpack.c.h.b16 %v5381
    %v7074 = vunpack.c.l.b16 %v5382
    %v7075 = vunpack.c.h.b16 %v5382
    %v7076 = vunpack.c.l.b16 %v5383
    %v7077 = vunpack.c.h.b16 %v5383
    %v7078 = vunpack.c.l.b16 %v5384
    %v7079 = vunpack.c.h.b16 %v5384
    %v7080 = vunpack.c.l.b16 %v5385
    %v7081 = vunpack.c.h.b16 %v5385
    %v7082 = vunpack.c.l.b16 %v5386
    %v7083 = vunpack.c.h.b16 %v5386
    %v7084 = vunpack.c.l.b16 %v5387
    %v7085 = vunpack.c.h.b16 %v5387
    %v7086 = vunpack.c.l.b16 %v5388
    %v7087 = vunpack.c.h.b16 %v5388
    %v7088 = vunpack.c.l.b16 %v5389
    %v7089 = vunpack.c.h.b16 %v5389
    %v7090 = vunpack.c.l.b16 %v5390
    %v7091 = vunpack.c.h.b16 %v5390
    %v7092 = vunpack.c.l.b16 %v5391
    %v7093 = vunpack.c.h.b16 %v5391
    %v7094 = vunpack.c.l.b16 %v5392
    %v7095 = vunpack.c.h.b16 %v5392
    %v7096 = vunpack.c.l.b16 %v5393
    %v7097 = vunpack.c.h.b16 %v5393
    %v7098 = vunpack.c.l.b16 %v5394
    %v7099 = vunpack.c.h.b16 %v5394
    %v7100 = vunpack.c.l.b16 %v5395
    %v7101 = vunpack.c.h.b16 %v5395
    %v7102 = vunpack.c.l.b16 %v5396
    %v7103 = vunpack.c.h.b16 %v5396
    %v7104 = vunpack.c.l.b16 %v5397
    %v7105 = vunpack.c.h.b16 %v5397
    %v7106 = vunpack.c.l.b16 %v5398
    %v7107 = vunpack.c.h.b16 %v5398
    %v7108 = vunpack.c.l.b16 %v5399
    %v7109 = vunpack.c.h.b16 %v5399
    %v7110 = vunpack.c.l.b16 %v5400
    %v7111 = vunpack.c.h.b16 %v5400
    %v7112 = vunpack.c.l.b16 %v5401
    %v7113 = vunpack.c.h.b16 %v5401
    %v7114 = vunpack.c.l.b16 %v5402
    %v7115 = vunpack.c.h.b16 %v5402
    %v7116 = vunpack.c.l.b16 %v5403
    %v7117 = vunpack.c.h.b16 %v5403
    %v7118 = vunpack.c.l.b16 %v5404
    %v7119 = vunpack.c.h.b16 %v5404
    %v7120 = vunpack.c.l.b16 %v5405
    %v7121 = vunpack.c.h.b16 %v5405
    %v7122 = vunpack.c.l.b16 %v5406
    %v7123 = vunpack.c.h.b16 %v5406
    %v7124 = vunpack.c.l.b16 %v5407
    %v7125 = vunpack.c.h.b16 %v5407
    %v7126 = vunpack.c.l.b16 %v5408
    %v7127 = vunpack.c.h.b16 %v5408
    %v7128 = vunpack.c.l.b16 %v5409
    %v7129 = vunpack.c.h.b16 %v5409
    %v7130 = vunpack.c.l.b16 %v5410
    %v7131 = vunpack.c.h.b16 %v5410
    %v7132 = vunpack.c.l.b16 %v5411
    %v7133 = vunpack.c.h.b16 %v5411
    %v7134 = vunpack.c.l.b16 %v5412
    %v7135 = vunpack.c.h.b16 %v5412
    %v7136 = vunpack.c.l.b16 %v5413
    %v7137 = vunpack.c.h.b16 %v5413
    %v7138 = vunpack.c.l.b16 %v5414
    %v7139 = vunpack.c.h.b16 %v5414
    %v7140 = vunpack.c.l.b16 %v5415
    %v7141 = vunpack.c.h.b16 %v5415
    %v7142 = vunpack.c.l.b16 %v5416
    %v7143 = vunpack.c.h.b16 %v5416
    %v7144 = vunpack.c.l.b16 %v5417
    %v7145 = vunpack.c.h.b16 %v5417
    %v7146 = vunpack.c.l.b16 %v5418
    %v7147 = vunpack.c.h.b16 %v5418
    %v7148 = vunpack.c.l.b16 %v5419
    %v7149 = vunpack.c.h.b16 %v5419
    %v7150 = vunpack.c.l.b16 %v5420
    %v7151 = vunpack.c.h.b16 %v5420
    %v7152 = vunpack.c.l.b16 %v5421
    %v7153 = vunpack.c.h.b16 %v5421
    %v7154 = vunpack.c.l.b16 %v5422
    %v7155 = vunpack.c.h.b16 %v5422
    %v7156 = vunpack.c.l.b16 %v5423
    %v7157 = vunpack.c.h.b16 %v5423
    %v7158 = vunpack.c.l.b16 %v5424
    %v7159 = vunpack.c.h.b16 %v5424
    %v7160 = vunpack.c.l.b16 %v5425
    %v7161 = vunpack.c.h.b16 %v5425
    %v7162 = vunpack.c.l.b16 %v5426
    %v7163 = vunpack.c.h.b16 %v5426
    %v7164 = vunpack.c.l.b16 %v5427
    %v7165 = vunpack.c.h.b16 %v5427
    %v7166 = vunpack.c.l.b16 %v5428
    %v7167 = vunpack.c.h.b16 %v5428
    %v7168 = vunpack.c.l.b16 %v5429
    %v7169 = vunpack.c.h.b16 %v5429
    %v7170 = vunpack.c.l.b16 %v5430
    %v7171 = vunpack.c.h.b16 %v5430
    %v7172 = vunpack.c.l.b16 %v5431
    %v7173 = vunpack.c.h.b16 %v5431
    %v7174 = vunpack.c.l.b16 %v5432
    %v7175 = vunpack.c.h.b16 %v5432
    %v7176 = vunpack.c.l.b16 %v5433
    %v7177 = vunpack.c.h.b16 %v5433
    %v7178 = vunpack.c.l.b16 %v5434
    %v7179 = vunpack.c.h.b16 %v5434
    %v7180 = vunpack.c.l.b16 %v5435
    %v7181 = vunpack.c.h.b16 %v5435
    %v7182 = vunpack.c.l.b16 %v5436
    %v7183 = vunpack.c.h.b16 %v5436
    %v7184 = vunpack.c.l.b16 %v5437
    %v7185 = vunpack.c.h.b16 %v5437
    %v7186 = vunpack.c.l.b16 %v5438
    %v7187 = vunpack.c.h.b16 %v5438
    %v7188 = vunpack.c.l.b16 %v5439
    %v7189 = vunpack.c.h.b16 %v5439
    %v7190 = vunpack.c.l.b16 %v5440
    %v7191 = vunpack.c.h.b16 %v5440
    %v7192 = vunpack.c.l.b16 %v5441
    %v7193 = vunpack.c.h.b16 %v5441
    %v7194 = vunpack.c.l.b16 %v5442
    %v7195 = vunpack.c.h.b16 %v5442
    %v7196 = vunpack.c.l.b16 %v5443
    %v7197 = vunpack.c.h.b16 %v5443
    %v7198 = vunpack.c.l.b16 %v5444
    %v7199 = vunpack.c.h.b16 %v5444
    %v7200 = vunpack.c.l.b16 %v5445
    %v7201 = vunpack.c.h.b16 %v5445
    %v7202 = vunpack.c.l.b16 %v5446
    %v7203 = vunpack.c.h.b16 %v5446
    %v7204 = vunpack.c.l.b16 %v5447
    %v7205 = vunpack.c.h.b16 %v5447
    %v7206 = vunpack.c.l.b16 %v5448
    %v7207 = vunpack.c.h.b16 %v5448
    %v7208 = vunpack.c.l.b16 %v5449
    %v7209 = vunpack.c.h.b16 %v5449
    %v7210 = vunpack.c.l.b16 %v5450
    %v7211 = vunpack.c.h.b16 %v5450
    %v7212 = vunpack.c.l.b16 %v5451
    %v7213 = vunpack.c.h.b16 %v5451
    %v7214 = vunpack.c.l.b16 %v5452
    %v7215 = vunpack.c.h.b16 %v5452
    %v7216 = vunpack.c.l.b16 %v5453
    %v7217 = vunpack.c.h.b16 %v5453
    %v7218 = vunpack.c.l.b16 %v5454
    %v7219 = vunpack.c.h.b16 %v5454
    %v7220 = vunpack.c.l.b16 %v5455
    %v7221 = vunpack.c.h.b16 %v5455
    %v7222 = vunpack.c.l.b16 %v5456
    %v7223 = vunpack.c.h.b16 %v5456
    %v7224 = vunpack.c.l.b16 %v5457
    %v7225 = vunpack.c.h.b16 %v5457
    %v7226 = vunpack.c.l.b16 %v5458
    %v7227 = vunpack.c.h.b16 %v5458
    %v7228 = vunpack.c.l.b16 %v5459
    %v7229 = vunpack.c.h.b16 %v5459
    %v7230 = vunpack.c.l.b16 %v5460
    %v7231 = vunpack.c.h.b16 %v5460
    %v7232 = vunpack.c.l.b16 %v5461
    %v7233 = vunpack.c.h.b16 %v5461
    %v7234 = vunpack.c.l.b16 %v5462
    %v7235 = vunpack.c.h.b16 %v5462
    %v7236 = vunpack.c.l.b16 %v5463
    %v7237 = vunpack.c.h.b16 %v5463
    %v7238 = vunpack.c.l.b16 %v5464
    %v7239 = vunpack.c.h.b16 %v5464
    %v7240 = vunpack.c.l.b16 %v5465
    %v7241 = vunpack.c.h.b16 %v5465
    %v7242 = vunpack.c.l.b16 %v5466
    %v7243 = vunpack.c.h.b16 %v5466
    %v7244 = vunpack.c.l.b16 %v5467
    %v7245 = vunpack.c.h.b16 %v5467
    %v7246 = vunpack.c.l.b16 %v5468
    %v7247 = vunpack.c.h.b16 %v5468
    %v7248 = vunpack.c.l.b16 %v5469
    %v7249 = vunpack.c.h.b16 %v5469
    %v7250 = vunpack.c.l.b16 %v5470
    %v7251 = vunpack.c.h.b16 %v5470
    %v7252 = vunpack.c.l.b16 %v5471
    %v7253 = vunpack.c.h.b16 %v5471
    %v7254 = vunpack.c.l.b16 %v5472
    %v7255 = vunpack.c.h.b16 %v5472
    %v7256 = vunpack.c.l.b16 %v5473
    %v7257 = vunpack.c.h.b16 %v5473
    %v7258 = vunpack.c.l.b16 %v5474
    %v7259 = vunpack.c.h.b16 %v5474
    %v7260 = vunpack.c.l.b16 %v5475
    %v7261 = vunpack.c.h.b16 %v5475
    %v7262 = vunpack.c.l.b16 %v5476
    %v7263 = vunpack.c.h.b16 %v5476
    %v7264 = vunpack.c.l.b16 %v5477
    %v7265 = vunpack.c.h.b16 %v5477
    %v7266 = vunpack.c.l.b16 %v5478
    %v7267 = vunpack.c.h.b16 %v5478
    %v7268 = vunpack.c.l.b16 %v5479
    %v7269 = vunpack.c.h.b16 %v5479
    %v7270 = vunpack.c.l.b16 %v5480
    %v7271 = vunpack.c.h.b16 %v5480
    %v7272 = vunpack.c.l.b16 %v5481
    %v7273 = vunpack.c.h.b16 %v5481
    %v7274 = vunpack.c.l.b16 %v5482
    %v7275 = vunpack.c.h.b16 %v5482
    %v7276 = vunpack.c.l.b16 %v5483
    %v7277 = vunpack.c.h.b16 %v5483
    %v7278 = vunpack.c.l.b16 %v5484
    %v7279 = vunpack.c.h.b16 %v5484
    %v7280 = vunpack.c.l.b16 %v5485
    %v7281 = vunpack.c.h.b16 %v5485
    %v7282 = vunpack.c.l.b16 %v5486
    %v7283 = vunpack.c.h.b16 %v5486
    %v7284 = vunpack.c.l.b16 %v5487
    %v7285 = vunpack.c.h.b16 %v5487
    %v7286 = vunpack.c.l.b16 %v5488
    %v7287 = vunpack.c.h.b16 %v5488
    %v7288 = vunpack.c.l.b16 %v5489
    %v7289 = vunpack.c.h.b16 %v5489
    %v7290 = vunpack.c.l.b16 %v5490
    %v7291 = vunpack.c.h.b16 %v5490
    %v7292 = vunpack.c.l.b16 %v5491
    %v7293 = vunpack.c.h.b16 %v5491
    %v7294 = vunpack.c.l.b16 %v5492
    %v7295 = vunpack.c.h.b16 %v5492
    %v7296 = vunpack.c.l.b16 %v5493
    %v7297 = vunpack.c.h.b16 %v5493
    %v7298 = vunpack.c.l.b16 %v5494
    %v7299 = vunpack.c.h.b16 %v5494
    %v7300 = vunpack.c.l.b16 %v5495
    %v7301 = vunpack.c.h.b16 %v5495
    %v7302 = vunpack.c.l.b16 %v5496
    %v7303 = vunpack.c.h.b16 %v5496
    %v7304 = vunpack.c.l.b16 %v5497
    %v7305 = vunpack.c.h.b16 %v5497
    %v7306 = vunpack.c.l.b16 %v5498
    %v7307 = vunpack.c.h.b16 %v5498
    %v7308 = vunpack.c.l.b16 %v5499
    %v7309 = vunpack.c.h.b16 %v5499
    %v7310 = vunpack.c.l.b16 %v5500
    %v7311 = vunpack.c.h.b16 %v5500
    %v7312 = vunpack.c.l.b16 %v5501
    %v7313 = vunpack.c.h.b16 %v5501
    %v7314 = vunpack.c.l.b16 %v5502
    %v7315 = vunpack.c.h.b16 %v5502
    %v7316 = vunpack.c.l.b16 %v5503
    %v7317 = vunpack.c.h.b16 %v5503
    %v7318 = vunpack.c.l.b16 %v5504
    %v7319 = vunpack.c.h.b16 %v5504
    %v7320 = vunpack.c.l.b16 %v5505
    %v7321 = vunpack.c.h.b16 %v5505
    %v7322 = vunpack.c.l.b16 %v5506
    %v7323 = vunpack.c.h.b16 %v5506
    %v7324 = vunpack.c.l.b16 %v5507
    %v7325 = vunpack.c.h.b16 %v5507
    %v7326 = vunpack.c.l.b16 %v5508
    %v7327 = vunpack.c.h.b16 %v5508
    %v7328 = vunpack.c.l.b16 %v5509
    %v7329 = vunpack.c.h.b16 %v5509
    %v7330 = vunpack.c.l.b16 %v5510
    %v7331 = vunpack.c.h.b16 %v5510
    %v7332 = vunpack.c.l.b16 %v5511
    %v7333 = vunpack.c.h.b16 %v5511
    %v7334 = vunpack.c.l.b16 %v5512
    %v7335 = vunpack.c.h.b16 %v5512
    %v7336 = vunpack.c.l.b16 %v5513
    %v7337 = vunpack.c.h.b16 %v5513
    %v7338 = vunpack.c.l.b16 %v5514
    %v7339 = vunpack.c.h.b16 %v5514
    %v7340 = vunpack.c.l.b16 %v5515
    %v7341 = vunpack.c.h.b16 %v5515
    %v7342 = vunpack.c.l.b16 %v5516
    %v7343 = vunpack.c.h.b16 %v5516
    %v7344 = vunpack.c.l.b16 %v5517
    %v7345 = vunpack.c.h.b16 %v5517
    %v7346 = vunpack.c.l.b16 %v5518
    %v7347 = vunpack.c.h.b16 %v5518
    %v7348 = vunpack.c.l.b16 %v5519
    %v7349 = vunpack.c.h.b16 %v5519
    %v7350 = vunpack.c.l.b16 %v5520
    %v7351 = vunpack.c.h.b16 %v5520
    %v7352 = vunpack.c.l.b16 %v5521
    %v7353 = vunpack.c.h.b16 %v5521
    %v7354 = vunpack.c.l.b16 %v5522
    %v7355 = vunpack.c.h.b16 %v5522
    %v7356 = vunpack.c.l.b16 %v5523
    %v7357 = vunpack.c.h.b16 %v5523
    %v7358 = vunpack.c.l.b16 %v5524
    %v7359 = vunpack.c.h.b16 %v5524
    %v7360 = vunpack.c.l.b16 %v5525
    %v7361 = vunpack.c.h.b16 %v5525
    %v7362 = vunpack.c.l.b16 %v5526
    %v7363 = vunpack.c.h.b16 %v5526
    %v7364 = vunpack.c.l.b16 %v5527
    %v7365 = vunpack.c.h.b16 %v5527
    %v7366 = vunpack.c.l.b16 %v5528
    %v7367 = vunpack.c.h.b16 %v5528
    %v7368 = vunpack.c.l.b16 %v5529
    %v7369 = vunpack.c.h.b16 %v5529
    %v7370 = vunpack.c.l.b16 %v5530
    %v7371 = vunpack.c.h.b16 %v5530
    %v7372 = vunpack.c.l.b16 %v5531
    %v7373 = vunpack.c.h.b16 %v5531
    %v7374 = vunpack.c.l.b16 %v5532
    %v7375 = vunpack.c.h.b16 %v5532
    %v7376 = vunpack.c.l.b16 %v5533
    %v7377 = vunpack.c.h.b16 %v5533
    %v7378 = vunpack.c.l.b16 %v5534
    %v7379 = vunpack.c.h.b16 %v5534
    %v7380 = vunpack.c.l.b16 %v5535
    %v7381 = vunpack.c.h.b16 %v5535
    %v7382 = vunpack.c.l.b16 %v5536
    %v7383 = vunpack.c.h.b16 %v5536
    %v7384 = vunpack.c.l.b16 %v5537
    %v7385 = vunpack.c.h.b16 %v5537
    %v7386 = vunpack.c.l.b16 %v5538
    %v7387 = vunpack.c.h.b16 %v5538
    %v7388 = vunpack.c.l.b16 %v5539
    %v7389 = vunpack.c.h.b16 %v5539
    %v7390 = vunpack.c.l.b16 %v5540
    %v7391 = vunpack.c.h.b16 %v5540
    %v7392 = vunpack.c.l.b16 %v5541
    %v7393 = vunpack.c.h.b16 %v5541
    %v7394 = vunpack.c.l.b16 %v5542
    %v7395 = vunpack.c.h.b16 %v5542
    %v7396 = vunpack.c.l.b16 %v5543
    %v7397 = vunpack.c.h.b16 %v5543
    %v7398 = vunpack.c.l.b16 %v5544
    %v7399 = vunpack.c.h.b16 %v5544
    %v7400 = vunpack.c.l.b16 %v5545
    %v7401 = vunpack.c.h.b16 %v5545
    %v7402 = vunpack.c.l.b16 %v5546
    %v7403 = vunpack.c.h.b16 %v5546
    %v7404 = vunpack.c.l.b16 %v5547
    %v7405 = vunpack.c.h.b16 %v5547
    %v7406 = vunpack.c.l.b16 %v5548
    %v7407 = vunpack.c.h.b16 %v5548
    %v7408 = vunpack.c.l.b16 %v5549
    %v7409 = vunpack.c.h.b16 %v5549
    %v7410 = vunpack.c.l.b16 %v5550
    %v7411 = vunpack.c.h.b16 %v5550
    %v7412 = vunpack.c.l.b16 %v5551
    %v7413 = vunpack.c.h.b16 %v5551
    %v7414 = vunpack.c.l.b16 %v5552
    %v7415 = vunpack.c.h.b16 %v5552
    %v7416 = vunpack.c.l.b16 %v5553
    %v7417 = vunpack.c.h.b16 %v5553
    %v7418 = vunpack.c.l.b16 %v5554
    %v7419 = vunpack.c.h.b16 %v5554
    %v7420 = vunpack.c.l.b16 %v5555
    %v7421 = vunpack.c.h.b16 %v5555
    %v7422 = vunpack.c.l.b16 %v5556
    %v7423 = vunpack.c.h.b16 %v5556
    %v7424 = vunpack.c.l.b16 %v5557
    %v7425 = vunpack.c.h.b16 %v5557
    %v7426 = vunpack.c.l.b16 %v5558
    %v7427 = vunpack.c.h.b16 %v5558
    %v7428 = vunpack.c.l.b16 %v5559
    %v7429 = vunpack.c.h.b16 %v5559
    %v7430 = vunpack.c.l.b16 %v5560
    %v7431 = vunpack.c.h.b16 %v5560
    %v7432 = vunpack.c.l.b16 %v5561
    %v7433 = vunpack.c.h.b16 %v5561
    %v7434 = vunpack.c.l.b16 %v5562
    %v7435 = vunpack.c.h.b16 %v5562
    %v7436 = vunpack.c.l.b16 %v5563
    %v7437 = vunpack.c.h.b16 %v5563
    %v7438 = vunpack.c.l.b16 %v5564
    %v7439 = vunpack.c.h.b16 %v5564
    %v7440 = vunpack.c.l.b16 %v5565
    %v7441 = vunpack.c.h.b16 %v5565
    %v7442 = vunpack.c.l.b16 %v5566
    %v7443 = vunpack.c.h.b16 %v5566
    %v7444 = vunpack.c.l.b16 %v5567
    %v7445 = vunpack.c.h.b16 %v5567
    %v7446 = vunpack.c.l.b16 %v5568
    %v7447 = vunpack.c.h.b16 %v5568
    %v7448 = vunpack.c.l.b16 %v5569
    %v7449 = vunpack.c.h.b16 %v5569
    %v7450 = vunpack.c.l.b16 %v5570
    %v7451 = vunpack.c.h.b16 %v5570
    %v7452 = vunpack.c.l.b16 %v5571
    %v7453 = vunpack.c.h.b16 %v5571
    %v7454 = vunpack.c.l.b16 %v5572
    %v7455 = vunpack.c.h.b16 %v5572
    %v7456 = vunpack.c.l.b16 %v5573
    %v7457 = vunpack.c.h.b16 %v5573
    %v7458 = vunpack.c.l.b16 %v5574
    %v7459 = vunpack.c.h.b16 %v5574
    %v7460 = vunpack.c.l.b16 %v5575
    %v7461 = vunpack.c.h.b16 %v5575
    %v7462 = vunpack.c.l.b16 %v5576
    %v7463 = vunpack.c.h.b16 %v5576
    %v7464 = vunpack.c.l.b16 %v5577
    %v7465 = vunpack.c.h.b16 %v5577
    %v7466 = vunpack.c.l.b16 %v5578
    %v7467 = vunpack.c.h.b16 %v5578
    %v7468 = vunpack.c.l.b16 %v5579
    %v7469 = vunpack.c.h.b16 %v5579
    %v7470 = vunpack.c.l.b16 %v5580
    %v7471 = vunpack.c.h.b16 %v5580
    %v7472 = vunpack.c.l.b16 %v5581
    %v7473 = vunpack.c.h.b16 %v5581
    %v7474 = vunpack.c.l.b16 %v5582
    %v7475 = vunpack.c.h.b16 %v5582
    %v7476 = vunpack.c.l.b16 %v5583
    %v7477 = vunpack.c.h.b16 %v5583
    %v7478 = vunpack.c.l.b16 %v5584
    %v7479 = vunpack.c.h.b16 %v5584
    %v7480 = vunpack.c.l.b16 %v5585
    %v7481 = vunpack.c.h.b16 %v5585
    %v7482 = vunpack.c.l.b16 %v5586
    %v7483 = vunpack.c.h.b16 %v5586
    %v7484 = vunpack.c.l.b16 %v5587
    %v7485 = vunpack.c.h.b16 %v5587
    %v7486 = vunpack.c.l.b16 %v5588
    %v7487 = vunpack.c.h.b16 %v5588
    %v7488 = vunpack.c.l.b16 %v5589
    %v7489 = vunpack.c.h.b16 %v5589
    %v7490 = vunpack.c.l.b16 %v5590
    %v7491 = vunpack.c.h.b16 %v5590
    %v7492 = vunpack.c.l.b16 %v5591
    %v7493 = vunpack.c.h.b16 %v5591
    %v7494 = vunpack.c.l.b16 %v5592
    %v7495 = vunpack.c.h.b16 %v5592
    %v7496 = vunpack.c.l.b16 %v5593
    %v7497 = vunpack.c.h.b16 %v5593
    %v7498 = vunpack.c.l.b16 %v5594
    %v7499 = vunpack.c.h.b16 %v5594
    %v7500 = vunpack.c.l.b16 %v5595
    %v7501 = vunpack.c.h.b16 %v5595
    %v7502 = vunpack.c.l.b16 %v5596
    %v7503 = vunpack.c.h.b16 %v5596
    %v7504 = vunpack.c.l.b16 %v5597
    %v7505 = vunpack.c.h.b16 %v5597
    %v7506 = vunpack.c.l.b16 %v5598
    %v7507 = vunpack.c.h.b16 %v5598
    %v7508 = vunpack.c.l.b16 %v5599
    %v7509 = vunpack.c.h.b16 %v5599
    %v7510 = vunpack.c.l.b16 %v5600
    %v7511 = vunpack.c.h.b16 %v5600
    %v7512 = vunpack.c.l.b16 %v5601
    %v7513 = vunpack.c.h.b16 %v5601
    %v7514 = vunpack.c.l.b16 %v5602
    %v7515 = vunpack.c.h.b16 %v5602
    %v7516 = vunpack.c.l.b16 %v5603
    %v7517 = vunpack.c.h.b16 %v5603
    %v7518 = vunpack.c.l.b16 %v5604
    %v7519 = vunpack.c.h.b16 %v5604
    %v7520 = vunpack.c.l.b16 %v5605
    %v7521 = vunpack.c.h.b16 %v5605
    %v7522 = vunpack.c.l.b16 %v5606
    %v7523 = vunpack.c.h.b16 %v5606
    %v7524 = vunpack.c.l.b16 %v5607
    %v7525 = vunpack.c.h.b16 %v5607
    %v7526 = vunpack.c.l.b16 %v5608
    %v7527 = vunpack.c.h.b16 %v5608
    %v7528 = vunpack.c.l.b16 %v5609
    %v7529 = vunpack.c.h.b16 %v5609
    %v7530 = vunpack.c.l.b16 %v5610
    %v7531 = vunpack.c.h.b16 %v5610
    %v7532 = vunpack.c.l.b16 %v5611
    %v7533 = vunpack.c.h.b16 %v5611
    %v7534 = vunpack.c.l.b16 %v5612
    %v7535 = vunpack.c.h.b16 %v5612
    %v7536 = vunpack.c.l.b16 %v5613
    %v7537 = vunpack.c.h.b16 %v5613
    %v7538 = vunpack.c.l.b16 %v5614
    %v7539 = vunpack.c.h.b16 %v5614
    %v7540 = vunpack.c.l.b16 %v5615
    %v7541 = vunpack.c.h.b16 %v5615
    %v7542 = vunpack.c.l.b16 %v5616
    %v7543 = vunpack.c.h.b16 %v5616
    %v7544 = vunpack.c.l.b16 %v5617
    %v7545 = vunpack.c.h.b16 %v5617
    %v7546 = vunpack.c.l.b16 %v5618
    %v7547 = vunpack.c.h.b16 %v5618
    %v7548 = vunpack.c.l.b16 %v5619
    %v7549 = vunpack.c.h.b16 %v5619
    %v7550 = vunpack.c.l.b16 %v5620
    %v7551 = vunpack.c.h.b16 %v5620
    %v7552 = vunpack.c.l.b16 %v5621
    %v7553 = vunpack.c.h.b16 %v5621
    %v7554 = vunpack.c.l.b16 %v5622
    %v7555 = vunpack.c.h.b16 %v5622
    %v7556 = vunpack.c.l.b16 %v5623
    %v7557 = vunpack.c.h.b16 %v5623
    %v7558 = vunpack.c.l.b16 %v5624
    %v7559 = vunpack.c.h.b16 %v5624
    %v7560 = vunpack.c.l.b16 %v5625
    %v7561 = vunpack.c.h.b16 %v5625
    %v7562 = vunpack.c.l.b16 %v5626
    %v7563 = vunpack.c.h.b16 %v5626
    %v7564 = vunpack.c.l.b16 %v5627
    %v7565 = vunpack.c.h.b16 %v5627
    %v7566 = vunpack.c.l.b16 %v5628
    %v7567 = vunpack.c.h.b16 %v5628
    %v7568 = vunpack.c.l.b16 %v5629
    %v7569 = vunpack.c.h.b16 %v5629
    %v7570 = vunpack.c.l.b16 %v5630
    %v7571 = vunpack.c.h.b16 %v5630
    %v7572 = vunpack.c.l.b16 %v5631
    %v7573 = vunpack.c.h.b16 %v5631
    %v7574 = vunpack.c.l.b16 %v5632
    %v7575 = vunpack.c.h.b16 %v5632
    %v7576 = vunpack.c.l.b16 %v5633
    %v7577 = vunpack.c.h.b16 %v5633
    %v7578 = vunpack.c.l.b16 %v5634
    %v7579 = vunpack.c.h.b16 %v5634
    %v7580 = vunpack.c.l.b16 %v5635
    %v7581 = vunpack.c.h.b16 %v5635
    %v7582 = vunpack.c.l.b16 %v5636
    %v7583 = vunpack.c.h.b16 %v5636
    %v7584 = vunpack.c.l.b16 %v5637
    %v7585 = vunpack.c.h.b16 %v5637
    %v7586 = vunpack.c.l.b16 %v5638
    %v7587 = vunpack.c.h.b16 %v5638
    %v7588 = vunpack.c.l.b16 %v5639
    %v7589 = vunpack.c.h.b16 %v5639
    %v7590 = vunpack.c.l.b16 %v5640
    %v7591 = vunpack.c.h.b16 %v5640
    %v7592 = vunpack.c.l.b16 %v5641
    %v7593 = vunpack.c.h.b16 %v5641
    %v7594 = vunpack.c.l.b16 %v5642
    %v7595 = vunpack.c.h.b16 %v5642
    %v7596 = vunpack.c.l.b16 %v5643
    %v7597 = vunpack.c.h.b16 %v5643
    %v7598 = vunpack.c.l.b16 %v5644
    %v7599 = vunpack.c.h.b16 %v5644
    %v7600 = vunpack.c.l.b16 %v5645
    %v7601 = vunpack.c.h.b16 %v5645
    %v7602 = vunpack.c.l.b16 %v5646
    %v7603 = vunpack.c.h.b16 %v5646
    %v7604 = vunpack.c.l.b16 %v5647
    %v7605 = vunpack.c.h.b16 %v5647
    %v7606 = vunpack.c.l.b16 %v5648
    %v7607 = vunpack.c.h.b16 %v5648
    %v7608 = vunpack.c.l.b16 %v5649
    %v7609 = vunpack.c.h.b16 %v5649
    %v7610 = vunpack.c.l.b16 %v5650
    %v7611 = vunpack.c.h.b16 %v5650
    %v7612 = vunpack.c.l.b16 %v5651
    %v7613 = vunpack.c.h.b16 %v5651
    %v7614 = vunpack.c.l.b16 %v5652
    %v7615 = vunpack.c.h.b16 %v5652
    %v7616 = vunpack.c.l.b16 %v5653
    %v7617 = vunpack.c.h.b16 %v5653
    %v7618 = vunpack.c.l.b16 %v5654
    %v7619 = vunpack.c.h.b16 %v5654
    %v7620 = vunpack.c.l.b16 %v5655
    %v7621 = vunpack.c.h.b16 %v5655
    %v7622 = vunpack.c.l.b16 %v5656
    %v7623 = vunpack.c.h.b16 %v5656
    %v7624 = vunpack.c.l.b16 %v5657
    %v7625 = vunpack.c.h.b16 %v5657
    %v7626 = vunpack.c.l.b16 %v5658
    %v7627 = vunpack.c.h.b16 %v5658
    %v7628 = vunpack.c.l.b16 %v5659
    %v7629 = vunpack.c.h.b16 %v5659
    %v7630 = vunpack.c.l.b16 %v5660
    %v7631 = vunpack.c.h.b16 %v5660
    %v7632 = vunpack.c.l.b16 %v5661
    %v7633 = vunpack.c.h.b16 %v5661
    %v7634 = vunpack.c.l.b16 %v5662
    %v7635 = vunpack.c.h.b16 %v5662
    %v7636 = vunpack.c.l.b16 %v5663
    %v7637 = vunpack.c.h.b16 %v5663
    %v7638 = vunpack.c.l.b16 %v5664
    %v7639 = vunpack.c.h.b16 %v5664
    %v7640 = vunpack.c.l.b16 %v5665
    %v7641 = vunpack.c.h.b16 %v5665
    %v7642 = vunpack.c.l.b16 %v5666
    %v7643 = vunpack.c.h.b16 %v5666
    %v7644 = vunpack.c.l.b16 %v5667
    %v7645 = vunpack.c.h.b16 %v5667
    %v7646 = vunpack.c.l.b16 %v5668
    %v7647 = vunpack.c.h.b16 %v5668
    %v7648 = vunpack.c.l.b16 %v5669
    %v7649 = vunpack.c.h.b16 %v5669
    %v7650 = vunpack.c.l.b16 %v5670
    %v7651 = vunpack.c.h.b16 %v5670
    %v7652 = vunpack.c.l.b16 %v5671
    %v7653 = vunpack.c.h.b16 %v5671
    %v7654 = vunpack.c.l.b16 %v5672
    %v7655 = vunpack.c.h.b16 %v5672
    %v7656 = vunpack.c.l.b16 %v5673
    %v7657 = vunpack.c.h.b16 %v5673
    %v7658 = vunpack.c.l.b16 %v5674
    %v7659 = vunpack.c.h.b16 %v5674
    %v7660 = vunpack.c.l.b16 %v5675
    %v7661 = vunpack.c.h.b16 %v5675
    %v7662 = vunpack.c.l.b16 %v5676
    %v7663 = vunpack.c.h.b16 %v5676
    %v7664 = vunpack.c.l.b16 %v5677
    %v7665 = vunpack.c.h.b16 %v5677
    %v7666 = vunpack.c.l.b16 %v5678
    %v7667 = vunpack.c.h.b16 %v5678
    %v7668 = vunpack.c.l.b16 %v5679
    %v7669 = vunpack.c.h.b16 %v5679
    %v7670 = vunpack.c.l.b16 %v5680
    %v7671 = vunpack.c.h.b16 %v5680
    %v7672 = vunpack.c.l.b16 %v5681
    %v7673 = vunpack.c.h.b16 %v5681
    %v7674 = vunpack.c.l.b16 %v5682
    %v7675 = vunpack.c.h.b16 %v5682
    %v7676 = vunpack.c.l.b16 %v5683
    %v7677 = vunpack.c.h.b16 %v5683
    %v7678 = vunpack.c.l.b16 %v5684
    %v7679 = vunpack.c.h.b16 %v5684
    %v7680 = vunpack.c.l.b16 %v5685
    %v7681 = vunpack.c.h.b16 %v5685
    %v7682 = vunpack.c.l.b16 %v5686
    %v7683 = vunpack.c.h.b16 %v5686
    %v7684 = vunpack.c.l.b16 %v5687
    %v7685 = vunpack.c.h.b16 %v5687
    %v7686 = vunpack.c.l.b16 %v5688
    %v7687 = vunpack.c.h.b16 %v5688
    %v7688 = vunpack.c.l.b16 %v5689
    %v7689 = vunpack.c.h.b16 %v5689
    %v7690 = vunpack.c.l.b16 %v5690
    %v7691 = vunpack.c.h.b16 %v5690
    %v7692 = vunpack.c.l.b16 %v5691
    %v7693 = vunpack.c.h.b16 %v5691
    %v7694 = vunpack.c.l.b16 %v5692
    %v7695 = vunpack.c.h.b16 %v5692
    %v7696 = vunpack.c.l.b16 %v5693
    %v7697 = vunpack.c.h.b16 %v5693
    %v7698 = vunpack.c.l.b16 %v5694
    %v7699 = vunpack.c.h.b16 %v5694
    %v7700 = vunpack.c.l.b16 %v5695
    %v7701 = vunpack.c.h.b16 %v5695
    %v7702 = vunpack.c.l.b16 %v5696
    %v7703 = vunpack.c.h.b16 %v5696
    %v7704 = vunpack.c.l.b16 %v5697
    %v7705 = vunpack.c.h.b16 %v5697
    %v7706 = vunpack.c.l.b16 %v5698
    %v7707 = vunpack.c.h.b16 %v5698
    %v7708 = vunpack.c.l.b16 %v5699
    %v7709 = vunpack.c.h.b16 %v5699
    %v7710 = vunpack.c.l.b16 %v5700
    %v7711 = vunpack.c.h.b16 %v5700
    %v7712 = vunpack.c.l.b16 %v5701
    %v7713 = vunpack.c.h.b16 %v5701
    %v7714 = vunpack.c.l.b16 %v5702
    %v7715 = vunpack.c.h.b16 %v5702
    %v7716 = vunpack.c.l.b16 %v5703
    %v7717 = vunpack.c.h.b16 %v5703
    %v7718 = vunpack.c.l.b16 %v5704
    %v7719 = vunpack.c.h.b16 %v5704
    %v7720 = vunpack.c.l.b16 %v5705
    %v7721 = vunpack.c.h.b16 %v5705
    %v7722 = vunpack.c.l.b16 %v5706
    %v7723 = vunpack.c.h.b16 %v5706
    %v7724 = vunpack.c.l.b16 %v5707
    %v7725 = vunpack.c.h.b16 %v5707
    %v7726 = vunpack.c.l.b16 %v5708
    %v7727 = vunpack.c.h.b16 %v5708
    %v7728 = vunpack.c.l.b16 %v5709
    %v7729 = vunpack.c.h.b16 %v5709
    %v7730 = vunpack.c.l.b16 %v5710
    %v7731 = vunpack.c.h.b16 %v5710
    %v7732 = vunpack.c.l.b16 %v5711
    %v7733 = vunpack.c.h.b16 %v5711
    %v7734 = vunpack.c.l.b16 %v5712
    %v7735 = vunpack.c.h.b16 %v5712
    %v7736 = vunpack.c.l.b16 %v5713
    %v7737 = vunpack.c.h.b16 %v5713
    %v7738 = vunpack.c.l.b16 %v5714
    %v7739 = vunpack.c.h.b16 %v5714
    %v7740 = vunpack.c.l.b16 %v5715
    %v7741 = vunpack.c.h.b16 %v5715
    %v7742 = vunpack.c.l.b16 %v5716
    %v7743 = vunpack.c.h.b16 %v5716
    %v7744 = vunpack.c.l.b16 %v5717
    %v7745 = vunpack.c.h.b16 %v5717
    %v7746 = vunpack.c.l.b16 %v5718
    %v7747 = vunpack.c.h.b16 %v5718
    %v7748 = vunpack.c.l.b16 %v5719
    %v7749 = vunpack.c.h.b16 %v5719
    %v7750 = vunpack.c.l.b16 %v5720
    %v7751 = vunpack.c.h.b16 %v5720
    %v7752 = vunpack.c.l.b16 %v5721
    %v7753 = vunpack.c.h.b16 %v5721
    %v7754 = vunpack.c.l.b16 %v5722
    %v7755 = vunpack.c.h.b16 %v5722
    %v7756 = vunpack.c.l.b16 %v5723
    %v7757 = vunpack.c.h.b16 %v5723
    %v7758 = vunpack.c.l.b16 %v5724
    %v7759 = vunpack.c.h.b16 %v5724
    %v7760 = vunpack.c.l.b16 %v5725
    %v7761 = vunpack.c.h.b16 %v5725
    %v7762 = vunpack.c.l.b16 %v5726
    %v7763 = vunpack.c.h.b16 %v5726
    %v7764 = vunpack.c.l.b16 %v5727
    %v7765 = vunpack.c.h.b16 %v5727
    %v7766 = vunpack.c.l.b16 %v5728
    %v7767 = vunpack.c.h.b16 %v5728
    %v7768 = vunpack.c.l.b16 %v5729
    %v7769 = vunpack.c.h.b16 %v5729
    %v7770 = vunpack.c.l.b16 %v5730
    %v7771 = vunpack.c.h.b16 %v5730
    %v7772 = vunpack.c.l.b16 %v5731
    %v7773 = vunpack.c.h.b16 %v5731
    %v7774 = vunpack.c.l.b16 %v5732
    %v7775 = vunpack.c.h.b16 %v5732
    %v7776 = vunpack.c.l.b16 %v5733
    %v7777 = vunpack.c.h.b16 %v5733
    %v7778 = vunpack.c.l.b16 %v5734
    %v7779 = vunpack.c.h.b16 %v5734
    %v7780 = vunpack.c.l.b16 %v5735
    %v7781 = vunpack.c.h.b16 %v5735
    %v7782 = vunpack.c.l.b16 %v5736
    %v7783 = vunpack.c.h.b16 %v5736
    %v7784 = vunpack.c.l.b16 %v5737
    %v7785 = vunpack.c.h.b16 %v5737
    %v7786 = vunpack.c.l.b16 %v5738
    %v7787 = vunpack.c.h.b16 %v5738
    %v7788 = vunpack.c.l.b16 %v5739
    %v7789 = vunpack.c.h.b16 %v5739
    %v7790 = vunpack.c.l.b16 %v5740
    %v7791 = vunpack.c.h.b16 %v5740
    %v7792 = vunpack.c.l.b16 %v5741
    %v7793 = vunpack.c.h.b16 %v5741
    %v7794 = vunpack.c.l.b16 %v5742
    %v7795 = vunpack.c.h.b16 %v5742
    %v7796 = vunpack.c.l.b16 %v5743
    %v7797 = vunpack.c.h.b16 %v5743
    %v7798 = vunpack.c.l.b16 %v5744
    %v7799 = vunpack.c.h.b16 %v5744
    %v7800 = vunpack.c.l.b16 %v5745
    %v7801 = vunpack.c.h.b16 %v5745
    %v7802 = vunpack.c.l.b16 %v5746
    %v7803 = vunpack.c.h.b16 %v5746
    %v7804 = vunpack.c.l.b16 %v5747
    %v7805 = vunpack.c.h.b16 %v5747
    %v7806 = vunpack.c.l.b16 %v5748
    %v7807 = vunpack.c.h.b16 %v5748
    %v7808 = vunpack.c.l.b16 %v5749
    %v7809 = vunpack.c.h.b16 %v5749
    %v7810 = vunpack.c.l.b16 %v5750
    %v7811 = vunpack.c.h.b16 %v5750
    %v7812 = vunpack.c.l.b16 %v5751
    %v7813 = vunpack.c.h.b16 %v5751
    %v7814 = vunpack.c.l.b16 %v5752
    %v7815 = vunpack.c.h.b16 %v5752
    %v7816 = vunpack.c.l.b16 %v5753
    %v7817 = vunpack.c.h.b16 %v5753
    %v7818 = vunpack.c.l.b16 %v5754
    %v7819 = vunpack.c.h.b16 %v5754
    %v7820 = vunpack.c.l.b16 %v5755
    %v7821 = vunpack.c.h.b16 %v5755
    %v7822 = vunpack.c.l.b16 %v5756
    %v7823 = vunpack.c.h.b16 %v5756
    %v7824 = vunpack.c.l.b16 %v5757
    %v7825 = vunpack.c.h.b16 %v5757
    %v7826 = vunpack.c.l.b16 %v5758
    %v7827 = vunpack.c.h.b16 %v5758
    %v7828 = vunpack.c.l.b16 %v5759
    %v7829 = vunpack.c.h.b16 %v5759
    %v7830 = vunpack.c.l.b16 %v5760
    %v7831 = vunpack.c.h.b16 %v5760
    %v7832 = vunpack.c.l.b16 %v5761
    %v7833 = vunpack.c.h.b16 %v5761
    %v7834 = vunpack.c.l.b16 %v5762
    %v7835 = vunpack.c.h.b16 %v5762
    %v7836 = vunpack.c.l.b16 %v5763
    %v7837 = vunpack.c.h.b16 %v5763
    %v7838 = vunpack.c.l.b16 %v5764
    %v7839 = vunpack.c.h.b16 %v5764
    %v7840 = vunpack.c.l.b16 %v5765
    %v7841 = vunpack.c.h.b16 %v5765
    %v7842 = vunpack.c.l.b16 %v5766
    %v7843 = vunpack.c.h.b16 %v5766
    %v7844 = vunpack.c.l.b16 %v5767
    %v7845 = vunpack.c.h.b16 %v5767
    %v7846 = vunpack.c.l.b16 %v5768
    %v7847 = vunpack.c.h.b16 %v5768
    %v7848 = vunpack.c.l.b16 %v5769
    %v7849 = vunpack.c.h.b16 %v5769
    %v7850 = vunpack.c.l.b16 %v5770
    %v7851 = vunpack.c.h.b16 %v5770
    %v7852 = vunpack.c.l.b16 %v5771
    %v7853 = vunpack.c.h.b16 %v5771
    %v7854 = vunpack.c.l.b16 %v5772
    %v7855 = vunpack.c.h.b16 %v5772
    %v7856 = vunpack.c.l.b16 %v5773
    %v7857 = vunpack.c.h.b16 %v5773
    %v7858 = vunpack.c.l.b16 %v5774
    %v7859 = vunpack.c.h.b16 %v5774
    %v7860 = vunpack.c.l.b16 %v5775
    %v7861 = vunpack.c.h.b16 %v5775
    %v7862 = vunpack.c.l.b16 %v5776
    %v7863 = vunpack.c.h.b16 %v5776
    %v7864 = vunpack.c.l.b16 %v5777
    %v7865 = vunpack.c.h.b16 %v5777
    %v7866 = vunpack.c.l.b16 %v5778
    %v7867 = vunpack.c.h.b16 %v5778
    %v7868 = vunpack.c.l.b16 %v5779
    %v7869 = vunpack.c.h.b16 %v5779
    %v7870 = vunpack.c.l.b16 %v5780
    %v7871 = vunpack.c.h.b16 %v5780
    %v7872 = vunpack.c.l.b16 %v5781
    %v7873 = vunpack.c.h.b16 %v5781
    %v7874 = vunpack.c.l.b16 %v5782
    %v7875 = vunpack.c.h.b16 %v5782
    %v7876 = vunpack.c.l.b16 %v5783
    %v7877 = vunpack.c.h.b16 %v5783
    %v7878 = vunpack.c.l.b16 %v5784
    %v7879 = vunpack.c.h.b16 %v5784
    %v7880 = vunpack.c.l.b16 %v5785
    %v7881 = vunpack.c.h.b16 %v5785
    %v7882 = vunpack.c.l.b16 %v5786
    %v7883 = vunpack.c.h.b16 %v5786
    %v7884 = vunpack.c.l.b16 %v5787
    %v7885 = vunpack.c.h.b16 %v5787
    %v7886 = vunpack.c.l.b16 %v5788
    %v7887 = vunpack.c.h.b16 %v5788
    %v7888 = vunpack.c.l.b16 %v5789
    %v7889 = vunpack.c.h.b16 %v5789
    %v7890 = vunpack.c.l.b16 %v5790
    %v7891 = vunpack.c.h.b16 %v5790
    %v7892 = vunpack.c.l.b16 %v5791
    %v7893 = vunpack.c.h.b16 %v5791
    %v7894 = vunpack.c.l.b16 %v5792
    %v7895 = vunpack.c.h.b16 %v5792
    %v7896 = vunpack.c.l.b16 %v5793
    %v7897 = vunpack.c.h.b16 %v5793
    %v7898 = vunpack.c.l.b16 %v5794
    %v7899 = vunpack.c.h.b16 %v5794
    %v7900 = vunpack.c.l.b16 %v5795
    %v7901 = vunpack.c.h.b16 %v5795
    %v7902 = vunpack.c.l.b16 %v5796
    %v7903 = vunpack.c.h.b16 %v5796
    %v7904 = vunpack.c.l.b16 %v5797
    %v7905 = vunpack.c.h.b16 %v5797
    %v7906 = vunpack.c.l.b16 %v5798
    %v7907 = vunpack.c.h.b16 %v5798
    %v7908 = vunpack.c.l.b16 %v5799
    %v7909 = vunpack.c.h.b16 %v5799
    %v7910 = vunpack.c.l.b16 %v5800
    %v7911 = vunpack.c.h.b16 %v5800
    %v7912 = vunpack.c.l.b16 %v5801
    %v7913 = vunpack.c.h.b16 %v5801
    %v7914 = vunpack.c.l.b16 %v5802
    %v7915 = vunpack.c.h.b16 %v5802
    %v7916 = vunpack.c.l.b16 %v5803
    %v7917 = vunpack.c.h.b16 %v5803
    %v7918 = vunpack.c.l.b16 %v5804
    %v7919 = vunpack.c.h.b16 %v5804
    %v7920 = vunpack.c.l.b16 %v5805
    %v7921 = vunpack.c.h.b16 %v5805
    %v7922 = vunpack.c.l.b16 %v5806
    %v7923 = vunpack.c.h.b16 %v5806
    %v7924 = vunpack.c.l.b16 %v5807
    %v7925 = vunpack.c.h.b16 %v5807
    %v7926 = vunpack.c.l.b16 %v5808
    %v7927 = vunpack.c.h.b16 %v5808
    %v7928 = vunpack.c.l.b16 %v5809
    %v7929 = vunpack.c.h.b16 %v5809
    %v7930 = vunpack.c.l.b16 %v5810
    %v7931 = vunpack.c.h.b16 %v5810
    %v7932 = vunpack.c.l.b16 %v5811
    %v7933 = vunpack.c.h.b16 %v5811
    %v7934 = vunpack.c.l.b16 %v5812
    %v7935 = vunpack.c.h.b16 %v5812
    %v7936 = vunpack.c.l.b16 %v5813
    %v7937 = vunpack.c.h.b16 %v5813
    %v7938 = vunpack.c.l.b16 %v5814
    %v7939 = vunpack.c.h.b16 %v5814
    %v7940 = vunpack.c.l.b16 %v5815
    %v7941 = vunpack.c.h.b16 %v5815
    %v7942 = vunpack.c.l.b16 %v5816
    %v7943 = vunpack.c.h.b16 %v5816
    %v7944 = vunpack.c.l.b16 %v5817
    %v7945 = vunpack.c.h.b16 %v5817
    %v7946 = vunpack.c.l.b16 %v5818
    %v7947 = vunpack.c.h.b16 %v5818
    %v7948 = vunpack.c.l.b16 %v5819
    %v7949 = vunpack.c.h.b16 %v5819
    %v7950 = vunpack.c.l.b16 %v5820
    %v7951 = vunpack.c.h.b16 %v5820
    %v7952 = vunpack.c.l.b16 %v5821
    %v7953 = vunpack.c.h.b16 %v5821
    %v7954 = vunpack.c.l.b16 %v5822
    %v7955 = vunpack.c.h.b16 %v5822
    %v7956 = vunpack.c.l.b16 %v5823
    %v7957 = vunpack.c.h.b16 %v5823
    %v7958 = vunpack.c.l.b16 %v5824
    %v7959 = vunpack.c.h.b16 %v5824
    %v7960 = vunpack.c.l.b16 %v5825
    %v7961 = vunpack.c.h.b16 %v5825
    %v7962 = vunpack.c.l.b16 %v5826
    %v7963 = vunpack.c.h.b16 %v5826
    %v7964 = vunpack.c.l.b16 %v5827
    %v7965 = vunpack.c.h.b16 %v5827
    %v7966 = vunpack.c.l.b16 %v5828
    %v7967 = vunpack.c.h.b16 %v5828
    %v7968 = vunpack.c.l.b16 %v5829
    %v7969 = vunpack.c.h.b16 %v5829
    %v7970 = vunpack.c.l.b16 %v5830
    %v7971 = vunpack.c.h.b16 %v5830
    %v7972 = vunpack.c.l.b16 %v5831
    %v7973 = vunpack.c.h.b16 %v5831
    %v7974 = vunpack.c.l.b16 %v5832
    %v7975 = vunpack.c.h.b16 %v5832
    %v7976 = vunpack.c.l.b16 %v5833
    %v7977 = vunpack.c.h.b16 %v5833
    %v7978 = vunpack.c.l.b16 %v5834
    %v7979 = vunpack.c.h.b16 %v5834
    %v7980 = vunpack.c.l.b16 %v5835
    %v7981 = vunpack.c.h.b16 %v5835
    %v7982 = vunpack.c.l.b16 %v5836
    %v7983 = vunpack.c.h.b16 %v5836
    %v7984 = vunpack.c.l.b16 %v5837
    %v7985 = vunpack.c.h.b16 %v5837
    %v7986 = vunpack.c.l.b16 %v5838
    %v7987 = vunpack.c.h.b16 %v5838
    %v7988 = vunpack.c.l.b16 %v5839
    %v7989 = vunpack.c.h.b16 %v5839
    %v7990 = vunpack.c.l.b16 %v5840
    %v7991 = vunpack.c.h.b16 %v5840
    %v7992 = vunpack.c.l.b16 %v5841
    %v7993 = vunpack.c.h.b16 %v5841
    %v7994 = vunpack.c.l.b16 %v5842
    %v7995 = vunpack.c.h.b16 %v5842
    %v7996 = vunpack.c.l.b16 %v5843
    %v7997 = vunpack.c.h.b16 %v5843
    %v7998 = vunpack.c.l.b16 %v5844
    %v7999 = vunpack.c.h.b16 %v5844
    %v8000 = vunpack.c.l.b16 %v5845
    %v8001 = vunpack.c.h.b16 %v5845
    %v8002 = vunpack.c.l.b16 %v5846
    %v8003 = vunpack.c.h.b16 %v5846
    %v8004 = vunpack.c.l.b16 %v5847
    %v8005 = vunpack.c.h.b16 %v5847
    %v8006 = vunpack.c.l.b16 %v5848
    %v8007 = vunpack.c.h.b16 %v5848
    %v8008 = vunpack.c.l.b16 %v5849
    %v8009 = vunpack.c.h.b16 %v5849
    %v8010 = vunpack.c.l.b16 %v5850
    %v8011 = vunpack.c.h.b16 %v5850
    %v8012 = vunpack.c.l.b16 %v5851
    %v8013 = vunpack.c.h.b16 %v5851
    %v8014 = vunpack.c.l.b16 %v5852
    %v8015 = vunpack.c.h.b16 %v5852
    %v8016 = vunpack.c.l.b16 %v5853
    %v8017 = vunpack.c.h.b16 %v5853
    %v8018 = vunpack.c.l.b16 %v5854
    %v8019 = vunpack.c.h.b16 %v5854
    %v8020 = vunpack.c.l.b16 %v5855
    %v8021 = vunpack.c.h.b16 %v5855
    %v8022 = vunpack.c.l.b16 %v5856
    %v8023 = vunpack.c.h.b16 %v5856
    %v8024 = vunpack.c.l.b16 %v5857
    %v8025 = vunpack.c.h.b16 %v5857
    %v8026 = vunpack.c.l.b16 %v5858
    %v8027 = vunpack.c.h.b16 %v5858
    %v8028 = vunpack.c.l.b16 %v5859
    %v8029 = vunpack.c.h.b16 %v5859
    %v8030 = vunpack.c.l.b16 %v5860
    %v8031 = vunpack.c.h.b16 %v5860
    %v8032 = vunpack.c.l.b16 %v5861
    %v8033 = vunpack.c.h.b16 %v5861
    %v8034 = vunpack.c.l.b16 %v5862
    %v8035 = vunpack.c.h.b16 %v5862
    %v8036 = vunpack.c.l.b16 %v5863
    %v8037 = vunpack.c.h.b16 %v5863
    %v8038 = vunpack.c.l.b16 %v5864
    %v8039 = vunpack.c.h.b16 %v5864
    %v8040 = vunpack.c.l.b16 %v5865
    %v8041 = vunpack.c.h.b16 %v5865
    %v8042 = vunpack.c.l.b16 %v5866
    %v8043 = vunpack.c.h.b16 %v5866
    %v8044 = vunpack.c.l.b16 %v5867
    %v8045 = vunpack.c.h.b16 %v5867
    %v8046 = vunpack.c.l.b16 %v5868
    %v8047 = vunpack.c.h.b16 %v5868
    %v8048 = vunpack.c.l.b16 %v5869
    %v8049 = vunpack.c.h.b16 %v5869
    %v8050 = vunpack.c.l.b16 %v5870
    %v8051 = vunpack.c.h.b16 %v5870
    %v8052 = vunpack.c.l.b16 %v5871
    %v8053 = vunpack.c.h.b16 %v5871
    %v8054 = vunpack.c.l.b16 %v5872
    %v8055 = vunpack.c.h.b16 %v5872
    %v8056 = vunpack.c.l.b16 %v5873
    %v8057 = vunpack.c.h.b16 %v5873
    %v8058 = vunpack.c.l.b16 %v5874
    %v8059 = vunpack.c.h.b16 %v5874
    %v8060 = vunpack.c.l.b16 %v5875
    %v8061 = vunpack.c.h.b16 %v5875
    %v8062 = vunpack.c.l.b16 %v5876
    %v8063 = vunpack.c.h.b16 %v5876
    %v8064 = vunpack.c.l.b16 %v5877
    %v8065 = vunpack.c.h.b16 %v5877
    %v8066 = vunpack.c.l.b16 %v5878
    %v8067 = vunpack.c.h.b16 %v5878
    %v8068 = vunpack.c.l.b16 %v5879
    %v8069 = vunpack.c.h.b16 %v5879
    %v8070 = vunpack.c.l.b16 %v5880
    %v8071 = vunpack.c.h.b16 %v5880
    %v8072 = vunpack.c.l.b16 %v5881
    %v8073 = vunpack.c.h.b16 %v5881
    %v8074 = vunpack.c.l.b16 %v5882
    %v8075 = vunpack.c.h.b16 %v5882
    %v8076 = vunpack.c.l.b16 %v5883
    %v8077 = vunpack.c.h.b16 %v5883
    %v8078 = vunpack.c.l.b16 %v5884
    %v8079 = vunpack.c.h.b16 %v5884
    %v8080 = vunpack.c.l.b16 %v5885
    %v8081 = vunpack.c.h.b16 %v5885
    %v8082 = vunpack.c.l.b16 %v5886
    %v8083 = vunpack.c.h.b16 %v5886
    %v8084 = vunpack.c.l.b16 %v5887
    %v8085 = vunpack.c.h.b16 %v5887
    %v8086 = vunpack.c.l.b16 %v5888
    %v8087 = vunpack.c.h.b16 %v5888
    %v8088 = vunpack.c.l.b16 %v5889
    %v8089 = vunpack.c.h.b16 %v5889
    %v8090 = vunpack.c.l.b16 %v5890
    %v8091 = vunpack.c.h.b16 %v5890
    %v8092 = vunpack.c.l.b16 %v5891
    %v8093 = vunpack.c.h.b16 %v5891
    %v8094 = vunpack.c.l.b16 %v5892
    %v8095 = vunpack.c.h.b16 %v5892
    %v8096 = vunpack.c.l.b16 %v5893
    %v8097 = vunpack.c.h.b16 %v5893
    %v8098 = vunpack.c.l.b16 %v5894
    %v8099 = vunpack.c.h.b16 %v5894
    %v8100 = vunpack.c.l.b16 %v5895
    %v8101 = vunpack.c.h.b16 %v5895
    %v8102 = vunpack.c.l.b16 %v5896
    %v8103 = vunpack.c.h.b16 %v5896
    %v8104 = vunpack.c.l.b16 %v5897
    %v8105 = vunpack.c.h.b16 %v5897
    %v8106 = vunpack.c.l.b16 %v5898
    %v8107 = vunpack.c.h.b16 %v5898
    %v8108 = vunpack.c.l.b16 %v5899
    %v8109 = vunpack.c.h.b16 %v5899
    %v8110 = vunpack.c.l.b16 %v5900
    %v8111 = vunpack.c.h.b16 %v5900
    %v8112 = vunpack.c.l.b16 %v5901
    %v8113 = vunpack.c.h.b16 %v5901
    %v8114 = vunpack.c.l.b16 %v5902
    %v8115 = vunpack.c.h.b16 %v5902
    %v8116 = vunpack.c.l.b16 %v5903
    %v8117 = vunpack.c.h.b16 %v5903
    %v8118 = vunpack.c.l.b16 %v5904
    %v8119 = vunpack.c.h.b16 %v5904
    %v8120 = vunpack.c.l.b16 %v5905
    %v8121 = vunpack.c.h.b16 %v5905
    %v8122 = vunpack.c.l.b16 %v5906
    %v8123 = vunpack.c.h.b16 %v5906
    %v8124 = vunpack.c.l.b16 %v5907
    %v8125 = vunpack.c.h.b16 %v5907
    %v8126 = vunpack.c.l.b16 %v5908
    %v8127 = vunpack.c.h.b16 %v5908
    %v8128 = vunpack.c.l.b16 %v5909
    %v8129 = vunpack.c.h.b16 %v5909
    %v8130 = vunpack.c.l.b16 %v5910
    %v8131 = vunpack.c.h.b16 %v5910
    %v8132 = vunpack.c.l.b16 %v5911
    %v8133 = vunpack.c.h.b16 %v5911
    %v8134 = vunpack.c.l.b16 %v5912
    %v8135 = vunpack.c.h.b16 %v5912
    %v8136 = vunpack.c.l.b16 %v5913
    %v8137 = vunpack.c.h.b16 %v5913
    %v8138 = vunpack.c.l.b16 %v5914
    %v8139 = vunpack.c.h.b16 %v5914
    %v8140 = vunpack.c.l.b16 %v5915
    %v8141 = vunpack.c.h.b16 %v5915
    %v8142 = vunpack.c.l.b16 %v5916
    %v8143 = vunpack.c.h.b16 %v5916
    %v8144 = vunpack.c.l.b16 %v5917
    %v8145 = vunpack.c.h.b16 %v5917
    %v8146 = vunpack.c.l.b16 %v5918
    %v8147 = vunpack.c.h.b16 %v5918
    %v8148 = vunpack.c.l.b16 %v5919
    %v8149 = vunpack.c.h.b16 %v5919
    %v8150 = vunpack.c.l.b16 %v5920
    %v8151 = vunpack.c.h.b16 %v5920
    %v8152 = vunpack.c.l.b16 %v5921
    %v8153 = vunpack.c.h.b16 %v5921
    %v8154 = vunpack.c.l.b16 %v5922
    %v8155 = vunpack.c.h.b16 %v5922
    %v8156 = vunpack.c.l.b16 %v5923
    %v8157 = vunpack.c.h.b16 %v5923
    %v8158 = vunpack.c.l.b16 %v5924
    %v8159 = vunpack.c.h.b16 %v5924
    %v8160 = vunpack.c.l.b16 %v5925
    %v8161 = vunpack.c.h.b16 %v5925
    %v8162 = vunpack.c.l.b16 %v5926
    %v8163 = vunpack.c.h.b16 %v5926
    %v8164 = vunpack.c.l.b16 %v5927
    %v8165 = vunpack.c.h.b16 %v5927
    %v8166 = vunpack.c.l.b16 %v5928
    %v8167 = vunpack.c.h.b16 %v5928
    %v8168 = vunpack.c.l.b16 %v5929
    %v8169 = vunpack.c.h.b16 %v5929
    %v8170 = vunpack.c.l.b16 %v5930
    %v8171 = vunpack.c.h.b16 %v5930
    %v8172 = vunpack.c.l.b16 %v5931
    %v8173 = vunpack.c.h.b16 %v5931
    %v8174 = vunpack.c.l.b16 %v5932
    %v8175 = vunpack.c.h.b16 %v5932
    %v8176 = vunpack.c.l.b16 %v5933
    %v8177 = vunpack.c.h.b16 %v5933
    %v8178 = vunpack.c.l.b16 %v5934
    %v8179 = vunpack.c.h.b16 %v5934
    %v8180 = vunpack.c.l.b16 %v5935
    %v8181 = vunpack.c.h.b16 %v5935
    %v8182 = vunpack.c.l.b16 %v5936
    %v8183 = vunpack.c.h.b16 %v5936
    %v8184 = vunpack.c.l.b16 %v5937
    %v8185 = vunpack.c.h.b16 %v5937
    %v8186 = vunpack.c.l.b16 %v5938
    %v8187 = vunpack.c.h.b16 %v5938
    %v8188 = vunpack.c.l.b16 %v5939
    %v8189 = vunpack.c.h.b16 %v5939
    %v8190 = vunpack.c.l.b16 %v5940
    %v8191 = vunpack.c.h.b16 %v5940
    %v8192 = vunpack.c.l.b16 %v5941
    %v8193 = vunpack.c.h.b16 %v5941
    %v8194 = vunpack.c.l.b16 %v5942
    %v8195 = vunpack.c.h.b16 %v5942
    %v8196 = vunpack.c.l.b16 %v5943
    %v8197 = vunpack.c.h.b16 %v5943
    %v8198 = vunpack.c.l.b16 %v5944
    %v8199 = vunpack.c.h.b16 %v5944
    %v8200 = vunpack.c.l.b16 %v5945
    %v8201 = vunpack.c.h.b16 %v5945
    %v8202 = vunpack.c.l.b16 %v5946
    %v8203 = vunpack.c.h.b16 %v5946
    %v8204 = vunpack.c.l.b16 %v5947
    %v8205 = vunpack.c.h.b16 %v5947
    %v8206 = vunpack.c.l.b16 %v5948
    %v8207 = vunpack.c.h.b16 %v5948
    %v8208 = vunpack.c.l.b16 %v5949
    %v8209 = vunpack.c.h.b16 %v5949
    %v8210 = vunpack.c.l.b16 %v5950
    %v8211 = vunpack.c.h.b16 %v5950
    %v8212 = vunpack.c.l.b16 %v5951
    %v8213 = vunpack.c.h.b16 %v5951
    %v8214 = vunpack.c.l.b16 %v5952
    %v8215 = vunpack.c.h.b16 %v5952
    %v8216 = vunpack.c.l.b16 %v5953
    %v8217 = vunpack.c.h.b16 %v5953
    %v8218 = vunpack.c.l.b16 %v5954
    %v8219 = vunpack.c.h.b16 %v5954
    %v8220 = vunpack.c.l.b16 %v5955
    %v8221 = vunpack.c.h.b16 %v5955
    %v8222 = vunpack.c.l.b16 %v5956
    %v8223 = vunpack.c.h.b16 %v5956
    %v8224 = vunpack.c.l.b16 %v5957
    %v8225 = vunpack.c.h.b16 %v5957
    %v8226 = vunpack.c.l.b16 %v5958
    %v8227 = vunpack.c.h.b16 %v5958
    %v8228 = vunpack.c.l.b16 %v5959
    %v8229 = vunpack.c.h.b16 %v5959
    %v8230 = vunpack.c.l.b16 %v5960
    %v8231 = vunpack.c.h.b16 %v5960
    %v8232 = vunpack.c.l.b16 %v5961
    %v8233 = vunpack.c.h.b16 %v5961
    %v8234 = vunpack.c.l.b16 %v5962
    %v8235 = vunpack.c.h.b16 %v5962
    %v8236 = vunpack.c.l.b16 %v5963
    %v8237 = vunpack.c.h.b16 %v5963
    %v8238 = vunpack.c.l.b16 %v5964
    %v8239 = vunpack.c.h.b16 %v5964
    %v8240 = vunpack.c.l.b16 %v5965
    %v8241 = vunpack.c.h.b16 %v5965
    %v8242 = vunpack.c.l.b16 %v5966
    %v8243 = vunpack.c.h.b16 %v5966
    %v8244 = vunpack.c.l.b16 %v5967
    %v8245 = vunpack.c.h.b16 %v5967
    %v8246 = vunpack.c.l.b16 %v5968
    %v8247 = vunpack.c.h.b16 %v5968
    %v8248 = vunpack.c.l.b16 %v5969
    %v8249 = vunpack.c.h.b16 %v5969
    %v8250 = vunpack.c.l.b16 %v5970
    %v8251 = vunpack.c.h.b16 %v5970
    %v8252 = vunpack.c.l.b16 %v5971
    %v8253 = vunpack.c.h.b16 %v5971
    %v8254 = vunpack.c.l.b16 %v5972
    %v8255 = vunpack.c.h.b16 %v5972
    %v8256 = vunpack.c.l.b16 %v5973
    %v8257 = vunpack.c.h.b16 %v5973
    %v8258 = vunpack.c.l.b16 %v5974
    %v8259 = vunpack.c.h.b16 %v5974
    %v8260 = vunpack.c.l.b16 %v5975
    %v8261 = vunpack.c.h.b16 %v5975
    %v8262 = vunpack.c.l.b16 %v5976
    %v8263 = vunpack.c.h.b16 %v5976
    %v8264 = vunpack.c.l.b16 %v5977
    %v8265 = vunpack.c.h.b16 %v5977
    %v8266 = vunpack.c.l.b16 %v5978
    %v8267 = vunpack.c.h.b16 %v5978
    %v8268 = vunpack.c.l.b16 %v5979
    %v8269 = vunpack.c.h.b16 %v5979
    %v8270 = vunpack.c.l.b16 %v5980
    %v8271 = vunpack.c.h.b16 %v5980
    %v8272 = vunpack.c.l.b16 %v5981
    %v8273 = vunpack.c.h.b16 %v5981
    %v8274 = vunpack.c.l.b16 %v5982
    %v8275 = vunpack.c.h.b16 %v5982
    %v8276 = vunpack.c.l.b16 %v5983
    %v8277 = vunpack.c.h.b16 %v5983
    %v8278 = vunpack.c.l.b16 %v5984
    %v8279 = vunpack.c.h.b16 %v5984
    %v8280 = vunpack.c.l.b16 %v5985
    %v8281 = vunpack.c.h.b16 %v5985
    %v8282 = vunpack.c.l.b16 %v5986
    %v8283 = vunpack.c.h.b16 %v5986
    %v8284 = vunpack.c.l.b16 %v5987
    %v8285 = vunpack.c.h.b16 %v5987
    %v8286 = vunpack.c.l.b16 %v5988
    %v8287 = vunpack.c.h.b16 %v5988
    %v8288 = vunpack.c.l.b16 %v5989
    %v8289 = vunpack.c.h.b16 %v5989
    %v8290 = vunpack.c.l.b16 %v5990
    %v8291 = vunpack.c.h.b16 %v5990
    %v8292 = vunpack.c.l.b16 %v5991
    %v8293 = vunpack.c.h.b16 %v5991
    %v8294 = vunpack.c.l.b16 %v5992
    %v8295 = vunpack.c.h.b16 %v5992
    %v8296 = vunpack.c.l.b16 %v5993
    %v8297 = vunpack.c.h.b16 %v5993
    %v8298 = vunpack.c.l.b16 %v5994
    %v8299 = vunpack.c.h.b16 %v5994
    %v8300 = vunpack.c.l.b16 %v5995
    %v8301 = vunpack.c.h.b16 %v5995
    %v8302 = vunpack.c.l.b16 %v5996
    %v8303 = vunpack.c.h.b16 %v5996
    %v8304 = vunpack.c.l.b16 %v5997
    %v8305 = vunpack.c.h.b16 %v5997
    %v8306 = vunpack.c.l.b16 %v5998
    %v8307 = vunpack.c.h.b16 %v5998
    %v8308 = vunpack.c.l.b16 %v5999
    %v8309 = vunpack.c.h.b16 %v5999
    %v8310 = vunpack.c.l.b16 %v6000
    %v8311 = vunpack.c.h.b16 %v6000
    %v8312 = vunpack.c.l.b16 %v6001
    %v8313 = vunpack.c.h.b16 %v6001
    %v8314 = vunpack.c.l.b16 %v6002
    %v8315 = vunpack.c.h.b16 %v6002
    %v8316 = vunpack.c.l.b16 %v6003
    %v8317 = vunpack.c.h.b16 %v6003
    %v8318 = vunpack.c.l.b16 %v6004
    %v8319 = vunpack.c.h.b16 %v6004
    %v8320 = vunpack.c.l.b16 %v6005
    %v8321 = vunpack.c.h.b16 %v6005
    %v8322 = vunpack.c.l.b16 %v6006
    %v8323 = vunpack.c.h.b16 %v6006
    %v8324 = vunpack.c.l.b16 %v6007
    %v8325 = vunpack.c.h.b16 %v6007
    %v8326 = vunpack.c.l.b16 %v6008
    %v8327 = vunpack.c.h.b16 %v6008
    %v8328 = vunpack.c.l.b16 %v6009
    %v8329 = vunpack.c.h.b16 %v6009
    %v8330 = vunpack.c.l.b16 %v6010
    %v8331 = vunpack.c.h.b16 %v6010
    %v8332 = vunpack.c.l.b16 %v6011
    %v8333 = vunpack.c.h.b16 %v6011
    %v8334 = vunpack.c.l.b16 %v6012
    %v8335 = vunpack.c.h.b16 %v6012
    %v8336 = vunpack.c.l.b16 %v6013
    %v8337 = vunpack.c.h.b16 %v6013
    %v8338 = vunpack.c.l.b16 %v6014
    %v8339 = vunpack.c.h.b16 %v6014
    %v8340 = vunpack.c.l.b16 %v6015
    %v8341 = vunpack.c.h.b16 %v6015
    %v8342 = vunpack.c.l.b16 %v6016
    %v8343 = vunpack.c.h.b16 %v6016
    %v8344 = vunpack.c.l.b16 %v6017
    %v8345 = vunpack.c.h.b16 %v6017
    %v8346 = vunpack.c.l.b16 %v6018
    %v8347 = vunpack.c.h.b16 %v6018
    %v8348 = vunpack.c.l.b16 %v6019
    %v8349 = vunpack.c.h.b16 %v6019
    %v8350 = vunpack.c.l.b16 %v6020
    %v8351 = vunpack.c.h.b16 %v6020
    %v8352 = vunpack.c.l.b16 %v6021
    %v8353 = vunpack.c.h.b16 %v6021
    %v8354 = vunpack.c.l.b16 %v6022
    %v8355 = vunpack.c.h.b16 %v6022
    %v8356 = vunpack.c.l.b16 %v6023
    %v8357 = vunpack.c.h.b16 %v6023
    %v8358 = vunpack.c.l.b16 %v6024
    %v8359 = vunpack.c.h.b16 %v6024
    %v8360 = vunpack.c.l.b16 %v6025
    %v8361 = vunpack.c.h.b16 %v6025
    %v8362 = vunpack.c.l.b16 %v6026
    %v8363 = vunpack.c.h.b16 %v6026
    %v8364 = vunpack.c.l.b16 %v6027
    %v8365 = vunpack.c.h.b16 %v6027
    %v8366 = vunpack.c.l.b16 %v6028
    %v8367 = vunpack.c.h.b16 %v6028
    %v8368 = vunpack.c.l.b16 %v6029
    %v8369 = vunpack.c.h.b16 %v6029
    %v8370 = vunpack.c.l.b16 %v6030
    %v8371 = vunpack.c.h.b16 %v6030
    %v8372 = vunpack.c.l.b16 %v6031
    %v8373 = vunpack.c.h.b16 %v6031
    %v8374 = vunpack.c.l.b16 %v6032
    %v8375 = vunpack.c.h.b16 %v6032
    %v8376 = vunpack.c.l.b16 %v6033
    %v8377 = vunpack.c.h.b16 %v6033
    %v8378 = vunpack.c.l.b16 %v6034
    %v8379 = vunpack.c.h.b16 %v6034
    %v8380 = vunpack.c.l.b16 %v6035
    %v8381 = vunpack.c.h.b16 %v6035
    %v8382 = vunpack.c.l.b16 %v6036
    %v8383 = vunpack.c.h.b16 %v6036
    %v8384 = vunpack.c.l.b16 %v6037
    %v8385 = vunpack.c.h.b16 %v6037
    %v8386 = vunpack.c.l.b16 %v6038
    %v8387 = vunpack.c.h.b16 %v6038
    %v8388 = vunpack.c.l.b16 %v6039
    %v8389 = vunpack.c.h.b16 %v6039
    %v8390 = vunpack.c.l.b16 %v6040
    %v8391 = vunpack.c.h.b16 %v6040
    %v8392 = vunpack.c.l.b16 %v6041
    %v8393 = vunpack.c.h.b16 %v6041
    %v8394 = vpack.c.b16 %v6830, %v6826
    %v8395 = vpack.c.b16 %v6831, %v6827
    %v8396 = vpack.c.b16 %v6832, %v6828
    %v8397 = vpack.c.b16 %v6833, %v6829
    %v8398 = vpack.c.b16 %v6838, %v6834
    %v8399 = vpack.c.b16 %v6839, %v6835
    %v8400 = vpack.c.b16 %v6840, %v6836
    %v8401 = vpack.c.b16 %v6841, %v6837
    %v8402 = vpack.c.b16 %v6846, %v6842
    %v8403 = vpack.c.b16 %v6847, %v6843
    %v8404 = vpack.c.b16 %v6848, %v6844
    %v8405 = vpack.c.b16 %v6849, %v6845
    %v8406 = vpack.c.b16 %v6854, %v6850
    %v8407 = vpack.c.b16 %v6855, %v6851
    %v8408 = vpack.c.b16 %v6856, %v6852
    %v8409 = vpack.c.b16 %v6857, %v6853
    %v8410 = vpack.c.b16 %v6862, %v6858
    %v8411 = vpack.c.b16 %v6863, %v6859
    %v8412 = vpack.c.b16 %v6864, %v6860
    %v8413 = vpack.c.b16 %v6865, %v6861
    %v8414 = vpack.c.b16 %v6870, %v6866
    %v8415 = vpack.c.b16 %v6871, %v6867
    %v8416 = vpack.c.b16 %v6872, %v6868
    %v8417 = vpack.c.b16 %v6873, %v6869
    %v8418 = vpack.c.b16 %v6878, %v6874
    %v8419 = vpack.c.b16 %v6879, %v6875
    %v8420 = vpack.c.b16 %v6880, %v6876
    %v8421 = vpack.c.b16 %v6881, %v6877
    %v8422 = vpack.c.b16 %v6886, %v6882
    %v8423 = vpack.c.b16 %v6887, %v6883
    %v8424 = vpack.c.b16 %v6888, %v6884
    %v8425 = vpack.c.b16 %v6889, %v6885
    %v8426 = vpack.c.b16 %v6894, %v6890
    %v8427 = vpack.c.b16 %v6895, %v6891
    %v8428 = vpack.c.b16 %v6896, %v6892
    %v8429 = vpack.c.b16 %v6897, %v6893
    %v8430 = vpack.c.b16 %v6902, %v6898
    %v8431 = vpack.c.b16 %v6903, %v6899
    %v8432 = vpack.c.b16 %v6904, %v6900
    %v8433 = vpack.c.b16 %v6905, %v6901
    %v8434 = vpack.c.b16 %v6910, %v6906
    %v8435 = vpack.c.b16 %v6911, %v6907
    %v8436 = vpack.c.b16 %v6912, %v6908
    %v8437 = vpack.c.b16 %v6913, %v6909
    %v8438 = vpack.c.b16 %v6918, %v6914
    %v8439 = vpack.c.b16 %v6919, %v6915
    %v8440 = vpack.c.b16 %v6920, %v6916
    %v8441 = vpack.c.b16 %v6921, %v6917
    %v8442 = vpack.c.b16 %v6926, %v6922
    %v8443 = vpack.c.b16 %v6927, %v6923
    %v8444 = vpack.c.b16 %v6928, %v6924
    %v8445 = vpack.c.b16 %v6929, %v6925
    %v8446 = vpack.c.b16 %v6934, %v6930
    %v8447 = vpack.c.b16 %v6935, %v6931
    %v8448 = vpack.c.b16 %v6936, %v6932
    %v8449 = vpack.c.b16 %v6937, %v6933
    %v8450 = vpack.c.b16 %v6942, %v6938
    %v8451 = vpack.c.b16 %v6943, %v6939
    %v8452 = vpack.c.b16 %v6944, %v6940
    %v8453 = vpack.c.b16 %v6945, %v6941
    %v8454 = vpack.c.b16 %v6950, %v6946
    %v8455 = vpack.c.b16 %v6951, %v6947
    %v8456 = vpack.c.b16 %v6952, %v6948
    %v8457 = vpack.c.b16 %v6953, %v6949
    %v8458 = vpack.c.b16 %v6958, %v6954
    %v8459 = vpack.c.b16 %v6959, %v6955
    %v8460 = vpack.c.b16 %v6960, %v6956
    %v8461 = vpack.c.b16 %v6961, %v6957
    %v8462 = vpack.c.b16 %v6966, %v6962
    %v8463 = vpack.c.b16 %v6967, %v6963
    %v8464 = vpack.c.b16 %v6968, %v6964
    %v8465 = vpack.c.b16 %v6969, %v6965
    %v8466 = vpack.c.b16 %v6974, %v6970
    %v8467 = vpack.c.b16 %v6975, %v6971
    %v8468 = vpack.c.b16 %v6976, %v6972
    %v8469 = vpack.c.b16 %v6977, %v6973
    %v8470 = vpack.c.b16 %v6982, %v6978
    %v8471 = vpack.c.b16 %v6983, %v6979
    %v8472 = vpack.c.b16 %v6984, %v6980
    %v8473 = vpack.c.b16 %v6985, %v6981
    %v8474 = vpack.c.b16 %v6990, %v6986
    %v8475 = vpack.c.b16 %v6991, %v6987
    %v8476 = vpack.c.b16 %v6992, %v6988
    %v8477 = vpack.c.b16 %v6993, %v6989
    %v8478 = vpack.c.b16 %v6998, %v6994
    %v8479 = vpack.c.b16 %v6999, %v6995
    %v8480 = vpack.c.b16 %v7000, %v6996
    %v8481 = vpack.c.b16 %v7001, %v6997
    %v8482 = vpack.c.b16 %v7006, %v7002
    %v8483 = vpack.c.b16 %v7007, %v7003
    %v8484 = vpack.c.b16 %v7008, %v7004
    %v8485 = vpack.c.b16 %v7009, %v7005
    %v8486 = vpack.c.b16 %v7014, %v7010
    %v8487 = vpack.c.b16 %v7015, %v7011
    %v8488 = vpack.c.b16 %v7016, %v7012
    %v8489 = vpack.c.b16 %v7017, %v7013
    %v8490 = vpack.c.b16 %v7022, %v7018
    %v8491 = vpack.c.b16 %v7023, %v7019
    %v8492 = vpack.c.b16 %v7024, %v7020
    %v8493 = vpack.c.b16 %v7025, %v7021
    %v8494 = vpack.c.b16 %v7030, %v7026
    %v8495 = vpack.c.b16 %v7031, %v7027
    %v8496 = vpack.c.b16 %v7032, %v7028
    %v8497 = vpack.c.b16 %v7033, %v7029
    %v8498 = vpack.c.b16 %v7038, %v7034
    %v8499 = vpack.c.b16 %v7039, %v7035
    %v8500 = vpack.c.b16 %v7040, %v7036
    %v8501 = vpack.c.b16 %v7041, %v7037
    %v8502 = vpack.c.b16 %v7046, %v7042
    %v8503 = vpack.c.b16 %v7047, %v7043
    %v8504 = vpack.c.b16 %v7048, %v7044
    %v8505 = vpack.c.b16 %v7049, %v7045
    %v8506 = vpack.c.b16 %v7054, %v7050
    %v8507 = vpack.c.b16 %v7055, %v7051
    %v8508 = vpack.c.b16 %v7056, %v7052
    %v8509 = vpack.c.b16 %v7057, %v7053
    %v8510 = vpack.c.b16 %v7062, %v7058
    %v8511 = vpack.c.b16 %v7063, %v7059
    %v8512 = vpack.c.b16 %v7064, %v7060
    %v8513 = vpack.c.b16 %v7065, %v7061
    %v8514 = vpack.c.b16 %v7070, %v7066
    %v8515 = vpack.c.b16 %v7071, %v7067
    %v8516 = vpack.c.b16 %v7072, %v7068
    %v8517 = vpack.c.b16 %v7073, %v7069
    %v8518 = vpack.c.b16 %v7078, %v7074
    %v8519 = vpack.c.b16 %v7079, %v7075
    %v8520 = vpack.c.b16 %v7080, %v7076
    %v8521 = vpack.c.b16 %v7081, %v7077
    %v8522 = vpack.c.b16 %v7086, %v7082
    %v8523 = vpack.c.b16 %v7087, %v7083
    %v8524 = vpack.c.b16 %v7088, %v7084
    %v8525 = vpack.c.b16 %v7089, %v7085
    %v8526 = vpack.c.b16 %v7094, %v7090
    %v8527 = vpack.c.b16 %v7095, %v7091
    %v8528 = vpack.c.b16 %v7096, %v7092
    %v8529 = vpack.c.b16 %v7097, %v7093
    %v8530 = vpack.c.b16 %v7102, %v7098
    %v8531 = vpack.c.b16 %v7103, %v7099
    %v8532 = vpack.c.b16 %v7104, %v7100
    %v8533 = vpack.c.b16 %v7105, %v7101
    %v8534 = vpack.c.b16 %v7110, %v7106
    %v8535 = vpack.c.b16 %v7111, %v7107
    %v8536 = vpack.c.b16 %v7112, %v7108
    %v8537 = vpack.c.b16 %v7113, %v7109
    %v8538 = vpack.c.b16 %v7118, %v7114
    %v8539 = vpack.c.b16 %v7119, %v7115
    %v8540 = vpack.c.b16 %v7120, %v7116
    %v8541 = vpack.c.b16 %v7121, %v7117
    %v8542 = vpack.c.b16 %v7126, %v7122
    %v8543 = vpack.c.b16 %v7127, %v7123
    %v8544 = vpack.c.b16 %v7128, %v7124
    %v8545 = vpack.c.b16 %v7129, %v7125
    %v8546 = vpack.c.b16 %v7134, %v7130
    %v8547 = vpack.c.b16 %v7135, %v7131
    %v8548 = vpack.c.b16 %v7136, %v7132
    %v8549 = vpack.c.b16 %v7137, %v7133
    %v8550 = vpack.c.b16 %v7142, %v7138
    %v8551 = vpack.c.b16 %v7143, %v7139
    %v8552 = vpack.c.b16 %v7144, %v7140
    %v8553 = vpack.c.b16 %v7145, %v7141
    %v8554 = vpack.c.b16 %v7150, %v7146
    %v8555 = vpack.c.b16 %v7151, %v7147
    %v8556 = vpack.c.b16 %v7152, %v7148
    %v8557 = vpack.c.b16 %v7153, %v7149
    %v8558 = vpack.c.b16 %v7158, %v7154
    %v8559 = vpack.c.b16 %v7159, %v7155
    %v8560 = vpack.c.b16 %v7160, %v7156
    %v8561 = vpack.c.b16 %v7161, %v7157
    %v8562 = vpack.c.b16 %v7166, %v7162
    %v8563 = vpack.c.b16 %v7167, %v7163
    %v8564 = vpack.c.b16 %v7168, %v7164
    %v8565 = vpack.c.b16 %v7169, %v7165
    %v8566 = vpack.c.b16 %v7174, %v7170
    %v8567 = vpack.c.b16 %v7175, %v7171
    %v8568 = vpack.c.b16 %v7176, %v7172
    %v8569 = vpack.c.b16 %v7177, %v7173
    %v8570 = vpack.c.b16 %v7182, %v7178
    %v8571 = vpack.c.b16 %v7183, %v7179
    %v8572 = vpack.c.b16 %v7184, %v7180
    %v8573 = vpack.c.b16 %v7185, %v7181
    %v8574 = vpack.c.b16 %v7190, %v7186
    %v8575 = vpack.c.b16 %v7191, %v7187
    %v8576 = vpack.c.b16 %v7192, %v7188
    %v8577 = vpack.c.b16 %v7193, %v7189
    %v8578 = vpack.c.b16 %v7198, %v7194
    %v8579 = vpack.c.b16 %v7199, %v7195
    %v8580 = vpack.c.b16 %v7200, %v7196
    %v8581 = vpack.c.b16 %v7201, %v7197
    %v8582 = vpack.c.b16 %v7206, %v7202
    %v8583 = vpack.c.b16 %v7207, %v7203
    %v8584 = vpack.c.b16 %v7208, %v7204
    %v8585 = vpack.c.b16 %v7209, %v7205
    %v8586 = vpack.c.b16 %v7214, %v7210
    %v8587 = vpack.c.b16 %v7215, %v7211
    %v8588 = vpack.c.b16 %v7216, %v7212
    %v8589 = vpack.c.b16 %v7217, %v7213
    %v8590 = vpack.c.b16 %v7222, %v7218
    %v8591 = vpack.c.b16 %v7223, %v7219
    %v8592 = vpack.c.b16 %v7224, %v7220
    %v8593 = vpack.c.b16 %v7225, %v7221
    %v8594 = vpack.c.b16 %v7230, %v7226
    %v8595 = vpack.c.b16 %v7231, %v7227
    %v8596 = vpack.c.b16 %v7232, %v7228
    %v8597 = vpack.c.b16 %v7233, %v7229
    %v8598 = vpack.c.b16 %v7238, %v7234
    %v8599 = vpack.c.b16 %v7239, %v7235
    %v8600 = vpack.c.b16 %v7240, %v7236
    %v8601 = vpack.c.b16 %v7241, %v7237
    %v8602 = vpack.c.b16 %v7246, %v7242
    %v8603 = vpack.c.b16 %v7247, %v7243
    %v8604 = vpack.c.b16 %v7248, %v7244
    %v8605 = vpack.c.b16 %v7249, %v7245
    %v8606 = vpack.c.b16 %v7254, %v7250
    %v8607 = vpack.c.b16 %v7255, %v7251
    %v8608 = vpack.c.b16 %v7256, %v7252
    %v8609 = vpack.c.b16 %v7257, %v7253
    %v8610 = vpack.c.b16 %v7262, %v7258
    %v8611 = vpack.c.b16 %v7263, %v7259
    %v8612 = vpack.c.b16 %v7264, %v7260
    %v8613 = vpack.c.b16 %v7265, %v7261
    %v8614 = vpack.c.b16 %v7270, %v7266
    %v8615 = vpack.c.b16 %v7271, %v7267
    %v8616 = vpack.c.b16 %v7272, %v7268
    %v8617 = vpack.c.b16 %v7273, %v7269
    %v8618 = vpack.c.b16 %v7278, %v7274
    %v8619 = vpack.c.b16 %v7279, %v7275
    %v8620 = vpack.c.b16 %v7280, %v7276
    %v8621 = vpack.c.b16 %v7281, %v7277
    %v8622 = vpack.c.b16 %v7286, %v7282
    %v8623 = vpack.c.b16 %v7287, %v7283
    %v8624 = vpack.c.b16 %v7288, %v7284
    %v8625 = vpack.c.b16 %v7289, %v7285
    %v8626 = vpack.c.b16 %v7294, %v7290
    %v8627 = vpack.c.b16 %v7295, %v7291
    %v8628 = vpack.c.b16 %v7296, %v7292
    %v8629 = vpack.c.b16 %v7297, %v7293
    %v8630 = vpack.c.b16 %v7302, %v7298
    %v8631 = vpack.c.b16 %v7303, %v7299
    %v8632 = vpack.c.b16 %v7304, %v7300
    %v8633 = vpack.c.b16 %v7305, %v7301
    %v8634 = vpack.c.b16 %v7310, %v7306
    %v8635 = vpack.c.b16 %v7311, %v7307
    %v8636 = vpack.c.b16 %v7312, %v7308
    %v8637 = vpack.c.b16 %v7313, %v7309
    %v8638 = vpack.c.b16 %v7318, %v7314
    %v8639 = vpack.c.b16 %v7319, %v7315
    %v8640 = vpack.c.b16 %v7320, %v7316
    %v8641 = vpack.c.b16 %v7321, %v7317
    %v8642 = vpack.c.b16 %v7326, %v7322
    %v8643 = vpack.c.b16 %v7327, %v7323
    %v8644 = vpack.c.b16 %v7328, %v7324
    %v8645 = vpack.c.b16 %v7329, %v7325
    %v8646 = vpack.c.b16 %v7334, %v7330
    %v8647 = vpack.c.b16 %v7335, %v7331
    %v8648 = vpack.c.b16 %v7336, %v7332
    %v8649 = vpack.c.b16 %v7337, %v7333
    %v8650 = vpack.c.b16 %v7342, %v7338
    %v8651 = vpack.c.b16 %v7343, %v7339
    %v8652 = vpack.c.b16 %v7344, %v7340
    %v8653 = vpack.c.b16 %v7345, %v7341
    %v8654 = vpack.c.b16 %v7350, %v7346
    %v8655 = vpack.c.b16 %v7351, %v7347
    %v8656 = vpack.c.b16 %v7352, %v7348
    %v8657 = vpack.c.b16 %v7353, %v7349
    %v8658 = vpack.c.b16 %v7358, %v7354
    %v8659 = vpack.c.b16 %v7359, %v7355
    %v8660 = vpack.c.b16 %v7360, %v7356
    %v8661 = vpack.c.b16 %v7361, %v7357
    %v8662 = vpack.c.b16 %v7366, %v7362
    %v8663 = vpack.c.b16 %v7367, %v7363
    %v8664 = vpack.c.b16 %v7368, %v7364
    %v8665 = vpack.c.b16 %v7369, %v7365
    %v8666 = vpack.c.b16 %v7374, %v7370
    %v8667 = vpack.c.b16 %v7375, %v7371
    %v8668 = vpack.c.b16 %v7376, %v7372
    %v8669 = vpack.c.b16 %v7377, %v7373
    %v8670 = vpack.c.b16 %v7382, %v7378
    %v8671 = vpack.c.b16 %v7383, %v7379
    %v8672 = vpack.c.b16 %v7384, %v7380
    %v8673 = vpack.c.b16 %v7385, %v7381
    %v8674 = vpack.c.b16 %v7390, %v7386
    %v8675 = vpack.c.b16 %v7391, %v7387
    %v8676 = vpack.c.b16 %v7392, %v7388
    %v8677 = vpack.c.b16 %v7393, %v7389
    %v8678 = vpack.c.b16 %v7398, %v7394
    %v8679 = vpack.c.b16 %v7399, %v7395
    %v8680 = vpack.c.b16 %v7400, %v7396
    %v8681 = vpack.c.b16 %v7401, %v7397
    %v8682 = vpack.c.b16 %v7406, %v7402
    %v8683 = vpack.c.b16 %v7407, %v7403
    %v8684 = vpack.c.b16 %v7408, %v7404
    %v8685 = vpack.c.b16 %v7409, %v7405
    %v8686 = vpack.c.b16 %v7414, %v7410
    %v8687 = vpack.c.b16 %v7415, %v7411
    %v8688 = vpack.c.b16 %v7416, %v7412
    %v8689 = vpack.c.b16 %v7417, %v7413
    %v8690 = vpack.c.b16 %v7422, %v7418
    %v8691 = vpack.c.b16 %v7423, %v7419
    %v8692 = vpack.c.b16 %v7424, %v7420
    %v8693 = vpack.c.b16 %v7425, %v7421
    %v8694 = vpack.c.b16 %v7430, %v7426
    %v8695 = vpack.c.b16 %v7431, %v7427
    %v8696 = vpack.c.b16 %v7432, %v7428
    %v8697 = vpack.c.b16 %v7433, %v7429
    %v8698 = vpack.c.b16 %v7438, %v7434
    %v8699 = vpack.c.b16 %v7439, %v7435
    %v8700 = vpack.c.b16 %v7440, %v7436
    %v8701 = vpack.c.b16 %v7441, %v7437
    %v8702 = vpack.c.b16 %v7446, %v7442
    %v8703 = vpack.c.b16 %v7447, %v7443
    %v8704 = vpack.c.b16 %v7448, %v7444
    %v8705 = vpack.c.b16 %v7449, %v7445
    %v8706 = vpack.c.b16 %v7454, %v7450
    %v8707 = vpack.c.b16 %v7455, %v7451
    %v8708 = vpack.c.b16 %v7456, %v7452
    %v8709 = vpack.c.b16 %v7457, %v7453
    %v8710 = vpack.c.b16 %v7462, %v7458
    %v8711 = vpack.c.b16 %v7463, %v7459
    %v8712 = vpack.c.b16 %v7464, %v7460
    %v8713 = vpack.c.b16 %v7465, %v7461
    %v8714 = vpack.c.b16 %v7470, %v7466
    %v8715 = vpack.c.b16 %v7471, %v7467
    %v8716 = vpack.c.b16 %v7472, %v7468
    %v8717 = vpack.c.b16 %v7473, %v7469
    %v8718 = vpack.c.b16 %v7478, %v7474
    %v8719 = vpack.c.b16 %v7479, %v7475
    %v8720 = vpack.c.b16 %v7480, %v7476
    %v8721 = vpack.c.b16 %v7481, %v7477
    %v8722 = vpack.c.b16 %v7486, %v7482
    %v8723 = vpack.c.b16 %v7487, %v7483
    %v8724 = vpack.c.b16 %v7488, %v7484
    %v8725 = vpack.c.b16 %v7489, %v7485
    %v8726 = vpack.c.b16 %v7494, %v7490
    %v8727 = vpack.c.b16 %v7495, %v7491
    %v8728 = vpack.c.b16 %v7496, %v7492
    %v8729 = vpack.c.b16 %v7497, %v7493
    %v8730 = vpack.c.b16 %v7502, %v7498
    %v8731 = vpack.c.b16 %v7503, %v7499
    %v8732 = vpack.c.b16 %v7504, %v7500
    %v8733 = vpack.c.b16 %v7505, %v7501
    %v8734 = vpack.c.b16 %v7510, %v7506
    %v8735 = vpack.c.b16 %v7511, %v7507
    %v8736 = vpack.c.b16 %v7512, %v7508
    %v8737 = vpack.c.b16 %v7513, %v7509
    %v8738 = vpack.c.b16 %v7518, %v7514
    %v8739 = vpack.c.b16 %v7519, %v7515
    %v8740 = vpack.c.b16 %v7520, %v7516
    %v8741 = vpack.c.b16 %v7521, %v7517
    %v8742 = vpack.c.b16 %v7526, %v7522
    %v8743 = vpack.c.b16 %v7527, %v7523
    %v8744 = vpack.c.b16 %v7528, %v7524
    %v8745 = vpack.c.b16 %v7529, %v7525
    %v8746 = vpack.c.b16 %v7534, %v7530
    %v8747 = vpack.c.b16 %v7535, %v7531
    %v8748 = vpack.c.b16 %v7536, %v7532
    %v8749 = vpack.c.b16 %v7537, %v7533
    %v8750 = vpack.c.b16 %v7542, %v7538
    %v8751 = vpack.c.b16 %v7543, %v7539
    %v8752 = vpack.c.b16 %v7544, %v7540
    %v8753 = vpack.c.b16 %v7545, %v7541
    %v8754 = vpack.c.b16 %v7550, %v7546
    %v8755 = vpack.c.b16 %v7551, %v7547
    %v8756 = vpack.c.b16 %v7552, %v7548
    %v8757 = vpack.c.b16 %v7553, %v7549
    %v8758 = vpack.c.b16 %v7558, %v7554
    %v8759 = vpack.c.b16 %v7559, %v7555
    %v8760 = vpack.c.b16 %v7560, %v7556
    %v8761 = vpack.c.b16 %v7561, %v7557
    %v8762 = vpack.c.b16 %v7566, %v7562
    %v8763 = vpack.c.b16 %v7567, %v7563
    %v8764 = vpack.c.b16 %v7568, %v7564
    %v8765 = vpack.c.b16 %v7569, %v7565
    %v8766 = vpack.c.b16 %v7574, %v7570
    %v8767 = vpack.c.b16 %v7575, %v7571
    %v8768 = vpack.c.b16 %v7576, %v7572
    %v8769 = vpack.c.b16 %v7577, %v7573
    %v8770 = vpack.c.b16 %v7582, %v7578
    %v8771 = vpack.c.b16 %v7583, %v7579
    %v8772 = vpack.c.b16 %v7584, %v7580
    %v8773 = vpack.c.b16 %v7585, %v7581
    %v8774 = vpack.c.b16 %v7590, %v7586
    %v8775 = vpack.c.b16 %v7591, %v7587
    %v8776 = vpack.c.b16 %v7592, %v7588
    %v8777 = vpack.c.b16 %v7593, %v7589
    %v8778 = vpack.c.b16 %v7598, %v7594
    %v8779 = vpack.c.b16 %v7599, %v7595
    %v8780 = vpack.c.b16 %v7600, %v7596
    %v8781 = vpack.c.b16 %v7601, %v7597
    %v8782 = vpack.c.b16 %v7606, %v7602
    %v8783 = vpack.c.b16 %v7607, %v7603
    %v8784 = vpack.c.b16 %v7608, %v7604
    %v8785 = vpack.c.b16 %v7609, %v7605
    %v8786 = vpack.c.b16 %v7614, %v7610
    %v8787 = vpack.c.b16 %v7615, %v7611
    %v8788 = vpack.c.b16 %v7616, %v7612
    %v8789 = vpack.c.b16 %v7617, %v7613
    %v8790 = vpack.c.b16 %v7622, %v7618
    %v8791 = vpack.c.b16 %v7623, %v7619
    %v8792 = vpack.c.b16 %v7624, %v7620
    %v8793 = vpack.c.b16 %v7625, %v7621
    %v8794 = vpack.c.b16 %v7630, %v7626
    %v8795 = vpack.c.b16 %v7631, %v7627
    %v8796 = vpack.c.b16 %v7632, %v7628
    %v8797 = vpack.c.b16 %v7633, %v7629
    %v8798 = vpack.c.b16 %v7638, %v7634
    %v8799 = vpack.c.b16 %v7639, %v7635
    %v8800 = vpack.c.b16 %v7640, %v7636
    %v8801 = vpack.c.b16 %v7641, %v7637
    %v8802 = vpack.c.b16 %v7646, %v7642
    %v8803 = vpack.c.b16 %v7647, %v7643
    %v8804 = vpack.c.b16 %v7648, %v7644
    %v8805 = vpack.c.b16 %v7649, %v7645
    %v8806 = vpack.c.b16 %v7654, %v7650
    %v8807 = vpack.c.b16 %v7655, %v7651
    %v8808 = vpack.c.b16 %v7656, %v7652
    %v8809 = vpack.c.b16 %v7657, %v7653
    %v8810 = vpack.c.b16 %v7662, %v7658
    %v8811 = vpack.c.b16 %v7663, %v7659
    %v8812 = vpack.c.b16 %v7664, %v7660
    %v8813 = vpack.c.b16 %v7665, %v7661
    %v8814 = vpack.c.b16 %v7670, %v7666
    %v8815 = vpack.c.b16 %v7671, %v7667
    %v8816 = vpack.c.b16 %v7672, %v7668
    %v8817 = vpack.c.b16 %v7673, %v7669
    %v8818 = vpack.c.b16 %v7678, %v7674
    %v8819 = vpack.c.b16 %v7679, %v7675
    %v8820 = vpack.c.b16 %v7680, %v7676
    %v8821 = vpack.c.b16 %v7681, %v7677
    %v8822 = vpack.c.b16 %v7686, %v7682
    %v8823 = vpack.c.b16 %v7687, %v7683
    %v8824 = vpack.c.b16 %v7688, %v7684
    %v8825 = vpack.c.b16 %v7689, %v7685
    %v8826 = vpack.c.b16 %v7694, %v7690
    %v8827 = vpack.c.b16 %v7695, %v7691
    %v8828 = vpack.c.b16 %v7696, %v7692
    %v8829 = vpack.c.b16 %v7697, %v7693
    %v8830 = vpack.c.b16 %v7702, %v7698
    %v8831 = vpack.c.b16 %v7703, %v7699
    %v8832 = vpack.c.b16 %v7704, %v7700
    %v8833 = vpack.c.b16 %v7705, %v7701
    %v8834 = vpack.c.b16 %v7710, %v7706
    %v8835 = vpack.c.b16 %v7711, %v7707
    %v8836 = vpack.c.b16 %v7712, %v7708
    %v8837 = vpack.c.b16 %v7713, %v7709
    %v8838 = vpack.c.b16 %v7718, %v7714
    %v8839 = vpack.c.b16 %v7719, %v7715
    %v8840 = vpack.c.b16 %v7720, %v7716
    %v8841 = vpack.c.b16 %v7721, %v7717
    %v8842 = vpack.c.b16 %v7726, %v7722
    %v8843 = vpack.c.b16 %v7727, %v7723
    %v8844 = vpack.c.b16 %v7728, %v7724
    %v8845 = vpack.c.b16 %v7729, %v7725
    %v8846 = vpack.c.b16 %v7734, %v7730
    %v8847 = vpack.c.b16 %v7735, %v7731
    %v8848 = vpack.c.b16 %v7736, %v7732
    %v8849 = vpack.c.b16 %v7737, %v7733
    %v8850 = vpack.c.b16 %v7742, %v7738
    %v8851 = vpack.c.b16 %v7743, %v7739
    %v8852 = vpack.c.b16 %v7744, %v7740
    %v8853 = vpack.c.b16 %v7745, %v7741
    %v8854 = vpack.c.b16 %v7750, %v7746
    %v8855 = vpack.c.b16 %v7751, %v7747
    %v8856 = vpack.c.b16 %v7752, %v7748
    %v8857 = vpack.c.b16 %v7753, %v7749
    %v8858 = vpack.c.b16 %v7758, %v7754
    %v8859 = vpack.c.b16 %v7759, %v7755
    %v8860 = vpack.c.b16 %v7760, %v7756
    %v8861 = vpack.c.b16 %v7761, %v7757
    %v8862 = vpack.c.b16 %v7766, %v7762
    %v8863 = vpack.c.b16 %v7767, %v7763
    %v8864 = vpack.c.b16 %v7768, %v7764
    %v8865 = vpack.c.b16 %v7769, %v7765
    %v8866 = vpack.c.b16 %v7774, %v7770
    %v8867 = vpack.c.b16 %v7775, %v7771
    %v8868 = vpack.c.b16 %v7776, %v7772
    %v8869 = vpack.c.b16 %v7777, %v7773
    %v8870 = vpack.c.b16 %v7782, %v7778
    %v8871 = vpack.c.b16 %v7783, %v7779
    %v8872 = vpack.c.b16 %v7784, %v7780
    %v8873 = vpack.c.b16 %v7785, %v7781
    %v8874 = vpack.c.b16 %v7790, %v7786
    %v8875 = vpack.c.b16 %v7791, %v7787
    %v8876 = vpack.c.b16 %v7792, %v7788
    %v8877 = vpack.c.b16 %v7793, %v7789
    %v8878 = vpack.c.b16 %v7798, %v7794
    %v8879 = vpack.c.b16 %v7799, %v7795
    %v8880 = vpack.c.b16 %v7800, %v7796
    %v8881 = vpack.c.b16 %v7801, %v7797
    %v8882 = vpack.c.b16 %v7806, %v7802
    %v8883 = vpack.c.b16 %v7807, %v7803
    %v8884 = vpack.c.b16 %v7808, %v7804
    %v8885 = vpack.c.b16 %v7809, %v7805
    %v8886 = vpack.c.b16 %v7814, %v7810
    %v8887 = vpack.c.b16 %v7815, %v7811
    %v8888 = vpack.c.b16 %v7816, %v7812
    %v8889 = vpack.c.b16 %v7817, %v7813
    %v8890 = vpack.c.b16 %v7822, %v7818
    %v8891 = vpack.c.b16 %v7823, %v7819
    %v8892 = vpack.c.b16 %v7824, %v7820
    %v8893 = vpack.c.b16 %v7825, %v7821
    %v8894 = vpack.c.b16 %v7830, %v7826
    %v8895 = vpack.c.b16 %v7831, %v7827
    %v8896 = vpack.c.b16 %v7832, %v7828
    %v8897 = vpack.c.b16 %v7833, %v7829
    %v8898 = vpack.c.b16 %v7838, %v7834
    %v8899 = vpack.c.b16 %v7839, %v7835
    %v8900 = vpack.c.b16 %v7840, %v7836
    %v8901 = vpack.c.b16 %v7841, %v7837
    %v8902 = vpack.c.b16 %v7846, %v7842
    %v8903 = vpack.c.b16 %v7847, %v7843
    %v8904 = vpack.c.b16 %v7848, %v7844
    %v8905 = vpack.c.b16 %v7849, %v7845
    %v8906 = vpack.c.b16 %v7854, %v7850
    %v8907 = vpack.c.b16 %v7855, %v7851
    %v8908 = vpack.c.b16 %v7856, %v7852
    %v8909 = vpack.c.b16 %v7857, %v7853
    %v8910 = vpack.c.b16 %v7862, %v7858
    %v8911 = vpack.c.b16 %v7863, %v7859
    %v8912 = vpack.c.b16 %v7864, %v7860
    %v8913 = vpack.c.b16 %v7865, %v7861
    %v8914 = vpack.c.b16 %v7870, %v7866
    %v8915 = vpack.c.b16 %v7871, %v7867
    %v8916 = vpack.c.b16 %v7872, %v7868
    %v8917 = vpack.c.b16 %v7873, %v7869
    %v8918 = vpack.c.b16 %v7878, %v7874
    %v8919 = vpack.c.b16 %v7879, %v7875
    %v8920 = vpack.c.b16 %v7880, %v7876
    %v8921 = vpack.c.b16 %v7881, %v7877
    %v8922 = vpack.c.b16 %v7886, %v7882
    %v8923 = vpack.c.b16 %v7887, %v7883
    %v8924 = vpack.c.b16 %v7888, %v7884
    %v8925 = vpack.c.b16 %v7889, %v7885
    %v8926 = vpack.c.b16 %v7894, %v7890
    %v8927 = vpack.c.b16 %v7895, %v7891
    %v8928 = vpack.c.b16 %v7896, %v7892
    %v8929 = vpack.c.b16 %v7897, %v7893
    %v8930 = vpack.c.b16 %v7902, %v7898
    %v8931 = vpack.c.b16 %v7903, %v7899
    %v8932 = vpack.c.b16 %v7904, %v7900
    %v8933 = vpack.c.b16 %v7905, %v7901
    %v8934 = vpack.c.b16 %v7910, %v7906
    %v8935 = vpack.c.b16 %v7911, %v7907
    %v8936 = vpack.c.b16 %v7912, %v7908
    %v8937 = vpack.c.b16 %v7913, %v7909
    %v8938 = vpack.c.b16 %v7918, %v7914
    %v8939 = vpack.c.b16 %v7919, %v7915
    %v8940 = vpack.c.b16 %v7920, %v7916
    %v8941 = vpack.c.b16 %v7921, %v7917
    %v8942 = vpack.c.b16 %v7926, %v7922
    %v8943 = vpack.c.b16 %v7927, %v7923
    %v8944 = vpack.c.b16 %v7928, %v7924
    %v8945 = vpack.c.b16 %v7929, %v7925
    %v8946 = vpack.c.b16 %v7934, %v7930
    %v8947 = vpack.c.b16 %v7935, %v7931
    %v8948 = vpack.c.b16 %v7936, %v7932
    %v8949 = vpack.c.b16 %v7937, %v7933
    %v8950 = vpack.c.b16 %v7942, %v7938
    %v8951 = vpack.c.b16 %v7943, %v7939
    %v8952 = vpack.c.b16 %v7944, %v7940
    %v8953 = vpack.c.b16 %v7945, %v7941
    %v8954 = vpack.c.b16 %v7950, %v7946
    %v8955 = vpack.c.b16 %v7951, %v7947
    %v8956 = vpack.c.b16 %v7952, %v7948
    %v8957 = vpack.c.b16 %v7953, %v7949
    %v8958 = vpack.c.b16 %v7958, %v7954
    %v8959 = vpack.c.b16 %v7959, %v7955
    %v8960 = vpack.c.b16 %v7960, %v7956
    %v8961 = vpack.c.b16 %v7961, %v7957
    %v8962 = vpack.c.b16 %v7966, %v7962
    %v8963 = vpack.c.b16 %v7967, %v7963
    %v8964 = vpack.c.b16 %v7968, %v7964
    %v8965 = vpack.c.b16 %v7969, %v7965
    %v8966 = vpack.c.b16 %v7974, %v7970
    %v8967 = vpack.c.b16 %v7975, %v7971
    %v8968 = vpack.c.b16 %v7976, %v7972
    %v8969 = vpack.c.b16 %v7977, %v7973
    %v8970 = vpack.c.b16 %v7982, %v7978
    %v8971 = vpack.c.b16 %v7983, %v7979
    %v8972 = vpack.c.b16 %v7984, %v7980
    %v8973 = vpack.c.b16 %v7985, %v7981
    %v8974 = vpack.c.b16 %v7990, %v7986
    %v8975 = vpack.c.b16 %v7991, %v7987
    %v8976 = vpack.c.b16 %v7992, %v7988
    %v8977 = vpack.c.b16 %v7993, %v7989
    %v8978 = vpack.c.b16 %v7998, %v7994
    %v8979 = vpack.c.b16 %v7999, %v7995
    %v8980 = vpack.c.b16 %v8000, %v7996
    %v8981 = vpack.c.b16 %v8001, %v7997
    %v8982 = vpack.c.b16 %v8006, %v8002
    %v8983 = vpack.c.b16 %v8007, %v8003
    %v8984 = vpack.c.b16 %v8008, %v8004
    %v8985 = vpack.c.b16 %v8009, %v8005
    %v8986 = vpack.c.b16 %v8014, %v8010
    %v8987 = vpack.c.b16 %v8015, %v8011
    %v8988 = vpack.c.b16 %v8016, %v8012
    %v8989 = vpack.c.b16 %v8017, %v8013
    %v8990 = vpack.c.b16 %v8022, %v8018
    %v8991 = vpack.c.b16 %v8023, %v8019
    %v8992 = vpack.c.b16 %v8024, %v8020
    %v8993 = vpack.c.b16 %v8025, %v8021
    %v8994 = vpack.c.b16 %v8030, %v8026
    %v8995 = vpack.c.b16 %v8031, %v8027
    %v8996 = vpack.c.b16 %v8032, %v8028
    %v8997 = vpack.c.b16 %v8033, %v8029
    %v8998 = vpack.c.b16 %v8038, %v8034
    %v8999 = vpack.c.b16 %v8039, %v8035
    %v9000 = vpack.c.b16 %v8040, %v8036
    %v9001 = vpack.c.b16 %v8041, %v8037
    %v9002 = vpack.c.b16 %v8046, %v8042
    %v9003 = vpack.c.b16 %v8047, %v8043
    %v9004 = vpack.c.b16 %v8048, %v8044
    %v9005 = vpack.c.b16 %v8049, %v8045
    %v9006 = vpack.c.b16 %v8054, %v8050
    %v9007 = vpack.c.b16 %v8055, %v8051
    %v9008 = vpack.c.b16 %v8056, %v8052
    %v9009 = vpack.c.b16 %v8057, %v8053
    %v9010 = vpack.c.b16 %v8062, %v8058
    %v9011 = vpack.c.b16 %v8063, %v8059
    %v9012 = vpack.c.b16 %v8064, %v8060
    %v9013 = vpack.c.b16 %v8065, %v8061
    %v9014 = vpack.c.b16 %v8070, %v8066
    %v9015 = vpack.c.b16 %v8071, %v8067
    %v9016 = vpack.c.b16 %v8072, %v8068
    %v9017 = vpack.c.b16 %v8073, %v8069
    %v9018 = vpack.c.b16 %v8078, %v8074
    %v9019 = vpack.c.b16 %v8079, %v8075
    %v9020 = vpack.c.b16 %v8080, %v8076
    %v9021 = vpack.c.b16 %v8081, %v8077
    %v9022 = vpack.c.b16 %v8086, %v8082
    %v9023 = vpack.c.b16 %v8087, %v8083
    %v9024 = vpack.c.b16 %v8088, %v8084
    %v9025 = vpack.c.b16 %v8089, %v8085
    %v9026 = vpack.c.b16 %v8094, %v8090
    %v9027 = vpack.c.b16 %v8095, %v8091
    %v9028 = vpack.c.b16 %v8096, %v8092
    %v9029 = vpack.c.b16 %v8097, %v8093
    %v9030 = vpack.c.b16 %v8102, %v8098
    %v9031 = vpack.c.b16 %v8103, %v8099
    %v9032 = vpack.c.b16 %v8104, %v8100
    %v9033 = vpack.c.b16 %v8105, %v8101
    %v9034 = vpack.c.b16 %v8110, %v8106
    %v9035 = vpack.c.b16 %v8111, %v8107
    %v9036 = vpack.c.b16 %v8112, %v8108
    %v9037 = vpack.c.b16 %v8113, %v8109
    %v9038 = vpack.c.b16 %v8118, %v8114
    %v9039 = vpack.c.b16 %v8119, %v8115
    %v9040 = vpack.c.b16 %v8120, %v8116
    %v9041 = vpack.c.b16 %v8121, %v8117
    %v9042 = vpack.c.b16 %v8126, %v8122
    %v9043 = vpack.c.b16 %v8127, %v8123
    %v9044 = vpack.c.b16 %v8128, %v8124
    %v9045 = vpack.c.b16 %v8129, %v8125
    %v9046 = vpack.c.b16 %v8134, %v8130
    %v9047 = vpack.c.b16 %v8135, %v8131
    %v9048 = vpack.c.b16 %v8136, %v8132
    %v9049 = vpack.c.b16 %v8137, %v8133
    %v9050 = vpack.c.b16 %v8142, %v8138
    %v9051 = vpack.c.b16 %v8143, %v8139
    %v9052 = vpack.c.b16 %v8144, %v8140
    %v9053 = vpack.c.b16 %v8145, %v8141
    %v9054 = vpack.c.b16 %v8150, %v8146
    %v9055 = vpack.c.b16 %v8151, %v8147
    %v9056 = vpack.c.b16 %v8152, %v8148
    %v9057 = vpack.c.b16 %v8153, %v8149
    %v9058 = vpack.c.b16 %v8158, %v8154
    %v9059 = vpack.c.b16 %v8159, %v8155
    %v9060 = vpack.c.b16 %v8160, %v8156
    %v9061 = vpack.c.b16 %v8161, %v8157
    %v9062 = vpack.c.b16 %v8166, %v8162
    %v9063 = vpack.c.b16 %v8167, %v8163
    %v9064 = vpack.c.b16 %v8168, %v8164
    %v9065 = vpack.c.b16 %v8169, %v8165
    %v9066 = vpack.c.b16 %v8174, %v8170
    %v9067 = vpack.c.b16 %v8175, %v8171
    %v9068 = vpack.c.b16 %v8176, %v8172
    %v9069 = vpack.c.b16 %v8177, %v8173
    %v9070 = vpack.c.b16 %v8182, %v8178
    %v9071 = vpack.c.b16 %v8183, %v8179
    %v9072 = vpack.c.b16 %v8184, %v8180
    %v9073 = vpack.c.b16 %v8185, %v8181
    %v9074 = vpack.c.b16 %v8190, %v8186
    %v9075 = vpack.c.b16 %v8191, %v8187
    %v9076 = vpack.c.b16 %v8192, %v8188
    %v9077 = vpack.c.b16 %v8193, %v8189
    %v9078 = vpack.c.b16 %v8198, %v8194
    %v9079 = vpack.c.b16 %v8199, %v8195
    %v9080 = vpack.c.b16 %v8200, %v8196
    %v9081 = vpack.c.b16 %v8201, %v8197
    %v9082 = vpack.c.b16 %v8206, %v8202
    %v9083 = vpack.c.b16 %v8207, %v8203
    %v9084 = vpack.c.b16 %v8208, %v8204
    %v9085 = vpack.c.b16 %v8209, %v8205
    %v9086 = vpack.c.b16 %v8214, %v8210
    %v9087 = vpack.c.b16 %v8215, %v8211
    %v9088 = vpack.c.b16 %v8216, %v8212
    %v9089 = vpack.c.b16 %v8217, %v8213
    %v9090 = vpack.c.b16 %v8222, %v8218
    %v9091 = vpack.c.b16 %v8223, %v8219
    %v9092 = vpack.c.b16 %v8224, %v8220
    %v9093 = vpack.c.b16 %v8225, %v8221
    %v9094 = vpack.c.b16 %v8230, %v8226
    %v9095 = vpack.c.b16 %v8231, %v8227
    %v9096 = vpack.c.b16 %v8232, %v8228
    %v9097 = vpack.c.b16 %v8233, %v8229
    %v9098 = vpack.c.b16 %v8238, %v8234
    %v9099 = vpack.c.b16 %v8239, %v8235
    %v9100 = vpack.c.b16 %v8240, %v8236
    %v9101 = vpack.c.b16 %v8241, %v8237
    %v9102 = vpack.c.b16 %v8246, %v8242
    %v9103 = vpack.c.b16 %v8247, %v8243
    %v9104 = vpack.c.b16 %v8248, %v8244
    %v9105 = vpack.c.b16 %v8249, %v8245
    %v9106 = vpack.c.b16 %v8254, %v8250
    %v9107 = vpack.c.b16 %v8255, %v8251
    %v9108 = vpack.c.b16 %v8256, %v8252
    %v9109 = vpack.c.b16 %v8257, %v8253
    %v9110 = vpack.c.b16 %v8262, %v8258
    %v9111 = vpack.c.b16 %v8263, %v8259
    %v9112 = vpack.c.b16 %v8264, %v8260
    %v9113 = vpack.c.b16 %v8265, %v8261
    %v9114 = vpack.c.b16 %v8270, %v8266
    %v9115 = vpack.c.b16 %v8271, %v8267
    %v9116 = vpack.c.b16 %v8272, %v8268
    %v9117 = vpack.c.b16 %v8273, %v8269
    %v9118 = vpack.c.b16 %v8278, %v8274
    %v9119 = vpack.c.b16 %v8279, %v8275
    %v9120 = vpack.c.b16 %v8280, %v8276
    %v9121 = vpack.c.b16 %v8281, %v8277
    %v9122 = vpack.c.b16 %v8286, %v8282
    %v9123 = vpack.c.b16 %v8287, %v8283
    %v9124 = vpack.c.b16 %v8288, %v8284
    %v9125 = vpack.c.b16 %v8289, %v8285
    %v9126 = vpack.c.b16 %v8294, %v8290
    %v9127 = vpack.c.b16 %v8295, %v8291
    %v9128 = vpack.c.b16 %v8296, %v8292
    %v9129 = vpack.c.b16 %v8297, %v8293
    %v9130 = vpack.c.b16 %v8302, %v8298
    %v9131 = vpack.c.b16 %v8303, %v8299
    %v9132 = vpack.c.b16 %v8304, %v8300
    %v9133 = vpack.c.b16 %v8305, %v8301
    %v9134 = vpack.c.b16 %v8310, %v8306
    %v9135 = vpack.c.b16 %v8311, %v8307
    %v9136 = vpack.c.b16 %v8312, %v8308
    %v9137 = vpack.c.b16 %v8313, %v8309
    %v9138 = vpack.c.b16 %v8318, %v8314
    %v9139 = vpack.c.b16 %v8319, %v8315
    %v9140 = vpack.c.b16 %v8320, %v8316
    %v9141 = vpack.c.b16 %v8321, %v8317
    %v9142 = vpack.c.b16 %v8326, %v8322
    %v9143 = vpack.c.b16 %v8327, %v8323
    %v9144 = vpack.c.b16 %v8328, %v8324
    %v9145 = vpack.c.b16 %v8329, %v8325
    %v9146 = vpack.c.b16 %v8334, %v8330
    %v9147 = vpack.c.b16 %v8335, %v8331
    %v9148 = vpack.c.b16 %v8336, %v8332
    %v9149 = vpack.c.b16 %v8337, %v8333
    %v9150 = vpack.c.b16 %v8342, %v8338
    %v9151 = vpack.c.b16 %v8343, %v8339
    %v9152 = vpack.c.b16 %v8344, %v8340
    %v9153 = vpack.c.b16 %v8345, %v8341
    %v9154 = vpack.c.b16 %v8350, %v8346
    %v9155 = vpack.c.b16 %v8351, %v8347
    %v9156 = vpack.c.b16 %v8352, %v8348
    %v9157 = vpack.c.b16 %v8353, %v8349
    %v9158 = vpack.c.b16 %v8358, %v8354
    %v9159 = vpack.c.b16 %v8359, %v8355
    %v9160 = vpack.c.b16 %v8360, %v8356
    %v9161 = vpack.c.b16 %v8361, %v8357
    %v9162 = vpack.c.b16 %v8366, %v8362
    %v9163 = vpack.c.b16 %v8367, %v8363
    %v9164 = vpack.c.b16 %v8368, %v8364
    %v9165 = vpack.c.b16 %v8369, %v8365
    %v9166 = vpack.c.b16 %v8374, %v8370
    %v9167 = vpack.c.b16 %v8375, %v8371
    %v9168 = vpack.c.b16 %v8376, %v8372
    %v9169 = vpack.c.b16 %v8377, %v8373
    %v9170 = vpack.c.b16 %v8382, %v8378
    %v9171 = vpack.c.b16 %v8383, %v8379
    %v9172 = vpack.c.b16 %v8384, %v8380
    %v9173 = vpack.c.b16 %v8385, %v8381
    %v9174 = vpack.c.b16 %v8390, %v8386
    %v9175 = vpack.c.b16 %v8391, %v8387
    %v9176 = vpack.c.b16 %v8392, %v8388
    %v9177 = vpack.c.b16 %v8393, %v8389
    %v9963 = vsel %vm4618, %v5253, 0
    %9965 = vmatprep.subr.bf16.mxu0 %v8423
    %9966 = vmatpush1.bf16.msra.mxu0 %v8422
    %9967 = vmatprep.subr.bf16.mxu0 %v8419
    %9968 = vmatpush1.bf16.msra.mxu0 %v8418
    %9969 = vmatprep.subr.bf16.mxu0 %v8415
    %9970 = vmatpush1.bf16.msra.mxu0 %v8414
    %9971 = vmatprep.subr.bf16.mxu0 %v8411
    %9972 = vmatpush1.bf16.msra.mxu0 %v8410
    %9973 = vmatprep.subr.bf16.mxu0 %v8407
    %9974 = vmatpush1.bf16.msra.mxu0 %v8406
    %9975 = vmatprep.subr.bf16.mxu0 %v8403
    %9976 = vmatpush1.bf16.msra.mxu0 %v8402
    %9977 = vmatprep.subr.bf16.mxu0 %v8399
    %9978 = vmatpush1.bf16.msra.mxu0 %v8398
    %9979 = vmatprep.subr.bf16.mxu0 %v8395
    %9980 = vmatpush1.bf16.msra.mxu0 %v8394
    %9981 = vmatprep.subr.bf16.mxu0 %v8455
    %9982 = vmatpush2.bf16.msra.mxu0 %v8454
    %9983 = vmatprep.subr.bf16.mxu0 %v8451
    %9984 = vmatpush2.bf16.msra.mxu0 %v8450
    %9985 = vmatprep.subr.bf16.mxu0 %v8447
    %9986 = vmatpush2.bf16.msra.mxu0 %v8446
    %9987 = vmatprep.subr.bf16.mxu0 %v8443
    %9988 = vmatpush2.bf16.msra.mxu0 %v8442
    %9989 = vmatprep.subr.bf16.mxu0 %v8439
    %9990 = vmatpush2.bf16.msra.mxu0 %v8438
    %9991 = vmatprep.subr.bf16.mxu0 %v8435
    %9992 = vmatpush2.bf16.msra.mxu0 %v8434
    %9993 = vmatprep.subr.bf16.mxu0 %v8431
    %9994 = vmatpush2.bf16.msra.mxu0 %v8430
    %9995 = vmatprep.subr.bf16.mxu0 %v8427
    %9996 = vmatpush2.bf16.msra.mxu0 %v8426
    %9997 = vmatprep.mubr.bf16.mxu0 %v5012
    %9998 = vmatmul.mubr.bf16.gmra.mxu0 %v5008
    %v9999 = vpop.f32.mrf.mxu0
    %v10000 = vadd.f32 0.0, %v9999
    %v10001 = vpop.f32.mrf.mxu0
    %v10002 = vadd.f32 0.0, %v10001
    %v10003 = vpop.f32.mrf.mxu0
    %v10004 = vpop.f32.mrf.mxu0
    %10005 = vdwg.mxu0
    %10006 = vmatprep.subr.bf16.mxu0 %v8487
    %10007 = vmatpush1.bf16.msra.mxu0 %v8486
    %10008 = vmatprep.subr.bf16.mxu0 %v8483
    %10009 = vmatpush1.bf16.msra.mxu0 %v8482
    %10010 = vmatprep.subr.bf16.mxu0 %v8479
    %10011 = vmatpush1.bf16.msra.mxu0 %v8478
    %10012 = vmatprep.subr.bf16.mxu0 %v8475
    %10013 = vmatpush1.bf16.msra.mxu0 %v8474
    %10014 = vmatprep.subr.bf16.mxu0 %v8471
    %10015 = vmatpush1.bf16.msra.mxu0 %v8470
    %10016 = vmatprep.subr.bf16.mxu0 %v8467
    %10017 = vmatpush1.bf16.msra.mxu0 %v8466
    %10018 = vmatprep.subr.bf16.mxu0 %v8463
    %10019 = vmatpush1.bf16.msra.mxu0 %v8462
    %10020 = vmatprep.subr.bf16.mxu0 %v8459
    %10021 = vmatpush1.bf16.msra.mxu0 %v8458
    %10022 = vmatprep.subr.bf16.mxu0 %v8519
    %10023 = vmatpush2.bf16.msra.mxu0 %v8518
    %10024 = vmatprep.subr.bf16.mxu0 %v8515
    %10025 = vmatpush2.bf16.msra.mxu0 %v8514
    %10026 = vmatprep.subr.bf16.mxu0 %v8511
    %10027 = vmatpush2.bf16.msra.mxu0 %v8510
    %10028 = vmatprep.subr.bf16.mxu0 %v8507
    %10029 = vmatpush2.bf16.msra.mxu0 %v8506
    %10030 = vmatprep.subr.bf16.mxu0 %v8503
    %10031 = vmatpush2.bf16.msra.mxu0 %v8502
    %10032 = vmatprep.subr.bf16.mxu0 %v8499
    %10033 = vmatpush2.bf16.msra.mxu0 %v8498
    %10034 = vmatprep.subr.bf16.mxu0 %v8495
    %10035 = vmatpush2.bf16.msra.mxu0 %v8494
    %10036 = vmatprep.subr.bf16.mxu0 %v8491
    %10037 = vmatpush2.bf16.msra.mxu0 %v8490
    %10038 = vmatprep.mubr.bf16.mxu0 %v5020
    %10039 = vmatmul.mubr.bf16.gmra.mxu0 %v5016
    %v10040 = vpop.f32.mrf.mxu0
    %v10041 = vadd.f32 %v10000, %v10040
    %v10042 = vpop.f32.mrf.mxu0
    %v10043 = vadd.f32 %v10002, %v10042
    %v10044 = vpop.f32.mrf.mxu0
    %v10045 = vpop.f32.mrf.mxu0
    %10046 = vdwg.mxu0
    %10047 = vmatprep.subr.bf16.mxu0 %v8551
    %10048 = vmatpush1.bf16.msra.mxu0 %v8550
    %10049 = vmatprep.subr.bf16.mxu0 %v8547
    %10050 = vmatpush1.bf16.msra.mxu0 %v8546
    %10051 = vmatprep.subr.bf16.mxu0 %v8543
    %10052 = vmatpush1.bf16.msra.mxu0 %v8542
    %10053 = vmatprep.subr.bf16.mxu0 %v8539
    %10054 = vmatpush1.bf16.msra.mxu0 %v8538
    %10055 = vmatprep.subr.bf16.mxu0 %v8535
    %10056 = vmatpush1.bf16.msra.mxu0 %v8534
    %10057 = vmatprep.subr.bf16.mxu0 %v8531
    %10058 = vmatpush1.bf16.msra.mxu0 %v8530
    %10059 = vmatprep.subr.bf16.mxu0 %v8527
    %10060 = vmatpush1.bf16.msra.mxu0 %v8526
    %10061 = vmatprep.subr.bf16.mxu0 %v8523
    %10062 = vmatpush1.bf16.msra.mxu0 %v8522
    %10063 = vmatprep.subr.bf16.mxu0 %v8583
    %10064 = vmatpush2.bf16.msra.mxu0 %v8582
    %10065 = vmatprep.subr.bf16.mxu0 %v8579
    %10066 = vmatpush2.bf16.msra.mxu0 %v8578
    %10067 = vmatprep.subr.bf16.mxu0 %v8575
    %10068 = vmatpush2.bf16.msra.mxu0 %v8574
    %10069 = vmatprep.subr.bf16.mxu0 %v8571
    %10070 = vmatpush2.bf16.msra.mxu0 %v8570
    %10071 = vmatprep.subr.bf16.mxu0 %v8567
    %10072 = vmatpush2.bf16.msra.mxu0 %v8566
    %10073 = vmatprep.subr.bf16.mxu0 %v8563
    %10074 = vmatpush2.bf16.msra.mxu0 %v8562
    %10075 = vmatprep.subr.bf16.mxu0 %v8559
    %10076 = vmatpush2.bf16.msra.mxu0 %v8558
    %10077 = vmatprep.subr.bf16.mxu0 %v8555
    %10078 = vmatpush2.bf16.msra.mxu0 %v8554
    %10079 = vmatprep.mubr.bf16.mxu0 %v5028
    %10080 = vmatmul.mubr.bf16.gmra.mxu0 %v5024
    %v10081 = vpop.f32.mrf.mxu0
    %v10082 = vadd.f32 %v10041, %v10081
    %v10083 = vpop.f32.mrf.mxu0
    %v10084 = vadd.f32 %v10043, %v10083
    %v10085 = vpop.f32.mrf.mxu0
    %v10086 = vpop.f32.mrf.mxu0
    %10087 = vdwg.mxu0
    %10088 = vmatprep.subr.bf16.mxu0 %v8615
    %10089 = vmatpush1.bf16.msra.mxu0 %v8614
    %10090 = vmatprep.subr.bf16.mxu0 %v8611
    %10091 = vmatpush1.bf16.msra.mxu0 %v8610
    %10092 = vmatprep.subr.bf16.mxu0 %v8607
    %10093 = vmatpush1.bf16.msra.mxu0 %v8606
    %10094 = vmatprep.subr.bf16.mxu0 %v8603
    %10095 = vmatpush1.bf16.msra.mxu0 %v8602
    %10096 = vmatprep.subr.bf16.mxu0 %v8599
    %10097 = vmatpush1.bf16.msra.mxu0 %v8598
    %10098 = vmatprep.subr.bf16.mxu0 %v8595
    %10099 = vmatpush1.bf16.msra.mxu0 %v8594
    %10100 = vmatprep.subr.bf16.mxu0 %v8591
    %10101 = vmatpush1.bf16.msra.mxu0 %v8590
    %10102 = vmatprep.subr.bf16.mxu0 %v8587
    %10103 = vmatpush1.bf16.msra.mxu0 %v8586
    %10104 = vmatprep.subr.bf16.mxu0 %v8647
    %10105 = vmatpush2.bf16.msra.mxu0 %v8646
    %10106 = vmatprep.subr.bf16.mxu0 %v8643
    %10107 = vmatpush2.bf16.msra.mxu0 %v8642
    %10108 = vmatprep.subr.bf16.mxu0 %v8639
    %10109 = vmatpush2.bf16.msra.mxu0 %v8638
    %10110 = vmatprep.subr.bf16.mxu0 %v8635
    %10111 = vmatpush2.bf16.msra.mxu0 %v8634
    %10112 = vmatprep.subr.bf16.mxu0 %v8631
    %10113 = vmatpush2.bf16.msra.mxu0 %v8630
    %10114 = vmatprep.subr.bf16.mxu0 %v8627
    %10115 = vmatpush2.bf16.msra.mxu0 %v8626
    %10116 = vmatprep.subr.bf16.mxu0 %v8623
    %10117 = vmatpush2.bf16.msra.mxu0 %v8622
    %10118 = vmatprep.subr.bf16.mxu0 %v8619
    %10119 = vmatpush2.bf16.msra.mxu0 %v8618
    %10120 = vmatprep.mubr.bf16.mxu0 %v5036
    %10121 = vmatmul.mubr.bf16.gmra.mxu0 %v5032
    %v10122 = vpop.f32.mrf.mxu0
    %v10123 = vadd.f32 %v10082, %v10122
    %v10124 = vpop.f32.mrf.mxu0
    %v10125 = vadd.f32 %v10084, %v10124
    %v10126 = vpop.f32.mrf.mxu0
    %v10127 = vpop.f32.mrf.mxu0
    %10128 = vdwg.mxu0
    %10129 = vmatprep.subr.bf16.mxu0 %v8679
    %10130 = vmatpush1.bf16.msra.mxu0 %v8678
    %10131 = vmatprep.subr.bf16.mxu0 %v8675
    %10132 = vmatpush1.bf16.msra.mxu0 %v8674
    %10133 = vmatprep.subr.bf16.mxu0 %v8671
    %10134 = vmatpush1.bf16.msra.mxu0 %v8670
    %10135 = vmatprep.subr.bf16.mxu0 %v8667
    %10136 = vmatpush1.bf16.msra.mxu0 %v8666
    %10137 = vmatprep.subr.bf16.mxu0 %v8663
    %10138 = vmatpush1.bf16.msra.mxu0 %v8662
    %10139 = vmatprep.subr.bf16.mxu0 %v8659
    %10140 = vmatpush1.bf16.msra.mxu0 %v8658
    %10141 = vmatprep.subr.bf16.mxu0 %v8655
    %10142 = vmatpush1.bf16.msra.mxu0 %v8654
    %10143 = vmatprep.subr.bf16.mxu0 %v8651
    %10144 = vmatpush1.bf16.msra.mxu0 %v8650
    %10145 = vmatprep.subr.bf16.mxu0 %v8711
    %10146 = vmatpush2.bf16.msra.mxu0 %v8710
    %10147 = vmatprep.subr.bf16.mxu0 %v8707
    %10148 = vmatpush2.bf16.msra.mxu0 %v8706
    %10149 = vmatprep.subr.bf16.mxu0 %v8703
    %10150 = vmatpush2.bf16.msra.mxu0 %v8702
    %10151 = vmatprep.subr.bf16.mxu0 %v8699
    %10152 = vmatpush2.bf16.msra.mxu0 %v8698
    %10153 = vmatprep.subr.bf16.mxu0 %v8695
    %10154 = vmatpush2.bf16.msra.mxu0 %v8694
    %10155 = vmatprep.subr.bf16.mxu0 %v8691
    %10156 = vmatpush2.bf16.msra.mxu0 %v8690
    %10157 = vmatprep.subr.bf16.mxu0 %v8687
    %10158 = vmatpush2.bf16.msra.mxu0 %v8686
    %10159 = vmatprep.subr.bf16.mxu0 %v8683
    %10160 = vmatpush2.bf16.msra.mxu0 %v8682
    %10161 = vmatprep.mubr.bf16.mxu0 %v5235
    %10162 = vmatmul.mubr.bf16.gmra.mxu0 %v5234
    %v10163 = vpop.f32.mrf.mxu0
    %v10164 = vadd.f32 %v10123, %v10163
    %v10165 = vpop.f32.mrf.mxu0
    %v10166 = vadd.f32 %v10125, %v10165
    %v10167 = vpop.f32.mrf.mxu0
    %v10168 = vpop.f32.mrf.mxu0
    %10169 = vdwg.mxu0
    %10170 = vmatprep.subr.bf16.mxu0 %v8743
    %10171 = vmatpush1.bf16.msra.mxu0 %v8742
    %10172 = vmatprep.subr.bf16.mxu0 %v8739
    %10173 = vmatpush1.bf16.msra.mxu0 %v8738
    %10174 = vmatprep.subr.bf16.mxu0 %v8735
    %10175 = vmatpush1.bf16.msra.mxu0 %v8734
    %10176 = vmatprep.subr.bf16.mxu0 %v8731
    %10177 = vmatpush1.bf16.msra.mxu0 %v8730
    %10178 = vmatprep.subr.bf16.mxu0 %v8727
    %10179 = vmatpush1.bf16.msra.mxu0 %v8726
    %10180 = vmatprep.subr.bf16.mxu0 %v8723
    %10181 = vmatpush1.bf16.msra.mxu0 %v8722
    %10182 = vmatprep.subr.bf16.mxu0 %v8719
    %10183 = vmatpush1.bf16.msra.mxu0 %v8718
    %10184 = vmatprep.subr.bf16.mxu0 %v8715
    %10185 = vmatpush1.bf16.msra.mxu0 %v8714
    %10186 = vmatprep.subr.bf16.mxu0 %v8775
    %10187 = vmatpush2.bf16.msra.mxu0 %v8774
    %10188 = vmatprep.subr.bf16.mxu0 %v8771
    %10189 = vmatpush2.bf16.msra.mxu0 %v8770
    %10190 = vmatprep.subr.bf16.mxu0 %v8767
    %10191 = vmatpush2.bf16.msra.mxu0 %v8766
    %10192 = vmatprep.subr.bf16.mxu0 %v8763
    %10193 = vmatpush2.bf16.msra.mxu0 %v8762
    %10194 = vmatprep.subr.bf16.mxu0 %v8759
    %10195 = vmatpush2.bf16.msra.mxu0 %v8758
    %10196 = vmatprep.subr.bf16.mxu0 %v8755
    %10197 = vmatpush2.bf16.msra.mxu0 %v8754
    %10198 = vmatprep.subr.bf16.mxu0 %v8751
    %10199 = vmatpush2.bf16.msra.mxu0 %v8750
    %10200 = vmatprep.subr.bf16.mxu0 %v8747
    %10201 = vmatpush2.bf16.msra.mxu0 %v8746
    %10202 = vmatprep.mubr.bf16.mxu0 %v5237
    %10203 = vmatmul.mubr.bf16.gmra.mxu0 %v5236
    %v10204 = vpop.f32.mrf.mxu0
    %v10205 = vadd.f32 %v10164, %v10204
    %v10206 = vpop.f32.mrf.mxu0
    %v10207 = vadd.f32 %v10166, %v10206
    %v10208 = vpop.f32.mrf.mxu0
    %v10209 = vpop.f32.mrf.mxu0
    %10210 = vdwg.mxu0
    %10211 = vmatprep.subr.bf16.mxu0 %v8807
    %10212 = vmatpush1.bf16.msra.mxu0 %v8806
    %10213 = vmatprep.subr.bf16.mxu0 %v8803
    %10214 = vmatpush1.bf16.msra.mxu0 %v8802
    %10215 = vmatprep.subr.bf16.mxu0 %v8799
    %10216 = vmatpush1.bf16.msra.mxu0 %v8798
    %10217 = vmatprep.subr.bf16.mxu0 %v8795
    %10218 = vmatpush1.bf16.msra.mxu0 %v8794
    %10219 = vmatprep.subr.bf16.mxu0 %v8791
    %10220 = vmatpush1.bf16.msra.mxu0 %v8790
    %10221 = vmatprep.subr.bf16.mxu0 %v8787
    %10222 = vmatpush1.bf16.msra.mxu0 %v8786
    %10223 = vmatprep.subr.bf16.mxu0 %v8783
    %10224 = vmatpush1.bf16.msra.mxu0 %v8782
    %10225 = vmatprep.subr.bf16.mxu0 %v8779
    %10226 = vmatpush1.bf16.msra.mxu0 %v8778
    %10227 = vmatprep.subr.bf16.mxu0 %v8839
    %10228 = vmatpush2.bf16.msra.mxu0 %v8838
    %10229 = vmatprep.subr.bf16.mxu0 %v8835
    %10230 = vmatpush2.bf16.msra.mxu0 %v8834
    %10231 = vmatprep.subr.bf16.mxu0 %v8831
    %10232 = vmatpush2.bf16.msra.mxu0 %v8830
    %10233 = vmatprep.subr.bf16.mxu0 %v8827
    %10234 = vmatpush2.bf16.msra.mxu0 %v8826
    %10235 = vmatprep.subr.bf16.mxu0 %v8823
    %10236 = vmatpush2.bf16.msra.mxu0 %v8822
    %10237 = vmatprep.subr.bf16.mxu0 %v8819
    %10238 = vmatpush2.bf16.msra.mxu0 %v8818
    %10239 = vmatprep.subr.bf16.mxu0 %v8815
    %10240 = vmatpush2.bf16.msra.mxu0 %v8814
    %10241 = vmatprep.subr.bf16.mxu0 %v8811
    %10242 = vmatpush2.bf16.msra.mxu0 %v8810
    %10243 = vmatprep.mubr.bf16.mxu0 %v5239
    %10244 = vmatmul.mubr.bf16.gmra.mxu0 %v5238
    %v10245 = vpop.f32.mrf.mxu0
    %v10246 = vadd.f32 %v10205, %v10245
    %v10247 = vpop.f32.mrf.mxu0
    %v10248 = vadd.f32 %v10207, %v10247
    %v10249 = vpop.f32.mrf.mxu0
    %v10250 = vpop.f32.mrf.mxu0
    %10251 = vdwg.mxu0
    %10252 = vmatprep.subr.bf16.mxu0 %v8871
    %10253 = vmatpush1.bf16.msra.mxu0 %v8870
    %10254 = vmatprep.subr.bf16.mxu0 %v8867
    %10255 = vmatpush1.bf16.msra.mxu0 %v8866
    %10256 = vmatprep.subr.bf16.mxu0 %v8863
    %10257 = vmatpush1.bf16.msra.mxu0 %v8862
    %10258 = vmatprep.subr.bf16.mxu0 %v8859
    %10259 = vmatpush1.bf16.msra.mxu0 %v8858
    %10260 = vmatprep.subr.bf16.mxu0 %v8855
    %10261 = vmatpush1.bf16.msra.mxu0 %v8854
    %10262 = vmatprep.subr.bf16.mxu0 %v8851
    %10263 = vmatpush1.bf16.msra.mxu0 %v8850
    %10264 = vmatprep.subr.bf16.mxu0 %v8847
    %10265 = vmatpush1.bf16.msra.mxu0 %v8846
    %10266 = vmatprep.subr.bf16.mxu0 %v8843
    %10267 = vmatpush1.bf16.msra.mxu0 %v8842
    %10268 = vmatprep.subr.bf16.mxu0 %v8903
    %10269 = vmatpush2.bf16.msra.mxu0 %v8902
    %10270 = vmatprep.subr.bf16.mxu0 %v8899
    %10271 = vmatpush2.bf16.msra.mxu0 %v8898
    %10272 = vmatprep.subr.bf16.mxu0 %v8895
    %10273 = vmatpush2.bf16.msra.mxu0 %v8894
    %10274 = vmatprep.subr.bf16.mxu0 %v8891
    %10275 = vmatpush2.bf16.msra.mxu0 %v8890
    %10276 = vmatprep.subr.bf16.mxu0 %v8887
    %10277 = vmatpush2.bf16.msra.mxu0 %v8886
    %10278 = vmatprep.subr.bf16.mxu0 %v8883
    %10279 = vmatpush2.bf16.msra.mxu0 %v8882
    %10280 = vmatprep.subr.bf16.mxu0 %v8879
    %10281 = vmatpush2.bf16.msra.mxu0 %v8878
    %10282 = vmatprep.subr.bf16.mxu0 %v8875
    %10283 = vmatpush2.bf16.msra.mxu0 %v8874
    %10284 = vmatprep.mubr.bf16.mxu0 %v5241
    %10285 = vmatmul.mubr.bf16.gmra.mxu0 %v5240
    %v10286 = vpop.f32.mrf.mxu0
    %v10287 = vadd.f32 %v10246, %v10286
    %v10288 = vpop.f32.mrf.mxu0
    %v10289 = vadd.f32 %v10248, %v10288
    %v10290 = vpop.f32.mrf.mxu0
    %v10291 = vpop.f32.mrf.mxu0
    %10292 = vdwg.mxu0
    %10293 = vmatprep.subr.bf16.mxu0 %v8935
    %10294 = vmatpush1.bf16.msra.mxu0 %v8934
    %10295 = vmatprep.subr.bf16.mxu0 %v8931
    %10296 = vmatpush1.bf16.msra.mxu0 %v8930
    %10297 = vmatprep.subr.bf16.mxu0 %v8927
    %10298 = vmatpush1.bf16.msra.mxu0 %v8926
    %10299 = vmatprep.subr.bf16.mxu0 %v8923
    %10300 = vmatpush1.bf16.msra.mxu0 %v8922
    %10301 = vmatprep.subr.bf16.mxu0 %v8919
    %10302 = vmatpush1.bf16.msra.mxu0 %v8918
    %10303 = vmatprep.subr.bf16.mxu0 %v8915
    %10304 = vmatpush1.bf16.msra.mxu0 %v8914
    %10305 = vmatprep.subr.bf16.mxu0 %v8911
    %10306 = vmatpush1.bf16.msra.mxu0 %v8910
    %10307 = vmatprep.subr.bf16.mxu0 %v8907
    %10308 = vmatpush1.bf16.msra.mxu0 %v8906
    %10309 = vmatprep.subr.bf16.mxu0 %v8967
    %10310 = vmatpush2.bf16.msra.mxu0 %v8966
    %10311 = vmatprep.subr.bf16.mxu0 %v8963
    %10312 = vmatpush2.bf16.msra.mxu0 %v8962
    %10313 = vmatprep.subr.bf16.mxu0 %v8959
    %10314 = vmatpush2.bf16.msra.mxu0 %v8958
    %10315 = vmatprep.subr.bf16.mxu0 %v8955
    %10316 = vmatpush2.bf16.msra.mxu0 %v8954
    %10317 = vmatprep.subr.bf16.mxu0 %v8951
    %10318 = vmatpush2.bf16.msra.mxu0 %v8950
    %10319 = vmatprep.subr.bf16.mxu0 %v8947
    %10320 = vmatpush2.bf16.msra.mxu0 %v8946
    %10321 = vmatprep.subr.bf16.mxu0 %v8943
    %10322 = vmatpush2.bf16.msra.mxu0 %v8942
    %10323 = vmatprep.subr.bf16.mxu0 %v8939
    %10324 = vmatpush2.bf16.msra.mxu0 %v8938
    %10325 = vmatprep.mubr.bf16.mxu0 %v5200
    %10326 = vmatmul.mubr.bf16.gmra.mxu0 %v5196
    %v10327 = vpop.f32.mrf.mxu0
    %v10328 = vadd.f32 %v10287, %v10327
    %v10329 = vpop.f32.mrf.mxu0
    %v10330 = vadd.f32 %v10289, %v10329
    %v10331 = vpop.f32.mrf.mxu0
    %v10332 = vpop.f32.mrf.mxu0
    %10333 = vdwg.mxu0
    %10334 = vmatprep.subr.bf16.mxu0 %v8999
    %10335 = vmatpush1.bf16.msra.mxu0 %v8998
    %10336 = vmatprep.subr.bf16.mxu0 %v8995
    %10337 = vmatpush1.bf16.msra.mxu0 %v8994
    %10338 = vmatprep.subr.bf16.mxu0 %v8991
    %10339 = vmatpush1.bf16.msra.mxu0 %v8990
    %10340 = vmatprep.subr.bf16.mxu0 %v8987
    %10341 = vmatpush1.bf16.msra.mxu0 %v8986
    %10342 = vmatprep.subr.bf16.mxu0 %v8983
    %10343 = vmatpush1.bf16.msra.mxu0 %v8982
    %10344 = vmatprep.subr.bf16.mxu0 %v8979
    %10345 = vmatpush1.bf16.msra.mxu0 %v8978
    %10346 = vmatprep.subr.bf16.mxu0 %v8975
    %10347 = vmatpush1.bf16.msra.mxu0 %v8974
    %10348 = vmatprep.subr.bf16.mxu0 %v8971
    %10349 = vmatpush1.bf16.msra.mxu0 %v8970
    %10350 = vmatprep.subr.bf16.mxu0 %v9031
    %10351 = vmatpush2.bf16.msra.mxu0 %v9030
    %10352 = vmatprep.subr.bf16.mxu0 %v9027
    %10353 = vmatpush2.bf16.msra.mxu0 %v9026
    %10354 = vmatprep.subr.bf16.mxu0 %v9023
    %10355 = vmatpush2.bf16.msra.mxu0 %v9022
    %10356 = vmatprep.subr.bf16.mxu0 %v9019
    %10357 = vmatpush2.bf16.msra.mxu0 %v9018
    %10358 = vmatprep.subr.bf16.mxu0 %v9015
    %10359 = vmatpush2.bf16.msra.mxu0 %v9014
    %10360 = vmatprep.subr.bf16.mxu0 %v9011
    %10361 = vmatpush2.bf16.msra.mxu0 %v9010
    %10362 = vmatprep.subr.bf16.mxu0 %v9007
    %10363 = vmatpush2.bf16.msra.mxu0 %v9006
    %10364 = vmatprep.subr.bf16.mxu0 %v9003
    %10365 = vmatpush2.bf16.msra.mxu0 %v9002
    %10366 = vmatprep.mubr.bf16.mxu0 %v5208
    %10367 = vmatmul.mubr.bf16.gmra.mxu0 %v5204
    %v10368 = vpop.f32.mrf.mxu0
    %v10369 = vadd.f32 %v10328, %v10368
    %v10370 = vpop.f32.mrf.mxu0
    %v10371 = vadd.f32 %v10330, %v10370
    %v10372 = vpop.f32.mrf.mxu0
    %v10373 = vpop.f32.mrf.mxu0
    %10374 = vdwg.mxu0
    %10375 = vmatprep.subr.bf16.mxu0 %v9063
    %10376 = vmatpush1.bf16.msra.mxu0 %v9062
    %10377 = vmatprep.subr.bf16.mxu0 %v9059
    %10378 = vmatpush1.bf16.msra.mxu0 %v9058
    %10379 = vmatprep.subr.bf16.mxu0 %v9055
    %10380 = vmatpush1.bf16.msra.mxu0 %v9054
    %10381 = vmatprep.subr.bf16.mxu0 %v9051
    %10382 = vmatpush1.bf16.msra.mxu0 %v9050
    %10383 = vmatprep.subr.bf16.mxu0 %v9047
    %10384 = vmatpush1.bf16.msra.mxu0 %v9046
    %10385 = vmatprep.subr.bf16.mxu0 %v9043
    %10386 = vmatpush1.bf16.msra.mxu0 %v9042
    %10387 = vmatprep.subr.bf16.mxu0 %v9039
    %10388 = vmatpush1.bf16.msra.mxu0 %v9038
    %10389 = vmatprep.subr.bf16.mxu0 %v9035
    %10390 = vmatpush1.bf16.msra.mxu0 %v9034
    %10391 = vmatprep.subr.bf16.mxu0 %v9095
    %10392 = vmatpush2.bf16.msra.mxu0 %v9094
    %10393 = vmatprep.subr.bf16.mxu0 %v9091
    %10394 = vmatpush2.bf16.msra.mxu0 %v9090
    %10395 = vmatprep.subr.bf16.mxu0 %v9087
    %10396 = vmatpush2.bf16.msra.mxu0 %v9086
    %10397 = vmatprep.subr.bf16.mxu0 %v9083
    %10398 = vmatpush2.bf16.msra.mxu0 %v9082
    %10399 = vmatprep.subr.bf16.mxu0 %v9079
    %10400 = vmatpush2.bf16.msra.mxu0 %v9078
    %10401 = vmatprep.subr.bf16.mxu0 %v9075
    %10402 = vmatpush2.bf16.msra.mxu0 %v9074
    %10403 = vmatprep.subr.bf16.mxu0 %v9071
    %10404 = vmatpush2.bf16.msra.mxu0 %v9070
    %10405 = vmatprep.subr.bf16.mxu0 %v9067
    %10406 = vmatpush2.bf16.msra.mxu0 %v9066
    %10407 = vmatprep.mubr.bf16.mxu0 %v5216
    %10408 = vmatmul.mubr.bf16.gmra.mxu0 %v5212
    %v10409 = vpop.f32.mrf.mxu0
    %v10410 = vadd.f32 %v10369, %v10409
    %v10411 = vpop.f32.mrf.mxu0
    %v10412 = vadd.f32 %v10371, %v10411
    %v10413 = vpop.f32.mrf.mxu0
    %v10414 = vpop.f32.mrf.mxu0
    %10415 = vdwg.mxu0
    %10416 = vmatprep.subr.bf16.mxu0 %v9127
    %10417 = vmatpush1.bf16.msra.mxu0 %v9126
    %10418 = vmatprep.subr.bf16.mxu0 %v9123
    %10419 = vmatpush1.bf16.msra.mxu0 %v9122
    %10420 = vmatprep.subr.bf16.mxu0 %v9119
    %10421 = vmatpush1.bf16.msra.mxu0 %v9118
    %10422 = vmatprep.subr.bf16.mxu0 %v9115
    %10423 = vmatpush1.bf16.msra.mxu0 %v9114
    %10424 = vmatprep.subr.bf16.mxu0 %v9111
    %10425 = vmatpush1.bf16.msra.mxu0 %v9110
    %10426 = vmatprep.subr.bf16.mxu0 %v9107
    %10427 = vmatpush1.bf16.msra.mxu0 %v9106
    %10428 = vmatprep.subr.bf16.mxu0 %v9103
    %10429 = vmatpush1.bf16.msra.mxu0 %v9102
    %10430 = vmatprep.subr.bf16.mxu0 %v9099
    %10431 = vmatpush1.bf16.msra.mxu0 %v9098
    %10432 = vmatprep.subr.bf16.mxu0 %v9159
    %10433 = vmatpush2.bf16.msra.mxu0 %v9158
    %10434 = vmatprep.subr.bf16.mxu0 %v9155
    %10435 = vmatpush2.bf16.msra.mxu0 %v9154
    %10436 = vmatprep.subr.bf16.mxu0 %v9151
    %10437 = vmatpush2.bf16.msra.mxu0 %v9150
    %10438 = vmatprep.subr.bf16.mxu0 %v9147
    %10439 = vmatpush2.bf16.msra.mxu0 %v9146
    %10440 = vmatprep.subr.bf16.mxu0 %v9143
    %10441 = vmatpush2.bf16.msra.mxu0 %v9142
    %10442 = vmatprep.subr.bf16.mxu0 %v9139
    %10443 = vmatpush2.bf16.msra.mxu0 %v9138
    %10444 = vmatprep.subr.bf16.mxu0 %v9135
    %10445 = vmatpush2.bf16.msra.mxu0 %v9134
    %10446 = vmatprep.subr.bf16.mxu0 %v9131
    %10447 = vmatpush2.bf16.msra.mxu0 %v9130
    %10448 = vmatprep.mubr.bf16.mxu0 %v5224
    %10449 = vmatmul.mubr.bf16.gmra.mxu0 %v5220
    %v10450 = vpop.f32.mrf.mxu0
    %v10451 = vadd.f32 %v10410, %v10450
    %v10452 = vpop.f32.mrf.mxu0
    %v10453 = vadd.f32 %v10412, %v10452
    %v10454 = vpop.f32.mrf.mxu0
    %v10455 = vpop.f32.mrf.mxu0
    %10456 = vdwg.mxu0
    %10457 = vmatprep.subr.bf16.mxu0 0
    %10458 = vmatpush1.bf16.msra.mxu0 0
    %10459 = vmatprep.subr.bf16.mxu0 0
    %10460 = vmatpush1.bf16.msra.mxu0 0
    %10461 = vmatprep.subr.bf16.mxu0 0
    %10462 = vmatpush1.bf16.msra.mxu0 0
    %10463 = vmatprep.subr.bf16.mxu0 0
    %10464 = vmatpush1.bf16.msra.mxu0 0
    %10465 = vmatprep.subr.bf16.mxu0 %v9175
    %10466 = vmatpush1.bf16.msra.mxu0 %v9174
    %10467 = vmatprep.subr.bf16.mxu0 %v9171
    %10468 = vmatpush1.bf16.msra.mxu0 %v9170
    %10469 = vmatprep.subr.bf16.mxu0 %v9167
    %10470 = vmatpush1.bf16.msra.mxu0 %v9166
    %10471 = vmatprep.subr.bf16.mxu0 %v9163
    %10472 = vmatpush1.bf16.msra.mxu0 %v9162
    %10473 = vmatprep.subr.bf16.mxu0 0
    %10474 = vmatpush2.bf16.msra.mxu0 0
    %10475 = vmatprep.subr.bf16.mxu0 0
    %10476 = vmatpush2.bf16.msra.mxu0 0
    %10477 = vmatprep.subr.bf16.mxu0 0
    %10478 = vmatpush2.bf16.msra.mxu0 0
    %10479 = vmatprep.subr.bf16.mxu0 0
    %10480 = vmatpush2.bf16.msra.mxu0 0
    %10481 = vmatprep.subr.bf16.mxu0 0
    %10482 = vmatpush2.bf16.msra.mxu0 0
    %10483 = vmatprep.subr.bf16.mxu0 0
    %10484 = vmatpush2.bf16.msra.mxu0 0
    %10485 = vmatprep.subr.bf16.mxu0 0
    %10486 = vmatpush2.bf16.msra.mxu0 0
    %10487 = vmatprep.subr.bf16.mxu0 0
    %10488 = vmatpush2.bf16.msra.mxu0 0
    %10489 = vmatprep.mubr.bf16.mxu0 0
    %10490 = vmatmul.mubr.bf16.gmra.mxu0 %v9963
    %v10491 = vpop.f32.mrf.mxu0
    %v10492 = vadd.f32 %v10451, %v10491
    %v10493 = vpop.f32.mrf.mxu0
    %v10494 = vadd.f32 %v10453, %v10493
    %v10495 = vpop.f32.mrf.mxu0
    %v10496 = vpop.f32.mrf.mxu0
    %10497 = vdwg.mxu0
    %10498 = vmatprep.subr.bf16.mxu0 %v8425
    %10499 = vmatpush1.bf16.msra.mxu0 %v8424
    %10500 = vmatprep.subr.bf16.mxu0 %v8421
    %10501 = vmatpush1.bf16.msra.mxu0 %v8420
    %10502 = vmatprep.subr.bf16.mxu0 %v8417
    %10503 = vmatpush1.bf16.msra.mxu0 %v8416
    %10504 = vmatprep.subr.bf16.mxu0 %v8413
    %10505 = vmatpush1.bf16.msra.mxu0 %v8412
    %10506 = vmatprep.subr.bf16.mxu0 %v8409
    %10507 = vmatpush1.bf16.msra.mxu0 %v8408
    %10508 = vmatprep.subr.bf16.mxu0 %v8405
    %10509 = vmatpush1.bf16.msra.mxu0 %v8404
    %10510 = vmatprep.subr.bf16.mxu0 %v8401
    %10511 = vmatpush1.bf16.msra.mxu0 %v8400
    %10512 = vmatprep.subr.bf16.mxu0 %v8397
    %10513 = vmatpush1.bf16.msra.mxu0 %v8396
    %10514 = vmatprep.subr.bf16.mxu0 %v8457
    %10515 = vmatpush2.bf16.msra.mxu0 %v8456
    %10516 = vmatprep.subr.bf16.mxu0 %v8453
    %10517 = vmatpush2.bf16.msra.mxu0 %v8452
    %10518 = vmatprep.subr.bf16.mxu0 %v8449
    %10519 = vmatpush2.bf16.msra.mxu0 %v8448
    %10520 = vmatprep.subr.bf16.mxu0 %v8445
    %10521 = vmatpush2.bf16.msra.mxu0 %v8444
    %10522 = vmatprep.subr.bf16.mxu0 %v8441
    %10523 = vmatpush2.bf16.msra.mxu0 %v8440
    %10524 = vmatprep.subr.bf16.mxu0 %v8437
    %10525 = vmatpush2.bf16.msra.mxu0 %v8436
    %10526 = vmatprep.subr.bf16.mxu0 %v8433
    %10527 = vmatpush2.bf16.msra.mxu0 %v8432
    %10528 = vmatprep.subr.bf16.mxu0 %v8429
    %10529 = vmatpush2.bf16.msra.mxu0 %v8428
    %10530 = vmatprep.mubr.bf16.mxu0 %v5012
    %10531 = vmatmul.mubr.bf16.gmra.mxu0 %v5008
    %v10532 = vpop.f32.mrf.mxu0
    %v10533 = vadd.f32 0.0, %v10532
    %v10534 = vpop.f32.mrf.mxu0
    %v10535 = vadd.f32 0.0, %v10534
    %v10536 = vpop.f32.mrf.mxu0
    %v10537 = vpop.f32.mrf.mxu0
    %10538 = vdwg.mxu0
    %10539 = vmatprep.subr.bf16.mxu0 %v8489
    %10540 = vmatpush1.bf16.msra.mxu0 %v8488
    %10541 = vmatprep.subr.bf16.mxu0 %v8485
    %10542 = vmatpush1.bf16.msra.mxu0 %v8484
    %10543 = vmatprep.subr.bf16.mxu0 %v8481
    %10544 = vmatpush1.bf16.msra.mxu0 %v8480
    %10545 = vmatprep.subr.bf16.mxu0 %v8477
    %10546 = vmatpush1.bf16.msra.mxu0 %v8476
    %10547 = vmatprep.subr.bf16.mxu0 %v8473
    %10548 = vmatpush1.bf16.msra.mxu0 %v8472
    %10549 = vmatprep.subr.bf16.mxu0 %v8469
    %10550 = vmatpush1.bf16.msra.mxu0 %v8468
    %10551 = vmatprep.subr.bf16.mxu0 %v8465
    %10552 = vmatpush1.bf16.msra.mxu0 %v8464
    %10553 = vmatprep.subr.bf16.mxu0 %v8461
    %10554 = vmatpush1.bf16.msra.mxu0 %v8460
    %10555 = vmatprep.subr.bf16.mxu0 %v8521
    %10556 = vmatpush2.bf16.msra.mxu0 %v8520
    %10557 = vmatprep.subr.bf16.mxu0 %v8517
    %10558 = vmatpush2.bf16.msra.mxu0 %v8516
    %10559 = vmatprep.subr.bf16.mxu0 %v8513
    %10560 = vmatpush2.bf16.msra.mxu0 %v8512
    %10561 = vmatprep.subr.bf16.mxu0 %v8509
    %10562 = vmatpush2.bf16.msra.mxu0 %v8508
    %10563 = vmatprep.subr.bf16.mxu0 %v8505
    %10564 = vmatpush2.bf16.msra.mxu0 %v8504
    %10565 = vmatprep.subr.bf16.mxu0 %v8501
    %10566 = vmatpush2.bf16.msra.mxu0 %v8500
    %10567 = vmatprep.subr.bf16.mxu0 %v8497
    %10568 = vmatpush2.bf16.msra.mxu0 %v8496
    %10569 = vmatprep.subr.bf16.mxu0 %v8493
    %10570 = vmatpush2.bf16.msra.mxu0 %v8492
    %10571 = vmatprep.mubr.bf16.mxu0 %v5020
    %10572 = vmatmul.mubr.bf16.gmra.mxu0 %v5016
    %v10573 = vpop.f32.mrf.mxu0
    %v10574 = vadd.f32 %v10533, %v10573
    %v10575 = vpop.f32.mrf.mxu0
    %v10576 = vadd.f32 %v10535, %v10575
    %v10577 = vpop.f32.mrf.mxu0
    %v10578 = vpop.f32.mrf.mxu0
    %10579 = vdwg.mxu0
    %10580 = vmatprep.subr.bf16.mxu0 %v8553
    %10581 = vmatpush1.bf16.msra.mxu0 %v8552
    %10582 = vmatprep.subr.bf16.mxu0 %v8549
    %10583 = vmatpush1.bf16.msra.mxu0 %v8548
    %10584 = vmatprep.subr.bf16.mxu0 %v8545
    %10585 = vmatpush1.bf16.msra.mxu0 %v8544
    %10586 = vmatprep.subr.bf16.mxu0 %v8541
    %10587 = vmatpush1.bf16.msra.mxu0 %v8540
    %10588 = vmatprep.subr.bf16.mxu0 %v8537
    %10589 = vmatpush1.bf16.msra.mxu0 %v8536
    %10590 = vmatprep.subr.bf16.mxu0 %v8533
    %10591 = vmatpush1.bf16.msra.mxu0 %v8532
    %10592 = vmatprep.subr.bf16.mxu0 %v8529
    %10593 = vmatpush1.bf16.msra.mxu0 %v8528
    %10594 = vmatprep.subr.bf16.mxu0 %v8525
    %10595 = vmatpush1.bf16.msra.mxu0 %v8524
    %10596 = vmatprep.subr.bf16.mxu0 %v8585
    %10597 = vmatpush2.bf16.msra.mxu0 %v8584
    %10598 = vmatprep.subr.bf16.mxu0 %v8581
    %10599 = vmatpush2.bf16.msra.mxu0 %v8580
    %10600 = vmatprep.subr.bf16.mxu0 %v8577
    %10601 = vmatpush2.bf16.msra.mxu0 %v8576
    %10602 = vmatprep.subr.bf16.mxu0 %v8573
    %10603 = vmatpush2.bf16.msra.mxu0 %v8572
    %10604 = vmatprep.subr.bf16.mxu0 %v8569
    %10605 = vmatpush2.bf16.msra.mxu0 %v8568
    %10606 = vmatprep.subr.bf16.mxu0 %v8565
    %10607 = vmatpush2.bf16.msra.mxu0 %v8564
    %10608 = vmatprep.subr.bf16.mxu0 %v8561
    %10609 = vmatpush2.bf16.msra.mxu0 %v8560
    %10610 = vmatprep.subr.bf16.mxu0 %v8557
    %10611 = vmatpush2.bf16.msra.mxu0 %v8556
    %10612 = vmatprep.mubr.bf16.mxu0 %v5028
    %10613 = vmatmul.mubr.bf16.gmra.mxu0 %v5024
    %v10614 = vpop.f32.mrf.mxu0
    %v10615 = vadd.f32 %v10574, %v10614
    %v10616 = vpop.f32.mrf.mxu0
    %v10617 = vadd.f32 %v10576, %v10616
    %v10618 = vpop.f32.mrf.mxu0
    %v10619 = vpop.f32.mrf.mxu0
    %10620 = vdwg.mxu0
    %10621 = vmatprep.subr.bf16.mxu0 %v8617
    %10622 = vmatpush1.bf16.msra.mxu0 %v8616
    %10623 = vmatprep.subr.bf16.mxu0 %v8613
    %10624 = vmatpush1.bf16.msra.mxu0 %v8612
    %10625 = vmatprep.subr.bf16.mxu0 %v8609
    %10626 = vmatpush1.bf16.msra.mxu0 %v8608
    %10627 = vmatprep.subr.bf16.mxu0 %v8605
    %10628 = vmatpush1.bf16.msra.mxu0 %v8604
    %10629 = vmatprep.subr.bf16.mxu0 %v8601
    %10630 = vmatpush1.bf16.msra.mxu0 %v8600
    %10631 = vmatprep.subr.bf16.mxu0 %v8597
    %10632 = vmatpush1.bf16.msra.mxu0 %v8596
    %10633 = vmatprep.subr.bf16.mxu0 %v8593
    %10634 = vmatpush1.bf16.msra.mxu0 %v8592
    %10635 = vmatprep.subr.bf16.mxu0 %v8589
    %10636 = vmatpush1.bf16.msra.mxu0 %v8588
    %10637 = vmatprep.subr.bf16.mxu0 %v8649
    %10638 = vmatpush2.bf16.msra.mxu0 %v8648
    %10639 = vmatprep.subr.bf16.mxu0 %v8645
    %10640 = vmatpush2.bf16.msra.mxu0 %v8644
    %10641 = vmatprep.subr.bf16.mxu0 %v8641
    %10642 = vmatpush2.bf16.msra.mxu0 %v8640
    %10643 = vmatprep.subr.bf16.mxu0 %v8637
    %10644 = vmatpush2.bf16.msra.mxu0 %v8636
    %10645 = vmatprep.subr.bf16.mxu0 %v8633
    %10646 = vmatpush2.bf16.msra.mxu0 %v8632
    %10647 = vmatprep.subr.bf16.mxu0 %v8629
    %10648 = vmatpush2.bf16.msra.mxu0 %v8628
    %10649 = vmatprep.subr.bf16.mxu0 %v8625
    %10650 = vmatpush2.bf16.msra.mxu0 %v8624
    %10651 = vmatprep.subr.bf16.mxu0 %v8621
    %10652 = vmatpush2.bf16.msra.mxu0 %v8620
    %10653 = vmatprep.mubr.bf16.mxu0 %v5036
    %10654 = vmatmul.mubr.bf16.gmra.mxu0 %v5032
    %v10655 = vpop.f32.mrf.mxu0
    %v10656 = vadd.f32 %v10615, %v10655
    %v10657 = vpop.f32.mrf.mxu0
    %v10658 = vadd.f32 %v10617, %v10657
    %v10659 = vpop.f32.mrf.mxu0
    %v10660 = vpop.f32.mrf.mxu0
    %10661 = vdwg.mxu0
    %10662 = vmatprep.subr.bf16.mxu0 %v8681
    %10663 = vmatpush1.bf16.msra.mxu0 %v8680
    %10664 = vmatprep.subr.bf16.mxu0 %v8677
    %10665 = vmatpush1.bf16.msra.mxu0 %v8676
    %10666 = vmatprep.subr.bf16.mxu0 %v8673
    %10667 = vmatpush1.bf16.msra.mxu0 %v8672
    %10668 = vmatprep.subr.bf16.mxu0 %v8669
    %10669 = vmatpush1.bf16.msra.mxu0 %v8668
    %10670 = vmatprep.subr.bf16.mxu0 %v8665
    %10671 = vmatpush1.bf16.msra.mxu0 %v8664
    %10672 = vmatprep.subr.bf16.mxu0 %v8661
    %10673 = vmatpush1.bf16.msra.mxu0 %v8660
    %10674 = vmatprep.subr.bf16.mxu0 %v8657
    %10675 = vmatpush1.bf16.msra.mxu0 %v8656
    %10676 = vmatprep.subr.bf16.mxu0 %v8653
    %10677 = vmatpush1.bf16.msra.mxu0 %v8652
    %10678 = vmatprep.subr.bf16.mxu0 %v8713
    %10679 = vmatpush2.bf16.msra.mxu0 %v8712
    %10680 = vmatprep.subr.bf16.mxu0 %v8709
    %10681 = vmatpush2.bf16.msra.mxu0 %v8708
    %10682 = vmatprep.subr.bf16.mxu0 %v8705
    %10683 = vmatpush2.bf16.msra.mxu0 %v8704
    %10684 = vmatprep.subr.bf16.mxu0 %v8701
    %10685 = vmatpush2.bf16.msra.mxu0 %v8700
    %10686 = vmatprep.subr.bf16.mxu0 %v8697
    %10687 = vmatpush2.bf16.msra.mxu0 %v8696
    %10688 = vmatprep.subr.bf16.mxu0 %v8693
    %10689 = vmatpush2.bf16.msra.mxu0 %v8692
    %10690 = vmatprep.subr.bf16.mxu0 %v8689
    %10691 = vmatpush2.bf16.msra.mxu0 %v8688
    %10692 = vmatprep.subr.bf16.mxu0 %v8685
    %10693 = vmatpush2.bf16.msra.mxu0 %v8684
    %10694 = vmatprep.mubr.bf16.mxu0 %v5235
    %10695 = vmatmul.mubr.bf16.gmra.mxu0 %v5234
    %v10696 = vpop.f32.mrf.mxu0
    %v10697 = vadd.f32 %v10656, %v10696
    %v10698 = vpop.f32.mrf.mxu0
    %v10699 = vadd.f32 %v10658, %v10698
    %v10700 = vpop.f32.mrf.mxu0
    %v10701 = vpop.f32.mrf.mxu0
    %10702 = vdwg.mxu0
    %10703 = vmatprep.subr.bf16.mxu0 %v8745
    %10704 = vmatpush1.bf16.msra.mxu0 %v8744
    %10705 = vmatprep.subr.bf16.mxu0 %v8741
    %10706 = vmatpush1.bf16.msra.mxu0 %v8740
    %10707 = vmatprep.subr.bf16.mxu0 %v8737
    %10708 = vmatpush1.bf16.msra.mxu0 %v8736
    %10709 = vmatprep.subr.bf16.mxu0 %v8733
    %10710 = vmatpush1.bf16.msra.mxu0 %v8732
    %10711 = vmatprep.subr.bf16.mxu0 %v8729
    %10712 = vmatpush1.bf16.msra.mxu0 %v8728
    %10713 = vmatprep.subr.bf16.mxu0 %v8725
    %10714 = vmatpush1.bf16.msra.mxu0 %v8724
    %10715 = vmatprep.subr.bf16.mxu0 %v8721
    %10716 = vmatpush1.bf16.msra.mxu0 %v8720
    %10717 = vmatprep.subr.bf16.mxu0 %v8717
    %10718 = vmatpush1.bf16.msra.mxu0 %v8716
    %10719 = vmatprep.subr.bf16.mxu0 %v8777
    %10720 = vmatpush2.bf16.msra.mxu0 %v8776
    %10721 = vmatprep.subr.bf16.mxu0 %v8773
    %10722 = vmatpush2.bf16.msra.mxu0 %v8772
    %10723 = vmatprep.subr.bf16.mxu0 %v8769
    %10724 = vmatpush2.bf16.msra.mxu0 %v8768
    %10725 = vmatprep.subr.bf16.mxu0 %v8765
    %10726 = vmatpush2.bf16.msra.mxu0 %v8764
    %10727 = vmatprep.subr.bf16.mxu0 %v8761
    %10728 = vmatpush2.bf16.msra.mxu0 %v8760
    %10729 = vmatprep.subr.bf16.mxu0 %v8757
    %10730 = vmatpush2.bf16.msra.mxu0 %v8756
    %10731 = vmatprep.subr.bf16.mxu0 %v8753
    %10732 = vmatpush2.bf16.msra.mxu0 %v8752
    %10733 = vmatprep.subr.bf16.mxu0 %v8749
    %10734 = vmatpush2.bf16.msra.mxu0 %v8748
    %10735 = vmatprep.mubr.bf16.mxu0 %v5237
    %10736 = vmatmul.mubr.bf16.gmra.mxu0 %v5236
    %v10737 = vpop.f32.mrf.mxu0
    %v10738 = vadd.f32 %v10697, %v10737
    %v10739 = vpop.f32.mrf.mxu0
    %v10740 = vadd.f32 %v10699, %v10739
    %v10741 = vpop.f32.mrf.mxu0
    %v10742 = vpop.f32.mrf.mxu0
    %10743 = vdwg.mxu0
    %10744 = vmatprep.subr.bf16.mxu0 %v8809
    %10745 = vmatpush1.bf16.msra.mxu0 %v8808
    %10746 = vmatprep.subr.bf16.mxu0 %v8805
    %10747 = vmatpush1.bf16.msra.mxu0 %v8804
    %10748 = vmatprep.subr.bf16.mxu0 %v8801
    %10749 = vmatpush1.bf16.msra.mxu0 %v8800
    %10750 = vmatprep.subr.bf16.mxu0 %v8797
    %10751 = vmatpush1.bf16.msra.mxu0 %v8796
    %10752 = vmatprep.subr.bf16.mxu0 %v8793
    %10753 = vmatpush1.bf16.msra.mxu0 %v8792
    %10754 = vmatprep.subr.bf16.mxu0 %v8789
    %10755 = vmatpush1.bf16.msra.mxu0 %v8788
    %10756 = vmatprep.subr.bf16.mxu0 %v8785
    %10757 = vmatpush1.bf16.msra.mxu0 %v8784
    %10758 = vmatprep.subr.bf16.mxu0 %v8781
    %10759 = vmatpush1.bf16.msra.mxu0 %v8780
    %10760 = vmatprep.subr.bf16.mxu0 %v8841
    %10761 = vmatpush2.bf16.msra.mxu0 %v8840
    %10762 = vmatprep.subr.bf16.mxu0 %v8837
    %10763 = vmatpush2.bf16.msra.mxu0 %v8836
    %10764 = vmatprep.subr.bf16.mxu0 %v8833
    %10765 = vmatpush2.bf16.msra.mxu0 %v8832
    %10766 = vmatprep.subr.bf16.mxu0 %v8829
    %10767 = vmatpush2.bf16.msra.mxu0 %v8828
    %10768 = vmatprep.subr.bf16.mxu0 %v8825
    %10769 = vmatpush2.bf16.msra.mxu0 %v8824
    %10770 = vmatprep.subr.bf16.mxu0 %v8821
    %10771 = vmatpush2.bf16.msra.mxu0 %v8820
    %10772 = vmatprep.subr.bf16.mxu0 %v8817
    %10773 = vmatpush2.bf16.msra.mxu0 %v8816
    %10774 = vmatprep.subr.bf16.mxu0 %v8813
    %10775 = vmatpush2.bf16.msra.mxu0 %v8812
    %10776 = vmatprep.mubr.bf16.mxu0 %v5239
    %10777 = vmatmul.mubr.bf16.gmra.mxu0 %v5238
    %v10778 = vpop.f32.mrf.mxu0
    %v10779 = vadd.f32 %v10738, %v10778
    %v10780 = vpop.f32.mrf.mxu0
    %v10781 = vadd.f32 %v10740, %v10780
    %v10782 = vpop.f32.mrf.mxu0
    %v10783 = vpop.f32.mrf.mxu0
    %10784 = vdwg.mxu0
    %10785 = vmatprep.subr.bf16.mxu0 %v8873
    %10786 = vmatpush1.bf16.msra.mxu0 %v8872
    %10787 = vmatprep.subr.bf16.mxu0 %v8869
    %10788 = vmatpush1.bf16.msra.mxu0 %v8868
    %10789 = vmatprep.subr.bf16.mxu0 %v8865
    %10790 = vmatpush1.bf16.msra.mxu0 %v8864
    %10791 = vmatprep.subr.bf16.mxu0 %v8861
    %10792 = vmatpush1.bf16.msra.mxu0 %v8860
    %10793 = vmatprep.subr.bf16.mxu0 %v8857
    %10794 = vmatpush1.bf16.msra.mxu0 %v8856
    %10795 = vmatprep.subr.bf16.mxu0 %v8853
    %10796 = vmatpush1.bf16.msra.mxu0 %v8852
    %10797 = vmatprep.subr.bf16.mxu0 %v8849
    %10798 = vmatpush1.bf16.msra.mxu0 %v8848
    %10799 = vmatprep.subr.bf16.mxu0 %v8845
    %10800 = vmatpush1.bf16.msra.mxu0 %v8844
    %10801 = vmatprep.subr.bf16.mxu0 %v8905
    %10802 = vmatpush2.bf16.msra.mxu0 %v8904
    %10803 = vmatprep.subr.bf16.mxu0 %v8901
    %10804 = vmatpush2.bf16.msra.mxu0 %v8900
    %10805 = vmatprep.subr.bf16.mxu0 %v8897
    %10806 = vmatpush2.bf16.msra.mxu0 %v8896
    %10807 = vmatprep.subr.bf16.mxu0 %v8893
    %10808 = vmatpush2.bf16.msra.mxu0 %v8892
    %10809 = vmatprep.subr.bf16.mxu0 %v8889
    %10810 = vmatpush2.bf16.msra.mxu0 %v8888
    %10811 = vmatprep.subr.bf16.mxu0 %v8885
    %10812 = vmatpush2.bf16.msra.mxu0 %v8884
    %10813 = vmatprep.subr.bf16.mxu0 %v8881
    %10814 = vmatpush2.bf16.msra.mxu0 %v8880
    %10815 = vmatprep.subr.bf16.mxu0 %v8877
    %10816 = vmatpush2.bf16.msra.mxu0 %v8876
    %10817 = vmatprep.mubr.bf16.mxu0 %v5241
    %10818 = vmatmul.mubr.bf16.gmra.mxu0 %v5240
    %v10819 = vpop.f32.mrf.mxu0
    %v10820 = vadd.f32 %v10779, %v10819
    %v10821 = vpop.f32.mrf.mxu0
    %v10822 = vadd.f32 %v10781, %v10821
    %v10823 = vpop.f32.mrf.mxu0
    %v10824 = vpop.f32.mrf.mxu0
    %10825 = vdwg.mxu0
    %10826 = vmatprep.subr.bf16.mxu0 %v8937
    %10827 = vmatpush1.bf16.msra.mxu0 %v8936
    %10828 = vmatprep.subr.bf16.mxu0 %v8933
    %10829 = vmatpush1.bf16.msra.mxu0 %v8932
    %10830 = vmatprep.subr.bf16.mxu0 %v8929
    %10831 = vmatpush1.bf16.msra.mxu0 %v8928
    %10832 = vmatprep.subr.bf16.mxu0 %v8925
    %10833 = vmatpush1.bf16.msra.mxu0 %v8924
    %10834 = vmatprep.subr.bf16.mxu0 %v8921
    %10835 = vmatpush1.bf16.msra.mxu0 %v8920
    %10836 = vmatprep.subr.bf16.mxu0 %v8917
    %10837 = vmatpush1.bf16.msra.mxu0 %v8916
    %10838 = vmatprep.subr.bf16.mxu0 %v8913
    %10839 = vmatpush1.bf16.msra.mxu0 %v8912
    %10840 = vmatprep.subr.bf16.mxu0 %v8909
    %10841 = vmatpush1.bf16.msra.mxu0 %v8908
    %10842 = vmatprep.subr.bf16.mxu0 %v8969
    %10843 = vmatpush2.bf16.msra.mxu0 %v8968
    %10844 = vmatprep.subr.bf16.mxu0 %v8965
    %10845 = vmatpush2.bf16.msra.mxu0 %v8964
    %10846 = vmatprep.subr.bf16.mxu0 %v8961
    %10847 = vmatpush2.bf16.msra.mxu0 %v8960
    %10848 = vmatprep.subr.bf16.mxu0 %v8957
    %10849 = vmatpush2.bf16.msra.mxu0 %v8956
    %10850 = vmatprep.subr.bf16.mxu0 %v8953
    %10851 = vmatpush2.bf16.msra.mxu0 %v8952
    %10852 = vmatprep.subr.bf16.mxu0 %v8949
    %10853 = vmatpush2.bf16.msra.mxu0 %v8948
    %10854 = vmatprep.subr.bf16.mxu0 %v8945
    %10855 = vmatpush2.bf16.msra.mxu0 %v8944
    %10856 = vmatprep.subr.bf16.mxu0 %v8941
    %10857 = vmatpush2.bf16.msra.mxu0 %v8940
    %10858 = vmatprep.mubr.bf16.mxu0 %v5200
    %10859 = vmatmul.mubr.bf16.gmra.mxu0 %v5196
    %v10860 = vpop.f32.mrf.mxu0
    %v10861 = vadd.f32 %v10820, %v10860
    %v10862 = vpop.f32.mrf.mxu0
    %v10863 = vadd.f32 %v10822, %v10862
    %v10864 = vpop.f32.mrf.mxu0
    %v10865 = vpop.f32.mrf.mxu0
    %10866 = vdwg.mxu0
    %10867 = vmatprep.subr.bf16.mxu0 %v9001
    %10868 = vmatpush1.bf16.msra.mxu0 %v9000
    %10869 = vmatprep.subr.bf16.mxu0 %v8997
    %10870 = vmatpush1.bf16.msra.mxu0 %v8996
    %10871 = vmatprep.subr.bf16.mxu0 %v8993
    %10872 = vmatpush1.bf16.msra.mxu0 %v8992
    %10873 = vmatprep.subr.bf16.mxu0 %v8989
    %10874 = vmatpush1.bf16.msra.mxu0 %v8988
    %10875 = vmatprep.subr.bf16.mxu0 %v8985
    %10876 = vmatpush1.bf16.msra.mxu0 %v8984
    %10877 = vmatprep.subr.bf16.mxu0 %v8981
    %10878 = vmatpush1.bf16.msra.mxu0 %v8980
    %10879 = vmatprep.subr.bf16.mxu0 %v8977
    %10880 = vmatpush1.bf16.msra.mxu0 %v8976
    %10881 = vmatprep.subr.bf16.mxu0 %v8973
    %10882 = vmatpush1.bf16.msra.mxu0 %v8972
    %10883 = vmatprep.subr.bf16.mxu0 %v9033
    %10884 = vmatpush2.bf16.msra.mxu0 %v9032
    %10885 = vmatprep.subr.bf16.mxu0 %v9029
    %10886 = vmatpush2.bf16.msra.mxu0 %v9028
    %10887 = vmatprep.subr.bf16.mxu0 %v9025
    %10888 = vmatpush2.bf16.msra.mxu0 %v9024
    %10889 = vmatprep.subr.bf16.mxu0 %v9021
    %10890 = vmatpush2.bf16.msra.mxu0 %v9020
    %10891 = vmatprep.subr.bf16.mxu0 %v9017
    %10892 = vmatpush2.bf16.msra.mxu0 %v9016
    %10893 = vmatprep.subr.bf16.mxu0 %v9013
    %10894 = vmatpush2.bf16.msra.mxu0 %v9012
    %10895 = vmatprep.subr.bf16.mxu0 %v9009
    %10896 = vmatpush2.bf16.msra.mxu0 %v9008
    %10897 = vmatprep.subr.bf16.mxu0 %v9005
    %10898 = vmatpush2.bf16.msra.mxu0 %v9004
    %10899 = vmatprep.mubr.bf16.mxu0 %v5208
    %10900 = vmatmul.mubr.bf16.gmra.mxu0 %v5204
    %v10901 = vpop.f32.mrf.mxu0
    %v10902 = vadd.f32 %v10861, %v10901
    %v10903 = vpop.f32.mrf.mxu0
    %v10904 = vadd.f32 %v10863, %v10903
    %v10905 = vpop.f32.mrf.mxu0
    %v10906 = vpop.f32.mrf.mxu0
    %10907 = vdwg.mxu0
    %10908 = vmatprep.subr.bf16.mxu0 %v9065
    %10909 = vmatpush1.bf16.msra.mxu0 %v9064
    %10910 = vmatprep.subr.bf16.mxu0 %v9061
    %10911 = vmatpush1.bf16.msra.mxu0 %v9060
    %10912 = vmatprep.subr.bf16.mxu0 %v9057
    %10913 = vmatpush1.bf16.msra.mxu0 %v9056
    %10914 = vmatprep.subr.bf16.mxu0 %v9053
    %10915 = vmatpush1.bf16.msra.mxu0 %v9052
    %10916 = vmatprep.subr.bf16.mxu0 %v9049
    %10917 = vmatpush1.bf16.msra.mxu0 %v9048
    %10918 = vmatprep.subr.bf16.mxu0 %v9045
    %10919 = vmatpush1.bf16.msra.mxu0 %v9044
    %10920 = vmatprep.subr.bf16.mxu0 %v9041
    %10921 = vmatpush1.bf16.msra.mxu0 %v9040
    %10922 = vmatprep.subr.bf16.mxu0 %v9037
    %10923 = vmatpush1.bf16.msra.mxu0 %v9036
    %10924 = vmatprep.subr.bf16.mxu0 %v9097
    %10925 = vmatpush2.bf16.msra.mxu0 %v9096
    %10926 = vmatprep.subr.bf16.mxu0 %v9093
    %10927 = vmatpush2.bf16.msra.mxu0 %v9092
    %10928 = vmatprep.subr.bf16.mxu0 %v9089
    %10929 = vmatpush2.bf16.msra.mxu0 %v9088
    %10930 = vmatprep.subr.bf16.mxu0 %v9085
    %10931 = vmatpush2.bf16.msra.mxu0 %v9084
    %10932 = vmatprep.subr.bf16.mxu0 %v9081
    %10933 = vmatpush2.bf16.msra.mxu0 %v9080
    %10934 = vmatprep.subr.bf16.mxu0 %v9077
    %10935 = vmatpush2.bf16.msra.mxu0 %v9076
    %10936 = vmatprep.subr.bf16.mxu0 %v9073
    %10937 = vmatpush2.bf16.msra.mxu0 %v9072
    %10938 = vmatprep.subr.bf16.mxu0 %v9069
    %10939 = vmatpush2.bf16.msra.mxu0 %v9068
    %10940 = vmatprep.mubr.bf16.mxu0 %v5216
    %10941 = vmatmul.mubr.bf16.gmra.mxu0 %v5212
    %v10942 = vpop.f32.mrf.mxu0
    %v10943 = vadd.f32 %v10902, %v10942
    %v10944 = vpop.f32.mrf.mxu0
    %v10945 = vadd.f32 %v10904, %v10944
    %v10946 = vpop.f32.mrf.mxu0
    %v10947 = vpop.f32.mrf.mxu0
    %10948 = vdwg.mxu0
    %10949 = vmatprep.subr.bf16.mxu0 %v9129
    %10950 = vmatpush1.bf16.msra.mxu0 %v9128
    %10951 = vmatprep.subr.bf16.mxu0 %v9125
    %10952 = vmatpush1.bf16.msra.mxu0 %v9124
    %10953 = vmatprep.subr.bf16.mxu0 %v9121
    %10954 = vmatpush1.bf16.msra.mxu0 %v9120
    %10955 = vmatprep.subr.bf16.mxu0 %v9117
    %10956 = vmatpush1.bf16.msra.mxu0 %v9116
    %10957 = vmatprep.subr.bf16.mxu0 %v9113
    %10958 = vmatpush1.bf16.msra.mxu0 %v9112
    %10959 = vmatprep.subr.bf16.mxu0 %v9109
    %10960 = vmatpush1.bf16.msra.mxu0 %v9108
    %10961 = vmatprep.subr.bf16.mxu0 %v9105
    %10962 = vmatpush1.bf16.msra.mxu0 %v9104
    %10963 = vmatprep.subr.bf16.mxu0 %v9101
    %10964 = vmatpush1.bf16.msra.mxu0 %v9100
    %10965 = vmatprep.subr.bf16.mxu0 %v9161
    %10966 = vmatpush2.bf16.msra.mxu0 %v9160
    %10967 = vmatprep.subr.bf16.mxu0 %v9157
    %10968 = vmatpush2.bf16.msra.mxu0 %v9156
    %10969 = vmatprep.subr.bf16.mxu0 %v9153
    %10970 = vmatpush2.bf16.msra.mxu0 %v9152
    %10971 = vmatprep.subr.bf16.mxu0 %v9149
    %10972 = vmatpush2.bf16.msra.mxu0 %v9148
    %10973 = vmatprep.subr.bf16.mxu0 %v9145
    %10974 = vmatpush2.bf16.msra.mxu0 %v9144
    %10975 = vmatprep.subr.bf16.mxu0 %v9141
    %10976 = vmatpush2.bf16.msra.mxu0 %v9140
    %10977 = vmatprep.subr.bf16.mxu0 %v9137
    %10978 = vmatpush2.bf16.msra.mxu0 %v9136
    %10979 = vmatprep.subr.bf16.mxu0 %v9133
    %10980 = vmatpush2.bf16.msra.mxu0 %v9132
    %10981 = vmatprep.mubr.bf16.mxu0 %v5224
    %10982 = vmatmul.mubr.bf16.gmra.mxu0 %v5220
    %v10983 = vpop.f32.mrf.mxu0
    %v10984 = vadd.f32 %v10943, %v10983
    %v10985 = vpop.f32.mrf.mxu0
    %v10986 = vadd.f32 %v10945, %v10985
    %v10987 = vpop.f32.mrf.mxu0
    %v10988 = vpop.f32.mrf.mxu0
    %10989 = vdwg.mxu0
    %10990 = vmatprep.subr.bf16.mxu0 0
    %10991 = vmatpush1.bf16.msra.mxu0 0
    %10992 = vmatprep.subr.bf16.mxu0 0
    %10993 = vmatpush1.bf16.msra.mxu0 0
    %10994 = vmatprep.subr.bf16.mxu0 0
    %10995 = vmatpush1.bf16.msra.mxu0 0
    %10996 = vmatprep.subr.bf16.mxu0 0
    %10997 = vmatpush1.bf16.msra.mxu0 0
    %10998 = vmatprep.subr.bf16.mxu0 %v9177
    %10999 = vmatpush1.bf16.msra.mxu0 %v9176
    %11000 = vmatprep.subr.bf16.mxu0 %v9173
    %11001 = vmatpush1.bf16.msra.mxu0 %v9172
    %11002 = vmatprep.subr.bf16.mxu0 %v9169
    %11003 = vmatpush1.bf16.msra.mxu0 %v9168
    %11004 = vmatprep.subr.bf16.mxu0 %v9165
    %11005 = vmatpush1.bf16.msra.mxu0 %v9164
    %11006 = vmatprep.subr.bf16.mxu0 0
    %11007 = vmatpush2.bf16.msra.mxu0 0
    %11008 = vmatprep.subr.bf16.mxu0 0
    %11009 = vmatpush2.bf16.msra.mxu0 0
    %11010 = vmatprep.subr.bf16.mxu0 0
    %11011 = vmatpush2.bf16.msra.mxu0 0
    %11012 = vmatprep.subr.bf16.mxu0 0
    %11013 = vmatpush2.bf16.msra.mxu0 0
    %11014 = vmatprep.subr.bf16.mxu0 0
    %11015 = vmatpush2.bf16.msra.mxu0 0
    %11016 = vmatprep.subr.bf16.mxu0 0
    %11017 = vmatpush2.bf16.msra.mxu0 0
    %11018 = vmatprep.subr.bf16.mxu0 0
    %11019 = vmatpush2.bf16.msra.mxu0 0
    %11020 = vmatprep.subr.bf16.mxu0 0
    %11021 = vmatpush2.bf16.msra.mxu0 0
    %11022 = vmatprep.mubr.bf16.mxu0 0
    %11023 = vmatmul.mubr.bf16.gmra.mxu0 %v9963
    %v11024 = vpop.f32.mrf.mxu0
    %v11025 = vadd.f32 %v10984, %v11024
    %v11026 = vpop.f32.mrf.mxu0
    %v11027 = vadd.f32 %v10986, %v11026
    %v11028 = vpop.f32.mrf.mxu0
    %v11029 = vpop.f32.mrf.mxu0
    %11030 = vdwg.mxu0
    %vm11031 = vcmask 1041408
    %v11032 = vsel %vm11031, %v10492, 0.0
    %v11033 = vrot.slane %v11032, 4
    %v11034 = vadd.f32 %v11032, %v11033
    %v11035 = vrot.slane %v11034, 2
    %v11036 = vadd.f32 %v11034, %v11035
    %v11037 = vrot.slane %v11036, 1
    %v11038 = vadd.f32 %v11036, %v11037
    %v11039 = vsel %vm11031, %v10494, 0.0
    %v11040 = vrot.slane %v11039, 4
    %v11041 = vadd.f32 %v11039, %v11040
    %v11042 = vrot.slane %v11041, 2
    %v11043 = vadd.f32 %v11041, %v11042
    %v11044 = vrot.slane %v11043, 1
    %v11045 = vadd.f32 %v11043, %v11044
    %v11046 = vsel %vm11031, %v11025, 0.0
    %v11047 = vrot.slane %v11046, 4
    %v11048 = vadd.f32 %v11046, %v11047
    %v11049 = vrot.slane %v11048, 2
    %v11050 = vadd.f32 %v11048, %v11049
    %v11051 = vrot.slane %v11050, 1
    %v11052 = vadd.f32 %v11050, %v11051
    %v11053 = vsel %vm11031, %v11027, 0.0
    %v11054 = vrot.slane %v11053, 4
    %v11055 = vadd.f32 %v11053, %v11054
    %v11056 = vrot.slane %v11055, 2
    %v11057 = vadd.f32 %v11055, %v11056
    %v11058 = vrot.slane %v11057, 1
    %v11059 = vadd.f32 %v11057, %v11058
    %v11060 = vrcp.pop 2.0
    %v11061 = vmul.f32 %v11038, %v11060
    %v11062 = vmul.f32 %v11045, %v11060
    %v11063 = vmul.f32 %v11052, %v11060
    %v11064 = vmul.f32 %v11059, %v11060
    %v11065 = vmul.f32 %v10492, %v10492
    %v11066 = vmul.f32 %v10494, %v10494
    %v11067 = vmul.f32 %v11025, %v11025
    %v11068 = vmul.f32 %v11027, %v11027
    %v11069 = vsel %vm11031, %v11065, 0.0
    %v11070 = vrot.slane %v11069, 4
    %v11071 = vadd.f32 %v11069, %v11070
    %v11072 = vrot.slane %v11071, 2
    %v11073 = vadd.f32 %v11071, %v11072
    %v11074 = vrot.slane %v11073, 1
    %v11075 = vadd.f32 %v11073, %v11074
    %v11076 = vsel %vm11031, %v11066, 0.0
    %v11077 = vrot.slane %v11076, 4
    %v11078 = vadd.f32 %v11076, %v11077
    %v11079 = vrot.slane %v11078, 2
    %v11080 = vadd.f32 %v11078, %v11079
    %v11081 = vrot.slane %v11080, 1
    %v11082 = vadd.f32 %v11080, %v11081
    %v11083 = vsel %vm11031, %v11067, 0.0
    %v11084 = vrot.slane %v11083, 4
    %v11085 = vadd.f32 %v11083, %v11084
    %v11086 = vrot.slane %v11085, 2
    %v11087 = vadd.f32 %v11085, %v11086
    %v11088 = vrot.slane %v11087, 1
    %v11089 = vadd.f32 %v11087, %v11088
    %v11090 = vsel %vm11031, %v11068, 0.0
    %v11091 = vrot.slane %v11090, 4
    %v11092 = vadd.f32 %v11090, %v11091
    %v11093 = vrot.slane %v11092, 2
    %v11094 = vadd.f32 %v11092, %v11093
    %v11095 = vrot.slane %v11094, 1
    %v11096 = vadd.f32 %v11094, %v11095
    %v11097 = vmul.f32 %v11075, %v11060
    %v11098 = vmul.f32 %v11082, %v11060
    %v11099 = vmul.f32 %v11089, %v11060
    %v11100 = vmul.f32 %v11096, %v11060
    %v11101 = vmul.f32 %v11061, %v11061
    %v11102 = vmul.f32 %v11062, %v11062
    %v11103 = vmul.f32 %v11063, %v11063
    %v11104 = vmul.f32 %v11064, %v11064
    %v11105 = vsub.f32 %v11097, %v11101
    %v11106 = vsub.f32 %v11098, %v11102
    %v11107 = vsub.f32 %v11099, %v11103
    %v11108 = vsub.f32 %v11100, %v11104
    %v11109 = vsub.f32 %v10492, %v11061
    %v11110 = vsub.f32 %v10494, %v11062
    %v11111 = vsub.f32 %v11025, %v11063
    %v11112 = vsub.f32 %v11027, %v11064
    %v11113 = vadd.f32 %v11105, 1e-05
    %v11114 = vadd.f32 %v11106, 1e-05
    %v11115 = vadd.f32 %v11107, 1e-05
    %v11116 = vadd.f32 %v11108, 1e-05
    %v11117 = vrsqrt.pop %v11113
    %v11118 = vrsqrt.pop %v11114
    %v11119 = vrsqrt.pop %v11115
    %v11120 = vrsqrt.pop %v11116
    %v11121 = vmul.f32 %v11109, %v11117
    %v11122 = vmul.f32 %v11110, %v11118
    %v11123 = vmul.f32 %v11111, %v11119
    %v11124 = vmul.f32 %v11112, %v11120
    %v11125 = vld [vmem:[%s9] sm:$0xf]
    %v11127 = vlaneseq
    %v11128 = vshrl.u32 %v11127, 7
    %v11129 = vsub.s32 0, %v11128
    %v11130 = vrot.slane %v11125, %v11129
    %v11131 = vlaneseq
    %v11132 = vshrl.u32 %v11131, 7
    %v11133 = vsub.s32 1, %v11132
    %v11134 = vrot.slane %v11125, %v11133
    %v11135 = vlaneseq
    %v11136 = vshrl.u32 %v11135, 7
    %v11137 = vsub.s32 2, %v11136
    %v11138 = vrot.slane %v11125, %v11137
    %v11139 = vlaneseq
    %v11140 = vshrl.u32 %v11139, 7
    %v11141 = vsub.s32 3, %v11140
    %v11142 = vrot.slane %v11125, %v11141
    %v11147 = vmul.f32 %v11121, %v11130
    %v11148 = vmul.f32 %v11122, %v11134
    %v11149 = vmul.f32 %v11123, %v11138
    %v11150 = vmul.f32 %v11124, %v11142
    %v11151 = vld [vmem:[%s10] sm:$0xf]
    %v11153 = vlaneseq
    %v11154 = vshrl.u32 %v11153, 7
    %v11155 = vsub.s32 0, %v11154
    %v11156 = vrot.slane %v11151, %v11155
    %v11157 = vlaneseq
    %v11158 = vshrl.u32 %v11157, 7
    %v11159 = vsub.s32 1, %v11158
    %v11160 = vrot.slane %v11151, %v11159
    %v11161 = vlaneseq
    %v11162 = vshrl.u32 %v11161, 7
    %v11163 = vsub.s32 2, %v11162
    %v11164 = vrot.slane %v11151, %v11163
    %v11165 = vlaneseq
    %v11166 = vshrl.u32 %v11165, 7
    %v11167 = vsub.s32 3, %v11166
    %v11168 = vrot.slane %v11151, %v11167
    %v11173 = vadd.f32 %v11147, %v11156
    %v11174 = vadd.f32 %v11148, %v11160
    %v11175 = vadd.f32 %v11149, %v11164
    %v11176 = vadd.f32 %v11150, %v11168
    %v11177 = vmax.f32 %v11173, 0.0
    %v11178 = vmax.f32 %v11174, 0.0
    %v11179 = vmax.f32 %v11175, 0.0
    %v11180 = vmax.f32 %v11176, 0.0
    %v11181 = vpack.c.bf16 %v11177, %v11177
    %v11182 = vpack.c.bf16 %v11178, %v11178
    %v11183 = vpack.c.bf16 %v11179, %v11179
    %v11184 = vpack.c.bf16 %v11180, %v11180
    %v11185 = vld [vmem:[%s11] sm:$0xf]
    %v11186 = vld [vmem:[%s11 + $0x4] sm:$0xf]
    %v11187 = vld [vmem:[%s11 + $0x8] sm:$0xf]
    %v11188 = vld [vmem:[%s11 + $0xc] sm:$0xf]
    %v11189 = vld [vmem:[%s11 + $0x10] sm:$0xf]
    %v11190 = vld [vmem:[%s11 + $0x14] sm:$0xf]
    %v11191 = vld [vmem:[%s11 + $0x18] sm:$0xf]
    %v11192 = vld [vmem:[%s11 + $0x1c] sm:$0xf]
    %v11193 = vld [vmem:[%s11 + $0x20] sm:$0xf]
    %v11194 = vld [vmem:[%s11 + $0x24] sm:$0xf]
    %v11195 = vld [vmem:[%s11 + $0x28] sm:$0xf]
    %v11196 = vld [vmem:[%s11 + $0x2c] sm:$0xf]
    %v11197 = vld [vmem:[%s11 + $0x30] sm:$0xf]
    %v11198 = vld [vmem:[%s11 + $0x34] sm:$0xf]
    %v11199 = vld [vmem:[%s11 + $0x38] sm:$0xf]
    %v11200 = vld [vmem:[%s11 + $0x3c] sm:$0xf]
    %v11201 = vld [vmem:[%s11 + $0x40] sm:$0xf]
    %v11202 = vld [vmem:[%s11 + $0x44] sm:$0xf]
    %v11203 = vld [vmem:[%s11 + $0x48] sm:$0xf]
    %v11204 = vld [vmem:[%s11 + $0x4c] sm:$0xf]
    %v11205 = vld [vmem:[%s11 + $0x50] sm:$0xf]
    %v11206 = vld [vmem:[%s11 + $0x54] sm:$0xf]
    %v11207 = vld [vmem:[%s11 + $0x58] sm:$0xf]
    %v11208 = vld [vmem:[%s11 + $0x5c] sm:$0xf]
    %v11209 = vld [vmem:[%s11 + $0x60] sm:$0xf]
    %v11210 = vld [vmem:[%s11 + $0x64] sm:$0xf]
    %v11211 = vld [vmem:[%s11 + $0x68] sm:$0xf]
    %v11212 = vld [vmem:[%s11 + $0x6c] sm:$0xf]
    %v11213 = vld [vmem:[%s11 + $0x70] sm:$0xf]
    %v11214 = vld [vmem:[%s11 + $0x74] sm:$0xf]
    %v11215 = vld [vmem:[%s11 + $0x78] sm:$0xf]
    %v11216 = vld [vmem:[%s11 + $0x7c] sm:$0xf]
    %v11217 = vld [vmem:[%s11 + $0x80] sm:$0xf]
    %v11218 = vld [vmem:[%s11 + $0x84] sm:$0xf]
    %v11219 = vld [vmem:[%s11 + $0x88] sm:$0xf]
    %v11220 = vld [vmem:[%s11 + $0x8c] sm:$0xf]
    %v11221 = vld [vmem:[%s11 + $0x90] sm:$0xf]
    %v11222 = vld [vmem:[%s11 + $0x94] sm:$0xf]
    %v11223 = vld [vmem:[%s11 + $0x98] sm:$0xf]
    %v11224 = vld [vmem:[%s11 + $0x9c] sm:$0xf]
    %v11225 = vld [vmem:[%s11 + $0xa0] sm:$0xf]
    %v11226 = vld [vmem:[%s11 + $0xa4] sm:$0xf]
    %v11227 = vld [vmem:[%s11 + $0xa8] sm:$0xf]
    %v11228 = vld [vmem:[%s11 + $0xac] sm:$0xf]
    %v11229 = vld [vmem:[%s11 + $0xb0] sm:$0xf]
    %v11230 = vld [vmem:[%s11 + $0xb4] sm:$0xf]
    %v11231 = vld [vmem:[%s11 + $0xb8] sm:$0xf]
    %v11232 = vld [vmem:[%s11 + $0xbc] sm:$0xf]
    %v11233 = vld [vmem:[%s11 + $0xc0] sm:$0xf]
    %v11234 = vld [vmem:[%s11 + $0xc4] sm:$0xf]
    %v11235 = vld [vmem:[%s11 + $0xc8] sm:$0xf]
    %v11236 = vld [vmem:[%s11 + $0xcc] sm:$0xf]
    %v11237 = vld [vmem:[%s11 + $0xd0] sm:$0xf]
    %v11238 = vld [vmem:[%s11 + $0xd4] sm:$0xf]
    %v11239 = vld [vmem:[%s11 + $0xd8] sm:$0xf]
    %v11240 = vld [vmem:[%s11 + $0xdc] sm:$0xf]
    %v11241 = vld [vmem:[%s11 + $0xe0] sm:$0xf]
    %v11242 = vld [vmem:[%s11 + $0xe4] sm:$0xf]
    %v11243 = vld [vmem:[%s11 + $0xe8] sm:$0xf]
    %v11244 = vld [vmem:[%s11 + $0xec] sm:$0xf]
    %v11245 = vld [vmem:[%s11 + $0xf0] sm:$0xf]
    %v11246 = vld [vmem:[%s11 + $0xf4] sm:$0xf]
    %v11247 = vld [vmem:[%s11 + $0xf8] sm:$0xf]
    %v11248 = vld [vmem:[%s11 + $0xfc] sm:$0xf]
    %v11249 = vld [vmem:[%s12] sm:$0x1]
    %v11251 = vlaneseq
    %v11252 = vshrl.u32 %v11251, 7
    %v11253 = vsub.s32 0, %v11252
    %v11254 = vrot.slane %v11249, %v11253
    %v11320 = vunpack.c.l.b16 %v11185
    %v11321 = vunpack.c.l.b16 %v11186
    %v11322 = vunpack.c.l.b16 %v11187
    %v11323 = vunpack.c.l.b16 %v11188
    %v11324 = vunpack.c.l.b16 %v11189
    %v11325 = vunpack.c.l.b16 %v11190
    %v11326 = vunpack.c.l.b16 %v11191
    %v11327 = vunpack.c.l.b16 %v11192
    %v11328 = vunpack.c.l.b16 %v11193
    %v11329 = vunpack.c.l.b16 %v11194
    %v11330 = vunpack.c.l.b16 %v11195
    %v11331 = vunpack.c.l.b16 %v11196
    %v11332 = vunpack.c.l.b16 %v11197
    %v11333 = vunpack.c.l.b16 %v11198
    %v11334 = vunpack.c.l.b16 %v11199
    %v11335 = vunpack.c.l.b16 %v11200
    %v11336 = vunpack.c.l.b16 %v11201
    %v11337 = vunpack.c.l.b16 %v11202
    %v11338 = vunpack.c.l.b16 %v11203
    %v11339 = vunpack.c.l.b16 %v11204
    %v11340 = vunpack.c.l.b16 %v11205
    %v11341 = vunpack.c.l.b16 %v11206
    %v11342 = vunpack.c.l.b16 %v11207
    %v11343 = vunpack.c.l.b16 %v11208
    %v11344 = vunpack.c.l.b16 %v11209
    %v11345 = vunpack.c.l.b16 %v11210
    %v11346 = vunpack.c.l.b16 %v11211
    %v11347 = vunpack.c.l.b16 %v11212
    %v11348 = vunpack.c.l.b16 %v11213
    %v11349 = vunpack.c.l.b16 %v11214
    %v11350 = vunpack.c.l.b16 %v11215
    %v11351 = vunpack.c.l.b16 %v11216
    %v11352 = vunpack.c.l.b16 %v11217
    %v11353 = vunpack.c.l.b16 %v11218
    %v11354 = vunpack.c.l.b16 %v11219
    %v11355 = vunpack.c.l.b16 %v11220
    %v11356 = vunpack.c.l.b16 %v11221
    %v11357 = vunpack.c.l.b16 %v11222
    %v11358 = vunpack.c.l.b16 %v11223
    %v11359 = vunpack.c.l.b16 %v11224
    %v11360 = vunpack.c.l.b16 %v11225
    %v11361 = vunpack.c.l.b16 %v11226
    %v11362 = vunpack.c.l.b16 %v11227
    %v11363 = vunpack.c.l.b16 %v11228
    %v11364 = vunpack.c.l.b16 %v11229
    %v11365 = vunpack.c.l.b16 %v11230
    %v11366 = vunpack.c.l.b16 %v11231
    %v11367 = vunpack.c.l.b16 %v11232
    %v11368 = vunpack.c.l.b16 %v11233
    %v11369 = vunpack.c.l.b16 %v11234
    %v11370 = vunpack.c.l.b16 %v11235
    %v11371 = vunpack.c.l.b16 %v11236
    %v11372 = vunpack.c.l.b16 %v11237
    %v11373 = vunpack.c.l.b16 %v11238
    %v11374 = vunpack.c.l.b16 %v11239
    %v11375 = vunpack.c.l.b16 %v11240
    %v11376 = vunpack.c.l.b16 %v11241
    %v11377 = vunpack.c.l.b16 %v11242
    %v11378 = vunpack.c.l.b16 %v11243
    %v11379 = vunpack.c.l.b16 %v11244
    %v11380 = vunpack.c.l.b16 %v11245
    %v11381 = vunpack.c.l.b16 %v11246
    %v11382 = vunpack.c.l.b16 %v11247
    %v11383 = vunpack.c.l.b16 %v11248
    %v11384 = vpack.c.b16 %v11321, %v11320
    %v11385 = vpack.c.b16 %v11323, %v11322
    %v11386 = vpack.c.b16 %v11325, %v11324
    %v11387 = vpack.c.b16 %v11327, %v11326
    %v11388 = vpack.c.b16 %v11329, %v11328
    %v11389 = vpack.c.b16 %v11331, %v11330
    %v11390 = vpack.c.b16 %v11333, %v11332
    %v11391 = vpack.c.b16 %v11335, %v11334
    %v11392 = vpack.c.b16 %v11337, %v11336
    %v11393 = vpack.c.b16 %v11339, %v11338
    %v11394 = vpack.c.b16 %v11341, %v11340
    %v11395 = vpack.c.b16 %v11343, %v11342
    %v11396 = vpack.c.b16 %v11345, %v11344
    %v11397 = vpack.c.b16 %v11347, %v11346
    %v11398 = vpack.c.b16 %v11349, %v11348
    %v11399 = vpack.c.b16 %v11351, %v11350
    %v11400 = vpack.c.b16 %v11353, %v11352
    %v11401 = vpack.c.b16 %v11355, %v11354
    %v11402 = vpack.c.b16 %v11357, %v11356
    %v11403 = vpack.c.b16 %v11359, %v11358
    %v11404 = vpack.c.b16 %v11361, %v11360
    %v11405 = vpack.c.b16 %v11363, %v11362
    %v11406 = vpack.c.b16 %v11365, %v11364
    %v11407 = vpack.c.b16 %v11367, %v11366
    %v11408 = vpack.c.b16 %v11369, %v11368
    %v11409 = vpack.c.b16 %v11371, %v11370
    %v11410 = vpack.c.b16 %v11373, %v11372
    %v11411 = vpack.c.b16 %v11375, %v11374
    %v11412 = vpack.c.b16 %v11377, %v11376
    %v11413 = vpack.c.b16 %v11379, %v11378
    %v11414 = vpack.c.b16 %v11381, %v11380
    %v11415 = vpack.c.b16 %v11383, %v11382
    %11448 = vmatprep.subr.bf16.mxu0 0
    %11449 = vmatpush1.bf16.msra.mxu0 %v11391
    %11450 = vmatprep.subr.bf16.mxu0 0
    %11451 = vmatpush1.bf16.msra.mxu0 %v11390
    %11452 = vmatprep.subr.bf16.mxu0 0
    %11453 = vmatpush1.bf16.msra.mxu0 %v11389
    %11454 = vmatprep.subr.bf16.mxu0 0
    %11455 = vmatpush1.bf16.msra.mxu0 %v11388
    %11456 = vmatprep.subr.bf16.mxu0 0
    %11457 = vmatpush1.bf16.msra.mxu0 %v11387
    %11458 = vmatprep.subr.bf16.mxu0 0
    %11459 = vmatpush1.bf16.msra.mxu0 %v11386
    %11460 = vmatprep.subr.bf16.mxu0 0
    %11461 = vmatpush1.bf16.msra.mxu0 %v11385
    %11462 = vmatprep.subr.bf16.mxu0 0
    %11463 = vmatpush1.bf16.msra.mxu0 %v11384
    %11464 = vmatprep.subr.bf16.mxu0 0
    %11465 = vmatpush2.bf16.msra.mxu0 %v11399
    %11466 = vmatprep.subr.bf16.mxu0 0
    %11467 = vmatpush2.bf16.msra.mxu0 %v11398
    %11468 = vmatprep.subr.bf16.mxu0 0
    %11469 = vmatpush2.bf16.msra.mxu0 %v11397
    %11470 = vmatprep.subr.bf16.mxu0 0
    %11471 = vmatpush2.bf16.msra.mxu0 %v11396
    %11472 = vmatprep.subr.bf16.mxu0 0
    %11473 = vmatpush2.bf16.msra.mxu0 %v11395
    %11474 = vmatprep.subr.bf16.mxu0 0
    %11475 = vmatpush2.bf16.msra.mxu0 %v11394
    %11476 = vmatprep.subr.bf16.mxu0 0
    %11477 = vmatpush2.bf16.msra.mxu0 %v11393
    %11478 = vmatprep.subr.bf16.mxu0 0
    %11479 = vmatpush2.bf16.msra.mxu0 %v11392
    %11480 = vmatprep.mubr.bf16.mxu0 %v11182
    %11481 = vmatmul.mubr.bf16.gmra.mxu0 %v11181
    %v11482 = vpop.f32.mrf.mxu0
    %v11483 = vadd.f32 %v11254, %v11482
    %v11484 = vpop.f32.mrf.mxu0
    %v11485 = vpop.f32.mrf.mxu0
    %v11486 = vpop.f32.mrf.mxu0
    %11487 = vdwg.mxu0
    %11488 = vmatprep.subr.bf16.mxu0 0
    %11489 = vmatpush1.bf16.msra.mxu0 %v11407
    %11490 = vmatprep.subr.bf16.mxu0 0
    %11491 = vmatpush1.bf16.msra.mxu0 %v11406
    %11492 = vmatprep.subr.bf16.mxu0 0
    %11493 = vmatpush1.bf16.msra.mxu0 %v11405
    %11494 = vmatprep.subr.bf16.mxu0 0
    %11495 = vmatpush1.bf16.msra.mxu0 %v11404
    %11496 = vmatprep.subr.bf16.mxu0 0
    %11497 = vmatpush1.bf16.msra.mxu0 %v11403
    %11498 = vmatprep.subr.bf16.mxu0 0
    %11499 = vmatpush1.bf16.msra.mxu0 %v11402
    %11500 = vmatprep.subr.bf16.mxu0 0
    %11501 = vmatpush1.bf16.msra.mxu0 %v11401
    %11502 = vmatprep.subr.bf16.mxu0 0
    %11503 = vmatpush1.bf16.msra.mxu0 %v11400
    %11504 = vmatprep.subr.bf16.mxu0 0
    %11505 = vmatpush2.bf16.msra.mxu0 %v11415
    %11506 = vmatprep.subr.bf16.mxu0 0
    %11507 = vmatpush2.bf16.msra.mxu0 %v11414
    %11508 = vmatprep.subr.bf16.mxu0 0
    %11509 = vmatpush2.bf16.msra.mxu0 %v11413
    %11510 = vmatprep.subr.bf16.mxu0 0
    %11511 = vmatpush2.bf16.msra.mxu0 %v11412
    %11512 = vmatprep.subr.bf16.mxu0 0
    %11513 = vmatpush2.bf16.msra.mxu0 %v11411
    %11514 = vmatprep.subr.bf16.mxu0 0
    %11515 = vmatpush2.bf16.msra.mxu0 %v11410
    %11516 = vmatprep.subr.bf16.mxu0 0
    %11517 = vmatpush2.bf16.msra.mxu0 %v11409
    %11518 = vmatprep.subr.bf16.mxu0 0
    %11519 = vmatpush2.bf16.msra.mxu0 %v11408
    %11520 = vmatprep.mubr.bf16.mxu0 %v11184
    %11521 = vmatmul.mubr.bf16.gmra.mxu0 %v11183
    %v11522 = vpop.f32.mrf.mxu0
    %v11523 = vadd.f32 %v11483, %v11522
    %v11524 = vpop.f32.mrf.mxu0
    %v11525 = vpop.f32.mrf.mxu0
    %v11526 = vpop.f32.mrf.mxu0
    %11527 = vdwg.mxu0
    %11528 = vst [vmem:[#allocation6] sm:$0x3] %v11523
    // Predicated region
    $region84: #{encoder_z_forward.1} parent=1 // pred_check
      _
    $region85: #{encoder_z_forward.1} parent=1 // pred_check_branch
      %11530 = sbr.rel (0) target = $region87
    $region86: #{encoder_z_forward.1} parent=1 // pred_region
      %s11532 = ssub.s32 32, 32
      %11533 = vsyncadd [#allocation7], %s11532
      %s11535 = sshll.u32 [#allocation6], 4
      %s11536 = int_to_ptr.vmem [resolvable:$true] %s11535
      %11538 = dma.vmem_to_hbm [thread:$0]  %s11536, 32, %s13, [#allocation7]
    $region87: #{encoder_z_forward.1} parent=1 // pred_fallthru
      _
    // Predicated region
    $region88: #{encoder_z_forward.1} parent=1 // pred_check
      _
    $region89: #{encoder_z_forward.1} parent=1 // pred_check_branch
      %11540 = sbr.rel (0) target = $region91
    $region90: #{encoder_z_forward.1} parent=1 // pred_region
      %11541 = dma.done [#allocation7], 32
    $region91: #{encoder_z_forward.1} parent=1 // pred_fallthru
      _
    %11542 = vsyncpa [#allocation7], 1
  %11543 = vsyncmov [#allocation5]
  %s11544 = vpop.sfrf %11543
  %p11545 = scmp.eq.s32.totalorder %s11544, 0
  %p11546 = pneg %p11545
  %11548 = shalt.err (%p11546)

</llo_original>
